<compile_context>
chip_gen: v6e
topology: v6e:2x2x1
jax: 0.10.0
libtpu: 0.0.40
codegen_flags: <defaults>
</compile_context>

<pallas_src>
import math

import jax
import jax.numpy as jnp
from jax.experimental import pallas as pl
from jax.experimental.pallas import tpu as pltpu


# ----------------------------- Pallas kernel ---------------------------------
def _build_kernel(num_layers, seq_len_out):
    """Kernel closed over static (num_layers, decoder sequence length)."""
    L, S = num_layers, seq_len_out

    def kernel(*refs):
        x_ref = refs[0]            # (1, T, D) block: one batch element
        out_ref = refs[-1]         # (1, S, D) block
        w = refs[1:-1]             # weight/bias Refs (read at point of use)

        _, T, D = x_ref.shape

        # ---- unpack refs (weights stay as Refs; biases loaded once) --------
        idx = 0
        enc_wih, enc_whh, enc_b = [], [], []
        for _ in range(L):
            enc_wih.append(w[idx])                      # Ref (in_l, 4H)
            enc_whh.append(w[idx + 1])                  # Ref (H, 4H)
            enc_b.append(w[idx + 2][...])               # (1, 4H) f32
            idx += 3
        dec_wih, dec_whh, dec_b = [], [], []
        for _ in range(L):
            dec_wih.append(w[idx])                      # Ref (D|H, 4H)
            dec_whh.append(w[idx + 1])                  # Ref (H, 4H)
            dec_b.append(w[idx + 2][...])               # (1, 4H) f32
            idx += 3
        fc_w_ref = w[idx]                               # Ref (H, D)
        fc_b = w[idx + 1][...]                          # (1, D) f32

        H = enc_whh[0].shape[0]

        # ---- hoisted encoder layer-0 input projection (bias folded in) -----
        # x_ref[0] -> (T, D); one matmul, time-major result, per-step reads are
        # contiguous static sublane slices.
        xproj = (jnp.dot(x_ref[0], enc_wih[0][...],
                         preferred_element_type=jnp.float32)
                 + enc_b[0])                            # (T, 4H)

        def cell(gates, c_prev):
            # gates: (1, 4H) pre-activation. Activate the full vreg on the EUP,
            # slice only the activated values. PyTorch gate order i, f, g, o.
            sig = jax.nn.sigmoid(gates)
            th = jnp.tanh(gates)
            i = sig[:, 0 * H:1 * H]
            f = sig[:, 1 * H:2 * H]
            g = th[:, 2 * H:3 * H]
            o = sig[:, 3 * H:4 * H]
            c = f * c_prev + i * g
            h = o * jnp.tanh(c)
            return h, c

        h = [jnp.zeros((1, H), jnp.float32) for _ in range(L)]
        c = [jnp.zeros((1, H), jnp.float32) for _ in range(L)]

        # --------------------------- encoder (unrolled) ---------------------
        for t in range(T):
            gates = (xproj[t:t + 1, :]
                     + jnp.dot(h[0], enc_whh[0][...],
                               preferred_element_type=jnp.float32))
            h[0], c[0] = cell(gates, c[0])
            for l in range(1, L):
                gates = (jnp.dot(h[l - 1], enc_wih[l][...],
                                 preferred_element_type=jnp.float32)
                         + jnp.dot(h[l], enc_whh[l][...],
                                   preferred_element_type=jnp.float32)
                         + enc_b[l])
                h[l], c[l] = cell(gates, c[l])

        # --------------------------- decoder (unrolled) ---------------------
        # torch.zeros(B, 1, D) initial input; autoregressive feedback of y;
        # decoder LSTM initialized with the encoder's final (h, c).
        dec_in = jnp.zeros((1, D), jnp.float32)
        outs = []
        for _ in range(S):
            inp = dec_in
            for l in range(L):
                gates = (jnp.dot(inp, dec_wih[l][...],
                                 preferred_element_type=jnp.float32)
                         + jnp.dot(h[l], dec_whh[l][...],
                                   preferred_element_type=jnp.float32)
                         + dec_b[l])
                h[l], c[l] = cell(gates, c[l])
                inp = h[l]
            y = jnp.dot(h[L - 1], fc_w_ref[...],
                        preferred_element_type=jnp.float32) + fc_b
            y = jnp.where(y >= 0.0, y, 0.01 * y)        # LeakyReLU(0.01)
            outs.append(y)
            dec_in = y

        # Single store of the whole output block.
        out_ref[...] = jnp.concatenate(outs, axis=0)[None, :, :].astype(out_ref.dtype)

    return kernel


# ------------------------------ host wrapper ----------------------------------
def lstm_autoencoder(x, packed_params, sequence_length, num_layers):
    """x: (B, T, D) float32. Returns (B, sequence_length, D) float32."""
    B, T, D = x.shape
    S = sequence_length
    kernel = _build_kernel(num_layers, S)

    def _rep_spec(a):
        zeros = (0,) * a.ndim
        return pl.BlockSpec(a.shape, lambda i: zeros)   # replicated across grid

    in_specs = [pl.BlockSpec((1, T, D), lambda i: (i, 0, 0))]
    in_specs += [_rep_spec(a) for a in packed_params]
    out_spec = pl.BlockSpec((1, S, D), lambda i: (i, 0, 0))

    out = pl.pallas_call(
        kernel,
        out_shape=jax.ShapeDtypeStruct((B, S, D), jnp.float32),
        grid_spec=pltpu.PrefetchScalarGridSpec(
            num_scalar_prefetch=0,
            grid=(B,),                      # batch-parallel: one element per TC on v7x
            in_specs=in_specs,
            out_specs=out_spec,
        ),
        compiler_params=pltpu.CompilerParams(
            dimension_semantics=("parallel",)),
    )(x, *packed_params)
    return out


# --------------------------- deterministic init --------------------------------
def _xavier_uniform(key, shape):
    fan_out, fan_in = shape
    a = math.sqrt(6.0 / (fan_in + fan_out))
    return jax.random.uniform(key, shape, jnp.float32, -a, a)


def _orthogonal(key, shape):
    m = jax.random.normal(key, shape, jnp.float32)
    q, r = jnp.linalg.qr(m)
    return (q * jnp.sign(jnp.diag(r))[None, :]).astype(jnp.float32)


def init_torch_params(key, input_dim, hidden_dim, num_layers):
    """PyTorch-layout params matching SimpleLSTMAutoencoder._initialize_weights:
    weight_ih: xavier_uniform, weight_hh: orthogonal, all biases (incl. fc): 0,
    fc.weight: nn.Linear default uniform(-1/sqrt(H), 1/sqrt(H))."""
    D, H, L = input_dim, hidden_dim, num_layers

    def make_lstm(key):
        wih, whh, b = [], [], []
        for l in range(L):
            key, k1, k2 = jax.random.split(key, 3)
            in_l = D if l == 0 else H
            wih.append(_xavier_uniform(k1, (4 * H, in_l)))   # (4H, in_l)
            whh.append(_orthogonal(k2, (4 * H, H)))          # (4H, H)
            b.append(jnp.zeros((4 * H,), jnp.float32))       # bias_ih + bias_hh = 0
        return key, wih, whh, b

    key, e_wih, e_whh, e_b = make_lstm(key)
    key, d_wih, d_whh, d_b = make_lstm(key)

    key, kf = jax.random.split(key)
    bound = 1.0 / math.sqrt(H)
    fc_w = jax.random.uniform(kf, (D, H), jnp.float32, -bound, bound)
    fc_b = jnp.zeros((D,), jnp.float32)

    return dict(enc_wih=e_wih, enc_whh=e_whh, enc_b=e_b,
                dec_wih=d_wih, dec_whh=d_whh, dec_b=d_b,
                fc_w=fc_w, fc_b=fc_b)


def pack_params(p):
    """Pre-transpose PyTorch-layout params into the kernel layout (all f32).
    W_ih^T and W_hh^T are kept separate so the kernel uses two accumulating
    dots per layer-step instead of a lane-axis concat + one dot."""
    L = len(p["enc_wih"])
    flat = []
    for l in range(L):
        flat += [p["enc_wih"][l].T.astype(jnp.float32),       # (in_l, 4H)
                 p["enc_whh"][l].T.astype(jnp.float32),       # (H, 4H)
                 p["enc_b"][l][None, :].astype(jnp.float32)]  # (1, 4H)
    for l in range(L):
        flat += [p["dec_wih"][l].T.astype(jnp.float32),       # (D|H, 4H)
                 p["dec_whh"][l].T.astype(jnp.float32),       # (H, 4H)
                 p["dec_b"][l][None, :].astype(jnp.float32)]  # (1, 4H)
    flat += [p["fc_w"].T.astype(jnp.float32),                 # (H, D)
             p["fc_b"][None, :].astype(jnp.float32)]          # (1, D)
    return tuple(flat)


if __name__ == "__main__":
    # Small shapes consistent with the module: batch=2, seq=8, input_dim=16,
    # hidden_dim=32, num_layers=2, dropout=0 (no-op).
    B, T, D, H, L = 2, 8, 16, 32, 2
    sequence_length = 8

    key = jax.random.PRNGKey(0)
    key, kx, kp = jax.random.split(key, 3)
    x = jax.random.normal(kx, (B, T, D), jnp.float32)
    raw = init_torch_params(kp, D, H, L)
    packed = pack_params(raw)

    out = lstm_autoencoder(x, packed, sequence_length, L)
    out = jax.block_until_ready(out)
    assert out.shape == (B, sequence_length, D)
    assert out.dtype == jnp.float32
    assert bool(jnp.all(jnp.isfinite(out)))
    print("KERNEL_OK")
</pallas_src>

<mosaic_0001>
module attributes {stable_mosaic.version = 11 : i64} {
  func.func @kernel(%arg0: i32, %arg1: memref<1x8x16xf32, #tpu.memory_space<vmem>>, %arg2: memref<16x128xf32, #tpu.memory_space<vmem>>, %arg3: memref<32x128xf32, #tpu.memory_space<vmem>>, %arg4: memref<1x128xf32, #tpu.memory_space<vmem>>, %arg5: memref<32x128xf32, #tpu.memory_space<vmem>>, %arg6: memref<32x128xf32, #tpu.memory_space<vmem>>, %arg7: memref<1x128xf32, #tpu.memory_space<vmem>>, %arg8: memref<16x128xf32, #tpu.memory_space<vmem>>, %arg9: memref<32x128xf32, #tpu.memory_space<vmem>>, %arg10: memref<1x128xf32, #tpu.memory_space<vmem>>, %arg11: memref<32x128xf32, #tpu.memory_space<vmem>>, %arg12: memref<32x128xf32, #tpu.memory_space<vmem>>, %arg13: memref<1x128xf32, #tpu.memory_space<vmem>>, %arg14: memref<32x16xf32, #tpu.memory_space<vmem>>, %arg15: memref<1x16xf32, #tpu.memory_space<vmem>>, %arg16: memref<1x8x16xf32, #tpu.memory_space<vmem>>) attributes {dimension_semantics = [#tpu.dimension_semantics<parallel>], iteration_bounds = array<i64: 2>, scalar_prefetch = 0 : i64, scratch_operands = 0 : i64, tpu.core_type = #tpu.core_type<tc>, window_params = [{transform_indices = @transform_0, window_bounds = array<i64: 1, 8, 16>}, {pipeline_mode = #tpu.pipeline_mode<synchronous>, transform_indices = @transform_1, window_bounds = array<i64: 16, 128>}, {pipeline_mode = #tpu.pipeline_mode<synchronous>, transform_indices = @transform_2, window_bounds = array<i64: 32, 128>}, {pipeline_mode = #tpu.pipeline_mode<synchronous>, transform_indices = @transform_3, window_bounds = array<i64: 1, 128>}, {pipeline_mode = #tpu.pipeline_mode<synchronous>, transform_indices = @transform_4, window_bounds = array<i64: 32, 128>}, {pipeline_mode = #tpu.pipeline_mode<synchronous>, transform_indices = @transform_5, window_bounds = array<i64: 32, 128>}, {pipeline_mode = #tpu.pipeline_mode<synchronous>, transform_indices = @transform_6, window_bounds = array<i64: 1, 128>}, {pipeline_mode = #tpu.pipeline_mode<synchronous>, transform_indices = @transform_7, window_bounds = array<i64: 16, 128>}, {pipeline_mode = #tpu.pipeline_mode<synchronous>, transform_indices = @transform_8, window_bounds = array<i64: 32, 128>}, {pipeline_mode = #tpu.pipeline_mode<synchronous>, transform_indices = @transform_9, window_bounds = array<i64: 1, 128>}, {pipeline_mode = #tpu.pipeline_mode<synchronous>, transform_indices = @transform_10, window_bounds = array<i64: 32, 128>}, {pipeline_mode = #tpu.pipeline_mode<synchronous>, transform_indices = @transform_11, window_bounds = array<i64: 32, 128>}, {pipeline_mode = #tpu.pipeline_mode<synchronous>, transform_indices = @transform_12, window_bounds = array<i64: 1, 128>}, {pipeline_mode = #tpu.pipeline_mode<synchronous>, transform_indices = @transform_13, window_bounds = array<i64: 32, 16>}, {pipeline_mode = #tpu.pipeline_mode<synchronous>, transform_indices = @transform_14, window_bounds = array<i64: 1, 16>}, {transform_indices = @transform_15, window_bounds = array<i64: 1, 8, 16>}]} {
    %c0 = arith.constant 0 : index
    %c0_0 = arith.constant 0 : index
    %0 = vector.load %arg4[%c0, %c0_0] : memref<1x128xf32, #tpu.memory_space<vmem>>, vector<1x128xf32>
    %c0_1 = arith.constant 0 : index
    %c0_2 = arith.constant 0 : index
    %1 = vector.load %arg7[%c0_1, %c0_2] : memref<1x128xf32, #tpu.memory_space<vmem>>, vector<1x128xf32>
    %c0_3 = arith.constant 0 : index
    %c0_4 = arith.constant 0 : index
    %2 = vector.load %arg10[%c0_3, %c0_4] : memref<1x128xf32, #tpu.memory_space<vmem>>, vector<1x128xf32>
    %c0_5 = arith.constant 0 : index
    %c0_6 = arith.constant 0 : index
    %3 = vector.load %arg13[%c0_5, %c0_6] : memref<1x128xf32, #tpu.memory_space<vmem>>, vector<1x128xf32>
    %c0_7 = arith.constant 0 : index
    %c0_8 = arith.constant 0 : index
    %4 = vector.load %arg15[%c0_7, %c0_8] : memref<1x16xf32, #tpu.memory_space<vmem>>, vector<1x16xf32>
    %c0_9 = arith.constant 0 : index
    %c0_10 = arith.constant 0 : index
    %c0_11 = arith.constant 0 : index
    %5 = vector.load %arg1[%c0_9, %c0_10, %c0_11] : memref<1x8x16xf32, #tpu.memory_space<vmem>>, vector<1x8x16xf32>
    %6 = vector.shape_cast %5 : vector<1x8x16xf32> to vector<8x16xf32>
    %c0_12 = arith.constant 0 : index
    %c0_13 = arith.constant 0 : index
    %7 = vector.load %arg2[%c0_12, %c0_13] : memref<16x128xf32, #tpu.memory_space<vmem>>, vector<16x128xf32>
    %cst = arith.constant dense<0.000000e+00> : vector<8x128xf32>
    %8 = tpu.matmul %6, %7, %cst {dimension_numbers = #tpu.dot_dimension_numbers<[1], [0], [0], [1], [0, 0, 1, 1], [], []>} : vector<8x16xf32>, vector<16x128xf32>, vector<8x128xf32> -> vector<8x128xf32>
    %9 = vector.broadcast %0 : vector<1x128xf32> to vector<8x128xf32>
    %10 = arith.addf %8, %9 : vector<8x128xf32>
    %cst_14 = arith.constant 0.000000e+00 : f32
    %11 = vector.broadcast %cst_14 : f32 to vector<1x32xf32>
    %cst_15 = arith.constant 0.000000e+00 : f32
    %12 = vector.broadcast %cst_15 : f32 to vector<1x32xf32>
    %cst_16 = arith.constant 0.000000e+00 : f32
    %13 = vector.broadcast %cst_16 : f32 to vector<1x32xf32>
    %cst_17 = arith.constant 0.000000e+00 : f32
    %14 = vector.broadcast %cst_17 : f32 to vector<1x32xf32>
    %15 = vector.extract_strided_slice %10 {offsets = [0, 0], sizes = [1, 128], strides = [1, 1]} : vector<8x128xf32> to vector<1x128xf32>
    %c0_18 = arith.constant 0 : index
    %c0_19 = arith.constant 0 : index
    %16 = vector.load %arg3[%c0_18, %c0_19] : memref<32x128xf32, #tpu.memory_space<vmem>>, vector<32x128xf32>
    %cst_20 = arith.constant dense<0.000000e+00> : vector<1x128xf32>
    %17 = tpu.matmul %11, %16, %cst_20 {dimension_numbers = #tpu.dot_dimension_numbers<[1], [0], [0], [1], [0, 0, 1, 1], [], []>} : vector<1x32xf32>, vector<32x128xf32>, vector<1x128xf32> -> vector<1x128xf32>
    %18 = arith.addf %15, %17 : vector<1x128xf32>
    %19 = arith.negf %18 : vector<1x128xf32>
    %20 = math.exp %19 : vector<1x128xf32>
    %cst_21 = arith.constant 1.000000e+00 : f32
    %21 = vector.broadcast %cst_21 : f32 to vector<1x128xf32>
    %22 = arith.addf %21, %20 : vector<1x128xf32>
    %23 = arith.divf %21, %22 : vector<1x128xf32>
    %24 = math.tanh %18 : vector<1x128xf32>
    %25 = vector.extract_strided_slice %23 {offsets = [0, 0], sizes = [1, 32], strides = [1, 1]} : vector<1x128xf32> to vector<1x32xf32>
    %26 = vector.extract_strided_slice %23 {offsets = [0, 32], sizes = [1, 32], strides = [1, 1]} : vector<1x128xf32> to vector<1x32xf32>
    %27 = vector.extract_strided_slice %24 {offsets = [0, 64], sizes = [1, 32], strides = [1, 1]} : vector<1x128xf32> to vector<1x32xf32>
    %28 = vector.extract_strided_slice %23 {offsets = [0, 96], sizes = [1, 32], strides = [1, 1]} : vector<1x128xf32> to vector<1x32xf32>
    %29 = arith.mulf %26, %13 : vector<1x32xf32>
    %30 = arith.mulf %25, %27 : vector<1x32xf32>
    %31 = arith.addf %29, %30 : vector<1x32xf32>
    %32 = math.tanh %31 : vector<1x32xf32>
    %33 = arith.mulf %28, %32 : vector<1x32xf32>
    %c0_22 = arith.constant 0 : index
    %c0_23 = arith.constant 0 : index
    %34 = vector.load %arg5[%c0_22, %c0_23] : memref<32x128xf32, #tpu.memory_space<vmem>>, vector<32x128xf32>
    %cst_24 = arith.constant dense<0.000000e+00> : vector<1x128xf32>
    %35 = tpu.matmul %33, %34, %cst_24 {dimension_numbers = #tpu.dot_dimension_numbers<[1], [0], [0], [1], [0, 0, 1, 1], [], []>} : vector<1x32xf32>, vector<32x128xf32>, vector<1x128xf32> -> vector<1x128xf32>
    %c0_25 = arith.constant 0 : index
    %c0_26 = arith.constant 0 : index
    %36 = vector.load %arg6[%c0_25, %c0_26] : memref<32x128xf32, #tpu.memory_space<vmem>>, vector<32x128xf32>
    %cst_27 = arith.constant dense<0.000000e+00> : vector<1x128xf32>
    %37 = tpu.matmul %12, %36, %cst_27 {dimension_numbers = #tpu.dot_dimension_numbers<[1], [0], [0], [1], [0, 0, 1, 1], [], []>} : vector<1x32xf32>, vector<32x128xf32>, vector<1x128xf32> -> vector<1x128xf32>
    %38 = arith.addf %35, %37 : vector<1x128xf32>
    %39 = arith.addf %38, %1 : vector<1x128xf32>
    %40 = arith.negf %39 : vector<1x128xf32>
    %41 = math.exp %40 : vector<1x128xf32>
    %cst_28 = arith.constant 1.000000e+00 : f32
    %42 = vector.broadcast %cst_28 : f32 to vector<1x128xf32>
    %43 = arith.addf %42, %41 : vector<1x128xf32>
    %44 = arith.divf %42, %43 : vector<1x128xf32>
    %45 = math.tanh %39 : vector<1x128xf32>
    %46 = vector.extract_strided_slice %44 {offsets = [0, 0], sizes = [1, 32], strides = [1, 1]} : vector<1x128xf32> to vector<1x32xf32>
    %47 = vector.extract_strided_slice %44 {offsets = [0, 32], sizes = [1, 32], strides = [1, 1]} : vector<1x128xf32> to vector<1x32xf32>
    %48 = vector.extract_strided_slice %45 {offsets = [0, 64], sizes = [1, 32], strides = [1, 1]} : vector<1x128xf32> to vector<1x32xf32>
    %49 = vector.extract_strided_slice %44 {offsets = [0, 96], sizes = [1, 32], strides = [1, 1]} : vector<1x128xf32> to vector<1x32xf32>
    %50 = arith.mulf %47, %14 : vector<1x32xf32>
    %51 = arith.mulf %46, %48 : vector<1x32xf32>
    %52 = arith.addf %50, %51 : vector<1x32xf32>
    %53 = math.tanh %52 : vector<1x32xf32>
    %54 = arith.mulf %49, %53 : vector<1x32xf32>
    %55 = vector.extract_strided_slice %10 {offsets = [1, 0], sizes = [1, 128], strides = [1, 1]} : vector<8x128xf32> to vector<1x128xf32>
    %c0_29 = arith.constant 0 : index
    %c0_30 = arith.constant 0 : index
    %56 = vector.load %arg3[%c0_29, %c0_30] : memref<32x128xf32, #tpu.memory_space<vmem>>, vector<32x128xf32>
    %cst_31 = arith.constant dense<0.000000e+00> : vector<1x128xf32>
    %57 = tpu.matmul %33, %56, %cst_31 {dimension_numbers = #tpu.dot_dimension_numbers<[1], [0], [0], [1], [0, 0, 1, 1], [], []>} : vector<1x32xf32>, vector<32x128xf32>, vector<1x128xf32> -> vector<1x128xf32>
    %58 = arith.addf %55, %57 : vector<1x128xf32>
    %59 = arith.negf %58 : vector<1x128xf32>
    %60 = math.exp %59 : vector<1x128xf32>
    %cst_32 = arith.constant 1.000000e+00 : f32
    %61 = vector.broadcast %cst_32 : f32 to vector<1x128xf32>
    %62 = arith.addf %61, %60 : vector<1x128xf32>
    %63 = arith.divf %61, %62 : vector<1x128xf32>
    %64 = math.tanh %58 : vector<1x128xf32>
    %65 = vector.extract_strided_slice %63 {offsets = [0, 0], sizes = [1, 32], strides = [1, 1]} : vector<1x128xf32> to vector<1x32xf32>
    %66 = vector.extract_strided_slice %63 {offsets = [0, 32], sizes = [1, 32], strides = [1, 1]} : vector<1x128xf32> to vector<1x32xf32>
    %67 = vector.extract_strided_slice %64 {offsets = [0, 64], sizes = [1, 32], strides = [1, 1]} : vector<1x128xf32> to vector<1x32xf32>
    %68 = vector.extract_strided_slice %63 {offsets = [0, 96], sizes = [1, 32], strides = [1, 1]} : vector<1x128xf32> to vector<1x32xf32>
    %69 = arith.mulf %66, %31 : vector<1x32xf32>
    %70 = arith.mulf %65, %67 : vector<1x32xf32>
    %71 = arith.addf %69, %70 : vector<1x32xf32>
    %72 = math.tanh %71 : vector<1x32xf32>
    %73 = arith.mulf %68, %72 : vector<1x32xf32>
    %c0_33 = arith.constant 0 : index
    %c0_34 = arith.constant 0 : index
    %74 = vector.load %arg5[%c0_33, %c0_34] : memref<32x128xf32, #tpu.memory_space<vmem>>, vector<32x128xf32>
    %cst_35 = arith.constant dense<0.000000e+00> : vector<1x128xf32>
    %75 = tpu.matmul %73, %74, %cst_35 {dimension_numbers = #tpu.dot_dimension_numbers<[1], [0], [0], [1], [0, 0, 1, 1], [], []>} : vector<1x32xf32>, vector<32x128xf32>, vector<1x128xf32> -> vector<1x128xf32>
    %c0_36 = arith.constant 0 : index
    %c0_37 = arith.constant 0 : index
    %76 = vector.load %arg6[%c0_36, %c0_37] : memref<32x128xf32, #tpu.memory_space<vmem>>, vector<32x128xf32>
    %cst_38 = arith.constant dense<0.000000e+00> : vector<1x128xf32>
    %77 = tpu.matmul %54, %76, %cst_38 {dimension_numbers = #tpu.dot_dimension_numbers<[1], [0], [0], [1], [0, 0, 1, 1], [], []>} : vector<1x32xf32>, vector<32x128xf32>, vector<1x128xf32> -> vector<1x128xf32>
    %78 = arith.addf %75, %77 : vector<1x128xf32>
    %79 = arith.addf %78, %1 : vector<1x128xf32>
    %80 = arith.negf %79 : vector<1x128xf32>
    %81 = math.exp %80 : vector<1x128xf32>
    %cst_39 = arith.constant 1.000000e+00 : f32
    %82 = vector.broadcast %cst_39 : f32 to vector<1x128xf32>
    %83 = arith.addf %82, %81 : vector<1x128xf32>
    %84 = arith.divf %82, %83 : vector<1x128xf32>
    %85 = math.tanh %79 : vector<1x128xf32>
    %86 = vector.extract_strided_slice %84 {offsets = [0, 0], sizes = [1, 32], strides = [1, 1]} : vector<1x128xf32> to vector<1x32xf32>
    %87 = vector.extract_strided_slice %84 {offsets = [0, 32], sizes = [1, 32], strides = [1, 1]} : vector<1x128xf32> to vector<1x32xf32>
    %88 = vector.extract_strided_slice %85 {offsets = [0, 64], sizes = [1, 32], strides = [1, 1]} : vector<1x128xf32> to vector<1x32xf32>
    %89 = vector.extract_strided_slice %84 {offsets = [0, 96], sizes = [1, 32], strides = [1, 1]} : vector<1x128xf32> to vector<1x32xf32>
    %90 = arith.mulf %87, %52 : vector<1x32xf32>
    %91 = arith.mulf %86, %88 : vector<1x32xf32>
    %92 = arith.addf %90, %91 : vector<1x32xf32>
    %93 = math.tanh %92 : vector<1x32xf32>
    %94 = arith.mulf %89, %93 : vector<1x32xf32>
    %95 = vector.extract_strided_slice %10 {offsets = [2, 0], sizes = [1, 128], strides = [1, 1]} : vector<8x128xf32> to vector<1x128xf32>
    %c0_40 = arith.constant 0 : index
    %c0_41 = arith.constant 0 : index
    %96 = vector.load %arg3[%c0_40, %c0_41] : memref<32x128xf32, #tpu.memory_space<vmem>>, vector<32x128xf32>
    %cst_42 = arith.constant dense<0.000000e+00> : vector<1x128xf32>
    %97 = tpu.matmul %73, %96, %cst_42 {dimension_numbers = #tpu.dot_dimension_numbers<[1], [0], [0], [1], [0, 0, 1, 1], [], []>} : vector<1x32xf32>, vector<32x128xf32>, vector<1x128xf32> -> vector<1x128xf32>
    %98 = arith.addf %95, %97 : vector<1x128xf32>
    %99 = arith.negf %98 : vector<1x128xf32>
    %100 = math.exp %99 : vector<1x128xf32>
    %cst_43 = arith.constant 1.000000e+00 : f32
    %101 = vector.broadcast %cst_43 : f32 to vector<1x128xf32>
    %102 = arith.addf %101, %100 : vector<1x128xf32>
    %103 = arith.divf %101, %102 : vector<1x128xf32>
    %104 = math.tanh %98 : vector<1x128xf32>
    %105 = vector.extract_strided_slice %103 {offsets = [0, 0], sizes = [1, 32], strides = [1, 1]} : vector<1x128xf32> to vector<1x32xf32>
    %106 = vector.extract_strided_slice %103 {offsets = [0, 32], sizes = [1, 32], strides = [1, 1]} : vector<1x128xf32> to vector<1x32xf32>
    %107 = vector.extract_strided_slice %104 {offsets = [0, 64], sizes = [1, 32], strides = [1, 1]} : vector<1x128xf32> to vector<1x32xf32>
    %108 = vector.extract_strided_slice %103 {offsets = [0, 96], sizes = [1, 32], strides = [1, 1]} : vector<1x128xf32> to vector<1x32xf32>
    %109 = arith.mulf %106, %71 : vector<1x32xf32>
    %110 = arith.mulf %105, %107 : vector<1x32xf32>
    %111 = arith.addf %109, %110 : vector<1x32xf32>
    %112 = math.tanh %111 : vector<1x32xf32>
    %113 = arith.mulf %108, %112 : vector<1x32xf32>
    %c0_44 = arith.constant 0 : index
    %c0_45 = arith.constant 0 : index
    %114 = vector.load %arg5[%c0_44, %c0_45] : memref<32x128xf32, #tpu.memory_space<vmem>>, vector<32x128xf32>
    %cst_46 = arith.constant dense<0.000000e+00> : vector<1x128xf32>
    %115 = tpu.matmul %113, %114, %cst_46 {dimension_numbers = #tpu.dot_dimension_numbers<[1], [0], [0], [1], [0, 0, 1, 1], [], []>} : vector<1x32xf32>, vector<32x128xf32>, vector<1x128xf32> -> vector<1x128xf32>
    %c0_47 = arith.constant 0 : index
    %c0_48 = arith.constant 0 : index
    %116 = vector.load %arg6[%c0_47, %c0_48] : memref<32x128xf32, #tpu.memory_space<vmem>>, vector<32x128xf32>
    %cst_49 = arith.constant dense<0.000000e+00> : vector<1x128xf32>
    %117 = tpu.matmul %94, %116, %cst_49 {dimension_numbers = #tpu.dot_dimension_numbers<[1], [0], [0], [1], [0, 0, 1, 1], [], []>} : vector<1x32xf32>, vector<32x128xf32>, vector<1x128xf32> -> vector<1x128xf32>
    %118 = arith.addf %115, %117 : vector<1x128xf32>
    %119 = arith.addf %118, %1 : vector<1x128xf32>
    %120 = arith.negf %119 : vector<1x128xf32>
    %121 = math.exp %120 : vector<1x128xf32>
    %cst_50 = arith.constant 1.000000e+00 : f32
    %122 = vector.broadcast %cst_50 : f32 to vector<1x128xf32>
    %123 = arith.addf %122, %121 : vector<1x128xf32>
    %124 = arith.divf %122, %123 : vector<1x128xf32>
    %125 = math.tanh %119 : vector<1x128xf32>
    %126 = vector.extract_strided_slice %124 {offsets = [0, 0], sizes = [1, 32], strides = [1, 1]} : vector<1x128xf32> to vector<1x32xf32>
    %127 = vector.extract_strided_slice %124 {offsets = [0, 32], sizes = [1, 32], strides = [1, 1]} : vector<1x128xf32> to vector<1x32xf32>
    %128 = vector.extract_strided_slice %125 {offsets = [0, 64], sizes = [1, 32], strides = [1, 1]} : vector<1x128xf32> to vector<1x32xf32>
    %129 = vector.extract_strided_slice %124 {offsets = [0, 96], sizes = [1, 32], strides = [1, 1]} : vector<1x128xf32> to vector<1x32xf32>
    %130 = arith.mulf %127, %92 : vector<1x32xf32>
    %131 = arith.mulf %126, %128 : vector<1x32xf32>
    %132 = arith.addf %130, %131 : vector<1x32xf32>
    %133 = math.tanh %132 : vector<1x32xf32>
    %134 = arith.mulf %129, %133 : vector<1x32xf32>
    %135 = vector.extract_strided_slice %10 {offsets = [3, 0], sizes = [1, 128], strides = [1, 1]} : vector<8x128xf32> to vector<1x128xf32>
    %c0_51 = arith.constant 0 : index
    %c0_52 = arith.constant 0 : index
    %136 = vector.load %arg3[%c0_51, %c0_52] : memref<32x128xf32, #tpu.memory_space<vmem>>, vector<32x128xf32>
    %cst_53 = arith.constant dense<0.000000e+00> : vector<1x128xf32>
    %137 = tpu.matmul %113, %136, %cst_53 {dimension_numbers = #tpu.dot_dimension_numbers<[1], [0], [0], [1], [0, 0, 1, 1], [], []>} : vector<1x32xf32>, vector<32x128xf32>, vector<1x128xf32> -> vector<1x128xf32>
    %138 = arith.addf %135, %137 : vector<1x128xf32>
    %139 = arith.negf %138 : vector<1x128xf32>
    %140 = math.exp %139 : vector<1x128xf32>
    %cst_54 = arith.constant 1.000000e+00 : f32
    %141 = vector.broadcast %cst_54 : f32 to vector<1x128xf32>
    %142 = arith.addf %141, %140 : vector<1x128xf32>
    %143 = arith.divf %141, %142 : vector<1x128xf32>
    %144 = math.tanh %138 : vector<1x128xf32>
    %145 = vector.extract_strided_slice %143 {offsets = [0, 0], sizes = [1, 32], strides = [1, 1]} : vector<1x128xf32> to vector<1x32xf32>
    %146 = vector.extract_strided_slice %143 {offsets = [0, 32], sizes = [1, 32], strides = [1, 1]} : vector<1x128xf32> to vector<1x32xf32>
    %147 = vector.extract_strided_slice %144 {offsets = [0, 64], sizes = [1, 32], strides = [1, 1]} : vector<1x128xf32> to vector<1x32xf32>
    %148 = vector.extract_strided_slice %143 {offsets = [0, 96], sizes = [1, 32], strides = [1, 1]} : vector<1x128xf32> to vector<1x32xf32>
    %149 = arith.mulf %146, %111 : vector<1x32xf32>
    %150 = arith.mulf %145, %147 : vector<1x32xf32>
    %151 = arith.addf %149, %150 : vector<1x32xf32>
    %152 = math.tanh %151 : vector<1x32xf32>
    %153 = arith.mulf %148, %152 : vector<1x32xf32>
    %c0_55 = arith.constant 0 : index
    %c0_56 = arith.constant 0 : index
    %154 = vector.load %arg5[%c0_55, %c0_56] : memref<32x128xf32, #tpu.memory_space<vmem>>, vector<32x128xf32>
    %cst_57 = arith.constant dense<0.000000e+00> : vector<1x128xf32>
    %155 = tpu.matmul %153, %154, %cst_57 {dimension_numbers = #tpu.dot_dimension_numbers<[1], [0], [0], [1], [0, 0, 1, 1], [], []>} : vector<1x32xf32>, vector<32x128xf32>, vector<1x128xf32> -> vector<1x128xf32>
    %c0_58 = arith.constant 0 : index
    %c0_59 = arith.constant 0 : index
    %156 = vector.load %arg6[%c0_58, %c0_59] : memref<32x128xf32, #tpu.memory_space<vmem>>, vector<32x128xf32>
    %cst_60 = arith.constant dense<0.000000e+00> : vector<1x128xf32>
    %157 = tpu.matmul %134, %156, %cst_60 {dimension_numbers = #tpu.dot_dimension_numbers<[1], [0], [0], [1], [0, 0, 1, 1], [], []>} : vector<1x32xf32>, vector<32x128xf32>, vector<1x128xf32> -> vector<1x128xf32>
    %158 = arith.addf %155, %157 : vector<1x128xf32>
    %159 = arith.addf %158, %1 : vector<1x128xf32>
    %160 = arith.negf %159 : vector<1x128xf32>
    %161 = math.exp %160 : vector<1x128xf32>
    %cst_61 = arith.constant 1.000000e+00 : f32
    %162 = vector.broadcast %cst_61 : f32 to vector<1x128xf32>
    %163 = arith.addf %162, %161 : vector<1x128xf32>
    %164 = arith.divf %162, %163 : vector<1x128xf32>
    %165 = math.tanh %159 : vector<1x128xf32>
    %166 = vector.extract_strided_slice %164 {offsets = [0, 0], sizes = [1, 32], strides = [1, 1]} : vector<1x128xf32> to vector<1x32xf32>
    %167 = vector.extract_strided_slice %164 {offsets = [0, 32], sizes = [1, 32], strides = [1, 1]} : vector<1x128xf32> to vector<1x32xf32>
    %168 = vector.extract_strided_slice %165 {offsets = [0, 64], sizes = [1, 32], strides = [1, 1]} : vector<1x128xf32> to vector<1x32xf32>
    %169 = vector.extract_strided_slice %164 {offsets = [0, 96], sizes = [1, 32], strides = [1, 1]} : vector<1x128xf32> to vector<1x32xf32>
    %170 = arith.mulf %167, %132 : vector<1x32xf32>
    %171 = arith.mulf %166, %168 : vector<1x32xf32>
    %172 = arith.addf %170, %171 : vector<1x32xf32>
    %173 = math.tanh %172 : vector<1x32xf32>
    %174 = arith.mulf %169, %173 : vector<1x32xf32>
    %175 = vector.extract_strided_slice %10 {offsets = [4, 0], sizes = [1, 128], strides = [1, 1]} : vector<8x128xf32> to vector<1x128xf32>
    %c0_62 = arith.constant 0 : index
    %c0_63 = arith.constant 0 : index
    %176 = vector.load %arg3[%c0_62, %c0_63] : memref<32x128xf32, #tpu.memory_space<vmem>>, vector<32x128xf32>
    %cst_64 = arith.constant dense<0.000000e+00> : vector<1x128xf32>
    %177 = tpu.matmul %153, %176, %cst_64 {dimension_numbers = #tpu.dot_dimension_numbers<[1], [0], [0], [1], [0, 0, 1, 1], [], []>} : vector<1x32xf32>, vector<32x128xf32>, vector<1x128xf32> -> vector<1x128xf32>
    %178 = arith.addf %175, %177 : vector<1x128xf32>
    %179 = arith.negf %178 : vector<1x128xf32>
    %180 = math.exp %179 : vector<1x128xf32>
    %cst_65 = arith.constant 1.000000e+00 : f32
    %181 = vector.broadcast %cst_65 : f32 to vector<1x128xf32>
    %182 = arith.addf %181, %180 : vector<1x128xf32>
    %183 = arith.divf %181, %182 : vector<1x128xf32>
    %184 = math.tanh %178 : vector<1x128xf32>
    %185 = vector.extract_strided_slice %183 {offsets = [0, 0], sizes = [1, 32], strides = [1, 1]} : vector<1x128xf32> to vector<1x32xf32>
    %186 = vector.extract_strided_slice %183 {offsets = [0, 32], sizes = [1, 32], strides = [1, 1]} : vector<1x128xf32> to vector<1x32xf32>
    %187 = vector.extract_strided_slice %184 {offsets = [0, 64], sizes = [1, 32], strides = [1, 1]} : vector<1x128xf32> to vector<1x32xf32>
    %188 = vector.extract_strided_slice %183 {offsets = [0, 96], sizes = [1, 32], strides = [1, 1]} : vector<1x128xf32> to vector<1x32xf32>
    %189 = arith.mulf %186, %151 : vector<1x32xf32>
    %190 = arith.mulf %185, %187 : vector<1x32xf32>
    %191 = arith.addf %189, %190 : vector<1x32xf32>
    %192 = math.tanh %191 : vector<1x32xf32>
    %193 = arith.mulf %188, %192 : vector<1x32xf32>
    %c0_66 = arith.constant 0 : index
    %c0_67 = arith.constant 0 : index
    %194 = vector.load %arg5[%c0_66, %c0_67] : memref<32x128xf32, #tpu.memory_space<vmem>>, vector<32x128xf32>
    %cst_68 = arith.constant dense<0.000000e+00> : vector<1x128xf32>
    %195 = tpu.matmul %193, %194, %cst_68 {dimension_numbers = #tpu.dot_dimension_numbers<[1], [0], [0], [1], [0, 0, 1, 1], [], []>} : vector<1x32xf32>, vector<32x128xf32>, vector<1x128xf32> -> vector<1x128xf32>
    %c0_69 = arith.constant 0 : index
    %c0_70 = arith.constant 0 : index
    %196 = vector.load %arg6[%c0_69, %c0_70] : memref<32x128xf32, #tpu.memory_space<vmem>>, vector<32x128xf32>
    %cst_71 = arith.constant dense<0.000000e+00> : vector<1x128xf32>
    %197 = tpu.matmul %174, %196, %cst_71 {dimension_numbers = #tpu.dot_dimension_numbers<[1], [0], [0], [1], [0, 0, 1, 1], [], []>} : vector<1x32xf32>, vector<32x128xf32>, vector<1x128xf32> -> vector<1x128xf32>
    %198 = arith.addf %195, %197 : vector<1x128xf32>
    %199 = arith.addf %198, %1 : vector<1x128xf32>
    %200 = arith.negf %199 : vector<1x128xf32>
    %201 = math.exp %200 : vector<1x128xf32>
    %cst_72 = arith.constant 1.000000e+00 : f32
    %202 = vector.broadcast %cst_72 : f32 to vector<1x128xf32>
    %203 = arith.addf %202, %201 : vector<1x128xf32>
    %204 = arith.divf %202, %203 : vector<1x128xf32>
    %205 = math.tanh %199 : vector<1x128xf32>
    %206 = vector.extract_strided_slice %204 {offsets = [0, 0], sizes = [1, 32], strides = [1, 1]} : vector<1x128xf32> to vector<1x32xf32>
    %207 = vector.extract_strided_slice %204 {offsets = [0, 32], sizes = [1, 32], strides = [1, 1]} : vector<1x128xf32> to vector<1x32xf32>
    %208 = vector.extract_strided_slice %205 {offsets = [0, 64], sizes = [1, 32], strides = [1, 1]} : vector<1x128xf32> to vector<1x32xf32>
    %209 = vector.extract_strided_slice %204 {offsets = [0, 96], sizes = [1, 32], strides = [1, 1]} : vector<1x128xf32> to vector<1x32xf32>
    %210 = arith.mulf %207, %172 : vector<1x32xf32>
    %211 = arith.mulf %206, %208 : vector<1x32xf32>
    %212 = arith.addf %210, %211 : vector<1x32xf32>
    %213 = math.tanh %212 : vector<1x32xf32>
    %214 = arith.mulf %209, %213 : vector<1x32xf32>
    %215 = vector.extract_strided_slice %10 {offsets = [5, 0], sizes = [1, 128], strides = [1, 1]} : vector<8x128xf32> to vector<1x128xf32>
    %c0_73 = arith.constant 0 : index
    %c0_74 = arith.constant 0 : index
    %216 = vector.load %arg3[%c0_73, %c0_74] : memref<32x128xf32, #tpu.memory_space<vmem>>, vector<32x128xf32>
    %cst_75 = arith.constant dense<0.000000e+00> : vector<1x128xf32>
    %217 = tpu.matmul %193, %216, %cst_75 {dimension_numbers = #tpu.dot_dimension_numbers<[1], [0], [0], [1], [0, 0, 1, 1], [], []>} : vector<1x32xf32>, vector<32x128xf32>, vector<1x128xf32> -> vector<1x128xf32>
    %218 = arith.addf %215, %217 : vector<1x128xf32>
    %219 = arith.negf %218 : vector<1x128xf32>
    %220 = math.exp %219 : vector<1x128xf32>
    %cst_76 = arith.constant 1.000000e+00 : f32
    %221 = vector.broadcast %cst_76 : f32 to vector<1x128xf32>
    %222 = arith.addf %221, %220 : vector<1x128xf32>
    %223 = arith.divf %221, %222 : vector<1x128xf32>
    %224 = math.tanh %218 : vector<1x128xf32>
    %225 = vector.extract_strided_slice %223 {offsets = [0, 0], sizes = [1, 32], strides = [1, 1]} : vector<1x128xf32> to vector<1x32xf32>
    %226 = vector.extract_strided_slice %223 {offsets = [0, 32], sizes = [1, 32], strides = [1, 1]} : vector<1x128xf32> to vector<1x32xf32>
    %227 = vector.extract_strided_slice %224 {offsets = [0, 64], sizes = [1, 32], strides = [1, 1]} : vector<1x128xf32> to vector<1x32xf32>
    %228 = vector.extract_strided_slice %223 {offsets = [0, 96], sizes = [1, 32], strides = [1, 1]} : vector<1x128xf32> to vector<1x32xf32>
    %229 = arith.mulf %226, %191 : vector<1x32xf32>
    %230 = arith.mulf %225, %227 : vector<1x32xf32>
    %231 = arith.addf %229, %230 : vector<1x32xf32>
    %232 = math.tanh %231 : vector<1x32xf32>
    %233 = arith.mulf %228, %232 : vector<1x32xf32>
    %c0_77 = arith.constant 0 : index
    %c0_78 = arith.constant 0 : index
    %234 = vector.load %arg5[%c0_77, %c0_78] : memref<32x128xf32, #tpu.memory_space<vmem>>, vector<32x128xf32>
    %cst_79 = arith.constant dense<0.000000e+00> : vector<1x128xf32>
    %235 = tpu.matmul %233, %234, %cst_79 {dimension_numbers = #tpu.dot_dimension_numbers<[1], [0], [0], [1], [0, 0, 1, 1], [], []>} : vector<1x32xf32>, vector<32x128xf32>, vector<1x128xf32> -> vector<1x128xf32>
    %c0_80 = arith.constant 0 : index
    %c0_81 = arith.constant 0 : index
    %236 = vector.load %arg6[%c0_80, %c0_81] : memref<32x128xf32, #tpu.memory_space<vmem>>, vector<32x128xf32>
    %cst_82 = arith.constant dense<0.000000e+00> : vector<1x128xf32>
    %237 = tpu.matmul %214, %236, %cst_82 {dimension_numbers = #tpu.dot_dimension_numbers<[1], [0], [0], [1], [0, 0, 1, 1], [], []>} : vector<1x32xf32>, vector<32x128xf32>, vector<1x128xf32> -> vector<1x128xf32>
    %238 = arith.addf %235, %237 : vector<1x128xf32>
    %239 = arith.addf %238, %1 : vector<1x128xf32>
    %240 = arith.negf %239 : vector<1x128xf32>
    %241 = math.exp %240 : vector<1x128xf32>
    %cst_83 = arith.constant 1.000000e+00 : f32
    %242 = vector.broadcast %cst_83 : f32 to vector<1x128xf32>
    %243 = arith.addf %242, %241 : vector<1x128xf32>
    %244 = arith.divf %242, %243 : vector<1x128xf32>
    %245 = math.tanh %239 : vector<1x128xf32>
    %246 = vector.extract_strided_slice %244 {offsets = [0, 0], sizes = [1, 32], strides = [1, 1]} : vector<1x128xf32> to vector<1x32xf32>
    %247 = vector.extract_strided_slice %244 {offsets = [0, 32], sizes = [1, 32], strides = [1, 1]} : vector<1x128xf32> to vector<1x32xf32>
    %248 = vector.extract_strided_slice %245 {offsets = [0, 64], sizes = [1, 32], strides = [1, 1]} : vector<1x128xf32> to vector<1x32xf32>
    %249 = vector.extract_strided_slice %244 {offsets = [0, 96], sizes = [1, 32], strides = [1, 1]} : vector<1x128xf32> to vector<1x32xf32>
    %250 = arith.mulf %247, %212 : vector<1x32xf32>
    %251 = arith.mulf %246, %248 : vector<1x32xf32>
    %252 = arith.addf %250, %251 : vector<1x32xf32>
    %253 = math.tanh %252 : vector<1x32xf32>
    %254 = arith.mulf %249, %253 : vector<1x32xf32>
    %255 = vector.extract_strided_slice %10 {offsets = [6, 0], sizes = [1, 128], strides = [1, 1]} : vector<8x128xf32> to vector<1x128xf32>
    %c0_84 = arith.constant 0 : index
    %c0_85 = arith.constant 0 : index
    %256 = vector.load %arg3[%c0_84, %c0_85] : memref<32x128xf32, #tpu.memory_space<vmem>>, vector<32x128xf32>
    %cst_86 = arith.constant dense<0.000000e+00> : vector<1x128xf32>
    %257 = tpu.matmul %233, %256, %cst_86 {dimension_numbers = #tpu.dot_dimension_numbers<[1], [0], [0], [1], [0, 0, 1, 1], [], []>} : vector<1x32xf32>, vector<32x128xf32>, vector<1x128xf32> -> vector<1x128xf32>
    %258 = arith.addf %255, %257 : vector<1x128xf32>
    %259 = arith.negf %258 : vector<1x128xf32>
    %260 = math.exp %259 : vector<1x128xf32>
    %cst_87 = arith.constant 1.000000e+00 : f32
    %261 = vector.broadcast %cst_87 : f32 to vector<1x128xf32>
    %262 = arith.addf %261, %260 : vector<1x128xf32>
    %263 = arith.divf %261, %262 : vector<1x128xf32>
    %264 = math.tanh %258 : vector<1x128xf32>
    %265 = vector.extract_strided_slice %263 {offsets = [0, 0], sizes = [1, 32], strides = [1, 1]} : vector<1x128xf32> to vector<1x32xf32>
    %266 = vector.extract_strided_slice %263 {offsets = [0, 32], sizes = [1, 32], strides = [1, 1]} : vector<1x128xf32> to vector<1x32xf32>
    %267 = vector.extract_strided_slice %264 {offsets = [0, 64], sizes = [1, 32], strides = [1, 1]} : vector<1x128xf32> to vector<1x32xf32>
    %268 = vector.extract_strided_slice %263 {offsets = [0, 96], sizes = [1, 32], strides = [1, 1]} : vector<1x128xf32> to vector<1x32xf32>
    %269 = arith.mulf %266, %231 : vector<1x32xf32>
    %270 = arith.mulf %265, %267 : vector<1x32xf32>
    %271 = arith.addf %269, %270 : vector<1x32xf32>
    %272 = math.tanh %271 : vector<1x32xf32>
    %273 = arith.mulf %268, %272 : vector<1x32xf32>
    %c0_88 = arith.constant 0 : index
    %c0_89 = arith.constant 0 : index
    %274 = vector.load %arg5[%c0_88, %c0_89] : memref<32x128xf32, #tpu.memory_space<vmem>>, vector<32x128xf32>
    %cst_90 = arith.constant dense<0.000000e+00> : vector<1x128xf32>
    %275 = tpu.matmul %273, %274, %cst_90 {dimension_numbers = #tpu.dot_dimension_numbers<[1], [0], [0], [1], [0, 0, 1, 1], [], []>} : vector<1x32xf32>, vector<32x128xf32>, vector<1x128xf32> -> vector<1x128xf32>
    %c0_91 = arith.constant 0 : index
    %c0_92 = arith.constant 0 : index
    %276 = vector.load %arg6[%c0_91, %c0_92] : memref<32x128xf32, #tpu.memory_space<vmem>>, vector<32x128xf32>
    %cst_93 = arith.constant dense<0.000000e+00> : vector<1x128xf32>
    %277 = tpu.matmul %254, %276, %cst_93 {dimension_numbers = #tpu.dot_dimension_numbers<[1], [0], [0], [1], [0, 0, 1, 1], [], []>} : vector<1x32xf32>, vector<32x128xf32>, vector<1x128xf32> -> vector<1x128xf32>
    %278 = arith.addf %275, %277 : vector<1x128xf32>
    %279 = arith.addf %278, %1 : vector<1x128xf32>
    %280 = arith.negf %279 : vector<1x128xf32>
    %281 = math.exp %280 : vector<1x128xf32>
    %cst_94 = arith.constant 1.000000e+00 : f32
    %282 = vector.broadcast %cst_94 : f32 to vector<1x128xf32>
    %283 = arith.addf %282, %281 : vector<1x128xf32>
    %284 = arith.divf %282, %283 : vector<1x128xf32>
    %285 = math.tanh %279 : vector<1x128xf32>
    %286 = vector.extract_strided_slice %284 {offsets = [0, 0], sizes = [1, 32], strides = [1, 1]} : vector<1x128xf32> to vector<1x32xf32>
    %287 = vector.extract_strided_slice %284 {offsets = [0, 32], sizes = [1, 32], strides = [1, 1]} : vector<1x128xf32> to vector<1x32xf32>
    %288 = vector.extract_strided_slice %285 {offsets = [0, 64], sizes = [1, 32], strides = [1, 1]} : vector<1x128xf32> to vector<1x32xf32>
    %289 = vector.extract_strided_slice %284 {offsets = [0, 96], sizes = [1, 32], strides = [1, 1]} : vector<1x128xf32> to vector<1x32xf32>
    %290 = arith.mulf %287, %252 : vector<1x32xf32>
    %291 = arith.mulf %286, %288 : vector<1x32xf32>
    %292 = arith.addf %290, %291 : vector<1x32xf32>
    %293 = math.tanh %292 : vector<1x32xf32>
    %294 = arith.mulf %289, %293 : vector<1x32xf32>
    %295 = vector.extract_strided_slice %10 {offsets = [7, 0], sizes = [1, 128], strides = [1, 1]} : vector<8x128xf32> to vector<1x128xf32>
    %c0_95 = arith.constant 0 : index
    %c0_96 = arith.constant 0 : index
    %296 = vector.load %arg3[%c0_95, %c0_96] : memref<32x128xf32, #tpu.memory_space<vmem>>, vector<32x128xf32>
    %cst_97 = arith.constant dense<0.000000e+00> : vector<1x128xf32>
    %297 = tpu.matmul %273, %296, %cst_97 {dimension_numbers = #tpu.dot_dimension_numbers<[1], [0], [0], [1], [0, 0, 1, 1], [], []>} : vector<1x32xf32>, vector<32x128xf32>, vector<1x128xf32> -> vector<1x128xf32>
    %298 = arith.addf %295, %297 : vector<1x128xf32>
    %299 = arith.negf %298 : vector<1x128xf32>
    %300 = math.exp %299 : vector<1x128xf32>
    %cst_98 = arith.constant 1.000000e+00 : f32
    %301 = vector.broadcast %cst_98 : f32 to vector<1x128xf32>
    %302 = arith.addf %301, %300 : vector<1x128xf32>
    %303 = arith.divf %301, %302 : vector<1x128xf32>
    %304 = math.tanh %298 : vector<1x128xf32>
    %305 = vector.extract_strided_slice %303 {offsets = [0, 0], sizes = [1, 32], strides = [1, 1]} : vector<1x128xf32> to vector<1x32xf32>
    %306 = vector.extract_strided_slice %303 {offsets = [0, 32], sizes = [1, 32], strides = [1, 1]} : vector<1x128xf32> to vector<1x32xf32>
    %307 = vector.extract_strided_slice %304 {offsets = [0, 64], sizes = [1, 32], strides = [1, 1]} : vector<1x128xf32> to vector<1x32xf32>
    %308 = vector.extract_strided_slice %303 {offsets = [0, 96], sizes = [1, 32], strides = [1, 1]} : vector<1x128xf32> to vector<1x32xf32>
    %309 = arith.mulf %306, %271 : vector<1x32xf32>
    %310 = arith.mulf %305, %307 : vector<1x32xf32>
    %311 = arith.addf %309, %310 : vector<1x32xf32>
    %312 = math.tanh %311 : vector<1x32xf32>
    %313 = arith.mulf %308, %312 : vector<1x32xf32>
    %c0_99 = arith.constant 0 : index
    %c0_100 = arith.constant 0 : index
    %314 = vector.load %arg5[%c0_99, %c0_100] : memref<32x128xf32, #tpu.memory_space<vmem>>, vector<32x128xf32>
    %cst_101 = arith.constant dense<0.000000e+00> : vector<1x128xf32>
    %315 = tpu.matmul %313, %314, %cst_101 {dimension_numbers = #tpu.dot_dimension_numbers<[1], [0], [0], [1], [0, 0, 1, 1], [], []>} : vector<1x32xf32>, vector<32x128xf32>, vector<1x128xf32> -> vector<1x128xf32>
    %c0_102 = arith.constant 0 : index
    %c0_103 = arith.constant 0 : index
    %316 = vector.load %arg6[%c0_102, %c0_103] : memref<32x128xf32, #tpu.memory_space<vmem>>, vector<32x128xf32>
    %cst_104 = arith.constant dense<0.000000e+00> : vector<1x128xf32>
    %317 = tpu.matmul %294, %316, %cst_104 {dimension_numbers = #tpu.dot_dimension_numbers<[1], [0], [0], [1], [0, 0, 1, 1], [], []>} : vector<1x32xf32>, vector<32x128xf32>, vector<1x128xf32> -> vector<1x128xf32>
    %318 = arith.addf %315, %317 : vector<1x128xf32>
    %319 = arith.addf %318, %1 : vector<1x128xf32>
    %320 = arith.negf %319 : vector<1x128xf32>
    %321 = math.exp %320 : vector<1x128xf32>
    %cst_105 = arith.constant 1.000000e+00 : f32
    %322 = vector.broadcast %cst_105 : f32 to vector<1x128xf32>
    %323 = arith.addf %322, %321 : vector<1x128xf32>
    %324 = arith.divf %322, %323 : vector<1x128xf32>
    %325 = math.tanh %319 : vector<1x128xf32>
    %326 = vector.extract_strided_slice %324 {offsets = [0, 0], sizes = [1, 32], strides = [1, 1]} : vector<1x128xf32> to vector<1x32xf32>
    %327 = vector.extract_strided_slice %324 {offsets = [0, 32], sizes = [1, 32], strides = [1, 1]} : vector<1x128xf32> to vector<1x32xf32>
    %328 = vector.extract_strided_slice %325 {offsets = [0, 64], sizes = [1, 32], strides = [1, 1]} : vector<1x128xf32> to vector<1x32xf32>
    %329 = vector.extract_strided_slice %324 {offsets = [0, 96], sizes = [1, 32], strides = [1, 1]} : vector<1x128xf32> to vector<1x32xf32>
    %330 = arith.mulf %327, %292 : vector<1x32xf32>
    %331 = arith.mulf %326, %328 : vector<1x32xf32>
    %332 = arith.addf %330, %331 : vector<1x32xf32>
    %333 = math.tanh %332 : vector<1x32xf32>
    %334 = arith.mulf %329, %333 : vector<1x32xf32>
    %cst_106 = arith.constant 0.000000e+00 : f32
    %335 = vector.broadcast %cst_106 : f32 to vector<1x16xf32>
    %c0_107 = arith.constant 0 : index
    %c0_108 = arith.constant 0 : index
    %336 = vector.load %arg8[%c0_107, %c0_108] : memref<16x128xf32, #tpu.memory_space<vmem>>, vector<16x128xf32>
    %cst_109 = arith.constant dense<0.000000e+00> : vector<1x128xf32>
    %337 = tpu.matmul %335, %336, %cst_109 {dimension_numbers = #tpu.dot_dimension_numbers<[1], [0], [0], [1], [0, 0, 1, 1], [], []>} : vector<1x16xf32>, vector<16x128xf32>, vector<1x128xf32> -> vector<1x128xf32>
    %c0_110 = arith.constant 0 : index
    %c0_111 = arith.constant 0 : index
    %338 = vector.load %arg9[%c0_110, %c0_111] : memref<32x128xf32, #tpu.memory_space<vmem>>, vector<32x128xf32>
    %cst_112 = arith.constant dense<0.000000e+00> : vector<1x128xf32>
    %339 = tpu.matmul %313, %338, %cst_112 {dimension_numbers = #tpu.dot_dimension_numbers<[1], [0], [0], [1], [0, 0, 1, 1], [], []>} : vector<1x32xf32>, vector<32x128xf32>, vector<1x128xf32> -> vector<1x128xf32>
    %340 = arith.addf %337, %339 : vector<1x128xf32>
    %341 = arith.addf %340, %2 : vector<1x128xf32>
    %342 = arith.negf %341 : vector<1x128xf32>
    %343 = math.exp %342 : vector<1x128xf32>
    %cst_113 = arith.constant 1.000000e+00 : f32
    %344 = vector.broadcast %cst_113 : f32 to vector<1x128xf32>
    %345 = arith.addf %344, %343 : vector<1x128xf32>
    %346 = arith.divf %344, %345 : vector<1x128xf32>
    %347 = math.tanh %341 : vector<1x128xf32>
    %348 = vector.extract_strided_slice %346 {offsets = [0, 0], sizes = [1, 32], strides = [1, 1]} : vector<1x128xf32> to vector<1x32xf32>
    %349 = vector.extract_strided_slice %346 {offsets = [0, 32], sizes = [1, 32], strides = [1, 1]} : vector<1x128xf32> to vector<1x32xf32>
    %350 = vector.extract_strided_slice %347 {offsets = [0, 64], sizes = [1, 32], strides = [1, 1]} : vector<1x128xf32> to vector<1x32xf32>
    %351 = vector.extract_strided_slice %346 {offsets = [0, 96], sizes = [1, 32], strides = [1, 1]} : vector<1x128xf32> to vector<1x32xf32>
    %352 = arith.mulf %349, %311 : vector<1x32xf32>
    %353 = arith.mulf %348, %350 : vector<1x32xf32>
    %354 = arith.addf %352, %353 : vector<1x32xf32>
    %355 = math.tanh %354 : vector<1x32xf32>
    %356 = arith.mulf %351, %355 : vector<1x32xf32>
    %c0_114 = arith.constant 0 : index
    %c0_115 = arith.constant 0 : index
    %357 = vector.load %arg11[%c0_114, %c0_115] : memref<32x128xf32, #tpu.memory_space<vmem>>, vector<32x128xf32>
    %cst_116 = arith.constant dense<0.000000e+00> : vector<1x128xf32>
    %358 = tpu.matmul %356, %357, %cst_116 {dimension_numbers = #tpu.dot_dimension_numbers<[1], [0], [0], [1], [0, 0, 1, 1], [], []>} : vector<1x32xf32>, vector<32x128xf32>, vector<1x128xf32> -> vector<1x128xf32>
    %c0_117 = arith.constant 0 : index
    %c0_118 = arith.constant 0 : index
    %359 = vector.load %arg12[%c0_117, %c0_118] : memref<32x128xf32, #tpu.memory_space<vmem>>, vector<32x128xf32>
    %cst_119 = arith.constant dense<0.000000e+00> : vector<1x128xf32>
    %360 = tpu.matmul %334, %359, %cst_119 {dimension_numbers = #tpu.dot_dimension_numbers<[1], [0], [0], [1], [0, 0, 1, 1], [], []>} : vector<1x32xf32>, vector<32x128xf32>, vector<1x128xf32> -> vector<1x128xf32>
    %361 = arith.addf %358, %360 : vector<1x128xf32>
    %362 = arith.addf %361, %3 : vector<1x128xf32>
    %363 = arith.negf %362 : vector<1x128xf32>
    %364 = math.exp %363 : vector<1x128xf32>
    %cst_120 = arith.constant 1.000000e+00 : f32
    %365 = vector.broadcast %cst_120 : f32 to vector<1x128xf32>
    %366 = arith.addf %365, %364 : vector<1x128xf32>
    %367 = arith.divf %365, %366 : vector<1x128xf32>
    %368 = math.tanh %362 : vector<1x128xf32>
    %369 = vector.extract_strided_slice %367 {offsets = [0, 0], sizes = [1, 32], strides = [1, 1]} : vector<1x128xf32> to vector<1x32xf32>
    %370 = vector.extract_strided_slice %367 {offsets = [0, 32], sizes = [1, 32], strides = [1, 1]} : vector<1x128xf32> to vector<1x32xf32>
    %371 = vector.extract_strided_slice %368 {offsets = [0, 64], sizes = [1, 32], strides = [1, 1]} : vector<1x128xf32> to vector<1x32xf32>
    %372 = vector.extract_strided_slice %367 {offsets = [0, 96], sizes = [1, 32], strides = [1, 1]} : vector<1x128xf32> to vector<1x32xf32>
    %373 = arith.mulf %370, %332 : vector<1x32xf32>
    %374 = arith.mulf %369, %371 : vector<1x32xf32>
    %375 = arith.addf %373, %374 : vector<1x32xf32>
    %376 = math.tanh %375 : vector<1x32xf32>
    %377 = arith.mulf %372, %376 : vector<1x32xf32>
    %c0_121 = arith.constant 0 : index
    %c0_122 = arith.constant 0 : index
    %378 = vector.load %arg14[%c0_121, %c0_122] : memref<32x16xf32, #tpu.memory_space<vmem>>, vector<32x16xf32>
    %cst_123 = arith.constant dense<0.000000e+00> : vector<1x16xf32>
    %379 = tpu.matmul %377, %378, %cst_123 {dimension_numbers = #tpu.dot_dimension_numbers<[1], [0], [0], [1], [0, 0, 1, 1], [], []>} : vector<1x32xf32>, vector<32x16xf32>, vector<1x16xf32> -> vector<1x16xf32>
    %380 = arith.addf %379, %4 : vector<1x16xf32>
    %cst_124 = arith.constant 0.000000e+00 : f32
    %381 = vector.broadcast %cst_124 : f32 to vector<1x16xf32>
    %382 = arith.cmpf oge, %380, %381 : vector<1x16xf32>
    %cst_125 = arith.constant 0.00999999977 : f32
    %383 = vector.broadcast %cst_125 : f32 to vector<1x16xf32>
    %384 = arith.mulf %383, %380 : vector<1x16xf32>
    %385 = arith.select %382, %380, %384 : vector<1x16xi1>, vector<1x16xf32>
    %c0_126 = arith.constant 0 : index
    %c0_127 = arith.constant 0 : index
    %386 = vector.load %arg8[%c0_126, %c0_127] : memref<16x128xf32, #tpu.memory_space<vmem>>, vector<16x128xf32>
    %cst_128 = arith.constant dense<0.000000e+00> : vector<1x128xf32>
    %387 = tpu.matmul %385, %386, %cst_128 {dimension_numbers = #tpu.dot_dimension_numbers<[1], [0], [0], [1], [0, 0, 1, 1], [], []>} : vector<1x16xf32>, vector<16x128xf32>, vector<1x128xf32> -> vector<1x128xf32>
    %c0_129 = arith.constant 0 : index
    %c0_130 = arith.constant 0 : index
    %388 = vector.load %arg9[%c0_129, %c0_130] : memref<32x128xf32, #tpu.memory_space<vmem>>, vector<32x128xf32>
    %cst_131 = arith.constant dense<0.000000e+00> : vector<1x128xf32>
    %389 = tpu.matmul %356, %388, %cst_131 {dimension_numbers = #tpu.dot_dimension_numbers<[1], [0], [0], [1], [0, 0, 1, 1], [], []>} : vector<1x32xf32>, vector<32x128xf32>, vector<1x128xf32> -> vector<1x128xf32>
    %390 = arith.addf %387, %389 : vector<1x128xf32>
    %391 = arith.addf %390, %2 : vector<1x128xf32>
    %392 = arith.negf %391 : vector<1x128xf32>
    %393 = math.exp %392 : vector<1x128xf32>
    %cst_132 = arith.constant 1.000000e+00 : f32
    %394 = vector.broadcast %cst_132 : f32 to vector<1x128xf32>
    %395 = arith.addf %394, %393 : vector<1x128xf32>
    %396 = arith.divf %394, %395 : vector<1x128xf32>
    %397 = math.tanh %391 : vector<1x128xf32>
    %398 = vector.extract_strided_slice %396 {offsets = [0, 0], sizes = [1, 32], strides = [1, 1]} : vector<1x128xf32> to vector<1x32xf32>
    %399 = vector.extract_strided_slice %396 {offsets = [0, 32], sizes = [1, 32], strides = [1, 1]} : vector<1x128xf32> to vector<1x32xf32>
    %400 = vector.extract_strided_slice %397 {offsets = [0, 64], sizes = [1, 32], strides = [1, 1]} : vector<1x128xf32> to vector<1x32xf32>
    %401 = vector.extract_strided_slice %396 {offsets = [0, 96], sizes = [1, 32], strides = [1, 1]} : vector<1x128xf32> to vector<1x32xf32>
    %402 = arith.mulf %399, %354 : vector<1x32xf32>
    %403 = arith.mulf %398, %400 : vector<1x32xf32>
    %404 = arith.addf %402, %403 : vector<1x32xf32>
    %405 = math.tanh %404 : vector<1x32xf32>
    %406 = arith.mulf %401, %405 : vector<1x32xf32>
    %c0_133 = arith.constant 0 : index
    %c0_134 = arith.constant 0 : index
    %407 = vector.load %arg11[%c0_133, %c0_134] : memref<32x128xf32, #tpu.memory_space<vmem>>, vector<32x128xf32>
    %cst_135 = arith.constant dense<0.000000e+00> : vector<1x128xf32>
    %408 = tpu.matmul %406, %407, %cst_135 {dimension_numbers = #tpu.dot_dimension_numbers<[1], [0], [0], [1], [0, 0, 1, 1], [], []>} : vector<1x32xf32>, vector<32x128xf32>, vector<1x128xf32> -> vector<1x128xf32>
    %c0_136 = arith.constant 0 : index
    %c0_137 = arith.constant 0 : index
    %409 = vector.load %arg12[%c0_136, %c0_137] : memref<32x128xf32, #tpu.memory_space<vmem>>, vector<32x128xf32>
    %cst_138 = arith.constant dense<0.000000e+00> : vector<1x128xf32>
    %410 = tpu.matmul %377, %409, %cst_138 {dimension_numbers = #tpu.dot_dimension_numbers<[1], [0], [0], [1], [0, 0, 1, 1], [], []>} : vector<1x32xf32>, vector<32x128xf32>, vector<1x128xf32> -> vector<1x128xf32>
    %411 = arith.addf %408, %410 : vector<1x128xf32>
    %412 = arith.addf %411, %3 : vector<1x128xf32>
    %413 = arith.negf %412 : vector<1x128xf32>
    %414 = math.exp %413 : vector<1x128xf32>
    %cst_139 = arith.constant 1.000000e+00 : f32
    %415 = vector.broadcast %cst_139 : f32 to vector<1x128xf32>
    %416 = arith.addf %415, %414 : vector<1x128xf32>
    %417 = arith.divf %415, %416 : vector<1x128xf32>
    %418 = math.tanh %412 : vector<1x128xf32>
    %419 = vector.extract_strided_slice %417 {offsets = [0, 0], sizes = [1, 32], strides = [1, 1]} : vector<1x128xf32> to vector<1x32xf32>
    %420 = vector.extract_strided_slice %417 {offsets = [0, 32], sizes = [1, 32], strides = [1, 1]} : vector<1x128xf32> to vector<1x32xf32>
    %421 = vector.extract_strided_slice %418 {offsets = [0, 64], sizes = [1, 32], strides = [1, 1]} : vector<1x128xf32> to vector<1x32xf32>
    %422 = vector.extract_strided_slice %417 {offsets = [0, 96], sizes = [1, 32], strides = [1, 1]} : vector<1x128xf32> to vector<1x32xf32>
    %423 = arith.mulf %420, %375 : vector<1x32xf32>
    %424 = arith.mulf %419, %421 : vector<1x32xf32>
    %425 = arith.addf %423, %424 : vector<1x32xf32>
    %426 = math.tanh %425 : vector<1x32xf32>
    %427 = arith.mulf %422, %426 : vector<1x32xf32>
    %c0_140 = arith.constant 0 : index
    %c0_141 = arith.constant 0 : index
    %428 = vector.load %arg14[%c0_140, %c0_141] : memref<32x16xf32, #tpu.memory_space<vmem>>, vector<32x16xf32>
    %cst_142 = arith.constant dense<0.000000e+00> : vector<1x16xf32>
    %429 = tpu.matmul %427, %428, %cst_142 {dimension_numbers = #tpu.dot_dimension_numbers<[1], [0], [0], [1], [0, 0, 1, 1], [], []>} : vector<1x32xf32>, vector<32x16xf32>, vector<1x16xf32> -> vector<1x16xf32>
    %430 = arith.addf %429, %4 : vector<1x16xf32>
    %cst_143 = arith.constant 0.000000e+00 : f32
    %431 = vector.broadcast %cst_143 : f32 to vector<1x16xf32>
    %432 = arith.cmpf oge, %430, %431 : vector<1x16xf32>
    %cst_144 = arith.constant 0.00999999977 : f32
    %433 = vector.broadcast %cst_144 : f32 to vector<1x16xf32>
    %434 = arith.mulf %433, %430 : vector<1x16xf32>
    %435 = arith.select %432, %430, %434 : vector<1x16xi1>, vector<1x16xf32>
    %c0_145 = arith.constant 0 : index
    %c0_146 = arith.constant 0 : index
    %436 = vector.load %arg8[%c0_145, %c0_146] : memref<16x128xf32, #tpu.memory_space<vmem>>, vector<16x128xf32>
    %cst_147 = arith.constant dense<0.000000e+00> : vector<1x128xf32>
    %437 = tpu.matmul %435, %436, %cst_147 {dimension_numbers = #tpu.dot_dimension_numbers<[1], [0], [0], [1], [0, 0, 1, 1], [], []>} : vector<1x16xf32>, vector<16x128xf32>, vector<1x128xf32> -> vector<1x128xf32>
    %c0_148 = arith.constant 0 : index
    %c0_149 = arith.constant 0 : index
    %438 = vector.load %arg9[%c0_148, %c0_149] : memref<32x128xf32, #tpu.memory_space<vmem>>, vector<32x128xf32>
    %cst_150 = arith.constant dense<0.000000e+00> : vector<1x128xf32>
    %439 = tpu.matmul %406, %438, %cst_150 {dimension_numbers = #tpu.dot_dimension_numbers<[1], [0], [0], [1], [0, 0, 1, 1], [], []>} : vector<1x32xf32>, vector<32x128xf32>, vector<1x128xf32> -> vector<1x128xf32>
    %440 = arith.addf %437, %439 : vector<1x128xf32>
    %441 = arith.addf %440, %2 : vector<1x128xf32>
    %442 = arith.negf %441 : vector<1x128xf32>
    %443 = math.exp %442 : vector<1x128xf32>
    %cst_151 = arith.constant 1.000000e+00 : f32
    %444 = vector.broadcast %cst_151 : f32 to vector<1x128xf32>
    %445 = arith.addf %444, %443 : vector<1x128xf32>
    %446 = arith.divf %444, %445 : vector<1x128xf32>
    %447 = math.tanh %441 : vector<1x128xf32>
    %448 = vector.extract_strided_slice %446 {offsets = [0, 0], sizes = [1, 32], strides = [1, 1]} : vector<1x128xf32> to vector<1x32xf32>
    %449 = vector.extract_strided_slice %446 {offsets = [0, 32], sizes = [1, 32], strides = [1, 1]} : vector<1x128xf32> to vector<1x32xf32>
    %450 = vector.extract_strided_slice %447 {offsets = [0, 64], sizes = [1, 32], strides = [1, 1]} : vector<1x128xf32> to vector<1x32xf32>
    %451 = vector.extract_strided_slice %446 {offsets = [0, 96], sizes = [1, 32], strides = [1, 1]} : vector<1x128xf32> to vector<1x32xf32>
    %452 = arith.mulf %449, %404 : vector<1x32xf32>
    %453 = arith.mulf %448, %450 : vector<1x32xf32>
    %454 = arith.addf %452, %453 : vector<1x32xf32>
    %455 = math.tanh %454 : vector<1x32xf32>
    %456 = arith.mulf %451, %455 : vector<1x32xf32>
    %c0_152 = arith.constant 0 : index
    %c0_153 = arith.constant 0 : index
    %457 = vector.load %arg11[%c0_152, %c0_153] : memref<32x128xf32, #tpu.memory_space<vmem>>, vector<32x128xf32>
    %cst_154 = arith.constant dense<0.000000e+00> : vector<1x128xf32>
    %458 = tpu.matmul %456, %457, %cst_154 {dimension_numbers = #tpu.dot_dimension_numbers<[1], [0], [0], [1], [0, 0, 1, 1], [], []>} : vector<1x32xf32>, vector<32x128xf32>, vector<1x128xf32> -> vector<1x128xf32>
    %c0_155 = arith.constant 0 : index
    %c0_156 = arith.constant 0 : index
    %459 = vector.load %arg12[%c0_155, %c0_156] : memref<32x128xf32, #tpu.memory_space<vmem>>, vector<32x128xf32>
    %cst_157 = arith.constant dense<0.000000e+00> : vector<1x128xf32>
    %460 = tpu.matmul %427, %459, %cst_157 {dimension_numbers = #tpu.dot_dimension_numbers<[1], [0], [0], [1], [0, 0, 1, 1], [], []>} : vector<1x32xf32>, vector<32x128xf32>, vector<1x128xf32> -> vector<1x128xf32>
    %461 = arith.addf %458, %460 : vector<1x128xf32>
    %462 = arith.addf %461, %3 : vector<1x128xf32>
    %463 = arith.negf %462 : vector<1x128xf32>
    %464 = math.exp %463 : vector<1x128xf32>
    %cst_158 = arith.constant 1.000000e+00 : f32
    %465 = vector.broadcast %cst_158 : f32 to vector<1x128xf32>
    %466 = arith.addf %465, %464 : vector<1x128xf32>
    %467 = arith.divf %465, %466 : vector<1x128xf32>
    %468 = math.tanh %462 : vector<1x128xf32>
    %469 = vector.extract_strided_slice %467 {offsets = [0, 0], sizes = [1, 32], strides = [1, 1]} : vector<1x128xf32> to vector<1x32xf32>
    %470 = vector.extract_strided_slice %467 {offsets = [0, 32], sizes = [1, 32], strides = [1, 1]} : vector<1x128xf32> to vector<1x32xf32>
    %471 = vector.extract_strided_slice %468 {offsets = [0, 64], sizes = [1, 32], strides = [1, 1]} : vector<1x128xf32> to vector<1x32xf32>
    %472 = vector.extract_strided_slice %467 {offsets = [0, 96], sizes = [1, 32], strides = [1, 1]} : vector<1x128xf32> to vector<1x32xf32>
    %473 = arith.mulf %470, %425 : vector<1x32xf32>
    %474 = arith.mulf %469, %471 : vector<1x32xf32>
    %475 = arith.addf %473, %474 : vector<1x32xf32>
    %476 = math.tanh %475 : vector<1x32xf32>
    %477 = arith.mulf %472, %476 : vector<1x32xf32>
    %c0_159 = arith.constant 0 : index
    %c0_160 = arith.constant 0 : index
    %478 = vector.load %arg14[%c0_159, %c0_160] : memref<32x16xf32, #tpu.memory_space<vmem>>, vector<32x16xf32>
    %cst_161 = arith.constant dense<0.000000e+00> : vector<1x16xf32>
    %479 = tpu.matmul %477, %478, %cst_161 {dimension_numbers = #tpu.dot_dimension_numbers<[1], [0], [0], [1], [0, 0, 1, 1], [], []>} : vector<1x32xf32>, vector<32x16xf32>, vector<1x16xf32> -> vector<1x16xf32>
    %480 = arith.addf %479, %4 : vector<1x16xf32>
    %cst_162 = arith.constant 0.000000e+00 : f32
    %481 = vector.broadcast %cst_162 : f32 to vector<1x16xf32>
    %482 = arith.cmpf oge, %480, %481 : vector<1x16xf32>
    %cst_163 = arith.constant 0.00999999977 : f32
    %483 = vector.broadcast %cst_163 : f32 to vector<1x16xf32>
    %484 = arith.mulf %483, %480 : vector<1x16xf32>
    %485 = arith.select %482, %480, %484 : vector<1x16xi1>, vector<1x16xf32>
    %c0_164 = arith.constant 0 : index
    %c0_165 = arith.constant 0 : index
    %486 = vector.load %arg8[%c0_164, %c0_165] : memref<16x128xf32, #tpu.memory_space<vmem>>, vector<16x128xf32>
    %cst_166 = arith.constant dense<0.000000e+00> : vector<1x128xf32>
    %487 = tpu.matmul %485, %486, %cst_166 {dimension_numbers = #tpu.dot_dimension_numbers<[1], [0], [0], [1], [0, 0, 1, 1], [], []>} : vector<1x16xf32>, vector<16x128xf32>, vector<1x128xf32> -> vector<1x128xf32>
    %c0_167 = arith.constant 0 : index
    %c0_168 = arith.constant 0 : index
    %488 = vector.load %arg9[%c0_167, %c0_168] : memref<32x128xf32, #tpu.memory_space<vmem>>, vector<32x128xf32>
    %cst_169 = arith.constant dense<0.000000e+00> : vector<1x128xf32>
    %489 = tpu.matmul %456, %488, %cst_169 {dimension_numbers = #tpu.dot_dimension_numbers<[1], [0], [0], [1], [0, 0, 1, 1], [], []>} : vector<1x32xf32>, vector<32x128xf32>, vector<1x128xf32> -> vector<1x128xf32>
    %490 = arith.addf %487, %489 : vector<1x128xf32>
    %491 = arith.addf %490, %2 : vector<1x128xf32>
    %492 = arith.negf %491 : vector<1x128xf32>
    %493 = math.exp %492 : vector<1x128xf32>
    %cst_170 = arith.constant 1.000000e+00 : f32
    %494 = vector.broadcast %cst_170 : f32 to vector<1x128xf32>
    %495 = arith.addf %494, %493 : vector<1x128xf32>
    %496 = arith.divf %494, %495 : vector<1x128xf32>
    %497 = math.tanh %491 : vector<1x128xf32>
    %498 = vector.extract_strided_slice %496 {offsets = [0, 0], sizes = [1, 32], strides = [1, 1]} : vector<1x128xf32> to vector<1x32xf32>
    %499 = vector.extract_strided_slice %496 {offsets = [0, 32], sizes = [1, 32], strides = [1, 1]} : vector<1x128xf32> to vector<1x32xf32>
    %500 = vector.extract_strided_slice %497 {offsets = [0, 64], sizes = [1, 32], strides = [1, 1]} : vector<1x128xf32> to vector<1x32xf32>
    %501 = vector.extract_strided_slice %496 {offsets = [0, 96], sizes = [1, 32], strides = [1, 1]} : vector<1x128xf32> to vector<1x32xf32>
    %502 = arith.mulf %499, %454 : vector<1x32xf32>
    %503 = arith.mulf %498, %500 : vector<1x32xf32>
    %504 = arith.addf %502, %503 : vector<1x32xf32>
    %505 = math.tanh %504 : vector<1x32xf32>
    %506 = arith.mulf %501, %505 : vector<1x32xf32>
    %c0_171 = arith.constant 0 : index
    %c0_172 = arith.constant 0 : index
    %507 = vector.load %arg11[%c0_171, %c0_172] : memref<32x128xf32, #tpu.memory_space<vmem>>, vector<32x128xf32>
    %cst_173 = arith.constant dense<0.000000e+00> : vector<1x128xf32>
    %508 = tpu.matmul %506, %507, %cst_173 {dimension_numbers = #tpu.dot_dimension_numbers<[1], [0], [0], [1], [0, 0, 1, 1], [], []>} : vector<1x32xf32>, vector<32x128xf32>, vector<1x128xf32> -> vector<1x128xf32>
    %c0_174 = arith.constant 0 : index
    %c0_175 = arith.constant 0 : index
    %509 = vector.load %arg12[%c0_174, %c0_175] : memref<32x128xf32, #tpu.memory_space<vmem>>, vector<32x128xf32>
    %cst_176 = arith.constant dense<0.000000e+00> : vector<1x128xf32>
    %510 = tpu.matmul %477, %509, %cst_176 {dimension_numbers = #tpu.dot_dimension_numbers<[1], [0], [0], [1], [0, 0, 1, 1], [], []>} : vector<1x32xf32>, vector<32x128xf32>, vector<1x128xf32> -> vector<1x128xf32>
    %511 = arith.addf %508, %510 : vector<1x128xf32>
    %512 = arith.addf %511, %3 : vector<1x128xf32>
    %513 = arith.negf %512 : vector<1x128xf32>
    %514 = math.exp %513 : vector<1x128xf32>
    %cst_177 = arith.constant 1.000000e+00 : f32
    %515 = vector.broadcast %cst_177 : f32 to vector<1x128xf32>
    %516 = arith.addf %515, %514 : vector<1x128xf32>
    %517 = arith.divf %515, %516 : vector<1x128xf32>
    %518 = math.tanh %512 : vector<1x128xf32>
    %519 = vector.extract_strided_slice %517 {offsets = [0, 0], sizes = [1, 32], strides = [1, 1]} : vector<1x128xf32> to vector<1x32xf32>
    %520 = vector.extract_strided_slice %517 {offsets = [0, 32], sizes = [1, 32], strides = [1, 1]} : vector<1x128xf32> to vector<1x32xf32>
    %521 = vector.extract_strided_slice %518 {offsets = [0, 64], sizes = [1, 32], strides = [1, 1]} : vector<1x128xf32> to vector<1x32xf32>
    %522 = vector.extract_strided_slice %517 {offsets = [0, 96], sizes = [1, 32], strides = [1, 1]} : vector<1x128xf32> to vector<1x32xf32>
    %523 = arith.mulf %520, %475 : vector<1x32xf32>
    %524 = arith.mulf %519, %521 : vector<1x32xf32>
    %525 = arith.addf %523, %524 : vector<1x32xf32>
    %526 = math.tanh %525 : vector<1x32xf32>
    %527 = arith.mulf %522, %526 : vector<1x32xf32>
    %c0_178 = arith.constant 0 : index
    %c0_179 = arith.constant 0 : index
    %528 = vector.load %arg14[%c0_178, %c0_179] : memref<32x16xf32, #tpu.memory_space<vmem>>, vector<32x16xf32>
    %cst_180 = arith.constant dense<0.000000e+00> : vector<1x16xf32>
    %529 = tpu.matmul %527, %528, %cst_180 {dimension_numbers = #tpu.dot_dimension_numbers<[1], [0], [0], [1], [0, 0, 1, 1], [], []>} : vector<1x32xf32>, vector<32x16xf32>, vector<1x16xf32> -> vector<1x16xf32>
    %530 = arith.addf %529, %4 : vector<1x16xf32>
    %cst_181 = arith.constant 0.000000e+00 : f32
    %531 = vector.broadcast %cst_181 : f32 to vector<1x16xf32>
    %532 = arith.cmpf oge, %530, %531 : vector<1x16xf32>
    %cst_182 = arith.constant 0.00999999977 : f32
    %533 = vector.broadcast %cst_182 : f32 to vector<1x16xf32>
    %534 = arith.mulf %533, %530 : vector<1x16xf32>
    %535 = arith.select %532, %530, %534 : vector<1x16xi1>, vector<1x16xf32>
    %c0_183 = arith.constant 0 : index
    %c0_184 = arith.constant 0 : index
    %536 = vector.load %arg8[%c0_183, %c0_184] : memref<16x128xf32, #tpu.memory_space<vmem>>, vector<16x128xf32>
    %cst_185 = arith.constant dense<0.000000e+00> : vector<1x128xf32>
    %537 = tpu.matmul %535, %536, %cst_185 {dimension_numbers = #tpu.dot_dimension_numbers<[1], [0], [0], [1], [0, 0, 1, 1], [], []>} : vector<1x16xf32>, vector<16x128xf32>, vector<1x128xf32> -> vector<1x128xf32>
    %c0_186 = arith.constant 0 : index
    %c0_187 = arith.constant 0 : index
    %538 = vector.load %arg9[%c0_186, %c0_187] : memref<32x128xf32, #tpu.memory_space<vmem>>, vector<32x128xf32>
    %cst_188 = arith.constant dense<0.000000e+00> : vector<1x128xf32>
    %539 = tpu.matmul %506, %538, %cst_188 {dimension_numbers = #tpu.dot_dimension_numbers<[1], [0], [0], [1], [0, 0, 1, 1], [], []>} : vector<1x32xf32>, vector<32x128xf32>, vector<1x128xf32> -> vector<1x128xf32>
    %540 = arith.addf %537, %539 : vector<1x128xf32>
    %541 = arith.addf %540, %2 : vector<1x128xf32>
    %542 = arith.negf %541 : vector<1x128xf32>
    %543 = math.exp %542 : vector<1x128xf32>
    %cst_189 = arith.constant 1.000000e+00 : f32
    %544 = vector.broadcast %cst_189 : f32 to vector<1x128xf32>
    %545 = arith.addf %544, %543 : vector<1x128xf32>
    %546 = arith.divf %544, %545 : vector<1x128xf32>
    %547 = math.tanh %541 : vector<1x128xf32>
    %548 = vector.extract_strided_slice %546 {offsets = [0, 0], sizes = [1, 32], strides = [1, 1]} : vector<1x128xf32> to vector<1x32xf32>
    %549 = vector.extract_strided_slice %546 {offsets = [0, 32], sizes = [1, 32], strides = [1, 1]} : vector<1x128xf32> to vector<1x32xf32>
    %550 = vector.extract_strided_slice %547 {offsets = [0, 64], sizes = [1, 32], strides = [1, 1]} : vector<1x128xf32> to vector<1x32xf32>
    %551 = vector.extract_strided_slice %546 {offsets = [0, 96], sizes = [1, 32], strides = [1, 1]} : vector<1x128xf32> to vector<1x32xf32>
    %552 = arith.mulf %549, %504 : vector<1x32xf32>
    %553 = arith.mulf %548, %550 : vector<1x32xf32>
    %554 = arith.addf %552, %553 : vector<1x32xf32>
    %555 = math.tanh %554 : vector<1x32xf32>
    %556 = arith.mulf %551, %555 : vector<1x32xf32>
    %c0_190 = arith.constant 0 : index
    %c0_191 = arith.constant 0 : index
    %557 = vector.load %arg11[%c0_190, %c0_191] : memref<32x128xf32, #tpu.memory_space<vmem>>, vector<32x128xf32>
    %cst_192 = arith.constant dense<0.000000e+00> : vector<1x128xf32>
    %558 = tpu.matmul %556, %557, %cst_192 {dimension_numbers = #tpu.dot_dimension_numbers<[1], [0], [0], [1], [0, 0, 1, 1], [], []>} : vector<1x32xf32>, vector<32x128xf32>, vector<1x128xf32> -> vector<1x128xf32>
    %c0_193 = arith.constant 0 : index
    %c0_194 = arith.constant 0 : index
    %559 = vector.load %arg12[%c0_193, %c0_194] : memref<32x128xf32, #tpu.memory_space<vmem>>, vector<32x128xf32>
    %cst_195 = arith.constant dense<0.000000e+00> : vector<1x128xf32>
    %560 = tpu.matmul %527, %559, %cst_195 {dimension_numbers = #tpu.dot_dimension_numbers<[1], [0], [0], [1], [0, 0, 1, 1], [], []>} : vector<1x32xf32>, vector<32x128xf32>, vector<1x128xf32> -> vector<1x128xf32>
    %561 = arith.addf %558, %560 : vector<1x128xf32>
    %562 = arith.addf %561, %3 : vector<1x128xf32>
    %563 = arith.negf %562 : vector<1x128xf32>
    %564 = math.exp %563 : vector<1x128xf32>
    %cst_196 = arith.constant 1.000000e+00 : f32
    %565 = vector.broadcast %cst_196 : f32 to vector<1x128xf32>
    %566 = arith.addf %565, %564 : vector<1x128xf32>
    %567 = arith.divf %565, %566 : vector<1x128xf32>
    %568 = math.tanh %562 : vector<1x128xf32>
    %569 = vector.extract_strided_slice %567 {offsets = [0, 0], sizes = [1, 32], strides = [1, 1]} : vector<1x128xf32> to vector<1x32xf32>
    %570 = vector.extract_strided_slice %567 {offsets = [0, 32], sizes = [1, 32], strides = [1, 1]} : vector<1x128xf32> to vector<1x32xf32>
    %571 = vector.extract_strided_slice %568 {offsets = [0, 64], sizes = [1, 32], strides = [1, 1]} : vector<1x128xf32> to vector<1x32xf32>
    %572 = vector.extract_strided_slice %567 {offsets = [0, 96], sizes = [1, 32], strides = [1, 1]} : vector<1x128xf32> to vector<1x32xf32>
    %573 = arith.mulf %570, %525 : vector<1x32xf32>
    %574 = arith.mulf %569, %571 : vector<1x32xf32>
    %575 = arith.addf %573, %574 : vector<1x32xf32>
    %576 = math.tanh %575 : vector<1x32xf32>
    %577 = arith.mulf %572, %576 : vector<1x32xf32>
    %c0_197 = arith.constant 0 : index
    %c0_198 = arith.constant 0 : index
    %578 = vector.load %arg14[%c0_197, %c0_198] : memref<32x16xf32, #tpu.memory_space<vmem>>, vector<32x16xf32>
    %cst_199 = arith.constant dense<0.000000e+00> : vector<1x16xf32>
    %579 = tpu.matmul %577, %578, %cst_199 {dimension_numbers = #tpu.dot_dimension_numbers<[1], [0], [0], [1], [0, 0, 1, 1], [], []>} : vector<1x32xf32>, vector<32x16xf32>, vector<1x16xf32> -> vector<1x16xf32>
    %580 = arith.addf %579, %4 : vector<1x16xf32>
    %cst_200 = arith.constant 0.000000e+00 : f32
    %581 = vector.broadcast %cst_200 : f32 to vector<1x16xf32>
    %582 = arith.cmpf oge, %580, %581 : vector<1x16xf32>
    %cst_201 = arith.constant 0.00999999977 : f32
    %583 = vector.broadcast %cst_201 : f32 to vector<1x16xf32>
    %584 = arith.mulf %583, %580 : vector<1x16xf32>
    %585 = arith.select %582, %580, %584 : vector<1x16xi1>, vector<1x16xf32>
    %c0_202 = arith.constant 0 : index
    %c0_203 = arith.constant 0 : index
    %586 = vector.load %arg8[%c0_202, %c0_203] : memref<16x128xf32, #tpu.memory_space<vmem>>, vector<16x128xf32>
    %cst_204 = arith.constant dense<0.000000e+00> : vector<1x128xf32>
    %587 = tpu.matmul %585, %586, %cst_204 {dimension_numbers = #tpu.dot_dimension_numbers<[1], [0], [0], [1], [0, 0, 1, 1], [], []>} : vector<1x16xf32>, vector<16x128xf32>, vector<1x128xf32> -> vector<1x128xf32>
    %c0_205 = arith.constant 0 : index
    %c0_206 = arith.constant 0 : index
    %588 = vector.load %arg9[%c0_205, %c0_206] : memref<32x128xf32, #tpu.memory_space<vmem>>, vector<32x128xf32>
    %cst_207 = arith.constant dense<0.000000e+00> : vector<1x128xf32>
    %589 = tpu.matmul %556, %588, %cst_207 {dimension_numbers = #tpu.dot_dimension_numbers<[1], [0], [0], [1], [0, 0, 1, 1], [], []>} : vector<1x32xf32>, vector<32x128xf32>, vector<1x128xf32> -> vector<1x128xf32>
    %590 = arith.addf %587, %589 : vector<1x128xf32>
    %591 = arith.addf %590, %2 : vector<1x128xf32>
    %592 = arith.negf %591 : vector<1x128xf32>
    %593 = math.exp %592 : vector<1x128xf32>
    %cst_208 = arith.constant 1.000000e+00 : f32
    %594 = vector.broadcast %cst_208 : f32 to vector<1x128xf32>
    %595 = arith.addf %594, %593 : vector<1x128xf32>
    %596 = arith.divf %594, %595 : vector<1x128xf32>
    %597 = math.tanh %591 : vector<1x128xf32>
    %598 = vector.extract_strided_slice %596 {offsets = [0, 0], sizes = [1, 32], strides = [1, 1]} : vector<1x128xf32> to vector<1x32xf32>
    %599 = vector.extract_strided_slice %596 {offsets = [0, 32], sizes = [1, 32], strides = [1, 1]} : vector<1x128xf32> to vector<1x32xf32>
    %600 = vector.extract_strided_slice %597 {offsets = [0, 64], sizes = [1, 32], strides = [1, 1]} : vector<1x128xf32> to vector<1x32xf32>
    %601 = vector.extract_strided_slice %596 {offsets = [0, 96], sizes = [1, 32], strides = [1, 1]} : vector<1x128xf32> to vector<1x32xf32>
    %602 = arith.mulf %599, %554 : vector<1x32xf32>
    %603 = arith.mulf %598, %600 : vector<1x32xf32>
    %604 = arith.addf %602, %603 : vector<1x32xf32>
    %605 = math.tanh %604 : vector<1x32xf32>
    %606 = arith.mulf %601, %605 : vector<1x32xf32>
    %c0_209 = arith.constant 0 : index
    %c0_210 = arith.constant 0 : index
    %607 = vector.load %arg11[%c0_209, %c0_210] : memref<32x128xf32, #tpu.memory_space<vmem>>, vector<32x128xf32>
    %cst_211 = arith.constant dense<0.000000e+00> : vector<1x128xf32>
    %608 = tpu.matmul %606, %607, %cst_211 {dimension_numbers = #tpu.dot_dimension_numbers<[1], [0], [0], [1], [0, 0, 1, 1], [], []>} : vector<1x32xf32>, vector<32x128xf32>, vector<1x128xf32> -> vector<1x128xf32>
    %c0_212 = arith.constant 0 : index
    %c0_213 = arith.constant 0 : index
    %609 = vector.load %arg12[%c0_212, %c0_213] : memref<32x128xf32, #tpu.memory_space<vmem>>, vector<32x128xf32>
    %cst_214 = arith.constant dense<0.000000e+00> : vector<1x128xf32>
    %610 = tpu.matmul %577, %609, %cst_214 {dimension_numbers = #tpu.dot_dimension_numbers<[1], [0], [0], [1], [0, 0, 1, 1], [], []>} : vector<1x32xf32>, vector<32x128xf32>, vector<1x128xf32> -> vector<1x128xf32>
    %611 = arith.addf %608, %610 : vector<1x128xf32>
    %612 = arith.addf %611, %3 : vector<1x128xf32>
    %613 = arith.negf %612 : vector<1x128xf32>
    %614 = math.exp %613 : vector<1x128xf32>
    %cst_215 = arith.constant 1.000000e+00 : f32
    %615 = vector.broadcast %cst_215 : f32 to vector<1x128xf32>
    %616 = arith.addf %615, %614 : vector<1x128xf32>
    %617 = arith.divf %615, %616 : vector<1x128xf32>
    %618 = math.tanh %612 : vector<1x128xf32>
    %619 = vector.extract_strided_slice %617 {offsets = [0, 0], sizes = [1, 32], strides = [1, 1]} : vector<1x128xf32> to vector<1x32xf32>
    %620 = vector.extract_strided_slice %617 {offsets = [0, 32], sizes = [1, 32], strides = [1, 1]} : vector<1x128xf32> to vector<1x32xf32>
    %621 = vector.extract_strided_slice %618 {offsets = [0, 64], sizes = [1, 32], strides = [1, 1]} : vector<1x128xf32> to vector<1x32xf32>
    %622 = vector.extract_strided_slice %617 {offsets = [0, 96], sizes = [1, 32], strides = [1, 1]} : vector<1x128xf32> to vector<1x32xf32>
    %623 = arith.mulf %620, %575 : vector<1x32xf32>
    %624 = arith.mulf %619, %621 : vector<1x32xf32>
    %625 = arith.addf %623, %624 : vector<1x32xf32>
    %626 = math.tanh %625 : vector<1x32xf32>
    %627 = arith.mulf %622, %626 : vector<1x32xf32>
    %c0_216 = arith.constant 0 : index
    %c0_217 = arith.constant 0 : index
    %628 = vector.load %arg14[%c0_216, %c0_217] : memref<32x16xf32, #tpu.memory_space<vmem>>, vector<32x16xf32>
    %cst_218 = arith.constant dense<0.000000e+00> : vector<1x16xf32>
    %629 = tpu.matmul %627, %628, %cst_218 {dimension_numbers = #tpu.dot_dimension_numbers<[1], [0], [0], [1], [0, 0, 1, 1], [], []>} : vector<1x32xf32>, vector<32x16xf32>, vector<1x16xf32> -> vector<1x16xf32>
    %630 = arith.addf %629, %4 : vector<1x16xf32>
    %cst_219 = arith.constant 0.000000e+00 : f32
    %631 = vector.broadcast %cst_219 : f32 to vector<1x16xf32>
    %632 = arith.cmpf oge, %630, %631 : vector<1x16xf32>
    %cst_220 = arith.constant 0.00999999977 : f32
    %633 = vector.broadcast %cst_220 : f32 to vector<1x16xf32>
    %634 = arith.mulf %633, %630 : vector<1x16xf32>
    %635 = arith.select %632, %630, %634 : vector<1x16xi1>, vector<1x16xf32>
    %c0_221 = arith.constant 0 : index
    %c0_222 = arith.constant 0 : index
    %636 = vector.load %arg8[%c0_221, %c0_222] : memref<16x128xf32, #tpu.memory_space<vmem>>, vector<16x128xf32>
    %cst_223 = arith.constant dense<0.000000e+00> : vector<1x128xf32>
    %637 = tpu.matmul %635, %636, %cst_223 {dimension_numbers = #tpu.dot_dimension_numbers<[1], [0], [0], [1], [0, 0, 1, 1], [], []>} : vector<1x16xf32>, vector<16x128xf32>, vector<1x128xf32> -> vector<1x128xf32>
    %c0_224 = arith.constant 0 : index
    %c0_225 = arith.constant 0 : index
    %638 = vector.load %arg9[%c0_224, %c0_225] : memref<32x128xf32, #tpu.memory_space<vmem>>, vector<32x128xf32>
    %cst_226 = arith.constant dense<0.000000e+00> : vector<1x128xf32>
    %639 = tpu.matmul %606, %638, %cst_226 {dimension_numbers = #tpu.dot_dimension_numbers<[1], [0], [0], [1], [0, 0, 1, 1], [], []>} : vector<1x32xf32>, vector<32x128xf32>, vector<1x128xf32> -> vector<1x128xf32>
    %640 = arith.addf %637, %639 : vector<1x128xf32>
    %641 = arith.addf %640, %2 : vector<1x128xf32>
    %642 = arith.negf %641 : vector<1x128xf32>
    %643 = math.exp %642 : vector<1x128xf32>
    %cst_227 = arith.constant 1.000000e+00 : f32
    %644 = vector.broadcast %cst_227 : f32 to vector<1x128xf32>
    %645 = arith.addf %644, %643 : vector<1x128xf32>
    %646 = arith.divf %644, %645 : vector<1x128xf32>
    %647 = math.tanh %641 : vector<1x128xf32>
    %648 = vector.extract_strided_slice %646 {offsets = [0, 0], sizes = [1, 32], strides = [1, 1]} : vector<1x128xf32> to vector<1x32xf32>
    %649 = vector.extract_strided_slice %646 {offsets = [0, 32], sizes = [1, 32], strides = [1, 1]} : vector<1x128xf32> to vector<1x32xf32>
    %650 = vector.extract_strided_slice %647 {offsets = [0, 64], sizes = [1, 32], strides = [1, 1]} : vector<1x128xf32> to vector<1x32xf32>
    %651 = vector.extract_strided_slice %646 {offsets = [0, 96], sizes = [1, 32], strides = [1, 1]} : vector<1x128xf32> to vector<1x32xf32>
    %652 = arith.mulf %649, %604 : vector<1x32xf32>
    %653 = arith.mulf %648, %650 : vector<1x32xf32>
    %654 = arith.addf %652, %653 : vector<1x32xf32>
    %655 = math.tanh %654 : vector<1x32xf32>
    %656 = arith.mulf %651, %655 : vector<1x32xf32>
    %c0_228 = arith.constant 0 : index
    %c0_229 = arith.constant 0 : index
    %657 = vector.load %arg11[%c0_228, %c0_229] : memref<32x128xf32, #tpu.memory_space<vmem>>, vector<32x128xf32>
    %cst_230 = arith.constant dense<0.000000e+00> : vector<1x128xf32>
    %658 = tpu.matmul %656, %657, %cst_230 {dimension_numbers = #tpu.dot_dimension_numbers<[1], [0], [0], [1], [0, 0, 1, 1], [], []>} : vector<1x32xf32>, vector<32x128xf32>, vector<1x128xf32> -> vector<1x128xf32>
    %c0_231 = arith.constant 0 : index
    %c0_232 = arith.constant 0 : index
    %659 = vector.load %arg12[%c0_231, %c0_232] : memref<32x128xf32, #tpu.memory_space<vmem>>, vector<32x128xf32>
    %cst_233 = arith.constant dense<0.000000e+00> : vector<1x128xf32>
    %660 = tpu.matmul %627, %659, %cst_233 {dimension_numbers = #tpu.dot_dimension_numbers<[1], [0], [0], [1], [0, 0, 1, 1], [], []>} : vector<1x32xf32>, vector<32x128xf32>, vector<1x128xf32> -> vector<1x128xf32>
    %661 = arith.addf %658, %660 : vector<1x128xf32>
    %662 = arith.addf %661, %3 : vector<1x128xf32>
    %663 = arith.negf %662 : vector<1x128xf32>
    %664 = math.exp %663 : vector<1x128xf32>
    %cst_234 = arith.constant 1.000000e+00 : f32
    %665 = vector.broadcast %cst_234 : f32 to vector<1x128xf32>
    %666 = arith.addf %665, %664 : vector<1x128xf32>
    %667 = arith.divf %665, %666 : vector<1x128xf32>
    %668 = math.tanh %662 : vector<1x128xf32>
    %669 = vector.extract_strided_slice %667 {offsets = [0, 0], sizes = [1, 32], strides = [1, 1]} : vector<1x128xf32> to vector<1x32xf32>
    %670 = vector.extract_strided_slice %667 {offsets = [0, 32], sizes = [1, 32], strides = [1, 1]} : vector<1x128xf32> to vector<1x32xf32>
    %671 = vector.extract_strided_slice %668 {offsets = [0, 64], sizes = [1, 32], strides = [1, 1]} : vector<1x128xf32> to vector<1x32xf32>
    %672 = vector.extract_strided_slice %667 {offsets = [0, 96], sizes = [1, 32], strides = [1, 1]} : vector<1x128xf32> to vector<1x32xf32>
    %673 = arith.mulf %670, %625 : vector<1x32xf32>
    %674 = arith.mulf %669, %671 : vector<1x32xf32>
    %675 = arith.addf %673, %674 : vector<1x32xf32>
    %676 = math.tanh %675 : vector<1x32xf32>
    %677 = arith.mulf %672, %676 : vector<1x32xf32>
    %c0_235 = arith.constant 0 : index
    %c0_236 = arith.constant 0 : index
    %678 = vector.load %arg14[%c0_235, %c0_236] : memref<32x16xf32, #tpu.memory_space<vmem>>, vector<32x16xf32>
    %cst_237 = arith.constant dense<0.000000e+00> : vector<1x16xf32>
    %679 = tpu.matmul %677, %678, %cst_237 {dimension_numbers = #tpu.dot_dimension_numbers<[1], [0], [0], [1], [0, 0, 1, 1], [], []>} : vector<1x32xf32>, vector<32x16xf32>, vector<1x16xf32> -> vector<1x16xf32>
    %680 = arith.addf %679, %4 : vector<1x16xf32>
    %cst_238 = arith.constant 0.000000e+00 : f32
    %681 = vector.broadcast %cst_238 : f32 to vector<1x16xf32>
    %682 = arith.cmpf oge, %680, %681 : vector<1x16xf32>
    %cst_239 = arith.constant 0.00999999977 : f32
    %683 = vector.broadcast %cst_239 : f32 to vector<1x16xf32>
    %684 = arith.mulf %683, %680 : vector<1x16xf32>
    %685 = arith.select %682, %680, %684 : vector<1x16xi1>, vector<1x16xf32>
    %c0_240 = arith.constant 0 : index
    %c0_241 = arith.constant 0 : index
    %686 = vector.load %arg8[%c0_240, %c0_241] : memref<16x128xf32, #tpu.memory_space<vmem>>, vector<16x128xf32>
    %cst_242 = arith.constant dense<0.000000e+00> : vector<1x128xf32>
    %687 = tpu.matmul %685, %686, %cst_242 {dimension_numbers = #tpu.dot_dimension_numbers<[1], [0], [0], [1], [0, 0, 1, 1], [], []>} : vector<1x16xf32>, vector<16x128xf32>, vector<1x128xf32> -> vector<1x128xf32>
    %c0_243 = arith.constant 0 : index
    %c0_244 = arith.constant 0 : index
    %688 = vector.load %arg9[%c0_243, %c0_244] : memref<32x128xf32, #tpu.memory_space<vmem>>, vector<32x128xf32>
    %cst_245 = arith.constant dense<0.000000e+00> : vector<1x128xf32>
    %689 = tpu.matmul %656, %688, %cst_245 {dimension_numbers = #tpu.dot_dimension_numbers<[1], [0], [0], [1], [0, 0, 1, 1], [], []>} : vector<1x32xf32>, vector<32x128xf32>, vector<1x128xf32> -> vector<1x128xf32>
    %690 = arith.addf %687, %689 : vector<1x128xf32>
    %691 = arith.addf %690, %2 : vector<1x128xf32>
    %692 = arith.negf %691 : vector<1x128xf32>
    %693 = math.exp %692 : vector<1x128xf32>
    %cst_246 = arith.constant 1.000000e+00 : f32
    %694 = vector.broadcast %cst_246 : f32 to vector<1x128xf32>
    %695 = arith.addf %694, %693 : vector<1x128xf32>
    %696 = arith.divf %694, %695 : vector<1x128xf32>
    %697 = math.tanh %691 : vector<1x128xf32>
    %698 = vector.extract_strided_slice %696 {offsets = [0, 0], sizes = [1, 32], strides = [1, 1]} : vector<1x128xf32> to vector<1x32xf32>
    %699 = vector.extract_strided_slice %696 {offsets = [0, 32], sizes = [1, 32], strides = [1, 1]} : vector<1x128xf32> to vector<1x32xf32>
    %700 = vector.extract_strided_slice %697 {offsets = [0, 64], sizes = [1, 32], strides = [1, 1]} : vector<1x128xf32> to vector<1x32xf32>
    %701 = vector.extract_strided_slice %696 {offsets = [0, 96], sizes = [1, 32], strides = [1, 1]} : vector<1x128xf32> to vector<1x32xf32>
    %702 = arith.mulf %699, %654 : vector<1x32xf32>
    %703 = arith.mulf %698, %700 : vector<1x32xf32>
    %704 = arith.addf %702, %703 : vector<1x32xf32>
    %705 = math.tanh %704 : vector<1x32xf32>
    %706 = arith.mulf %701, %705 : vector<1x32xf32>
    %c0_247 = arith.constant 0 : index
    %c0_248 = arith.constant 0 : index
    %707 = vector.load %arg11[%c0_247, %c0_248] : memref<32x128xf32, #tpu.memory_space<vmem>>, vector<32x128xf32>
    %cst_249 = arith.constant dense<0.000000e+00> : vector<1x128xf32>
    %708 = tpu.matmul %706, %707, %cst_249 {dimension_numbers = #tpu.dot_dimension_numbers<[1], [0], [0], [1], [0, 0, 1, 1], [], []>} : vector<1x32xf32>, vector<32x128xf32>, vector<1x128xf32> -> vector<1x128xf32>
    %c0_250 = arith.constant 0 : index
    %c0_251 = arith.constant 0 : index
    %709 = vector.load %arg12[%c0_250, %c0_251] : memref<32x128xf32, #tpu.memory_space<vmem>>, vector<32x128xf32>
    %cst_252 = arith.constant dense<0.000000e+00> : vector<1x128xf32>
    %710 = tpu.matmul %677, %709, %cst_252 {dimension_numbers = #tpu.dot_dimension_numbers<[1], [0], [0], [1], [0, 0, 1, 1], [], []>} : vector<1x32xf32>, vector<32x128xf32>, vector<1x128xf32> -> vector<1x128xf32>
    %711 = arith.addf %708, %710 : vector<1x128xf32>
    %712 = arith.addf %711, %3 : vector<1x128xf32>
    %713 = arith.negf %712 : vector<1x128xf32>
    %714 = math.exp %713 : vector<1x128xf32>
    %cst_253 = arith.constant 1.000000e+00 : f32
    %715 = vector.broadcast %cst_253 : f32 to vector<1x128xf32>
    %716 = arith.addf %715, %714 : vector<1x128xf32>
    %717 = arith.divf %715, %716 : vector<1x128xf32>
    %718 = math.tanh %712 : vector<1x128xf32>
    %719 = vector.extract_strided_slice %717 {offsets = [0, 0], sizes = [1, 32], strides = [1, 1]} : vector<1x128xf32> to vector<1x32xf32>
    %720 = vector.extract_strided_slice %717 {offsets = [0, 32], sizes = [1, 32], strides = [1, 1]} : vector<1x128xf32> to vector<1x32xf32>
    %721 = vector.extract_strided_slice %718 {offsets = [0, 64], sizes = [1, 32], strides = [1, 1]} : vector<1x128xf32> to vector<1x32xf32>
    %722 = vector.extract_strided_slice %717 {offsets = [0, 96], sizes = [1, 32], strides = [1, 1]} : vector<1x128xf32> to vector<1x32xf32>
    %723 = arith.mulf %720, %675 : vector<1x32xf32>
    %724 = arith.mulf %719, %721 : vector<1x32xf32>
    %725 = arith.addf %723, %724 : vector<1x32xf32>
    %726 = math.tanh %725 : vector<1x32xf32>
    %727 = arith.mulf %722, %726 : vector<1x32xf32>
    %c0_254 = arith.constant 0 : index
    %c0_255 = arith.constant 0 : index
    %728 = vector.load %arg14[%c0_254, %c0_255] : memref<32x16xf32, #tpu.memory_space<vmem>>, vector<32x16xf32>
    %cst_256 = arith.constant dense<0.000000e+00> : vector<1x16xf32>
    %729 = tpu.matmul %727, %728, %cst_256 {dimension_numbers = #tpu.dot_dimension_numbers<[1], [0], [0], [1], [0, 0, 1, 1], [], []>} : vector<1x32xf32>, vector<32x16xf32>, vector<1x16xf32> -> vector<1x16xf32>
    %730 = arith.addf %729, %4 : vector<1x16xf32>
    %cst_257 = arith.constant 0.000000e+00 : f32
    %731 = vector.broadcast %cst_257 : f32 to vector<1x16xf32>
    %732 = arith.cmpf oge, %730, %731 : vector<1x16xf32>
    %cst_258 = arith.constant 0.00999999977 : f32
    %733 = vector.broadcast %cst_258 : f32 to vector<1x16xf32>
    %734 = arith.mulf %733, %730 : vector<1x16xf32>
    %735 = arith.select %732, %730, %734 : vector<1x16xi1>, vector<1x16xf32>
    %736 = tpu.concatenate %385, %435, %485, %535, %585, %635, %685, %735 in 0 : vector<1x16xf32>, vector<1x16xf32>, vector<1x16xf32>, vector<1x16xf32>, vector<1x16xf32>, vector<1x16xf32>, vector<1x16xf32>, vector<1x16xf32> -> vector<8x16xf32>
    %737 = vector.shape_cast %736 : vector<8x16xf32> to vector<1x8x16xf32>
    %c0_259 = arith.constant 0 : index
    %c0_260 = arith.constant 0 : index
    %c0_261 = arith.constant 0 : index
    %738 = vector.load %arg16[%c0_259, %c0_260, %c0_261] : memref<1x8x16xf32, #tpu.memory_space<vmem>>, vector<1x8x16xf32>
    tpu.vector_store %arg16[%c0_259, %c0_260, %c0_261], %737 {strides = array<i32>} : memref<1x8x16xf32, #tpu.memory_space<vmem>>, vector<1x8x16xf32>,
    return
  }
  func.func @transform_0(%arg0: i32) -> (i32, i32, i32) {
    %c0_i32 = arith.constant 0 : i32
    %c0_i32_0 = arith.constant 0 : i32
    %c0_i32_1 = arith.constant 0 : i32
    return %arg0, %c0_i32, %c0_i32_0 : i32, i32, i32
  }
  func.func @transform_1(%arg0: i32) -> (i32, i32) {
    %c0_i32 = arith.constant 0 : i32
    %c0_i32_0 = arith.constant 0 : i32
    %c0_i32_1 = arith.constant 0 : i32
    return %c0_i32, %c0_i32_0 : i32, i32
  }
  func.func @transform_2(%arg0: i32) -> (i32, i32) {
    %c0_i32 = arith.constant 0 : i32
    %c0_i32_0 = arith.constant 0 : i32
    %c0_i32_1 = arith.constant 0 : i32
    return %c0_i32, %c0_i32_0 : i32, i32
  }
  func.func @transform_3(%arg0: i32) -> (i32, i32) {
    %c0_i32 = arith.constant 0 : i32
    %c0_i32_0 = arith.constant 0 : i32
    %c0_i32_1 = arith.constant 0 : i32
    return %c0_i32, %c0_i32_0 : i32, i32
  }
  func.func @transform_4(%arg0: i32) -> (i32, i32) {
    %c0_i32 = arith.constant 0 : i32
    %c0_i32_0 = arith.constant 0 : i32
    %c0_i32_1 = arith.constant 0 : i32
    return %c0_i32, %c0_i32_0 : i32, i32
  }
  func.func @transform_5(%arg0: i32) -> (i32, i32) {
    %c0_i32 = arith.constant 0 : i32
    %c0_i32_0 = arith.constant 0 : i32
    %c0_i32_1 = arith.constant 0 : i32
    return %c0_i32, %c0_i32_0 : i32, i32
  }
  func.func @transform_6(%arg0: i32) -> (i32, i32) {
    %c0_i32 = arith.constant 0 : i32
    %c0_i32_0 = arith.constant 0 : i32
    %c0_i32_1 = arith.constant 0 : i32
    return %c0_i32, %c0_i32_0 : i32, i32
  }
  func.func @transform_7(%arg0: i32) -> (i32, i32) {
    %c0_i32 = arith.constant 0 : i32
    %c0_i32_0 = arith.constant 0 : i32
    %c0_i32_1 = arith.constant 0 : i32
    return %c0_i32, %c0_i32_0 : i32, i32
  }
  func.func @transform_8(%arg0: i32) -> (i32, i32) {
    %c0_i32 = arith.constant 0 : i32
    %c0_i32_0 = arith.constant 0 : i32
    %c0_i32_1 = arith.constant 0 : i32
    return %c0_i32, %c0_i32_0 : i32, i32
  }
  func.func @transform_9(%arg0: i32) -> (i32, i32) {
    %c0_i32 = arith.constant 0 : i32
    %c0_i32_0 = arith.constant 0 : i32
    %c0_i32_1 = arith.constant 0 : i32
    return %c0_i32, %c0_i32_0 : i32, i32
  }
  func.func @transform_10(%arg0: i32) -> (i32, i32) {
    %c0_i32 = arith.constant 0 : i32
    %c0_i32_0 = arith.constant 0 : i32
    %c0_i32_1 = arith.constant 0 : i32
    return %c0_i32, %c0_i32_0 : i32, i32
  }
  func.func @transform_11(%arg0: i32) -> (i32, i32) {
    %c0_i32 = arith.constant 0 : i32
    %c0_i32_0 = arith.constant 0 : i32
    %c0_i32_1 = arith.constant 0 : i32
    return %c0_i32, %c0_i32_0 : i32, i32
  }
  func.func @transform_12(%arg0: i32) -> (i32, i32) {
    %c0_i32 = arith.constant 0 : i32
    %c0_i32_0 = arith.constant 0 : i32
    %c0_i32_1 = arith.constant 0 : i32
    return %c0_i32, %c0_i32_0 : i32, i32
  }
  func.func @transform_13(%arg0: i32) -> (i32, i32) {
    %c0_i32 = arith.constant 0 : i32
    %c0_i32_0 = arith.constant 0 : i32
    %c0_i32_1 = arith.constant 0 : i32
    return %c0_i32, %c0_i32_0 : i32, i32
  }
  func.func @transform_14(%arg0: i32) -> (i32, i32) {
    %c0_i32 = arith.constant 0 : i32
    %c0_i32_0 = arith.constant 0 : i32
    %c0_i32_1 = arith.constant 0 : i32
    return %c0_i32, %c0_i32_0 : i32, i32
  }
  func.func @transform_15(%arg0: i32) -> (i32, i32, i32) {
    %c0_i32 = arith.constant 0 : i32
    %c0_i32_0 = arith.constant 0 : i32
    %c0_i32_1 = arith.constant 0 : i32
    return %arg0, %c0_i32, %c0_i32_0 : i32, i32, i32
  }
}

</mosaic_0001>

<llo_original>
// kernel: tpu_custom_call.1
$region0: #{tpu_custom_call.1}
  #allocation0 [shape = 'u32[]', space=smem, size = 0x4, offset = 0x4, fixed_abs, tag = 'smem constant byte address 0x4 - core index']
  #allocation1 [shape = 'u32[144,128]{1,0:T(1,128)}', space=vmem, size = 0x12000, scoped, tag = 'internal scratch']
  %s0 = inlined_call_operand.hbm [shape: f32[2,8,16], index: 0, kind: input, shape index: {}]
  %s1 = inlined_call_operand.hbm [shape: f32[16,128], index: 1, kind: input, shape index: {}]
  %s2 = inlined_call_operand.vmem [shape: f32[32,128], index: 2, kind: input, shape index: {}]
  %s3 = inlined_call_operand.hbm [shape: f32[1,128], index: 3, kind: input, shape index: {}]
  %s4 = inlined_call_operand.hbm [shape: f32[32,128], index: 4, kind: input, shape index: {}]
  %s5 = inlined_call_operand.hbm [shape: f32[32,128], index: 5, kind: input, shape index: {}]
  %s6 = inlined_call_operand.hbm [shape: f32[1,128], index: 6, kind: input, shape index: {}]
  %s7 = inlined_call_operand.hbm [shape: f32[16,128], index: 7, kind: input, shape index: {}]
  %s8 = inlined_call_operand.hbm [shape: f32[32,128], index: 8, kind: input, shape index: {}]
  %s9 = inlined_call_operand.hbm [shape: f32[1,128], index: 9, kind: input, shape index: {}]
  %s10 = inlined_call_operand.vmem [shape: f32[32,128], index: 10, kind: input, shape index: {}]
  %s11 = inlined_call_operand.hbm [shape: f32[32,128], index: 11, kind: input, shape index: {}]
  %s12 = inlined_call_operand.vmem [shape: f32[1,128], index: 12, kind: input, shape index: {}]
  %s13 = inlined_call_operand.vmem [shape: f32[32,16], index: 13, kind: input, shape index: {}]
  %s14 = inlined_call_operand.vmem [shape: f32[1,16], index: 14, kind: input, shape index: {}]
  %s15 = inlined_call_operand.hbm [shape: f32[2,8,16], index: 15, kind: output, shape index: {}]
  %s16 = sld [smem:[#allocation0]]
  $region133: #{tpu_custom_call.1} parent=0
    _
  %s18 = ssub.s32 1, %s16
  %s19 = scalar_select 0, %s18, %s16
  $region1: #{tpu_custom_call.1} parent=0
    #allocation2 [shape = 'u8[8192]{0}', space=vmem, size = 0x2000, scoped, tag = 'input window, operand 0']
    #allocation3 [shape = 's32[2]{0}', space=sflag, size = 0x8, scoped, tag = 'scoped memory for tpu_custom_call.1']
    #allocation4 [shape = 's32[2]{0}', space=sflag, size = 0x8, scoped, tag = 'scoped memory for tpu_custom_call.1']
    #allocation5 [shape = 'u8[8192]{0}', space=vmem, size = 0x2000, scoped, tag = 'input window, operand 1, single buffered']
    #allocation6 [shape = 's32[1]{0}', space=sflag, size = 0x4, scoped, tag = 'scoped memory for tpu_custom_call.1']
    #allocation7 [shape = 'u8[512]{0}', space=vmem, size = 0x400, scoped, tag = 'input window, operand 3, single buffered']
    #allocation8 [shape = 'u8[16384]{0}', space=vmem, size = 0x4000, scoped, tag = 'input window, operand 4, single buffered']
    #allocation9 [shape = 's32[1]{0}', space=sflag, size = 0x4, scoped, tag = 'scoped memory for tpu_custom_call.1']
    #allocation10 [shape = 'u8[16384]{0}', space=vmem, size = 0x4000, scoped, tag = 'input window, operand 5, single buffered']
    #allocation11 [shape = 'u8[512]{0}', space=vmem, size = 0x400, scoped, tag = 'input window, operand 6, single buffered']
    #allocation12 [shape = 's32[1]{0}', space=sflag, size = 0x4, scoped, tag = 'scoped memory for tpu_custom_call.1']
    #allocation13 [shape = 'u8[8192]{0}', space=vmem, size = 0x2000, scoped, tag = 'input window, operand 7, single buffered']
    #allocation14 [shape = 'u8[16384]{0}', space=vmem, size = 0x4000, scoped, tag = 'input window, operand 8, single buffered']
    #allocation15 [shape = 's32[1]{0}', space=sflag, size = 0x4, scoped, tag = 'scoped memory for tpu_custom_call.1']
    #allocation16 [shape = 'u8[512]{0}', space=vmem, size = 0x400, scoped, tag = 'input window, operand 9, single buffered']
    #allocation17 [shape = 'u8[16384]{0}', space=vmem, size = 0x4000, scoped, tag = 'input window, operand 11, single buffered']
    #allocation18 [shape = 's32[1]{0}', space=sflag, size = 0x4, scoped, tag = 'scoped memory for tpu_custom_call.1']
    #allocation19 [shape = 'u8[8192]{0}', space=vmem, size = 0x2000, scoped, tag = 'output window, operand 0']
    %20 = vsyncpa [#allocation3], 0
    %s21 = scalar_lea.sflag [#allocation3], 1
    %22 = vsyncpa %s21, 0
    %23 = vsyncpa [#allocation6], 0
    %24 = vsyncpa [#allocation9], 0
    %25 = vsyncpa [#allocation12], 0
    %26 = vsyncpa [#allocation15], 0
    %27 = vsyncpa [#allocation18], 0
    %28 = vsyncpa [#allocation4], 0
    %s29 = scalar_lea.sflag [#allocation4], 1
    %30 = vsyncpa %s29, 0
    loop: start=0, step=1, limit=4
    $region2: #{tpu_custom_call.1} parent=1 // loop_pre_header
      _
    $region3: #{tpu_custom_call.1} parent=1 // loop_header
      %s32 = sphi 0, %s36
      %p33 = scmp.ge.s32.totalorder %s32, 4
      %s42 = sphi 0, %s44
      %s45 = sphi 0, %s42
      %s46 = sphi 0, %s45
      %s62 = sphi 0, %s46
      %s66 = sphi 0, %s66
      %s68 = sphi 0, %s66
      %s69 = sphi 0, %s68
      %s83 = sphi 0, %s69
      %s87 = sphi 0, %s87
      %s89 = sphi 0, %s87
      %s90 = sphi 0, %s89
      %s104 = sphi 0, %s90
      %s108 = sphi 0, %s108
      %s110 = sphi 0, %s108
      %s111 = sphi 0, %s110
      %s125 = sphi 0, %s111
      %s129 = sphi 0, %s129
      %s131 = sphi 0, %s129
      %s132 = sphi 0, %s131
      %s146 = sphi 0, %s132
      %s150 = sphi 0, %s150
      %s152 = sphi 0, %s150
      %s153 = sphi 0, %s152
      %s167 = sphi 0, %s153
      %s171 = sphi 0, %s171
      %s173 = sphi 0, %s171
      %s174 = sphi 0, %s173
      %s188 = sphi 0, %s174
      %s192 = sphi 0, %s192
      %s194 = sphi 0, %s192
      %s195 = sphi 0, %s194
      %s209 = sphi 0, %s195
      %s213 = sphi 0, %s213
      %s215 = sphi 0, %s213
      %s216 = sphi 0, %s215
      %s230 = sphi 0, %s216
      %s234 = sphi 0, %s234
      %s236 = sphi 0, %s234
      %s237 = sphi 0, %s236
      %s251 = sphi 0, %s237
      %s255 = sphi 0, %s255
      %s257 = sphi 0, %s255
      %s258 = sphi 0, %s257
      %s272 = sphi 0, %s258
      %s276 = sphi 0, %s276
      %s278 = sphi 0, %s276
      %s279 = sphi 0, %s278
      %s293 = sphi 0, %s279
      %s297 = sphi 0, %s297
      %s299 = sphi 0, %s297
      %s300 = sphi 0, %s299
      %s314 = sphi 0, %s300
      %s318 = sphi 0, %s318
      %s320 = sphi 0, %s318
      %s321 = sphi 0, %s320
      %s335 = sphi 0, %s321
      %s339 = sphi 0, %s339
      %s341 = sphi 0, %s339
      %s342 = sphi 0, %s341
      %s356 = sphi 0, %s342
      %s362 = sphi 0, %s364
      %s365 = sphi 0, %s362
      %s366 = sphi 0, %s365
      %s382 = sphi 0, %s366
    $region4: #{tpu_custom_call.1} parent=1 // loop_header_branch
      %35 = sbr.rel (%p33) target = $region8
    $region5: #{tpu_custom_call.1} parent=1 // loop_body
      %s37 = ssub.s32 %s32, 1
      %s38 = ssub.s32 %s32, 2
      %s39 = sadd.s32 %s32, 1
      %s40 = ssub.s32 %s32, %s39
      %p41 = scmp.eq.s32.totalorder %s40, 0
      %s43 = sadd.s32 %s42, 1
      %s44 = scalar_select %p41, %s42, %s43
      %p47 = pneg %p41
      %p48 = scmp.eq.s32.totalorder %s32, 1
      %p49 = por %p47, %p48
      %p50 = scmp.ne.s32.totalorder %s42, %s45
      %p51 = scmp.eq.s32.totalorder %s32, 0
      %p52 = por %p50, %p51
      %p53 = scmp.ne.s32.totalorder %s42, %s45
      %p54 = scmp.eq.s32.totalorder %s37, 1
      %p55 = por %p53, %p54
      %p56 = scmp.ne.s32.totalorder %s45, %s46
      %p57 = scmp.eq.s32.totalorder %s37, 0
      %p58 = por %p56, %p57
      %p59 = scmp.ne.s32.totalorder %s45, %s46
      %p60 = scmp.eq.s32.totalorder %s38, 1
      %p61 = por %p59, %p60
      %p63 = scmp.ne.s32.totalorder %s46, %s62
      %p64 = scmp.eq.s32.totalorder %s38, 0
      %p65 = por %p63, %p64
      %s67 = sadd.s32 %s66, 1
      %p70 = scmp.eq.s32.totalorder %s32, 1
      %p71 = scmp.ne.s32.totalorder %s66, %s68
      %p72 = scmp.eq.s32.totalorder %s32, 0
      %p73 = por %p71, %p72
      %p74 = scmp.ne.s32.totalorder %s66, %s68
      %p75 = scmp.eq.s32.totalorder %s37, 1
      %p76 = por %p74, %p75
      %p77 = scmp.ne.s32.totalorder %s68, %s69
      %p78 = scmp.eq.s32.totalorder %s37, 0
      %p79 = por %p77, %p78
      %p80 = scmp.ne.s32.totalorder %s68, %s69
      %p81 = scmp.eq.s32.totalorder %s38, 1
      %p82 = por %p80, %p81
      %p84 = scmp.ne.s32.totalorder %s69, %s83
      %p85 = scmp.eq.s32.totalorder %s38, 0
      %p86 = por %p84, %p85
      %s88 = sadd.s32 %s87, 1
      %p91 = scmp.eq.s32.totalorder %s32, 1
      %p92 = scmp.ne.s32.totalorder %s87, %s89
      %p93 = scmp.eq.s32.totalorder %s32, 0
      %p94 = por %p92, %p93
      %p95 = scmp.ne.s32.totalorder %s87, %s89
      %p96 = scmp.eq.s32.totalorder %s37, 1
      %p97 = por %p95, %p96
      %p98 = scmp.ne.s32.totalorder %s89, %s90
      %p99 = scmp.eq.s32.totalorder %s37, 0
      %p100 = por %p98, %p99
      %p101 = scmp.ne.s32.totalorder %s89, %s90
      %p102 = scmp.eq.s32.totalorder %s38, 1
      %p103 = por %p101, %p102
      %p105 = scmp.ne.s32.totalorder %s90, %s104
      %p106 = scmp.eq.s32.totalorder %s38, 0
      %p107 = por %p105, %p106
      %s109 = sadd.s32 %s108, 1
      %p112 = scmp.eq.s32.totalorder %s32, 1
      %p113 = scmp.ne.s32.totalorder %s108, %s110
      %p114 = scmp.eq.s32.totalorder %s32, 0
      %p115 = por %p113, %p114
      %p116 = scmp.ne.s32.totalorder %s108, %s110
      %p117 = scmp.eq.s32.totalorder %s37, 1
      %p118 = por %p116, %p117
      %p119 = scmp.ne.s32.totalorder %s110, %s111
      %p120 = scmp.eq.s32.totalorder %s37, 0
      %p121 = por %p119, %p120
      %p122 = scmp.ne.s32.totalorder %s110, %s111
      %p123 = scmp.eq.s32.totalorder %s38, 1
      %p124 = por %p122, %p123
      %p126 = scmp.ne.s32.totalorder %s111, %s125
      %p127 = scmp.eq.s32.totalorder %s38, 0
      %p128 = por %p126, %p127
      %s130 = sadd.s32 %s129, 1
      %p133 = scmp.eq.s32.totalorder %s32, 1
      %p134 = scmp.ne.s32.totalorder %s129, %s131
      %p135 = scmp.eq.s32.totalorder %s32, 0
      %p136 = por %p134, %p135
      %p137 = scmp.ne.s32.totalorder %s129, %s131
      %p138 = scmp.eq.s32.totalorder %s37, 1
      %p139 = por %p137, %p138
      %p140 = scmp.ne.s32.totalorder %s131, %s132
      %p141 = scmp.eq.s32.totalorder %s37, 0
      %p142 = por %p140, %p141
      %p143 = scmp.ne.s32.totalorder %s131, %s132
      %p144 = scmp.eq.s32.totalorder %s38, 1
      %p145 = por %p143, %p144
      %p147 = scmp.ne.s32.totalorder %s132, %s146
      %p148 = scmp.eq.s32.totalorder %s38, 0
      %p149 = por %p147, %p148
      %s151 = sadd.s32 %s150, 1
      %p154 = scmp.eq.s32.totalorder %s32, 1
      %p155 = scmp.ne.s32.totalorder %s150, %s152
      %p156 = scmp.eq.s32.totalorder %s32, 0
      %p157 = por %p155, %p156
      %p158 = scmp.ne.s32.totalorder %s150, %s152
      %p159 = scmp.eq.s32.totalorder %s37, 1
      %p160 = por %p158, %p159
      %p161 = scmp.ne.s32.totalorder %s152, %s153
      %p162 = scmp.eq.s32.totalorder %s37, 0
      %p163 = por %p161, %p162
      %p164 = scmp.ne.s32.totalorder %s152, %s153
      %p165 = scmp.eq.s32.totalorder %s38, 1
      %p166 = por %p164, %p165
      %p168 = scmp.ne.s32.totalorder %s153, %s167
      %p169 = scmp.eq.s32.totalorder %s38, 0
      %p170 = por %p168, %p169
      %s172 = sadd.s32 %s171, 1
      %p175 = scmp.eq.s32.totalorder %s32, 1
      %p176 = scmp.ne.s32.totalorder %s171, %s173
      %p177 = scmp.eq.s32.totalorder %s32, 0
      %p178 = por %p176, %p177
      %p179 = scmp.ne.s32.totalorder %s171, %s173
      %p180 = scmp.eq.s32.totalorder %s37, 1
      %p181 = por %p179, %p180
      %p182 = scmp.ne.s32.totalorder %s173, %s174
      %p183 = scmp.eq.s32.totalorder %s37, 0
      %p184 = por %p182, %p183
      %p185 = scmp.ne.s32.totalorder %s173, %s174
      %p186 = scmp.eq.s32.totalorder %s38, 1
      %p187 = por %p185, %p186
      %p189 = scmp.ne.s32.totalorder %s174, %s188
      %p190 = scmp.eq.s32.totalorder %s38, 0
      %p191 = por %p189, %p190
      %s193 = sadd.s32 %s192, 1
      %p196 = scmp.eq.s32.totalorder %s32, 1
      %p197 = scmp.ne.s32.totalorder %s192, %s194
      %p198 = scmp.eq.s32.totalorder %s32, 0
      %p199 = por %p197, %p198
      %p200 = scmp.ne.s32.totalorder %s192, %s194
      %p201 = scmp.eq.s32.totalorder %s37, 1
      %p202 = por %p200, %p201
      %p203 = scmp.ne.s32.totalorder %s194, %s195
      %p204 = scmp.eq.s32.totalorder %s37, 0
      %p205 = por %p203, %p204
      %p206 = scmp.ne.s32.totalorder %s194, %s195
      %p207 = scmp.eq.s32.totalorder %s38, 1
      %p208 = por %p206, %p207
      %p210 = scmp.ne.s32.totalorder %s195, %s209
      %p211 = scmp.eq.s32.totalorder %s38, 0
      %p212 = por %p210, %p211
      %s214 = sadd.s32 %s213, 1
      %p217 = scmp.eq.s32.totalorder %s32, 1
      %p218 = scmp.ne.s32.totalorder %s213, %s215
      %p219 = scmp.eq.s32.totalorder %s32, 0
      %p220 = por %p218, %p219
      %p221 = scmp.ne.s32.totalorder %s213, %s215
      %p222 = scmp.eq.s32.totalorder %s37, 1
      %p223 = por %p221, %p222
      %p224 = scmp.ne.s32.totalorder %s215, %s216
      %p225 = scmp.eq.s32.totalorder %s37, 0
      %p226 = por %p224, %p225
      %p227 = scmp.ne.s32.totalorder %s215, %s216
      %p228 = scmp.eq.s32.totalorder %s38, 1
      %p229 = por %p227, %p228
      %p231 = scmp.ne.s32.totalorder %s216, %s230
      %p232 = scmp.eq.s32.totalorder %s38, 0
      %p233 = por %p231, %p232
      %s235 = sadd.s32 %s234, 1
      %p238 = scmp.eq.s32.totalorder %s32, 1
      %p239 = scmp.ne.s32.totalorder %s234, %s236
      %p240 = scmp.eq.s32.totalorder %s32, 0
      %p241 = por %p239, %p240
      %p242 = scmp.ne.s32.totalorder %s234, %s236
      %p243 = scmp.eq.s32.totalorder %s37, 1
      %p244 = por %p242, %p243
      %p245 = scmp.ne.s32.totalorder %s236, %s237
      %p246 = scmp.eq.s32.totalorder %s37, 0
      %p247 = por %p245, %p246
      %p248 = scmp.ne.s32.totalorder %s236, %s237
      %p249 = scmp.eq.s32.totalorder %s38, 1
      %p250 = por %p248, %p249
      %p252 = scmp.ne.s32.totalorder %s237, %s251
      %p253 = scmp.eq.s32.totalorder %s38, 0
      %p254 = por %p252, %p253
      %s256 = sadd.s32 %s255, 1
      %p259 = scmp.eq.s32.totalorder %s32, 1
      %p260 = scmp.ne.s32.totalorder %s255, %s257
      %p261 = scmp.eq.s32.totalorder %s32, 0
      %p262 = por %p260, %p261
      %p263 = scmp.ne.s32.totalorder %s255, %s257
      %p264 = scmp.eq.s32.totalorder %s37, 1
      %p265 = por %p263, %p264
      %p266 = scmp.ne.s32.totalorder %s257, %s258
      %p267 = scmp.eq.s32.totalorder %s37, 0
      %p268 = por %p266, %p267
      %p269 = scmp.ne.s32.totalorder %s257, %s258
      %p270 = scmp.eq.s32.totalorder %s38, 1
      %p271 = por %p269, %p270
      %p273 = scmp.ne.s32.totalorder %s258, %s272
      %p274 = scmp.eq.s32.totalorder %s38, 0
      %p275 = por %p273, %p274
      %s277 = sadd.s32 %s276, 1
      %p280 = scmp.eq.s32.totalorder %s32, 1
      %p281 = scmp.ne.s32.totalorder %s276, %s278
      %p282 = scmp.eq.s32.totalorder %s32, 0
      %p283 = por %p281, %p282
      %p284 = scmp.ne.s32.totalorder %s276, %s278
      %p285 = scmp.eq.s32.totalorder %s37, 1
      %p286 = por %p284, %p285
      %p287 = scmp.ne.s32.totalorder %s278, %s279
      %p288 = scmp.eq.s32.totalorder %s37, 0
      %p289 = por %p287, %p288
      %p290 = scmp.ne.s32.totalorder %s278, %s279
      %p291 = scmp.eq.s32.totalorder %s38, 1
      %p292 = por %p290, %p291
      %p294 = scmp.ne.s32.totalorder %s279, %s293
      %p295 = scmp.eq.s32.totalorder %s38, 0
      %p296 = por %p294, %p295
      %s298 = sadd.s32 %s297, 1
      %p301 = scmp.eq.s32.totalorder %s32, 1
      %p302 = scmp.ne.s32.totalorder %s297, %s299
      %p303 = scmp.eq.s32.totalorder %s32, 0
      %p304 = por %p302, %p303
      %p305 = scmp.ne.s32.totalorder %s297, %s299
      %p306 = scmp.eq.s32.totalorder %s37, 1
      %p307 = por %p305, %p306
      %p308 = scmp.ne.s32.totalorder %s299, %s300
      %p309 = scmp.eq.s32.totalorder %s37, 0
      %p310 = por %p308, %p309
      %p311 = scmp.ne.s32.totalorder %s299, %s300
      %p312 = scmp.eq.s32.totalorder %s38, 1
      %p313 = por %p311, %p312
      %p315 = scmp.ne.s32.totalorder %s300, %s314
      %p316 = scmp.eq.s32.totalorder %s38, 0
      %p317 = por %p315, %p316
      %s319 = sadd.s32 %s318, 1
      %p322 = scmp.eq.s32.totalorder %s32, 1
      %p323 = scmp.ne.s32.totalorder %s318, %s320
      %p324 = scmp.eq.s32.totalorder %s32, 0
      %p325 = por %p323, %p324
      %p326 = scmp.ne.s32.totalorder %s318, %s320
      %p327 = scmp.eq.s32.totalorder %s37, 1
      %p328 = por %p326, %p327
      %p329 = scmp.ne.s32.totalorder %s320, %s321
      %p330 = scmp.eq.s32.totalorder %s37, 0
      %p331 = por %p329, %p330
      %p332 = scmp.ne.s32.totalorder %s320, %s321
      %p333 = scmp.eq.s32.totalorder %s38, 1
      %p334 = por %p332, %p333
      %p336 = scmp.ne.s32.totalorder %s321, %s335
      %p337 = scmp.eq.s32.totalorder %s38, 0
      %p338 = por %p336, %p337
      %s340 = sadd.s32 %s339, 1
      %p343 = scmp.eq.s32.totalorder %s32, 1
      %p344 = scmp.ne.s32.totalorder %s339, %s341
      %p345 = scmp.eq.s32.totalorder %s32, 0
      %p346 = por %p344, %p345
      %p347 = scmp.ne.s32.totalorder %s339, %s341
      %p348 = scmp.eq.s32.totalorder %s37, 1
      %p349 = por %p347, %p348
      %p350 = scmp.ne.s32.totalorder %s341, %s342
      %p351 = scmp.eq.s32.totalorder %s37, 0
      %p352 = por %p350, %p351
      %p353 = scmp.ne.s32.totalorder %s341, %s342
      %p354 = scmp.eq.s32.totalorder %s38, 1
      %p355 = por %p353, %p354
      %p357 = scmp.ne.s32.totalorder %s342, %s356
      %p358 = scmp.eq.s32.totalorder %s38, 0
      %p359 = por %p357, %p358
      %s360 = ssub.s32 %s32, %s39
      %p361 = scmp.eq.s32.totalorder %s360, 0
      %s363 = sadd.s32 %s362, 1
      %s364 = scalar_select %p361, %s362, %s363
      %p367 = pneg %p361
      %p368 = scmp.eq.s32.totalorder %s32, 1
      %p369 = por %p367, %p368
      %p370 = scmp.ne.s32.totalorder %s362, %s365
      %p371 = scmp.eq.s32.totalorder %s32, 0
      %p372 = por %p370, %p371
      %p373 = scmp.ne.s32.totalorder %s362, %s365
      %p374 = scmp.eq.s32.totalorder %s37, 1
      %p375 = por %p373, %p374
      %p376 = scmp.ne.s32.totalorder %s365, %s366
      %p377 = scmp.eq.s32.totalorder %s37, 0
      %p378 = por %p376, %p377
      %p379 = scmp.ne.s32.totalorder %s365, %s366
      %p380 = scmp.eq.s32.totalorder %s38, 1
      %p381 = por %p379, %p380
      %p383 = scmp.ne.s32.totalorder %s366, %s382
      %p384 = scmp.eq.s32.totalorder %s38, 0
      %p385 = por %p383, %p384
      %p386 = scmp.le.s32.totalorder 1, %s32
      %p387 = scmp.lt.s32.totalorder %s32, 3
      %p388 = pnand %p386, %p387
      %p389 = pneg %p388
      // Predicated region
      $region9: #{tpu_custom_call.1} parent=5 // pred_check
        _
      $region10: #{tpu_custom_call.1} parent=5 // pred_check_branch
        %391 = sbr.rel (%p388) target = $region12
      $region11: #{tpu_custom_call.1} parent=5 // pred_region
        %s392 = ssub.s32 %s32, 1
        // Predicated region
        $region13: #{tpu_custom_call.1} parent=11 // pred_check
          %p393 = pneg %p79
        $region14: #{tpu_custom_call.1} parent=11 // pred_check_branch
          %395 = sbr.rel (%p393) target = $region16
        $region15: #{tpu_custom_call.1} parent=11 // pred_region
          %s397 = ssub.s32 256, 256
          %398 = vsyncadd [#allocation6], %s397
          %s399 = sshll.u32 [#allocation5], 4
          %s400 = int_to_ptr.vmem [resolvable:$true] %s399
          %405 = dma.hbm_to_vmem [thread:$0]  %s1, 256, %s400, [#allocation6], 128, 128, 8
        $region16: #{tpu_custom_call.1} parent=11 // pred_fallthru
          _
        // Predicated region
        $region17: #{tpu_custom_call.1} parent=11 // pred_check
          %p406 = pneg %p100
        $region18: #{tpu_custom_call.1} parent=11 // pred_check_branch
          %408 = sbr.rel (%p406) target = $region20
        $region19: #{tpu_custom_call.1} parent=11 // pred_region
          _
        $region20: #{tpu_custom_call.1} parent=11 // pred_fallthru
          _
        // Predicated region
        $region21: #{tpu_custom_call.1} parent=11 // pred_check
          %p409 = pneg %p121
        $region22: #{tpu_custom_call.1} parent=11 // pred_check_branch
          %411 = sbr.rel (%p409) target = $region24
        $region23: #{tpu_custom_call.1} parent=11 // pred_region
          %s413 = ssub.s32 16, 16
          %414 = vsyncadd [#allocation6], %s413
          %s416 = sshll.u32 [#allocation7], 4
          %s417 = int_to_ptr.vmem [resolvable:$true] %s416
          %419 = dma.hbm_to_vmem [thread:$0]  %s3, 16, %s417, [#allocation6]
        $region24: #{tpu_custom_call.1} parent=11 // pred_fallthru
          _
        // Predicated region
        $region25: #{tpu_custom_call.1} parent=11 // pred_check
          %p420 = pneg %p142
        $region26: #{tpu_custom_call.1} parent=11 // pred_check_branch
          %422 = sbr.rel (%p420) target = $region28
        $region27: #{tpu_custom_call.1} parent=11 // pred_region
          %s424 = ssub.s32 512, 512
          %425 = vsyncadd [#allocation9], %s424
          %s426 = sshll.u32 [#allocation8], 4
          %s427 = int_to_ptr.vmem [resolvable:$true] %s426
          %432 = dma.hbm_to_vmem [thread:$0]  %s4, 512, %s427, [#allocation9], 128, 128, 8
        $region28: #{tpu_custom_call.1} parent=11 // pred_fallthru
          _
        // Predicated region
        $region29: #{tpu_custom_call.1} parent=11 // pred_check
          %p433 = pneg %p163
        $region30: #{tpu_custom_call.1} parent=11 // pred_check_branch
          %435 = sbr.rel (%p433) target = $region32
        $region31: #{tpu_custom_call.1} parent=11 // pred_region
          %s437 = ssub.s32 512, 512
          %438 = vsyncadd [#allocation9], %s437
          %s439 = sshll.u32 [#allocation10], 4
          %s440 = int_to_ptr.vmem [resolvable:$true] %s439
          %445 = dma.hbm_to_vmem [thread:$0]  %s5, 512, %s440, [#allocation9], 128, 128, 8
        $region32: #{tpu_custom_call.1} parent=11 // pred_fallthru
          _
        // Predicated region
        $region33: #{tpu_custom_call.1} parent=11 // pred_check
          %p446 = pneg %p184
        $region34: #{tpu_custom_call.1} parent=11 // pred_check_branch
          %448 = sbr.rel (%p446) target = $region36
        $region35: #{tpu_custom_call.1} parent=11 // pred_region
          %s450 = ssub.s32 16, 16
          %451 = vsyncadd [#allocation12], %s450
          %s453 = sshll.u32 [#allocation11], 4
          %s454 = int_to_ptr.vmem [resolvable:$true] %s453
          %456 = dma.hbm_to_vmem [thread:$0]  %s6, 16, %s454, [#allocation12]
        $region36: #{tpu_custom_call.1} parent=11 // pred_fallthru
          _
        // Predicated region
        $region37: #{tpu_custom_call.1} parent=11 // pred_check
          %p457 = pneg %p205
        $region38: #{tpu_custom_call.1} parent=11 // pred_check_branch
          %459 = sbr.rel (%p457) target = $region40
        $region39: #{tpu_custom_call.1} parent=11 // pred_region
          %s461 = ssub.s32 256, 256
          %462 = vsyncadd [#allocation12], %s461
          %s463 = sshll.u32 [#allocation13], 4
          %s464 = int_to_ptr.vmem [resolvable:$true] %s463
          %469 = dma.hbm_to_vmem [thread:$0]  %s7, 256, %s464, [#allocation12], 128, 128, 8
        $region40: #{tpu_custom_call.1} parent=11 // pred_fallthru
          _
        // Predicated region
        $region41: #{tpu_custom_call.1} parent=11 // pred_check
          %p470 = pneg %p226
        $region42: #{tpu_custom_call.1} parent=11 // pred_check_branch
          %472 = sbr.rel (%p470) target = $region44
        $region43: #{tpu_custom_call.1} parent=11 // pred_region
          %s474 = ssub.s32 512, 512
          %475 = vsyncadd [#allocation15], %s474
          %s476 = sshll.u32 [#allocation14], 4
          %s477 = int_to_ptr.vmem [resolvable:$true] %s476
          %482 = dma.hbm_to_vmem [thread:$0]  %s8, 512, %s477, [#allocation15], 128, 128, 8
        $region44: #{tpu_custom_call.1} parent=11 // pred_fallthru
          _
        // Predicated region
        $region45: #{tpu_custom_call.1} parent=11 // pred_check
          %p483 = pneg %p247
        $region46: #{tpu_custom_call.1} parent=11 // pred_check_branch
          %485 = sbr.rel (%p483) target = $region48
        $region47: #{tpu_custom_call.1} parent=11 // pred_region
          %s487 = ssub.s32 16, 16
          %488 = vsyncadd [#allocation15], %s487
          %s490 = sshll.u32 [#allocation16], 4
          %s491 = int_to_ptr.vmem [resolvable:$true] %s490
          %493 = dma.hbm_to_vmem [thread:$0]  %s9, 16, %s491, [#allocation15]
        $region48: #{tpu_custom_call.1} parent=11 // pred_fallthru
          _
        // Predicated region
        $region49: #{tpu_custom_call.1} parent=11 // pred_check
          %p494 = pneg %p268
        $region50: #{tpu_custom_call.1} parent=11 // pred_check_branch
          %496 = sbr.rel (%p494) target = $region52
        $region51: #{tpu_custom_call.1} parent=11 // pred_region
          _
        $region52: #{tpu_custom_call.1} parent=11 // pred_fallthru
          _
        // Predicated region
        $region53: #{tpu_custom_call.1} parent=11 // pred_check
          %p497 = pneg %p289
        $region54: #{tpu_custom_call.1} parent=11 // pred_check_branch
          %499 = sbr.rel (%p497) target = $region56
        $region55: #{tpu_custom_call.1} parent=11 // pred_region
          %s501 = ssub.s32 512, 512
          %502 = vsyncadd [#allocation18], %s501
          %s503 = sshll.u32 [#allocation17], 4
          %s504 = int_to_ptr.vmem [resolvable:$true] %s503
          %509 = dma.hbm_to_vmem [thread:$0]  %s11, 512, %s504, [#allocation18], 128, 128, 8
        $region56: #{tpu_custom_call.1} parent=11 // pred_fallthru
          _
        // Predicated region
        $region57: #{tpu_custom_call.1} parent=11 // pred_check
          %p510 = pneg %p310
        $region58: #{tpu_custom_call.1} parent=11 // pred_check_branch
          %512 = sbr.rel (%p510) target = $region60
        $region59: #{tpu_custom_call.1} parent=11 // pred_region
          _
        $region60: #{tpu_custom_call.1} parent=11 // pred_fallthru
          _
        // Predicated region
        $region61: #{tpu_custom_call.1} parent=11 // pred_check
          %p513 = pneg %p331
        $region62: #{tpu_custom_call.1} parent=11 // pred_check_branch
          %515 = sbr.rel (%p513) target = $region64
        $region63: #{tpu_custom_call.1} parent=11 // pred_region
          _
        $region64: #{tpu_custom_call.1} parent=11 // pred_fallthru
          _
        // Predicated region
        $region65: #{tpu_custom_call.1} parent=11 // pred_check
          %p516 = pneg %p352
        $region66: #{tpu_custom_call.1} parent=11 // pred_check_branch
          %518 = sbr.rel (%p516) target = $region68
        $region67: #{tpu_custom_call.1} parent=11 // pred_region
          _
        $region68: #{tpu_custom_call.1} parent=11 // pred_fallthru
          _
      $region12: #{tpu_custom_call.1} parent=5 // pred_fallthru
        _
      %p519 = scmp.lt.s32.totalorder %s32, 2
      // Predicated region
      $region69: #{tpu_custom_call.1} parent=5 // pred_check
        %p520 = pneg %p519
      $region70: #{tpu_custom_call.1} parent=5 // pred_check_branch
        %522 = sbr.rel (%p520) target = $region72
      $region71: #{tpu_custom_call.1} parent=5 // pred_region
        // Predicated region
        $region73: #{tpu_custom_call.1} parent=71 // pred_check
          %p523 = pneg %p52
        $region74: #{tpu_custom_call.1} parent=71 // pred_check_branch
          %525 = sbr.rel (%p523) target = $region76
        $region75: #{tpu_custom_call.1} parent=71 // pred_region
          %s526 = sand.u32 %s42, 1
          %s527 = scalar_lea.sflag [#allocation3], %s526
          %s528 = sand.u32 %s42, 1
          %s529 = smul.addr %s528, 8
          %s530 = scalar_lea.vmem [#allocation2], %s529
          %s532 = ssub.s32 128, 128
          %533 = vsyncadd %s527, %s532
          %s534 = smul.addr %s32, 128
          %s535 = scalar_lea.hbm %s0, %s534
          %s537 = sshll.u32 %s530, 4
          %s538 = int_to_ptr.vmem [resolvable:$true] %s537
          %540 = dma.hbm_to_vmem [thread:$0]  %s535, 128, %s538, %s527
        $region76: #{tpu_custom_call.1} parent=71 // pred_fallthru
          _
      $region72: #{tpu_custom_call.1} parent=5 // pred_fallthru
        _
      %p541 = scmp.le.s32.totalorder 1, %s32
      %p542 = scmp.lt.s32.totalorder %s32, 3
      %p543 = pnand %p541, %p542
      %p544 = pneg %p543
      // Predicated region
      $region77: #{tpu_custom_call.1} parent=5 // pred_check
        _
      $region78: #{tpu_custom_call.1} parent=5 // pred_check_branch
        %546 = sbr.rel (%p543) target = $region80
      $region79: #{tpu_custom_call.1} parent=5 // pred_region
        %s547 = ssub.s32 %s32, 1
        %s548 = sand.u32 %s45, 1
        %s549 = scalar_lea.sflag [#allocation3], %s548
        %s550 = sand.u32 %s45, 1
        %s551 = smul.addr %s550, 8
        %s552 = scalar_lea.vmem [#allocation2], %s551
        // Predicated region
        $region81: #{tpu_custom_call.1} parent=79 // pred_check
          %p553 = pneg %p58
        $region82: #{tpu_custom_call.1} parent=79 // pred_check_branch
          %555 = sbr.rel (%p553) target = $region84
        $region83: #{tpu_custom_call.1} parent=79 // pred_region
          %556 = dma.done %s549, 128
        $region84: #{tpu_custom_call.1} parent=79 // pred_fallthru
          _
        // Predicated region
        $region85: #{tpu_custom_call.1} parent=79 // pred_check
          %p557 = pneg %p79
        $region86: #{tpu_custom_call.1} parent=79 // pred_check_branch
          %559 = sbr.rel (%p557) target = $region88
        $region87: #{tpu_custom_call.1} parent=79 // pred_region
          %560 = dma.done [#allocation6], 256
        $region88: #{tpu_custom_call.1} parent=79 // pred_fallthru
          _
        // Predicated region
        $region89: #{tpu_custom_call.1} parent=79 // pred_check
          %p561 = pneg %p121
        $region90: #{tpu_custom_call.1} parent=79 // pred_check_branch
          %563 = sbr.rel (%p561) target = $region92
        $region91: #{tpu_custom_call.1} parent=79 // pred_region
          %564 = dma.done [#allocation6], 16
        $region92: #{tpu_custom_call.1} parent=79 // pred_fallthru
          _
        // Predicated region
        $region93: #{tpu_custom_call.1} parent=79 // pred_check
          %p565 = pneg %p142
        $region94: #{tpu_custom_call.1} parent=79 // pred_check_branch
          %567 = sbr.rel (%p565) target = $region96
        $region95: #{tpu_custom_call.1} parent=79 // pred_region
          %568 = dma.done [#allocation9], 512
        $region96: #{tpu_custom_call.1} parent=79 // pred_fallthru
          _
        // Predicated region
        $region97: #{tpu_custom_call.1} parent=79 // pred_check
          %p569 = pneg %p163
        $region98: #{tpu_custom_call.1} parent=79 // pred_check_branch
          %571 = sbr.rel (%p569) target = $region100
        $region99: #{tpu_custom_call.1} parent=79 // pred_region
          %572 = dma.done [#allocation9], 512
        $region100: #{tpu_custom_call.1} parent=79 // pred_fallthru
          _
        // Predicated region
        $region101: #{tpu_custom_call.1} parent=79 // pred_check
          %p573 = pneg %p184
        $region102: #{tpu_custom_call.1} parent=79 // pred_check_branch
          %575 = sbr.rel (%p573) target = $region104
        $region103: #{tpu_custom_call.1} parent=79 // pred_region
          %576 = dma.done [#allocation12], 16
        $region104: #{tpu_custom_call.1} parent=79 // pred_fallthru
          _
        // Predicated region
        $region105: #{tpu_custom_call.1} parent=79 // pred_check
          %p577 = pneg %p205
        $region106: #{tpu_custom_call.1} parent=79 // pred_check_branch
          %579 = sbr.rel (%p577) target = $region108
        $region107: #{tpu_custom_call.1} parent=79 // pred_region
          %580 = dma.done [#allocation12], 256
        $region108: #{tpu_custom_call.1} parent=79 // pred_fallthru
          _
        // Predicated region
        $region109: #{tpu_custom_call.1} parent=79 // pred_check
          %p581 = pneg %p226
        $region110: #{tpu_custom_call.1} parent=79 // pred_check_branch
          %583 = sbr.rel (%p581) target = $region112
        $region111: #{tpu_custom_call.1} parent=79 // pred_region
          %584 = dma.done [#allocation15], 512
        $region112: #{tpu_custom_call.1} parent=79 // pred_fallthru
          _
        // Predicated region
        $region113: #{tpu_custom_call.1} parent=79 // pred_check
          %p585 = pneg %p247
        $region114: #{tpu_custom_call.1} parent=79 // pred_check_branch
          %587 = sbr.rel (%p585) target = $region116
        $region115: #{tpu_custom_call.1} parent=79 // pred_region
          %588 = dma.done [#allocation15], 16
        $region116: #{tpu_custom_call.1} parent=79 // pred_fallthru
          _
        // Predicated region
        $region117: #{tpu_custom_call.1} parent=79 // pred_check
          %p589 = pneg %p289
        $region118: #{tpu_custom_call.1} parent=79 // pred_check_branch
          %591 = sbr.rel (%p589) target = $region120
        $region119: #{tpu_custom_call.1} parent=79 // pred_region
          %592 = dma.done [#allocation18], 512
        $region120: #{tpu_custom_call.1} parent=79 // pred_fallthru
          _
        %s593 = sand.u32 %s45, 1
        %s594 = scalar_lea.sflag [#allocation3], %s593
        %s595 = sand.u32 %s45, 1
        %s596 = smul.addr %s595, 8
        %s597 = scalar_lea.vmem [#allocation2], %s596
        %p598 = pneg %p58
        %p599 = pneg %p55
        %p600 = pneg %p79
        %p601 = pneg %p76
        %p602 = pneg %p100
        %p603 = pneg %p97
        %p604 = pneg %p121
        %p605 = pneg %p118
        %p606 = pneg %p142
        %p607 = pneg %p139
        %p608 = pneg %p163
        %p609 = pneg %p160
        %p610 = pneg %p184
        %p611 = pneg %p181
        %p612 = pneg %p205
        %p613 = pneg %p202
        %p614 = pneg %p226
        %p615 = pneg %p223
        %p616 = pneg %p247
        %p617 = pneg %p244
        %p618 = pneg %p268
        %p619 = pneg %p265
        %p620 = pneg %p289
        %p621 = pneg %p286
        %p622 = pneg %p310
        %p623 = pneg %p307
        %p624 = pneg %p331
        %p625 = pneg %p328
        %p626 = pneg %p352
        %p627 = pneg %p349
        %p628 = pneg %p378
        %p629 = pneg %p375
        %s630 = sand.u32 %s365, 1
        %s631 = scalar_lea.sflag [#allocation4], %s630
        %s632 = sand.u32 %s365, 1
        %s633 = smul.addr %s632, 8
        %s634 = scalar_lea.vmem [#allocation19], %s633
        %v635 = vld [vmem:[#allocation7] sm:$0x1]
        %v636 = vld [vmem:[#allocation11] sm:$0x1]
        %v637 = vld [vmem:[#allocation16] sm:$0x1]
        %v638 = vld [vmem:[%s12] sm:$0x1]
        %v639 = vld [vmem:[%s14] sm:$0x1]
        %v640 = vld [vmem:[%s552] sm:$0xff]
        %v641 = vld [vmem:[#allocation5] sm:$0xff]
        %v642 = vld [vmem:[#allocation5 + $0x8] sm:$0xff]
        %v644 = vlaneseq
        %v645 = vshrl.u32 %v644, 7
        %v646 = vsub.s32 0, %v645
        %v647 = vrot.slane %v635, %v646
        %vm649 = vcmask 130048
        %v651 = vsel %vm649, %v640, 0
        %653 = vmatprep.subr.mxu0 0.0
        %654 = vmatpush1.msra.mxu0 0.0
        %655 = vmatprep.subr.mxu0 0.0
        %656 = vmatpush1.msra.mxu0 0.0
        %657 = vmatprep.subr.mxu0 0.0
        %658 = vmatpush1.msra.mxu0 0.0
        %659 = vmatprep.subr.mxu0 0.0
        %660 = vmatpush1.msra.mxu0 0.0
        %661 = vmatprep.subr.mxu0 0.0
        %662 = vmatpush1.msra.mxu0 0.0
        %663 = vmatprep.subr.mxu0 0.0
        %664 = vmatpush1.msra.mxu0 0.0
        %665 = vmatprep.subr.mxu0 0.0
        %666 = vmatpush1.msra.mxu0 0.0
        %667 = vmatprep.subr.mxu0 0.0
        %668 = vmatpush1.msra.mxu0 0.0
        %669 = vmatprep.subr.mxu0 0.0
        %670 = vmatpush1.msra.mxu0 0.0
        %671 = vmatprep.subr.mxu0 0.0
        %672 = vmatpush1.msra.mxu0 0.0
        %673 = vmatprep.subr.mxu0 0.0
        %674 = vmatpush1.msra.mxu0 0.0
        %675 = vmatprep.subr.mxu0 0.0
        %676 = vmatpush1.msra.mxu0 0.0
        %677 = vmatprep.subr.mxu0 0.0
        %678 = vmatpush1.msra.mxu0 0.0
        %679 = vmatprep.subr.mxu0 0.0
        %680 = vmatpush1.msra.mxu0 0.0
        %681 = vmatprep.subr.mxu0 0.0
        %682 = vmatpush1.msra.mxu0 %v642
        %683 = vmatprep.subr.mxu0 0.0
        %684 = vmatpush1.msra.mxu0 %v641
        %685 = vmatprep.subr.mxu0 0.0
        %686 = vmatpush2.msra.mxu0 0.0
        %687 = vmatprep.subr.mxu0 0.0
        %688 = vmatpush2.msra.mxu0 0.0
        %689 = vmatprep.subr.mxu0 0.0
        %690 = vmatpush2.msra.mxu0 0.0
        %691 = vmatprep.subr.mxu0 0.0
        %692 = vmatpush2.msra.mxu0 0.0
        %693 = vmatprep.subr.mxu0 0.0
        %694 = vmatpush2.msra.mxu0 0.0
        %695 = vmatprep.subr.mxu0 0.0
        %696 = vmatpush2.msra.mxu0 0.0
        %697 = vmatprep.subr.mxu0 0.0
        %698 = vmatpush2.msra.mxu0 0.0
        %699 = vmatprep.subr.mxu0 0.0
        %700 = vmatpush2.msra.mxu0 0.0
        %701 = vmatprep.subr.mxu0 0.0
        %702 = vmatpush2.msra.mxu0 0.0
        %703 = vmatprep.subr.mxu0 0.0
        %704 = vmatpush2.msra.mxu0 0.0
        %705 = vmatprep.subr.mxu0 0.0
        %706 = vmatpush2.msra.mxu0 0.0
        %707 = vmatprep.subr.mxu0 0.0
        %708 = vmatpush2.msra.mxu0 0.0
        %709 = vmatprep.subr.mxu0 0.0
        %710 = vmatpush2.msra.mxu0 0.0
        %711 = vmatprep.subr.mxu0 0.0
        %712 = vmatpush2.msra.mxu0 0.0
        %713 = vmatprep.subr.mxu0 0.0
        %714 = vmatpush2.msra.mxu0 0.0
        %715 = vmatprep.subr.mxu0 0.0
        %716 = vmatpush2.msra.mxu0 0.0
        %717 = vmatprep.mubr.f32.mxu0 0.0
        %718 = vmatmul.mubr.f32.gmra.mxu0 %v651
        %v719 = vpop.f32.mrf.mxu0
        %v720 = vadd.f32 %v647, %v719
        %v721 = vpop.f32.mrf.mxu0
        %722 = vdwg.mxu0
        %v723 = vld [vmem:[%s2] sm:$0xff]
        %v724 = vld [vmem:[%s2 + $0x8] sm:$0xff]
        %v725 = vld [vmem:[%s2 + $0x10] sm:$0xff]
        %v726 = vld [vmem:[%s2 + $0x18] sm:$0xff]
        %vm727 = vcmask 261120
        %v729 = vsel %vm727, 0.0, 0
        %731 = vmatprep.subr.mxu0 0.0
        %732 = vmatpush1.msra.mxu0 0.0
        %733 = vmatprep.subr.mxu0 0.0
        %734 = vmatpush1.msra.mxu0 0.0
        %735 = vmatprep.subr.mxu0 0.0
        %736 = vmatpush1.msra.mxu0 0.0
        %737 = vmatprep.subr.mxu0 0.0
        %738 = vmatpush1.msra.mxu0 0.0
        %739 = vmatprep.subr.mxu0 0.0
        %740 = vmatpush1.msra.mxu0 0.0
        %741 = vmatprep.subr.mxu0 0.0
        %742 = vmatpush1.msra.mxu0 0.0
        %743 = vmatprep.subr.mxu0 0.0
        %744 = vmatpush1.msra.mxu0 0.0
        %745 = vmatprep.subr.mxu0 0.0
        %746 = vmatpush1.msra.mxu0 0.0
        %747 = vmatprep.subr.mxu0 0.0
        %748 = vmatpush1.msra.mxu0 0.0
        %749 = vmatprep.subr.mxu0 0.0
        %750 = vmatpush1.msra.mxu0 0.0
        %751 = vmatprep.subr.mxu0 0.0
        %752 = vmatpush1.msra.mxu0 0.0
        %753 = vmatprep.subr.mxu0 0.0
        %754 = vmatpush1.msra.mxu0 0.0
        %755 = vmatprep.subr.mxu0 0.0
        %756 = vmatpush1.msra.mxu0 %v726
        %757 = vmatprep.subr.mxu0 0.0
        %758 = vmatpush1.msra.mxu0 %v725
        %759 = vmatprep.subr.mxu0 0.0
        %760 = vmatpush1.msra.mxu0 %v724
        %761 = vmatprep.subr.mxu0 0.0
        %762 = vmatpush1.msra.mxu0 %v723
        %763 = vmatprep.subr.mxu0 0.0
        %764 = vmatpush2.msra.mxu0 0.0
        %765 = vmatprep.subr.mxu0 0.0
        %766 = vmatpush2.msra.mxu0 0.0
        %767 = vmatprep.subr.mxu0 0.0
        %768 = vmatpush2.msra.mxu0 0.0
        %769 = vmatprep.subr.mxu0 0.0
        %770 = vmatpush2.msra.mxu0 0.0
        %771 = vmatprep.subr.mxu0 0.0
        %772 = vmatpush2.msra.mxu0 0.0
        %773 = vmatprep.subr.mxu0 0.0
        %774 = vmatpush2.msra.mxu0 0.0
        %775 = vmatprep.subr.mxu0 0.0
        %776 = vmatpush2.msra.mxu0 0.0
        %777 = vmatprep.subr.mxu0 0.0
        %778 = vmatpush2.msra.mxu0 0.0
        %779 = vmatprep.subr.mxu0 0.0
        %780 = vmatpush2.msra.mxu0 0.0
        %781 = vmatprep.subr.mxu0 0.0
        %782 = vmatpush2.msra.mxu0 0.0
        %783 = vmatprep.subr.mxu0 0.0
        %784 = vmatpush2.msra.mxu0 0.0
        %785 = vmatprep.subr.mxu0 0.0
        %786 = vmatpush2.msra.mxu0 0.0
        %787 = vmatprep.subr.mxu0 0.0
        %788 = vmatpush2.msra.mxu0 0.0
        %789 = vmatprep.subr.mxu0 0.0
        %790 = vmatpush2.msra.mxu0 0.0
        %791 = vmatprep.subr.mxu0 0.0
        %792 = vmatpush2.msra.mxu0 0.0
        %793 = vmatprep.subr.mxu0 0.0
        %794 = vmatpush2.msra.mxu0 0.0
        %795 = vmatprep.mubr.f32.mxu0 0.0
        %796 = vmatmul.mubr.f32.gmra.mxu0 %v729
        %v797 = vpop.f32.mrf.mxu0
        %v798 = vadd.f32 0.0, %v797
        %v799 = vpop.f32.mrf.mxu0
        %800 = vdwg.mxu0
        %v801 = vadd.f32 %v720, %v798
        %v802 = vxor.u32 %v801, 2147483648
        %v803 = vmul.f32 %v802, 1.442695
        %v804 = vpow.pop %v803
        %v805 = vadd.f32 %v804, 1.0
        %v806 = vrcp.pop %v805
        %v807 = vmul.f32 1.0, %v806
        %v808 = vtanh.pop %v801
        %v809 = vmul.f32 %v807, 0.0
        %811 = vrot.lane.b32.xlu0 %v808, 64
        %v812 = vpop.permute.xlu0 %811
        %v814 = vmul.f32 %v807, %v812
        %816 = vrot.lane.b32.xlu0 %v814, 32
        %v817 = vpop.permute.xlu0 %816
        %v819 = vadd.f32 %v809, %v817
        %v820 = vtanh.pop %v819
        %822 = vrot.lane.b32.xlu0 %v820, 64
        %v823 = vpop.permute.xlu0 %822
        %v825 = vmul.f32 %v807, %v823
        %v826 = vld [vmem:[#allocation8] sm:$0xff]
        %v827 = vld [vmem:[#allocation8 + $0x8] sm:$0xff]
        %v828 = vld [vmem:[#allocation8 + $0x10] sm:$0xff]
        %v829 = vld [vmem:[#allocation8 + $0x18] sm:$0xff]
        %v830 = vld [vmem:[#allocation10] sm:$0xff]
        %v831 = vld [vmem:[#allocation10 + $0x8] sm:$0xff]
        %v832 = vld [vmem:[#allocation10 + $0x10] sm:$0xff]
        %v833 = vld [vmem:[#allocation10 + $0x18] sm:$0xff]
        %834 = vmatprep.subr.mxu0 0.0
        %835 = vmatpush1.msra.mxu0 0.0
        %836 = vmatprep.subr.mxu0 0.0
        %837 = vmatpush1.msra.mxu0 0.0
        %838 = vmatprep.subr.mxu0 0.0
        %839 = vmatpush1.msra.mxu0 0.0
        %840 = vmatprep.subr.mxu0 0.0
        %841 = vmatpush1.msra.mxu0 0.0
        %842 = vmatprep.subr.mxu0 0.0
        %843 = vmatpush1.msra.mxu0 0.0
        %844 = vmatprep.subr.mxu0 0.0
        %845 = vmatpush1.msra.mxu0 0.0
        %846 = vmatprep.subr.mxu0 0.0
        %847 = vmatpush1.msra.mxu0 0.0
        %848 = vmatprep.subr.mxu0 0.0
        %849 = vmatpush1.msra.mxu0 0.0
        %850 = vmatprep.subr.mxu0 0.0
        %851 = vmatpush1.msra.mxu0 0.0
        %852 = vmatprep.subr.mxu0 0.0
        %853 = vmatpush1.msra.mxu0 0.0
        %854 = vmatprep.subr.mxu0 0.0
        %855 = vmatpush1.msra.mxu0 0.0
        %856 = vmatprep.subr.mxu0 0.0
        %857 = vmatpush1.msra.mxu0 0.0
        %858 = vmatprep.subr.mxu0 0.0
        %859 = vmatpush1.msra.mxu0 %v833
        %860 = vmatprep.subr.mxu0 0.0
        %861 = vmatpush1.msra.mxu0 %v832
        %862 = vmatprep.subr.mxu0 0.0
        %863 = vmatpush1.msra.mxu0 %v831
        %864 = vmatprep.subr.mxu0 0.0
        %865 = vmatpush1.msra.mxu0 %v830
        %866 = vmatprep.subr.mxu0 0.0
        %867 = vmatpush2.msra.mxu0 0.0
        %868 = vmatprep.subr.mxu0 0.0
        %869 = vmatpush2.msra.mxu0 0.0
        %870 = vmatprep.subr.mxu0 0.0
        %871 = vmatpush2.msra.mxu0 0.0
        %872 = vmatprep.subr.mxu0 0.0
        %873 = vmatpush2.msra.mxu0 0.0
        %874 = vmatprep.subr.mxu0 0.0
        %875 = vmatpush2.msra.mxu0 0.0
        %876 = vmatprep.subr.mxu0 0.0
        %877 = vmatpush2.msra.mxu0 0.0
        %878 = vmatprep.subr.mxu0 0.0
        %879 = vmatpush2.msra.mxu0 0.0
        %880 = vmatprep.subr.mxu0 0.0
        %881 = vmatpush2.msra.mxu0 0.0
        %882 = vmatprep.subr.mxu0 0.0
        %883 = vmatpush2.msra.mxu0 0.0
        %884 = vmatprep.subr.mxu0 0.0
        %885 = vmatpush2.msra.mxu0 0.0
        %886 = vmatprep.subr.mxu0 0.0
        %887 = vmatpush2.msra.mxu0 0.0
        %888 = vmatprep.subr.mxu0 0.0
        %889 = vmatpush2.msra.mxu0 0.0
        %890 = vmatprep.subr.mxu0 0.0
        %891 = vmatpush2.msra.mxu0 0.0
        %892 = vmatprep.subr.mxu0 0.0
        %893 = vmatpush2.msra.mxu0 0.0
        %894 = vmatprep.subr.mxu0 0.0
        %895 = vmatpush2.msra.mxu0 0.0
        %896 = vmatprep.subr.mxu0 0.0
        %897 = vmatpush2.msra.mxu0 0.0
        %898 = vmatprep.mubr.f32.mxu0 0.0
        %899 = vmatmul.mubr.f32.gmra.mxu0 %v729
        %v900 = vpop.f32.mrf.mxu0
        %v901 = vadd.f32 0.0, %v900
        %v902 = vpop.f32.mrf.mxu0
        %903 = vdwg.mxu0
        %905 = vrot.lane.b32.xlu0 %v825, 32
        %v906 = vpop.permute.xlu0 %905
        %v907 = vsel %vm727, %v906, 0
        %909 = vmatprep.subr.mxu0 0.0
        %910 = vmatpush1.msra.mxu0 0.0
        %911 = vmatprep.subr.mxu0 0.0
        %912 = vmatpush1.msra.mxu0 0.0
        %913 = vmatprep.subr.mxu0 0.0
        %914 = vmatpush1.msra.mxu0 0.0
        %915 = vmatprep.subr.mxu0 0.0
        %916 = vmatpush1.msra.mxu0 0.0
        %917 = vmatprep.subr.mxu0 0.0
        %918 = vmatpush1.msra.mxu0 0.0
        %919 = vmatprep.subr.mxu0 0.0
        %920 = vmatpush1.msra.mxu0 0.0
        %921 = vmatprep.subr.mxu0 0.0
        %922 = vmatpush1.msra.mxu0 0.0
        %923 = vmatprep.subr.mxu0 0.0
        %924 = vmatpush1.msra.mxu0 0.0
        %925 = vmatprep.subr.mxu0 0.0
        %926 = vmatpush1.msra.mxu0 0.0
        %927 = vmatprep.subr.mxu0 0.0
        %928 = vmatpush1.msra.mxu0 0.0
        %929 = vmatprep.subr.mxu0 0.0
        %930 = vmatpush1.msra.mxu0 0.0
        %931 = vmatprep.subr.mxu0 0.0
        %932 = vmatpush1.msra.mxu0 0.0
        %933 = vmatprep.subr.mxu0 0.0
        %934 = vmatpush1.msra.mxu0 %v829
        %935 = vmatprep.subr.mxu0 0.0
        %936 = vmatpush1.msra.mxu0 %v828
        %937 = vmatprep.subr.mxu0 0.0
        %938 = vmatpush1.msra.mxu0 %v827
        %939 = vmatprep.subr.mxu0 0.0
        %940 = vmatpush1.msra.mxu0 %v826
        %941 = vmatprep.subr.mxu0 0.0
        %942 = vmatpush2.msra.mxu0 0.0
        %943 = vmatprep.subr.mxu0 0.0
        %944 = vmatpush2.msra.mxu0 0.0
        %945 = vmatprep.subr.mxu0 0.0
        %946 = vmatpush2.msra.mxu0 0.0
        %947 = vmatprep.subr.mxu0 0.0
        %948 = vmatpush2.msra.mxu0 0.0
        %949 = vmatprep.subr.mxu0 0.0
        %950 = vmatpush2.msra.mxu0 0.0
        %951 = vmatprep.subr.mxu0 0.0
        %952 = vmatpush2.msra.mxu0 0.0
        %953 = vmatprep.subr.mxu0 0.0
        %954 = vmatpush2.msra.mxu0 0.0
        %955 = vmatprep.subr.mxu0 0.0
        %956 = vmatpush2.msra.mxu0 0.0
        %957 = vmatprep.subr.mxu0 0.0
        %958 = vmatpush2.msra.mxu0 0.0
        %959 = vmatprep.subr.mxu0 0.0
        %960 = vmatpush2.msra.mxu0 0.0
        %961 = vmatprep.subr.mxu0 0.0
        %962 = vmatpush2.msra.mxu0 0.0
        %963 = vmatprep.subr.mxu0 0.0
        %964 = vmatpush2.msra.mxu0 0.0
        %965 = vmatprep.subr.mxu0 0.0
        %966 = vmatpush2.msra.mxu0 0.0
        %967 = vmatprep.subr.mxu0 0.0
        %968 = vmatpush2.msra.mxu0 0.0
        %969 = vmatprep.subr.mxu0 0.0
        %970 = vmatpush2.msra.mxu0 0.0
        %971 = vmatprep.subr.mxu0 0.0
        %972 = vmatpush2.msra.mxu0 0.0
        %973 = vmatprep.mubr.f32.mxu0 0.0
        %974 = vmatmul.mubr.f32.gmra.mxu0 %v907
        %v975 = vpop.f32.mrf.mxu0
        %v976 = vadd.f32 %v901, %v975
        %v977 = vpop.f32.mrf.mxu0
        %978 = vdwg.mxu0
        %v979 = vadd.f32 %v976, %v636
        %v980 = vxor.u32 %v979, 2147483648
        %v981 = vmul.f32 %v980, 1.442695
        %v982 = vpow.pop %v981
        %v983 = vadd.f32 %v982, 1.0
        %v984 = vrcp.pop %v983
        %v985 = vmul.f32 1.0, %v984
        %v986 = vtanh.pop %v979
        %v987 = vmul.f32 %v985, 0.0
        %989 = vrot.lane.b32.xlu0 %v986, 64
        %v990 = vpop.permute.xlu0 %989
        %v992 = vmul.f32 %v985, %v990
        %994 = vrot.lane.b32.xlu0 %v992, 32
        %v995 = vpop.permute.xlu0 %994
        %v997 = vadd.f32 %v987, %v995
        %v998 = vtanh.pop %v997
        %1000 = vrot.lane.b32.xlu0 %v998, 64
        %v1001 = vpop.permute.xlu0 %1000
        %v1003 = vmul.f32 %v985, %v1001
        %1004 = vmatprep.subr.mxu0 0.0
        %1005 = vmatpush1.msra.mxu0 0.0
        %1006 = vmatprep.subr.mxu0 0.0
        %1007 = vmatpush1.msra.mxu0 0.0
        %1008 = vmatprep.subr.mxu0 0.0
        %1009 = vmatpush1.msra.mxu0 0.0
        %1010 = vmatprep.subr.mxu0 0.0
        %1011 = vmatpush1.msra.mxu0 0.0
        %1012 = vmatprep.subr.mxu0 0.0
        %1013 = vmatpush1.msra.mxu0 0.0
        %1014 = vmatprep.subr.mxu0 0.0
        %1015 = vmatpush1.msra.mxu0 0.0
        %1016 = vmatprep.subr.mxu0 0.0
        %1017 = vmatpush1.msra.mxu0 0.0
        %1018 = vmatprep.subr.mxu0 0.0
        %1019 = vmatpush1.msra.mxu0 0.0
        %1020 = vmatprep.subr.mxu0 0.0
        %1021 = vmatpush1.msra.mxu0 0.0
        %1022 = vmatprep.subr.mxu0 0.0
        %1023 = vmatpush1.msra.mxu0 0.0
        %1024 = vmatprep.subr.mxu0 0.0
        %1025 = vmatpush1.msra.mxu0 0.0
        %1026 = vmatprep.subr.mxu0 0.0
        %1027 = vmatpush1.msra.mxu0 0.0
        %1028 = vmatprep.subr.mxu0 0.0
        %1029 = vmatpush1.msra.mxu0 %v726
        %1030 = vmatprep.subr.mxu0 0.0
        %1031 = vmatpush1.msra.mxu0 %v725
        %1032 = vmatprep.subr.mxu0 0.0
        %1033 = vmatpush1.msra.mxu0 %v724
        %1034 = vmatprep.subr.mxu0 0.0
        %1035 = vmatpush1.msra.mxu0 %v723
        %1036 = vmatprep.subr.mxu0 0.0
        %1037 = vmatpush2.msra.mxu0 0.0
        %1038 = vmatprep.subr.mxu0 0.0
        %1039 = vmatpush2.msra.mxu0 0.0
        %1040 = vmatprep.subr.mxu0 0.0
        %1041 = vmatpush2.msra.mxu0 0.0
        %1042 = vmatprep.subr.mxu0 0.0
        %1043 = vmatpush2.msra.mxu0 0.0
        %1044 = vmatprep.subr.mxu0 0.0
        %1045 = vmatpush2.msra.mxu0 0.0
        %1046 = vmatprep.subr.mxu0 0.0
        %1047 = vmatpush2.msra.mxu0 0.0
        %1048 = vmatprep.subr.mxu0 0.0
        %1049 = vmatpush2.msra.mxu0 0.0
        %1050 = vmatprep.subr.mxu0 0.0
        %1051 = vmatpush2.msra.mxu0 0.0
        %1052 = vmatprep.subr.mxu0 0.0
        %1053 = vmatpush2.msra.mxu0 0.0
        %1054 = vmatprep.subr.mxu0 0.0
        %1055 = vmatpush2.msra.mxu0 0.0
        %1056 = vmatprep.subr.mxu0 0.0
        %1057 = vmatpush2.msra.mxu0 0.0
        %1058 = vmatprep.subr.mxu0 0.0
        %1059 = vmatpush2.msra.mxu0 0.0
        %1060 = vmatprep.subr.mxu0 0.0
        %1061 = vmatpush2.msra.mxu0 0.0
        %1062 = vmatprep.subr.mxu0 0.0
        %1063 = vmatpush2.msra.mxu0 0.0
        %1064 = vmatprep.subr.mxu0 0.0
        %1065 = vmatpush2.msra.mxu0 0.0
        %1066 = vmatprep.subr.mxu0 0.0
        %1067 = vmatpush2.msra.mxu0 0.0
        %1068 = vmatprep.mubr.f32.mxu0 0.0
        %1069 = vmatmul.mubr.f32.gmra.mxu0 %v907
        %v1070 = vpop.f32.mrf.mxu0
        %v1071 = vadd.f32 0.0, %v1070
        %v1072 = vpop.f32.mrf.mxu0
        %1073 = vdwg.mxu0
        %v1075 = vrot.slane %v1071, 7
        %v1077 = vadd.f32 %v720, %v1075
        %v1078 = vxor.u32 %v1077, 2147483648
        %v1079 = vmul.f32 %v1078, 1.442695
        %v1080 = vpow.pop %v1079
        %v1081 = vadd.f32 %v1080, 1.0
        %v1082 = vrcp.pop %v1081
        %v1083 = vmul.f32 1.0, %v1082
        %v1084 = vtanh.pop %v1077
        %v1086 = vrot.slane %v819, 7
        %v1088 = vmul.f32 %v1083, %v1086
        %1090 = vrot.lane.b32.xlu0 %v1084, 64
        %v1091 = vpop.permute.xlu0 %1090
        %v1093 = vmul.f32 %v1083, %v1091
        %1095 = vrot.lane.b32.xlu0 %v1093, 32
        %v1096 = vpop.permute.xlu0 %1095
        %v1098 = vadd.f32 %v1088, %v1096
        %v1099 = vtanh.pop %v1098
        %1101 = vrot.lane.b32.xlu0 %v1099, 64
        %v1102 = vpop.permute.xlu0 %1101
        %v1104 = vmul.f32 %v1083, %v1102
        %1106 = vrot.lane.b32.xlu0 %v1003, 32
        %v1107 = vpop.permute.xlu0 %1106
        %v1108 = vsel %vm727, %v1107, 0
        %1110 = vmatprep.subr.mxu0 0.0
        %1111 = vmatpush1.msra.mxu0 0.0
        %1112 = vmatprep.subr.mxu0 0.0
        %1113 = vmatpush1.msra.mxu0 0.0
        %1114 = vmatprep.subr.mxu0 0.0
        %1115 = vmatpush1.msra.mxu0 0.0
        %1116 = vmatprep.subr.mxu0 0.0
        %1117 = vmatpush1.msra.mxu0 0.0
        %1118 = vmatprep.subr.mxu0 0.0
        %1119 = vmatpush1.msra.mxu0 0.0
        %1120 = vmatprep.subr.mxu0 0.0
        %1121 = vmatpush1.msra.mxu0 0.0
        %1122 = vmatprep.subr.mxu0 0.0
        %1123 = vmatpush1.msra.mxu0 0.0
        %1124 = vmatprep.subr.mxu0 0.0
        %1125 = vmatpush1.msra.mxu0 0.0
        %1126 = vmatprep.subr.mxu0 0.0
        %1127 = vmatpush1.msra.mxu0 0.0
        %1128 = vmatprep.subr.mxu0 0.0
        %1129 = vmatpush1.msra.mxu0 0.0
        %1130 = vmatprep.subr.mxu0 0.0
        %1131 = vmatpush1.msra.mxu0 0.0
        %1132 = vmatprep.subr.mxu0 0.0
        %1133 = vmatpush1.msra.mxu0 0.0
        %1134 = vmatprep.subr.mxu0 0.0
        %1135 = vmatpush1.msra.mxu0 %v833
        %1136 = vmatprep.subr.mxu0 0.0
        %1137 = vmatpush1.msra.mxu0 %v832
        %1138 = vmatprep.subr.mxu0 0.0
        %1139 = vmatpush1.msra.mxu0 %v831
        %1140 = vmatprep.subr.mxu0 0.0
        %1141 = vmatpush1.msra.mxu0 %v830
        %1142 = vmatprep.subr.mxu0 0.0
        %1143 = vmatpush2.msra.mxu0 0.0
        %1144 = vmatprep.subr.mxu0 0.0
        %1145 = vmatpush2.msra.mxu0 0.0
        %1146 = vmatprep.subr.mxu0 0.0
        %1147 = vmatpush2.msra.mxu0 0.0
        %1148 = vmatprep.subr.mxu0 0.0
        %1149 = vmatpush2.msra.mxu0 0.0
        %1150 = vmatprep.subr.mxu0 0.0
        %1151 = vmatpush2.msra.mxu0 0.0
        %1152 = vmatprep.subr.mxu0 0.0
        %1153 = vmatpush2.msra.mxu0 0.0
        %1154 = vmatprep.subr.mxu0 0.0
        %1155 = vmatpush2.msra.mxu0 0.0
        %1156 = vmatprep.subr.mxu0 0.0
        %1157 = vmatpush2.msra.mxu0 0.0
        %1158 = vmatprep.subr.mxu0 0.0
        %1159 = vmatpush2.msra.mxu0 0.0
        %1160 = vmatprep.subr.mxu0 0.0
        %1161 = vmatpush2.msra.mxu0 0.0
        %1162 = vmatprep.subr.mxu0 0.0
        %1163 = vmatpush2.msra.mxu0 0.0
        %1164 = vmatprep.subr.mxu0 0.0
        %1165 = vmatpush2.msra.mxu0 0.0
        %1166 = vmatprep.subr.mxu0 0.0
        %1167 = vmatpush2.msra.mxu0 0.0
        %1168 = vmatprep.subr.mxu0 0.0
        %1169 = vmatpush2.msra.mxu0 0.0
        %1170 = vmatprep.subr.mxu0 0.0
        %1171 = vmatpush2.msra.mxu0 0.0
        %1172 = vmatprep.subr.mxu0 0.0
        %1173 = vmatpush2.msra.mxu0 0.0
        %1174 = vmatprep.mubr.f32.mxu0 0.0
        %1175 = vmatmul.mubr.f32.gmra.mxu0 %v1108
        %v1176 = vpop.f32.mrf.mxu0
        %v1177 = vadd.f32 0.0, %v1176
        %v1178 = vpop.f32.mrf.mxu0
        %1179 = vdwg.mxu0
        %v1181 = vrot.slane %v1104, 1
        %1182 = vrot.lane.b32.xlu0 %v1181, 32
        %v1183 = vpop.permute.xlu0 %1182
        %v1184 = vsel %vm727, %v1183, 0
        %1186 = vmatprep.subr.mxu0 0.0
        %1187 = vmatpush1.msra.mxu0 0.0
        %1188 = vmatprep.subr.mxu0 0.0
        %1189 = vmatpush1.msra.mxu0 0.0
        %1190 = vmatprep.subr.mxu0 0.0
        %1191 = vmatpush1.msra.mxu0 0.0
        %1192 = vmatprep.subr.mxu0 0.0
        %1193 = vmatpush1.msra.mxu0 0.0
        %1194 = vmatprep.subr.mxu0 0.0
        %1195 = vmatpush1.msra.mxu0 0.0
        %1196 = vmatprep.subr.mxu0 0.0
        %1197 = vmatpush1.msra.mxu0 0.0
        %1198 = vmatprep.subr.mxu0 0.0
        %1199 = vmatpush1.msra.mxu0 0.0
        %1200 = vmatprep.subr.mxu0 0.0
        %1201 = vmatpush1.msra.mxu0 0.0
        %1202 = vmatprep.subr.mxu0 0.0
        %1203 = vmatpush1.msra.mxu0 0.0
        %1204 = vmatprep.subr.mxu0 0.0
        %1205 = vmatpush1.msra.mxu0 0.0
        %1206 = vmatprep.subr.mxu0 0.0
        %1207 = vmatpush1.msra.mxu0 0.0
        %1208 = vmatprep.subr.mxu0 0.0
        %1209 = vmatpush1.msra.mxu0 0.0
        %1210 = vmatprep.subr.mxu0 0.0
        %1211 = vmatpush1.msra.mxu0 %v829
        %1212 = vmatprep.subr.mxu0 0.0
        %1213 = vmatpush1.msra.mxu0 %v828
        %1214 = vmatprep.subr.mxu0 0.0
        %1215 = vmatpush1.msra.mxu0 %v827
        %1216 = vmatprep.subr.mxu0 0.0
        %1217 = vmatpush1.msra.mxu0 %v826
        %1218 = vmatprep.subr.mxu0 0.0
        %1219 = vmatpush2.msra.mxu0 0.0
        %1220 = vmatprep.subr.mxu0 0.0
        %1221 = vmatpush2.msra.mxu0 0.0
        %1222 = vmatprep.subr.mxu0 0.0
        %1223 = vmatpush2.msra.mxu0 0.0
        %1224 = vmatprep.subr.mxu0 0.0
        %1225 = vmatpush2.msra.mxu0 0.0
        %1226 = vmatprep.subr.mxu0 0.0
        %1227 = vmatpush2.msra.mxu0 0.0
        %1228 = vmatprep.subr.mxu0 0.0
        %1229 = vmatpush2.msra.mxu0 0.0
        %1230 = vmatprep.subr.mxu0 0.0
        %1231 = vmatpush2.msra.mxu0 0.0
        %1232 = vmatprep.subr.mxu0 0.0
        %1233 = vmatpush2.msra.mxu0 0.0
        %1234 = vmatprep.subr.mxu0 0.0
        %1235 = vmatpush2.msra.mxu0 0.0
        %1236 = vmatprep.subr.mxu0 0.0
        %1237 = vmatpush2.msra.mxu0 0.0
        %1238 = vmatprep.subr.mxu0 0.0
        %1239 = vmatpush2.msra.mxu0 0.0
        %1240 = vmatprep.subr.mxu0 0.0
        %1241 = vmatpush2.msra.mxu0 0.0
        %1242 = vmatprep.subr.mxu0 0.0
        %1243 = vmatpush2.msra.mxu0 0.0
        %1244 = vmatprep.subr.mxu0 0.0
        %1245 = vmatpush2.msra.mxu0 0.0
        %1246 = vmatprep.subr.mxu0 0.0
        %1247 = vmatpush2.msra.mxu0 0.0
        %1248 = vmatprep.subr.mxu0 0.0
        %1249 = vmatpush2.msra.mxu0 0.0
        %1250 = vmatprep.mubr.f32.mxu0 0.0
        %1251 = vmatmul.mubr.f32.gmra.mxu0 %v1184
        %v1252 = vpop.f32.mrf.mxu0
        %v1253 = vadd.f32 %v1177, %v1252
        %v1254 = vpop.f32.mrf.mxu0
        %1255 = vdwg.mxu0
        %v1256 = vadd.f32 %v1253, %v636
        %v1257 = vxor.u32 %v1256, 2147483648
        %v1258 = vmul.f32 %v1257, 1.442695
        %v1259 = vpow.pop %v1258
        %v1260 = vadd.f32 %v1259, 1.0
        %v1261 = vrcp.pop %v1260
        %v1262 = vmul.f32 1.0, %v1261
        %v1263 = vtanh.pop %v1256
        %v1264 = vmul.f32 %v1262, %v997
        %1266 = vrot.lane.b32.xlu0 %v1263, 64
        %v1267 = vpop.permute.xlu0 %1266
        %v1269 = vmul.f32 %v1262, %v1267
        %1271 = vrot.lane.b32.xlu0 %v1269, 32
        %v1272 = vpop.permute.xlu0 %1271
        %v1274 = vadd.f32 %v1264, %v1272
        %v1275 = vtanh.pop %v1274
        %1277 = vrot.lane.b32.xlu0 %v1275, 64
        %v1278 = vpop.permute.xlu0 %1277
        %v1280 = vmul.f32 %v1262, %v1278
        %1281 = vmatprep.subr.mxu0 0.0
        %1282 = vmatpush1.msra.mxu0 0.0
        %1283 = vmatprep.subr.mxu0 0.0
        %1284 = vmatpush1.msra.mxu0 0.0
        %1285 = vmatprep.subr.mxu0 0.0
        %1286 = vmatpush1.msra.mxu0 0.0
        %1287 = vmatprep.subr.mxu0 0.0
        %1288 = vmatpush1.msra.mxu0 0.0
        %1289 = vmatprep.subr.mxu0 0.0
        %1290 = vmatpush1.msra.mxu0 0.0
        %1291 = vmatprep.subr.mxu0 0.0
        %1292 = vmatpush1.msra.mxu0 0.0
        %1293 = vmatprep.subr.mxu0 0.0
        %1294 = vmatpush1.msra.mxu0 0.0
        %1295 = vmatprep.subr.mxu0 0.0
        %1296 = vmatpush1.msra.mxu0 0.0
        %1297 = vmatprep.subr.mxu0 0.0
        %1298 = vmatpush1.msra.mxu0 0.0
        %1299 = vmatprep.subr.mxu0 0.0
        %1300 = vmatpush1.msra.mxu0 0.0
        %1301 = vmatprep.subr.mxu0 0.0
        %1302 = vmatpush1.msra.mxu0 0.0
        %1303 = vmatprep.subr.mxu0 0.0
        %1304 = vmatpush1.msra.mxu0 0.0
        %1305 = vmatprep.subr.mxu0 0.0
        %1306 = vmatpush1.msra.mxu0 %v726
        %1307 = vmatprep.subr.mxu0 0.0
        %1308 = vmatpush1.msra.mxu0 %v725
        %1309 = vmatprep.subr.mxu0 0.0
        %1310 = vmatpush1.msra.mxu0 %v724
        %1311 = vmatprep.subr.mxu0 0.0
        %1312 = vmatpush1.msra.mxu0 %v723
        %1313 = vmatprep.subr.mxu0 0.0
        %1314 = vmatpush2.msra.mxu0 0.0
        %1315 = vmatprep.subr.mxu0 0.0
        %1316 = vmatpush2.msra.mxu0 0.0
        %1317 = vmatprep.subr.mxu0 0.0
        %1318 = vmatpush2.msra.mxu0 0.0
        %1319 = vmatprep.subr.mxu0 0.0
        %1320 = vmatpush2.msra.mxu0 0.0
        %1321 = vmatprep.subr.mxu0 0.0
        %1322 = vmatpush2.msra.mxu0 0.0
        %1323 = vmatprep.subr.mxu0 0.0
        %1324 = vmatpush2.msra.mxu0 0.0
        %1325 = vmatprep.subr.mxu0 0.0
        %1326 = vmatpush2.msra.mxu0 0.0
        %1327 = vmatprep.subr.mxu0 0.0
        %1328 = vmatpush2.msra.mxu0 0.0
        %1329 = vmatprep.subr.mxu0 0.0
        %1330 = vmatpush2.msra.mxu0 0.0
        %1331 = vmatprep.subr.mxu0 0.0
        %1332 = vmatpush2.msra.mxu0 0.0
        %1333 = vmatprep.subr.mxu0 0.0
        %1334 = vmatpush2.msra.mxu0 0.0
        %1335 = vmatprep.subr.mxu0 0.0
        %1336 = vmatpush2.msra.mxu0 0.0
        %1337 = vmatprep.subr.mxu0 0.0
        %1338 = vmatpush2.msra.mxu0 0.0
        %1339 = vmatprep.subr.mxu0 0.0
        %1340 = vmatpush2.msra.mxu0 0.0
        %1341 = vmatprep.subr.mxu0 0.0
        %1342 = vmatpush2.msra.mxu0 0.0
        %1343 = vmatprep.subr.mxu0 0.0
        %1344 = vmatpush2.msra.mxu0 0.0
        %1345 = vmatprep.mubr.f32.mxu0 0.0
        %1346 = vmatmul.mubr.f32.gmra.mxu0 %v1184
        %v1347 = vpop.f32.mrf.mxu0
        %v1348 = vadd.f32 0.0, %v1347
        %v1349 = vpop.f32.mrf.mxu0
        %1350 = vdwg.mxu0
        %v1352 = vrot.slane %v1348, 6
        %v1354 = vadd.f32 %v720, %v1352
        %v1355 = vxor.u32 %v1354, 2147483648
        %v1356 = vmul.f32 %v1355, 1.442695
        %v1357 = vpow.pop %v1356
        %v1358 = vadd.f32 %v1357, 1.0
        %v1359 = vrcp.pop %v1358
        %v1360 = vmul.f32 1.0, %v1359
        %v1361 = vtanh.pop %v1354
        %v1363 = vrot.slane %v1098, 7
        %v1365 = vmul.f32 %v1360, %v1363
        %1367 = vrot.lane.b32.xlu0 %v1361, 64
        %v1368 = vpop.permute.xlu0 %1367
        %v1370 = vmul.f32 %v1360, %v1368
        %1372 = vrot.lane.b32.xlu0 %v1370, 32
        %v1373 = vpop.permute.xlu0 %1372
        %v1375 = vadd.f32 %v1365, %v1373
        %v1376 = vtanh.pop %v1375
        %1378 = vrot.lane.b32.xlu0 %v1376, 64
        %v1379 = vpop.permute.xlu0 %1378
        %v1381 = vmul.f32 %v1360, %v1379
        %1383 = vrot.lane.b32.xlu0 %v1280, 32
        %v1384 = vpop.permute.xlu0 %1383
        %v1385 = vsel %vm727, %v1384, 0
        %1387 = vmatprep.subr.mxu0 0.0
        %1388 = vmatpush1.msra.mxu0 0.0
        %1389 = vmatprep.subr.mxu0 0.0
        %1390 = vmatpush1.msra.mxu0 0.0
        %1391 = vmatprep.subr.mxu0 0.0
        %1392 = vmatpush1.msra.mxu0 0.0
        %1393 = vmatprep.subr.mxu0 0.0
        %1394 = vmatpush1.msra.mxu0 0.0
        %1395 = vmatprep.subr.mxu0 0.0
        %1396 = vmatpush1.msra.mxu0 0.0
        %1397 = vmatprep.subr.mxu0 0.0
        %1398 = vmatpush1.msra.mxu0 0.0
        %1399 = vmatprep.subr.mxu0 0.0
        %1400 = vmatpush1.msra.mxu0 0.0
        %1401 = vmatprep.subr.mxu0 0.0
        %1402 = vmatpush1.msra.mxu0 0.0
        %1403 = vmatprep.subr.mxu0 0.0
        %1404 = vmatpush1.msra.mxu0 0.0
        %1405 = vmatprep.subr.mxu0 0.0
        %1406 = vmatpush1.msra.mxu0 0.0
        %1407 = vmatprep.subr.mxu0 0.0
        %1408 = vmatpush1.msra.mxu0 0.0
        %1409 = vmatprep.subr.mxu0 0.0
        %1410 = vmatpush1.msra.mxu0 0.0
        %1411 = vmatprep.subr.mxu0 0.0
        %1412 = vmatpush1.msra.mxu0 %v833
        %1413 = vmatprep.subr.mxu0 0.0
        %1414 = vmatpush1.msra.mxu0 %v832
        %1415 = vmatprep.subr.mxu0 0.0
        %1416 = vmatpush1.msra.mxu0 %v831
        %1417 = vmatprep.subr.mxu0 0.0
        %1418 = vmatpush1.msra.mxu0 %v830
        %1419 = vmatprep.subr.mxu0 0.0
        %1420 = vmatpush2.msra.mxu0 0.0
        %1421 = vmatprep.subr.mxu0 0.0
        %1422 = vmatpush2.msra.mxu0 0.0
        %1423 = vmatprep.subr.mxu0 0.0
        %1424 = vmatpush2.msra.mxu0 0.0
        %1425 = vmatprep.subr.mxu0 0.0
        %1426 = vmatpush2.msra.mxu0 0.0
        %1427 = vmatprep.subr.mxu0 0.0
        %1428 = vmatpush2.msra.mxu0 0.0
        %1429 = vmatprep.subr.mxu0 0.0
        %1430 = vmatpush2.msra.mxu0 0.0
        %1431 = vmatprep.subr.mxu0 0.0
        %1432 = vmatpush2.msra.mxu0 0.0
        %1433 = vmatprep.subr.mxu0 0.0
        %1434 = vmatpush2.msra.mxu0 0.0
        %1435 = vmatprep.subr.mxu0 0.0
        %1436 = vmatpush2.msra.mxu0 0.0
        %1437 = vmatprep.subr.mxu0 0.0
        %1438 = vmatpush2.msra.mxu0 0.0
        %1439 = vmatprep.subr.mxu0 0.0
        %1440 = vmatpush2.msra.mxu0 0.0
        %1441 = vmatprep.subr.mxu0 0.0
        %1442 = vmatpush2.msra.mxu0 0.0
        %1443 = vmatprep.subr.mxu0 0.0
        %1444 = vmatpush2.msra.mxu0 0.0
        %1445 = vmatprep.subr.mxu0 0.0
        %1446 = vmatpush2.msra.mxu0 0.0
        %1447 = vmatprep.subr.mxu0 0.0
        %1448 = vmatpush2.msra.mxu0 0.0
        %1449 = vmatprep.subr.mxu0 0.0
        %1450 = vmatpush2.msra.mxu0 0.0
        %1451 = vmatprep.mubr.f32.mxu0 0.0
        %1452 = vmatmul.mubr.f32.gmra.mxu0 %v1385
        %v1453 = vpop.f32.mrf.mxu0
        %v1454 = vadd.f32 0.0, %v1453
        %v1455 = vpop.f32.mrf.mxu0
        %1456 = vdwg.mxu0
        %v1458 = vrot.slane %v1381, 2
        %1459 = vrot.lane.b32.xlu0 %v1458, 32
        %v1460 = vpop.permute.xlu0 %1459
        %v1461 = vsel %vm727, %v1460, 0
        %1463 = vmatprep.subr.mxu0 0.0
        %1464 = vmatpush1.msra.mxu0 0.0
        %1465 = vmatprep.subr.mxu0 0.0
        %1466 = vmatpush1.msra.mxu0 0.0
        %1467 = vmatprep.subr.mxu0 0.0
        %1468 = vmatpush1.msra.mxu0 0.0
        %1469 = vmatprep.subr.mxu0 0.0
        %1470 = vmatpush1.msra.mxu0 0.0
        %1471 = vmatprep.subr.mxu0 0.0
        %1472 = vmatpush1.msra.mxu0 0.0
        %1473 = vmatprep.subr.mxu0 0.0
        %1474 = vmatpush1.msra.mxu0 0.0
        %1475 = vmatprep.subr.mxu0 0.0
        %1476 = vmatpush1.msra.mxu0 0.0
        %1477 = vmatprep.subr.mxu0 0.0
        %1478 = vmatpush1.msra.mxu0 0.0
        %1479 = vmatprep.subr.mxu0 0.0
        %1480 = vmatpush1.msra.mxu0 0.0
        %1481 = vmatprep.subr.mxu0 0.0
        %1482 = vmatpush1.msra.mxu0 0.0
        %1483 = vmatprep.subr.mxu0 0.0
        %1484 = vmatpush1.msra.mxu0 0.0
        %1485 = vmatprep.subr.mxu0 0.0
        %1486 = vmatpush1.msra.mxu0 0.0
        %1487 = vmatprep.subr.mxu0 0.0
        %1488 = vmatpush1.msra.mxu0 %v829
        %1489 = vmatprep.subr.mxu0 0.0
        %1490 = vmatpush1.msra.mxu0 %v828
        %1491 = vmatprep.subr.mxu0 0.0
        %1492 = vmatpush1.msra.mxu0 %v827
        %1493 = vmatprep.subr.mxu0 0.0
        %1494 = vmatpush1.msra.mxu0 %v826
        %1495 = vmatprep.subr.mxu0 0.0
        %1496 = vmatpush2.msra.mxu0 0.0
        %1497 = vmatprep.subr.mxu0 0.0
        %1498 = vmatpush2.msra.mxu0 0.0
        %1499 = vmatprep.subr.mxu0 0.0
        %1500 = vmatpush2.msra.mxu0 0.0
        %1501 = vmatprep.subr.mxu0 0.0
        %1502 = vmatpush2.msra.mxu0 0.0
        %1503 = vmatprep.subr.mxu0 0.0
        %1504 = vmatpush2.msra.mxu0 0.0
        %1505 = vmatprep.subr.mxu0 0.0
        %1506 = vmatpush2.msra.mxu0 0.0
        %1507 = vmatprep.subr.mxu0 0.0
        %1508 = vmatpush2.msra.mxu0 0.0
        %1509 = vmatprep.subr.mxu0 0.0
        %1510 = vmatpush2.msra.mxu0 0.0
        %1511 = vmatprep.subr.mxu0 0.0
        %1512 = vmatpush2.msra.mxu0 0.0
        %1513 = vmatprep.subr.mxu0 0.0
        %1514 = vmatpush2.msra.mxu0 0.0
        %1515 = vmatprep.subr.mxu0 0.0
        %1516 = vmatpush2.msra.mxu0 0.0
        %1517 = vmatprep.subr.mxu0 0.0
        %1518 = vmatpush2.msra.mxu0 0.0
        %1519 = vmatprep.subr.mxu0 0.0
        %1520 = vmatpush2.msra.mxu0 0.0
        %1521 = vmatprep.subr.mxu0 0.0
        %1522 = vmatpush2.msra.mxu0 0.0
        %1523 = vmatprep.subr.mxu0 0.0
        %1524 = vmatpush2.msra.mxu0 0.0
        %1525 = vmatprep.subr.mxu0 0.0
        %1526 = vmatpush2.msra.mxu0 0.0
        %1527 = vmatprep.mubr.f32.mxu0 0.0
        %1528 = vmatmul.mubr.f32.gmra.mxu0 %v1461
        %v1529 = vpop.f32.mrf.mxu0
        %v1530 = vadd.f32 %v1454, %v1529
        %v1531 = vpop.f32.mrf.mxu0
        %1532 = vdwg.mxu0
        %v1533 = vadd.f32 %v1530, %v636
        %v1534 = vxor.u32 %v1533, 2147483648
        %v1535 = vmul.f32 %v1534, 1.442695
        %v1536 = vpow.pop %v1535
        %v1537 = vadd.f32 %v1536, 1.0
        %v1538 = vrcp.pop %v1537
        %v1539 = vmul.f32 1.0, %v1538
        %v1540 = vtanh.pop %v1533
        %v1541 = vmul.f32 %v1539, %v1274
        %1543 = vrot.lane.b32.xlu0 %v1540, 64
        %v1544 = vpop.permute.xlu0 %1543
        %v1546 = vmul.f32 %v1539, %v1544
        %1548 = vrot.lane.b32.xlu0 %v1546, 32
        %v1549 = vpop.permute.xlu0 %1548
        %v1551 = vadd.f32 %v1541, %v1549
        %v1552 = vtanh.pop %v1551
        %1554 = vrot.lane.b32.xlu0 %v1552, 64
        %v1555 = vpop.permute.xlu0 %1554
        %v1557 = vmul.f32 %v1539, %v1555
        %1558 = vmatprep.subr.mxu0 0.0
        %1559 = vmatpush1.msra.mxu0 0.0
        %1560 = vmatprep.subr.mxu0 0.0
        %1561 = vmatpush1.msra.mxu0 0.0
        %1562 = vmatprep.subr.mxu0 0.0
        %1563 = vmatpush1.msra.mxu0 0.0
        %1564 = vmatprep.subr.mxu0 0.0
        %1565 = vmatpush1.msra.mxu0 0.0
        %1566 = vmatprep.subr.mxu0 0.0
        %1567 = vmatpush1.msra.mxu0 0.0
        %1568 = vmatprep.subr.mxu0 0.0
        %1569 = vmatpush1.msra.mxu0 0.0
        %1570 = vmatprep.subr.mxu0 0.0
        %1571 = vmatpush1.msra.mxu0 0.0
        %1572 = vmatprep.subr.mxu0 0.0
        %1573 = vmatpush1.msra.mxu0 0.0
        %1574 = vmatprep.subr.mxu0 0.0
        %1575 = vmatpush1.msra.mxu0 0.0
        %1576 = vmatprep.subr.mxu0 0.0
        %1577 = vmatpush1.msra.mxu0 0.0
        %1578 = vmatprep.subr.mxu0 0.0
        %1579 = vmatpush1.msra.mxu0 0.0
        %1580 = vmatprep.subr.mxu0 0.0
        %1581 = vmatpush1.msra.mxu0 0.0
        %1582 = vmatprep.subr.mxu0 0.0
        %1583 = vmatpush1.msra.mxu0 %v726
        %1584 = vmatprep.subr.mxu0 0.0
        %1585 = vmatpush1.msra.mxu0 %v725
        %1586 = vmatprep.subr.mxu0 0.0
        %1587 = vmatpush1.msra.mxu0 %v724
        %1588 = vmatprep.subr.mxu0 0.0
        %1589 = vmatpush1.msra.mxu0 %v723
        %1590 = vmatprep.subr.mxu0 0.0
        %1591 = vmatpush2.msra.mxu0 0.0
        %1592 = vmatprep.subr.mxu0 0.0
        %1593 = vmatpush2.msra.mxu0 0.0
        %1594 = vmatprep.subr.mxu0 0.0
        %1595 = vmatpush2.msra.mxu0 0.0
        %1596 = vmatprep.subr.mxu0 0.0
        %1597 = vmatpush2.msra.mxu0 0.0
        %1598 = vmatprep.subr.mxu0 0.0
        %1599 = vmatpush2.msra.mxu0 0.0
        %1600 = vmatprep.subr.mxu0 0.0
        %1601 = vmatpush2.msra.mxu0 0.0
        %1602 = vmatprep.subr.mxu0 0.0
        %1603 = vmatpush2.msra.mxu0 0.0
        %1604 = vmatprep.subr.mxu0 0.0
        %1605 = vmatpush2.msra.mxu0 0.0
        %1606 = vmatprep.subr.mxu0 0.0
        %1607 = vmatpush2.msra.mxu0 0.0
        %1608 = vmatprep.subr.mxu0 0.0
        %1609 = vmatpush2.msra.mxu0 0.0
        %1610 = vmatprep.subr.mxu0 0.0
        %1611 = vmatpush2.msra.mxu0 0.0
        %1612 = vmatprep.subr.mxu0 0.0
        %1613 = vmatpush2.msra.mxu0 0.0
        %1614 = vmatprep.subr.mxu0 0.0
        %1615 = vmatpush2.msra.mxu0 0.0
        %1616 = vmatprep.subr.mxu0 0.0
        %1617 = vmatpush2.msra.mxu0 0.0
        %1618 = vmatprep.subr.mxu0 0.0
        %1619 = vmatpush2.msra.mxu0 0.0
        %1620 = vmatprep.subr.mxu0 0.0
        %1621 = vmatpush2.msra.mxu0 0.0
        %1622 = vmatprep.mubr.f32.mxu0 0.0
        %1623 = vmatmul.mubr.f32.gmra.mxu0 %v1461
        %v1624 = vpop.f32.mrf.mxu0
        %v1625 = vadd.f32 0.0, %v1624
        %v1626 = vpop.f32.mrf.mxu0
        %1627 = vdwg.mxu0
        %v1629 = vrot.slane %v1625, 5
        %v1631 = vadd.f32 %v720, %v1629
        %v1632 = vxor.u32 %v1631, 2147483648
        %v1633 = vmul.f32 %v1632, 1.442695
        %v1634 = vpow.pop %v1633
        %v1635 = vadd.f32 %v1634, 1.0
        %v1636 = vrcp.pop %v1635
        %v1637 = vmul.f32 1.0, %v1636
        %v1638 = vtanh.pop %v1631
        %v1640 = vrot.slane %v1375, 7
        %v1642 = vmul.f32 %v1637, %v1640
        %1644 = vrot.lane.b32.xlu0 %v1638, 64
        %v1645 = vpop.permute.xlu0 %1644
        %v1647 = vmul.f32 %v1637, %v1645
        %1649 = vrot.lane.b32.xlu0 %v1647, 32
        %v1650 = vpop.permute.xlu0 %1649
        %v1652 = vadd.f32 %v1642, %v1650
        %v1653 = vtanh.pop %v1652
        %1655 = vrot.lane.b32.xlu0 %v1653, 64
        %v1656 = vpop.permute.xlu0 %1655
        %v1658 = vmul.f32 %v1637, %v1656
        %1660 = vrot.lane.b32.xlu0 %v1557, 32
        %v1661 = vpop.permute.xlu0 %1660
        %v1662 = vsel %vm727, %v1661, 0
        %1664 = vmatprep.subr.mxu0 0.0
        %1665 = vmatpush1.msra.mxu0 0.0
        %1666 = vmatprep.subr.mxu0 0.0
        %1667 = vmatpush1.msra.mxu0 0.0
        %1668 = vmatprep.subr.mxu0 0.0
        %1669 = vmatpush1.msra.mxu0 0.0
        %1670 = vmatprep.subr.mxu0 0.0
        %1671 = vmatpush1.msra.mxu0 0.0
        %1672 = vmatprep.subr.mxu0 0.0
        %1673 = vmatpush1.msra.mxu0 0.0
        %1674 = vmatprep.subr.mxu0 0.0
        %1675 = vmatpush1.msra.mxu0 0.0
        %1676 = vmatprep.subr.mxu0 0.0
        %1677 = vmatpush1.msra.mxu0 0.0
        %1678 = vmatprep.subr.mxu0 0.0
        %1679 = vmatpush1.msra.mxu0 0.0
        %1680 = vmatprep.subr.mxu0 0.0
        %1681 = vmatpush1.msra.mxu0 0.0
        %1682 = vmatprep.subr.mxu0 0.0
        %1683 = vmatpush1.msra.mxu0 0.0
        %1684 = vmatprep.subr.mxu0 0.0
        %1685 = vmatpush1.msra.mxu0 0.0
        %1686 = vmatprep.subr.mxu0 0.0
        %1687 = vmatpush1.msra.mxu0 0.0
        %1688 = vmatprep.subr.mxu0 0.0
        %1689 = vmatpush1.msra.mxu0 %v833
        %1690 = vmatprep.subr.mxu0 0.0
        %1691 = vmatpush1.msra.mxu0 %v832
        %1692 = vmatprep.subr.mxu0 0.0
        %1693 = vmatpush1.msra.mxu0 %v831
        %1694 = vmatprep.subr.mxu0 0.0
        %1695 = vmatpush1.msra.mxu0 %v830
        %1696 = vmatprep.subr.mxu0 0.0
        %1697 = vmatpush2.msra.mxu0 0.0
        %1698 = vmatprep.subr.mxu0 0.0
        %1699 = vmatpush2.msra.mxu0 0.0
        %1700 = vmatprep.subr.mxu0 0.0
        %1701 = vmatpush2.msra.mxu0 0.0
        %1702 = vmatprep.subr.mxu0 0.0
        %1703 = vmatpush2.msra.mxu0 0.0
        %1704 = vmatprep.subr.mxu0 0.0
        %1705 = vmatpush2.msra.mxu0 0.0
        %1706 = vmatprep.subr.mxu0 0.0
        %1707 = vmatpush2.msra.mxu0 0.0
        %1708 = vmatprep.subr.mxu0 0.0
        %1709 = vmatpush2.msra.mxu0 0.0
        %1710 = vmatprep.subr.mxu0 0.0
        %1711 = vmatpush2.msra.mxu0 0.0
        %1712 = vmatprep.subr.mxu0 0.0
        %1713 = vmatpush2.msra.mxu0 0.0
        %1714 = vmatprep.subr.mxu0 0.0
        %1715 = vmatpush2.msra.mxu0 0.0
        %1716 = vmatprep.subr.mxu0 0.0
        %1717 = vmatpush2.msra.mxu0 0.0
        %1718 = vmatprep.subr.mxu0 0.0
        %1719 = vmatpush2.msra.mxu0 0.0
        %1720 = vmatprep.subr.mxu0 0.0
        %1721 = vmatpush2.msra.mxu0 0.0
        %1722 = vmatprep.subr.mxu0 0.0
        %1723 = vmatpush2.msra.mxu0 0.0
        %1724 = vmatprep.subr.mxu0 0.0
        %1725 = vmatpush2.msra.mxu0 0.0
        %1726 = vmatprep.subr.mxu0 0.0
        %1727 = vmatpush2.msra.mxu0 0.0
        %1728 = vmatprep.mubr.f32.mxu0 0.0
        %1729 = vmatmul.mubr.f32.gmra.mxu0 %v1662
        %v1730 = vpop.f32.mrf.mxu0
        %v1731 = vadd.f32 0.0, %v1730
        %v1732 = vpop.f32.mrf.mxu0
        %1733 = vdwg.mxu0
        %v1735 = vrot.slane %v1658, 3
        %1736 = vrot.lane.b32.xlu0 %v1735, 32
        %v1737 = vpop.permute.xlu0 %1736
        %v1738 = vsel %vm727, %v1737, 0
        %1740 = vmatprep.subr.mxu0 0.0
        %1741 = vmatpush1.msra.mxu0 0.0
        %1742 = vmatprep.subr.mxu0 0.0
        %1743 = vmatpush1.msra.mxu0 0.0
        %1744 = vmatprep.subr.mxu0 0.0
        %1745 = vmatpush1.msra.mxu0 0.0
        %1746 = vmatprep.subr.mxu0 0.0
        %1747 = vmatpush1.msra.mxu0 0.0
        %1748 = vmatprep.subr.mxu0 0.0
        %1749 = vmatpush1.msra.mxu0 0.0
        %1750 = vmatprep.subr.mxu0 0.0
        %1751 = vmatpush1.msra.mxu0 0.0
        %1752 = vmatprep.subr.mxu0 0.0
        %1753 = vmatpush1.msra.mxu0 0.0
        %1754 = vmatprep.subr.mxu0 0.0
        %1755 = vmatpush1.msra.mxu0 0.0
        %1756 = vmatprep.subr.mxu0 0.0
        %1757 = vmatpush1.msra.mxu0 0.0
        %1758 = vmatprep.subr.mxu0 0.0
        %1759 = vmatpush1.msra.mxu0 0.0
        %1760 = vmatprep.subr.mxu0 0.0
        %1761 = vmatpush1.msra.mxu0 0.0
        %1762 = vmatprep.subr.mxu0 0.0
        %1763 = vmatpush1.msra.mxu0 0.0
        %1764 = vmatprep.subr.mxu0 0.0
        %1765 = vmatpush1.msra.mxu0 %v829
        %1766 = vmatprep.subr.mxu0 0.0
        %1767 = vmatpush1.msra.mxu0 %v828
        %1768 = vmatprep.subr.mxu0 0.0
        %1769 = vmatpush1.msra.mxu0 %v827
        %1770 = vmatprep.subr.mxu0 0.0
        %1771 = vmatpush1.msra.mxu0 %v826
        %1772 = vmatprep.subr.mxu0 0.0
        %1773 = vmatpush2.msra.mxu0 0.0
        %1774 = vmatprep.subr.mxu0 0.0
        %1775 = vmatpush2.msra.mxu0 0.0
        %1776 = vmatprep.subr.mxu0 0.0
        %1777 = vmatpush2.msra.mxu0 0.0
        %1778 = vmatprep.subr.mxu0 0.0
        %1779 = vmatpush2.msra.mxu0 0.0
        %1780 = vmatprep.subr.mxu0 0.0
        %1781 = vmatpush2.msra.mxu0 0.0
        %1782 = vmatprep.subr.mxu0 0.0
        %1783 = vmatpush2.msra.mxu0 0.0
        %1784 = vmatprep.subr.mxu0 0.0
        %1785 = vmatpush2.msra.mxu0 0.0
        %1786 = vmatprep.subr.mxu0 0.0
        %1787 = vmatpush2.msra.mxu0 0.0
        %1788 = vmatprep.subr.mxu0 0.0
        %1789 = vmatpush2.msra.mxu0 0.0
        %1790 = vmatprep.subr.mxu0 0.0
        %1791 = vmatpush2.msra.mxu0 0.0
        %1792 = vmatprep.subr.mxu0 0.0
        %1793 = vmatpush2.msra.mxu0 0.0
        %1794 = vmatprep.subr.mxu0 0.0
        %1795 = vmatpush2.msra.mxu0 0.0
        %1796 = vmatprep.subr.mxu0 0.0
        %1797 = vmatpush2.msra.mxu0 0.0
        %1798 = vmatprep.subr.mxu0 0.0
        %1799 = vmatpush2.msra.mxu0 0.0
        %1800 = vmatprep.subr.mxu0 0.0
        %1801 = vmatpush2.msra.mxu0 0.0
        %1802 = vmatprep.subr.mxu0 0.0
        %1803 = vmatpush2.msra.mxu0 0.0
        %1804 = vmatprep.mubr.f32.mxu0 0.0
        %1805 = vmatmul.mubr.f32.gmra.mxu0 %v1738
        %v1806 = vpop.f32.mrf.mxu0
        %v1807 = vadd.f32 %v1731, %v1806
        %v1808 = vpop.f32.mrf.mxu0
        %1809 = vdwg.mxu0
        %v1810 = vadd.f32 %v1807, %v636
        %v1811 = vxor.u32 %v1810, 2147483648
        %v1812 = vmul.f32 %v1811, 1.442695
        %v1813 = vpow.pop %v1812
        %v1814 = vadd.f32 %v1813, 1.0
        %v1815 = vrcp.pop %v1814
        %v1816 = vmul.f32 1.0, %v1815
        %v1817 = vtanh.pop %v1810
        %v1818 = vmul.f32 %v1816, %v1551
        %1820 = vrot.lane.b32.xlu0 %v1817, 64
        %v1821 = vpop.permute.xlu0 %1820
        %v1823 = vmul.f32 %v1816, %v1821
        %1825 = vrot.lane.b32.xlu0 %v1823, 32
        %v1826 = vpop.permute.xlu0 %1825
        %v1828 = vadd.f32 %v1818, %v1826
        %v1829 = vtanh.pop %v1828
        %1831 = vrot.lane.b32.xlu0 %v1829, 64
        %v1832 = vpop.permute.xlu0 %1831
        %v1834 = vmul.f32 %v1816, %v1832
        %1835 = vmatprep.subr.mxu0 0.0
        %1836 = vmatpush1.msra.mxu0 0.0
        %1837 = vmatprep.subr.mxu0 0.0
        %1838 = vmatpush1.msra.mxu0 0.0
        %1839 = vmatprep.subr.mxu0 0.0
        %1840 = vmatpush1.msra.mxu0 0.0
        %1841 = vmatprep.subr.mxu0 0.0
        %1842 = vmatpush1.msra.mxu0 0.0
        %1843 = vmatprep.subr.mxu0 0.0
        %1844 = vmatpush1.msra.mxu0 0.0
        %1845 = vmatprep.subr.mxu0 0.0
        %1846 = vmatpush1.msra.mxu0 0.0
        %1847 = vmatprep.subr.mxu0 0.0
        %1848 = vmatpush1.msra.mxu0 0.0
        %1849 = vmatprep.subr.mxu0 0.0
        %1850 = vmatpush1.msra.mxu0 0.0
        %1851 = vmatprep.subr.mxu0 0.0
        %1852 = vmatpush1.msra.mxu0 0.0
        %1853 = vmatprep.subr.mxu0 0.0
        %1854 = vmatpush1.msra.mxu0 0.0
        %1855 = vmatprep.subr.mxu0 0.0
        %1856 = vmatpush1.msra.mxu0 0.0
        %1857 = vmatprep.subr.mxu0 0.0
        %1858 = vmatpush1.msra.mxu0 0.0
        %1859 = vmatprep.subr.mxu0 0.0
        %1860 = vmatpush1.msra.mxu0 %v726
        %1861 = vmatprep.subr.mxu0 0.0
        %1862 = vmatpush1.msra.mxu0 %v725
        %1863 = vmatprep.subr.mxu0 0.0
        %1864 = vmatpush1.msra.mxu0 %v724
        %1865 = vmatprep.subr.mxu0 0.0
        %1866 = vmatpush1.msra.mxu0 %v723
        %1867 = vmatprep.subr.mxu0 0.0
        %1868 = vmatpush2.msra.mxu0 0.0
        %1869 = vmatprep.subr.mxu0 0.0
        %1870 = vmatpush2.msra.mxu0 0.0
        %1871 = vmatprep.subr.mxu0 0.0
        %1872 = vmatpush2.msra.mxu0 0.0
        %1873 = vmatprep.subr.mxu0 0.0
        %1874 = vmatpush2.msra.mxu0 0.0
        %1875 = vmatprep.subr.mxu0 0.0
        %1876 = vmatpush2.msra.mxu0 0.0
        %1877 = vmatprep.subr.mxu0 0.0
        %1878 = vmatpush2.msra.mxu0 0.0
        %1879 = vmatprep.subr.mxu0 0.0
        %1880 = vmatpush2.msra.mxu0 0.0
        %1881 = vmatprep.subr.mxu0 0.0
        %1882 = vmatpush2.msra.mxu0 0.0
        %1883 = vmatprep.subr.mxu0 0.0
        %1884 = vmatpush2.msra.mxu0 0.0
        %1885 = vmatprep.subr.mxu0 0.0
        %1886 = vmatpush2.msra.mxu0 0.0
        %1887 = vmatprep.subr.mxu0 0.0
        %1888 = vmatpush2.msra.mxu0 0.0
        %1889 = vmatprep.subr.mxu0 0.0
        %1890 = vmatpush2.msra.mxu0 0.0
        %1891 = vmatprep.subr.mxu0 0.0
        %1892 = vmatpush2.msra.mxu0 0.0
        %1893 = vmatprep.subr.mxu0 0.0
        %1894 = vmatpush2.msra.mxu0 0.0
        %1895 = vmatprep.subr.mxu0 0.0
        %1896 = vmatpush2.msra.mxu0 0.0
        %1897 = vmatprep.subr.mxu0 0.0
        %1898 = vmatpush2.msra.mxu0 0.0
        %1899 = vmatprep.mubr.f32.mxu0 0.0
        %1900 = vmatmul.mubr.f32.gmra.mxu0 %v1738
        %v1901 = vpop.f32.mrf.mxu0
        %v1902 = vadd.f32 0.0, %v1901
        %v1903 = vpop.f32.mrf.mxu0
        %1904 = vdwg.mxu0
        %v1906 = vrot.slane %v1902, 4
        %v1908 = vadd.f32 %v720, %v1906
        %v1909 = vxor.u32 %v1908, 2147483648
        %v1910 = vmul.f32 %v1909, 1.442695
        %v1911 = vpow.pop %v1910
        %v1912 = vadd.f32 %v1911, 1.0
        %v1913 = vrcp.pop %v1912
        %v1914 = vmul.f32 1.0, %v1913
        %v1915 = vtanh.pop %v1908
        %v1917 = vrot.slane %v1652, 7
        %v1919 = vmul.f32 %v1914, %v1917
        %1921 = vrot.lane.b32.xlu0 %v1915, 64
        %v1922 = vpop.permute.xlu0 %1921
        %v1924 = vmul.f32 %v1914, %v1922
        %1926 = vrot.lane.b32.xlu0 %v1924, 32
        %v1927 = vpop.permute.xlu0 %1926
        %v1929 = vadd.f32 %v1919, %v1927
        %v1930 = vtanh.pop %v1929
        %1932 = vrot.lane.b32.xlu0 %v1930, 64
        %v1933 = vpop.permute.xlu0 %1932
        %v1935 = vmul.f32 %v1914, %v1933
        %1937 = vrot.lane.b32.xlu0 %v1834, 32
        %v1938 = vpop.permute.xlu0 %1937
        %v1939 = vsel %vm727, %v1938, 0
        %1941 = vmatprep.subr.mxu0 0.0
        %1942 = vmatpush1.msra.mxu0 0.0
        %1943 = vmatprep.subr.mxu0 0.0
        %1944 = vmatpush1.msra.mxu0 0.0
        %1945 = vmatprep.subr.mxu0 0.0
        %1946 = vmatpush1.msra.mxu0 0.0
        %1947 = vmatprep.subr.mxu0 0.0
        %1948 = vmatpush1.msra.mxu0 0.0
        %1949 = vmatprep.subr.mxu0 0.0
        %1950 = vmatpush1.msra.mxu0 0.0
        %1951 = vmatprep.subr.mxu0 0.0
        %1952 = vmatpush1.msra.mxu0 0.0
        %1953 = vmatprep.subr.mxu0 0.0
        %1954 = vmatpush1.msra.mxu0 0.0
        %1955 = vmatprep.subr.mxu0 0.0
        %1956 = vmatpush1.msra.mxu0 0.0
        %1957 = vmatprep.subr.mxu0 0.0
        %1958 = vmatpush1.msra.mxu0 0.0
        %1959 = vmatprep.subr.mxu0 0.0
        %1960 = vmatpush1.msra.mxu0 0.0
        %1961 = vmatprep.subr.mxu0 0.0
        %1962 = vmatpush1.msra.mxu0 0.0
        %1963 = vmatprep.subr.mxu0 0.0
        %1964 = vmatpush1.msra.mxu0 0.0
        %1965 = vmatprep.subr.mxu0 0.0
        %1966 = vmatpush1.msra.mxu0 %v833
        %1967 = vmatprep.subr.mxu0 0.0
        %1968 = vmatpush1.msra.mxu0 %v832
        %1969 = vmatprep.subr.mxu0 0.0
        %1970 = vmatpush1.msra.mxu0 %v831
        %1971 = vmatprep.subr.mxu0 0.0
        %1972 = vmatpush1.msra.mxu0 %v830
        %1973 = vmatprep.subr.mxu0 0.0
        %1974 = vmatpush2.msra.mxu0 0.0
        %1975 = vmatprep.subr.mxu0 0.0
        %1976 = vmatpush2.msra.mxu0 0.0
        %1977 = vmatprep.subr.mxu0 0.0
        %1978 = vmatpush2.msra.mxu0 0.0
        %1979 = vmatprep.subr.mxu0 0.0
        %1980 = vmatpush2.msra.mxu0 0.0
        %1981 = vmatprep.subr.mxu0 0.0
        %1982 = vmatpush2.msra.mxu0 0.0
        %1983 = vmatprep.subr.mxu0 0.0
        %1984 = vmatpush2.msra.mxu0 0.0
        %1985 = vmatprep.subr.mxu0 0.0
        %1986 = vmatpush2.msra.mxu0 0.0
        %1987 = vmatprep.subr.mxu0 0.0
        %1988 = vmatpush2.msra.mxu0 0.0
        %1989 = vmatprep.subr.mxu0 0.0
        %1990 = vmatpush2.msra.mxu0 0.0
        %1991 = vmatprep.subr.mxu0 0.0
        %1992 = vmatpush2.msra.mxu0 0.0
        %1993 = vmatprep.subr.mxu0 0.0
        %1994 = vmatpush2.msra.mxu0 0.0
        %1995 = vmatprep.subr.mxu0 0.0
        %1996 = vmatpush2.msra.mxu0 0.0
        %1997 = vmatprep.subr.mxu0 0.0
        %1998 = vmatpush2.msra.mxu0 0.0
        %1999 = vmatprep.subr.mxu0 0.0
        %2000 = vmatpush2.msra.mxu0 0.0
        %2001 = vmatprep.subr.mxu0 0.0
        %2002 = vmatpush2.msra.mxu0 0.0
        %2003 = vmatprep.subr.mxu0 0.0
        %2004 = vmatpush2.msra.mxu0 0.0
        %2005 = vmatprep.mubr.f32.mxu0 0.0
        %2006 = vmatmul.mubr.f32.gmra.mxu0 %v1939
        %v2007 = vpop.f32.mrf.mxu0
        %v2008 = vadd.f32 0.0, %v2007
        %v2009 = vpop.f32.mrf.mxu0
        %2010 = vdwg.mxu0
        %v2012 = vrot.slane %v1935, 4
        %2013 = vrot.lane.b32.xlu0 %v2012, 32
        %v2014 = vpop.permute.xlu0 %2013
        %v2015 = vsel %vm727, %v2014, 0
        %2017 = vmatprep.subr.mxu0 0.0
        %2018 = vmatpush1.msra.mxu0 0.0
        %2019 = vmatprep.subr.mxu0 0.0
        %2020 = vmatpush1.msra.mxu0 0.0
        %2021 = vmatprep.subr.mxu0 0.0
        %2022 = vmatpush1.msra.mxu0 0.0
        %2023 = vmatprep.subr.mxu0 0.0
        %2024 = vmatpush1.msra.mxu0 0.0
        %2025 = vmatprep.subr.mxu0 0.0
        %2026 = vmatpush1.msra.mxu0 0.0
        %2027 = vmatprep.subr.mxu0 0.0
        %2028 = vmatpush1.msra.mxu0 0.0
        %2029 = vmatprep.subr.mxu0 0.0
        %2030 = vmatpush1.msra.mxu0 0.0
        %2031 = vmatprep.subr.mxu0 0.0
        %2032 = vmatpush1.msra.mxu0 0.0
        %2033 = vmatprep.subr.mxu0 0.0
        %2034 = vmatpush1.msra.mxu0 0.0
        %2035 = vmatprep.subr.mxu0 0.0
        %2036 = vmatpush1.msra.mxu0 0.0
        %2037 = vmatprep.subr.mxu0 0.0
        %2038 = vmatpush1.msra.mxu0 0.0
        %2039 = vmatprep.subr.mxu0 0.0
        %2040 = vmatpush1.msra.mxu0 0.0
        %2041 = vmatprep.subr.mxu0 0.0
        %2042 = vmatpush1.msra.mxu0 %v829
        %2043 = vmatprep.subr.mxu0 0.0
        %2044 = vmatpush1.msra.mxu0 %v828
        %2045 = vmatprep.subr.mxu0 0.0
        %2046 = vmatpush1.msra.mxu0 %v827
        %2047 = vmatprep.subr.mxu0 0.0
        %2048 = vmatpush1.msra.mxu0 %v826
        %2049 = vmatprep.subr.mxu0 0.0
        %2050 = vmatpush2.msra.mxu0 0.0
        %2051 = vmatprep.subr.mxu0 0.0
        %2052 = vmatpush2.msra.mxu0 0.0
        %2053 = vmatprep.subr.mxu0 0.0
        %2054 = vmatpush2.msra.mxu0 0.0
        %2055 = vmatprep.subr.mxu0 0.0
        %2056 = vmatpush2.msra.mxu0 0.0
        %2057 = vmatprep.subr.mxu0 0.0
        %2058 = vmatpush2.msra.mxu0 0.0
        %2059 = vmatprep.subr.mxu0 0.0
        %2060 = vmatpush2.msra.mxu0 0.0
        %2061 = vmatprep.subr.mxu0 0.0
        %2062 = vmatpush2.msra.mxu0 0.0
        %2063 = vmatprep.subr.mxu0 0.0
        %2064 = vmatpush2.msra.mxu0 0.0
        %2065 = vmatprep.subr.mxu0 0.0
        %2066 = vmatpush2.msra.mxu0 0.0
        %2067 = vmatprep.subr.mxu0 0.0
        %2068 = vmatpush2.msra.mxu0 0.0
        %2069 = vmatprep.subr.mxu0 0.0
        %2070 = vmatpush2.msra.mxu0 0.0
        %2071 = vmatprep.subr.mxu0 0.0
        %2072 = vmatpush2.msra.mxu0 0.0
        %2073 = vmatprep.subr.mxu0 0.0
        %2074 = vmatpush2.msra.mxu0 0.0
        %2075 = vmatprep.subr.mxu0 0.0
        %2076 = vmatpush2.msra.mxu0 0.0
        %2077 = vmatprep.subr.mxu0 0.0
        %2078 = vmatpush2.msra.mxu0 0.0
        %2079 = vmatprep.subr.mxu0 0.0
        %2080 = vmatpush2.msra.mxu0 0.0
        %2081 = vmatprep.mubr.f32.mxu0 0.0
        %2082 = vmatmul.mubr.f32.gmra.mxu0 %v2015
        %v2083 = vpop.f32.mrf.mxu0
        %v2084 = vadd.f32 %v2008, %v2083
        %v2085 = vpop.f32.mrf.mxu0
        %2086 = vdwg.mxu0
        %v2087 = vadd.f32 %v2084, %v636
        %v2088 = vxor.u32 %v2087, 2147483648
        %v2089 = vmul.f32 %v2088, 1.442695
        %v2090 = vpow.pop %v2089
        %v2091 = vadd.f32 %v2090, 1.0
        %v2092 = vrcp.pop %v2091
        %v2093 = vmul.f32 1.0, %v2092
        %v2094 = vtanh.pop %v2087
        %v2095 = vmul.f32 %v2093, %v1828
        %2097 = vrot.lane.b32.xlu0 %v2094, 64
        %v2098 = vpop.permute.xlu0 %2097
        %v2100 = vmul.f32 %v2093, %v2098
        %2102 = vrot.lane.b32.xlu0 %v2100, 32
        %v2103 = vpop.permute.xlu0 %2102
        %v2105 = vadd.f32 %v2095, %v2103
        %v2106 = vtanh.pop %v2105
        %2108 = vrot.lane.b32.xlu0 %v2106, 64
        %v2109 = vpop.permute.xlu0 %2108
        %v2111 = vmul.f32 %v2093, %v2109
        %2112 = vmatprep.subr.mxu0 0.0
        %2113 = vmatpush1.msra.mxu0 0.0
        %2114 = vmatprep.subr.mxu0 0.0
        %2115 = vmatpush1.msra.mxu0 0.0
        %2116 = vmatprep.subr.mxu0 0.0
        %2117 = vmatpush1.msra.mxu0 0.0
        %2118 = vmatprep.subr.mxu0 0.0
        %2119 = vmatpush1.msra.mxu0 0.0
        %2120 = vmatprep.subr.mxu0 0.0
        %2121 = vmatpush1.msra.mxu0 0.0
        %2122 = vmatprep.subr.mxu0 0.0
        %2123 = vmatpush1.msra.mxu0 0.0
        %2124 = vmatprep.subr.mxu0 0.0
        %2125 = vmatpush1.msra.mxu0 0.0
        %2126 = vmatprep.subr.mxu0 0.0
        %2127 = vmatpush1.msra.mxu0 0.0
        %2128 = vmatprep.subr.mxu0 0.0
        %2129 = vmatpush1.msra.mxu0 0.0
        %2130 = vmatprep.subr.mxu0 0.0
        %2131 = vmatpush1.msra.mxu0 0.0
        %2132 = vmatprep.subr.mxu0 0.0
        %2133 = vmatpush1.msra.mxu0 0.0
        %2134 = vmatprep.subr.mxu0 0.0
        %2135 = vmatpush1.msra.mxu0 0.0
        %2136 = vmatprep.subr.mxu0 0.0
        %2137 = vmatpush1.msra.mxu0 %v726
        %2138 = vmatprep.subr.mxu0 0.0
        %2139 = vmatpush1.msra.mxu0 %v725
        %2140 = vmatprep.subr.mxu0 0.0
        %2141 = vmatpush1.msra.mxu0 %v724
        %2142 = vmatprep.subr.mxu0 0.0
        %2143 = vmatpush1.msra.mxu0 %v723
        %2144 = vmatprep.subr.mxu0 0.0
        %2145 = vmatpush2.msra.mxu0 0.0
        %2146 = vmatprep.subr.mxu0 0.0
        %2147 = vmatpush2.msra.mxu0 0.0
        %2148 = vmatprep.subr.mxu0 0.0
        %2149 = vmatpush2.msra.mxu0 0.0
        %2150 = vmatprep.subr.mxu0 0.0
        %2151 = vmatpush2.msra.mxu0 0.0
        %2152 = vmatprep.subr.mxu0 0.0
        %2153 = vmatpush2.msra.mxu0 0.0
        %2154 = vmatprep.subr.mxu0 0.0
        %2155 = vmatpush2.msra.mxu0 0.0
        %2156 = vmatprep.subr.mxu0 0.0
        %2157 = vmatpush2.msra.mxu0 0.0
        %2158 = vmatprep.subr.mxu0 0.0
        %2159 = vmatpush2.msra.mxu0 0.0
        %2160 = vmatprep.subr.mxu0 0.0
        %2161 = vmatpush2.msra.mxu0 0.0
        %2162 = vmatprep.subr.mxu0 0.0
        %2163 = vmatpush2.msra.mxu0 0.0
        %2164 = vmatprep.subr.mxu0 0.0
        %2165 = vmatpush2.msra.mxu0 0.0
        %2166 = vmatprep.subr.mxu0 0.0
        %2167 = vmatpush2.msra.mxu0 0.0
        %2168 = vmatprep.subr.mxu0 0.0
        %2169 = vmatpush2.msra.mxu0 0.0
        %2170 = vmatprep.subr.mxu0 0.0
        %2171 = vmatpush2.msra.mxu0 0.0
        %2172 = vmatprep.subr.mxu0 0.0
        %2173 = vmatpush2.msra.mxu0 0.0
        %2174 = vmatprep.subr.mxu0 0.0
        %2175 = vmatpush2.msra.mxu0 0.0
        %2176 = vmatprep.mubr.f32.mxu0 0.0
        %2177 = vmatmul.mubr.f32.gmra.mxu0 %v2015
        %v2178 = vpop.f32.mrf.mxu0
        %v2179 = vadd.f32 0.0, %v2178
        %v2180 = vpop.f32.mrf.mxu0
        %2181 = vdwg.mxu0
        %v2183 = vrot.slane %v2179, 3
        %v2185 = vadd.f32 %v720, %v2183
        %v2186 = vxor.u32 %v2185, 2147483648
        %v2187 = vmul.f32 %v2186, 1.442695
        %v2188 = vpow.pop %v2187
        %v2189 = vadd.f32 %v2188, 1.0
        %v2190 = vrcp.pop %v2189
        %v2191 = vmul.f32 1.0, %v2190
        %v2192 = vtanh.pop %v2185
        %v2194 = vrot.slane %v1929, 7
        %v2196 = vmul.f32 %v2191, %v2194
        %2198 = vrot.lane.b32.xlu0 %v2192, 64
        %v2199 = vpop.permute.xlu0 %2198
        %v2201 = vmul.f32 %v2191, %v2199
        %2203 = vrot.lane.b32.xlu0 %v2201, 32
        %v2204 = vpop.permute.xlu0 %2203
        %v2206 = vadd.f32 %v2196, %v2204
        %v2207 = vtanh.pop %v2206
        %2209 = vrot.lane.b32.xlu0 %v2207, 64
        %v2210 = vpop.permute.xlu0 %2209
        %v2212 = vmul.f32 %v2191, %v2210
        %2214 = vrot.lane.b32.xlu0 %v2111, 32
        %v2215 = vpop.permute.xlu0 %2214
        %v2216 = vsel %vm727, %v2215, 0
        %2218 = vmatprep.subr.mxu0 0.0
        %2219 = vmatpush1.msra.mxu0 0.0
        %2220 = vmatprep.subr.mxu0 0.0
        %2221 = vmatpush1.msra.mxu0 0.0
        %2222 = vmatprep.subr.mxu0 0.0
        %2223 = vmatpush1.msra.mxu0 0.0
        %2224 = vmatprep.subr.mxu0 0.0
        %2225 = vmatpush1.msra.mxu0 0.0
        %2226 = vmatprep.subr.mxu0 0.0
        %2227 = vmatpush1.msra.mxu0 0.0
        %2228 = vmatprep.subr.mxu0 0.0
        %2229 = vmatpush1.msra.mxu0 0.0
        %2230 = vmatprep.subr.mxu0 0.0
        %2231 = vmatpush1.msra.mxu0 0.0
        %2232 = vmatprep.subr.mxu0 0.0
        %2233 = vmatpush1.msra.mxu0 0.0
        %2234 = vmatprep.subr.mxu0 0.0
        %2235 = vmatpush1.msra.mxu0 0.0
        %2236 = vmatprep.subr.mxu0 0.0
        %2237 = vmatpush1.msra.mxu0 0.0
        %2238 = vmatprep.subr.mxu0 0.0
        %2239 = vmatpush1.msra.mxu0 0.0
        %2240 = vmatprep.subr.mxu0 0.0
        %2241 = vmatpush1.msra.mxu0 0.0
        %2242 = vmatprep.subr.mxu0 0.0
        %2243 = vmatpush1.msra.mxu0 %v833
        %2244 = vmatprep.subr.mxu0 0.0
        %2245 = vmatpush1.msra.mxu0 %v832
        %2246 = vmatprep.subr.mxu0 0.0
        %2247 = vmatpush1.msra.mxu0 %v831
        %2248 = vmatprep.subr.mxu0 0.0
        %2249 = vmatpush1.msra.mxu0 %v830
        %2250 = vmatprep.subr.mxu0 0.0
        %2251 = vmatpush2.msra.mxu0 0.0
        %2252 = vmatprep.subr.mxu0 0.0
        %2253 = vmatpush2.msra.mxu0 0.0
        %2254 = vmatprep.subr.mxu0 0.0
        %2255 = vmatpush2.msra.mxu0 0.0
        %2256 = vmatprep.subr.mxu0 0.0
        %2257 = vmatpush2.msra.mxu0 0.0
        %2258 = vmatprep.subr.mxu0 0.0
        %2259 = vmatpush2.msra.mxu0 0.0
        %2260 = vmatprep.subr.mxu0 0.0
        %2261 = vmatpush2.msra.mxu0 0.0
        %2262 = vmatprep.subr.mxu0 0.0
        %2263 = vmatpush2.msra.mxu0 0.0
        %2264 = vmatprep.subr.mxu0 0.0
        %2265 = vmatpush2.msra.mxu0 0.0
        %2266 = vmatprep.subr.mxu0 0.0
        %2267 = vmatpush2.msra.mxu0 0.0
        %2268 = vmatprep.subr.mxu0 0.0
        %2269 = vmatpush2.msra.mxu0 0.0
        %2270 = vmatprep.subr.mxu0 0.0
        %2271 = vmatpush2.msra.mxu0 0.0
        %2272 = vmatprep.subr.mxu0 0.0
        %2273 = vmatpush2.msra.mxu0 0.0
        %2274 = vmatprep.subr.mxu0 0.0
        %2275 = vmatpush2.msra.mxu0 0.0
        %2276 = vmatprep.subr.mxu0 0.0
        %2277 = vmatpush2.msra.mxu0 0.0
        %2278 = vmatprep.subr.mxu0 0.0
        %2279 = vmatpush2.msra.mxu0 0.0
        %2280 = vmatprep.subr.mxu0 0.0
        %2281 = vmatpush2.msra.mxu0 0.0
        %2282 = vmatprep.mubr.f32.mxu0 0.0
        %2283 = vmatmul.mubr.f32.gmra.mxu0 %v2216
        %v2284 = vpop.f32.mrf.mxu0
        %v2285 = vadd.f32 0.0, %v2284
        %v2286 = vpop.f32.mrf.mxu0
        %2287 = vdwg.mxu0
        %v2289 = vrot.slane %v2212, 5
        %2290 = vrot.lane.b32.xlu0 %v2289, 32
        %v2291 = vpop.permute.xlu0 %2290
        %v2292 = vsel %vm727, %v2291, 0
        %2294 = vmatprep.subr.mxu0 0.0
        %2295 = vmatpush1.msra.mxu0 0.0
        %2296 = vmatprep.subr.mxu0 0.0
        %2297 = vmatpush1.msra.mxu0 0.0
        %2298 = vmatprep.subr.mxu0 0.0
        %2299 = vmatpush1.msra.mxu0 0.0
        %2300 = vmatprep.subr.mxu0 0.0
        %2301 = vmatpush1.msra.mxu0 0.0
        %2302 = vmatprep.subr.mxu0 0.0
        %2303 = vmatpush1.msra.mxu0 0.0
        %2304 = vmatprep.subr.mxu0 0.0
        %2305 = vmatpush1.msra.mxu0 0.0
        %2306 = vmatprep.subr.mxu0 0.0
        %2307 = vmatpush1.msra.mxu0 0.0
        %2308 = vmatprep.subr.mxu0 0.0
        %2309 = vmatpush1.msra.mxu0 0.0
        %2310 = vmatprep.subr.mxu0 0.0
        %2311 = vmatpush1.msra.mxu0 0.0
        %2312 = vmatprep.subr.mxu0 0.0
        %2313 = vmatpush1.msra.mxu0 0.0
        %2314 = vmatprep.subr.mxu0 0.0
        %2315 = vmatpush1.msra.mxu0 0.0
        %2316 = vmatprep.subr.mxu0 0.0
        %2317 = vmatpush1.msra.mxu0 0.0
        %2318 = vmatprep.subr.mxu0 0.0
        %2319 = vmatpush1.msra.mxu0 %v829
        %2320 = vmatprep.subr.mxu0 0.0
        %2321 = vmatpush1.msra.mxu0 %v828
        %2322 = vmatprep.subr.mxu0 0.0
        %2323 = vmatpush1.msra.mxu0 %v827
        %2324 = vmatprep.subr.mxu0 0.0
        %2325 = vmatpush1.msra.mxu0 %v826
        %2326 = vmatprep.subr.mxu0 0.0
        %2327 = vmatpush2.msra.mxu0 0.0
        %2328 = vmatprep.subr.mxu0 0.0
        %2329 = vmatpush2.msra.mxu0 0.0
        %2330 = vmatprep.subr.mxu0 0.0
        %2331 = vmatpush2.msra.mxu0 0.0
        %2332 = vmatprep.subr.mxu0 0.0
        %2333 = vmatpush2.msra.mxu0 0.0
        %2334 = vmatprep.subr.mxu0 0.0
        %2335 = vmatpush2.msra.mxu0 0.0
        %2336 = vmatprep.subr.mxu0 0.0
        %2337 = vmatpush2.msra.mxu0 0.0
        %2338 = vmatprep.subr.mxu0 0.0
        %2339 = vmatpush2.msra.mxu0 0.0
        %2340 = vmatprep.subr.mxu0 0.0
        %2341 = vmatpush2.msra.mxu0 0.0
        %2342 = vmatprep.subr.mxu0 0.0
        %2343 = vmatpush2.msra.mxu0 0.0
        %2344 = vmatprep.subr.mxu0 0.0
        %2345 = vmatpush2.msra.mxu0 0.0
        %2346 = vmatprep.subr.mxu0 0.0
        %2347 = vmatpush2.msra.mxu0 0.0
        %2348 = vmatprep.subr.mxu0 0.0
        %2349 = vmatpush2.msra.mxu0 0.0
        %2350 = vmatprep.subr.mxu0 0.0
        %2351 = vmatpush2.msra.mxu0 0.0
        %2352 = vmatprep.subr.mxu0 0.0
        %2353 = vmatpush2.msra.mxu0 0.0
        %2354 = vmatprep.subr.mxu0 0.0
        %2355 = vmatpush2.msra.mxu0 0.0
        %2356 = vmatprep.subr.mxu0 0.0
        %2357 = vmatpush2.msra.mxu0 0.0
        %2358 = vmatprep.mubr.f32.mxu0 0.0
        %2359 = vmatmul.mubr.f32.gmra.mxu0 %v2292
        %v2360 = vpop.f32.mrf.mxu0
        %v2361 = vadd.f32 %v2285, %v2360
        %v2362 = vpop.f32.mrf.mxu0
        %2363 = vdwg.mxu0
        %v2364 = vadd.f32 %v2361, %v636
        %v2365 = vxor.u32 %v2364, 2147483648
        %v2366 = vmul.f32 %v2365, 1.442695
        %v2367 = vpow.pop %v2366
        %v2368 = vadd.f32 %v2367, 1.0
        %v2369 = vrcp.pop %v2368
        %v2370 = vmul.f32 1.0, %v2369
        %v2371 = vtanh.pop %v2364
        %v2372 = vmul.f32 %v2370, %v2105
        %2374 = vrot.lane.b32.xlu0 %v2371, 64
        %v2375 = vpop.permute.xlu0 %2374
        %v2377 = vmul.f32 %v2370, %v2375
        %2379 = vrot.lane.b32.xlu0 %v2377, 32
        %v2380 = vpop.permute.xlu0 %2379
        %v2382 = vadd.f32 %v2372, %v2380
        %v2383 = vtanh.pop %v2382
        %2385 = vrot.lane.b32.xlu0 %v2383, 64
        %v2386 = vpop.permute.xlu0 %2385
        %v2388 = vmul.f32 %v2370, %v2386
        %2389 = vmatprep.subr.mxu0 0.0
        %2390 = vmatpush1.msra.mxu0 0.0
        %2391 = vmatprep.subr.mxu0 0.0
        %2392 = vmatpush1.msra.mxu0 0.0
        %2393 = vmatprep.subr.mxu0 0.0
        %2394 = vmatpush1.msra.mxu0 0.0
        %2395 = vmatprep.subr.mxu0 0.0
        %2396 = vmatpush1.msra.mxu0 0.0
        %2397 = vmatprep.subr.mxu0 0.0
        %2398 = vmatpush1.msra.mxu0 0.0
        %2399 = vmatprep.subr.mxu0 0.0
        %2400 = vmatpush1.msra.mxu0 0.0
        %2401 = vmatprep.subr.mxu0 0.0
        %2402 = vmatpush1.msra.mxu0 0.0
        %2403 = vmatprep.subr.mxu0 0.0
        %2404 = vmatpush1.msra.mxu0 0.0
        %2405 = vmatprep.subr.mxu0 0.0
        %2406 = vmatpush1.msra.mxu0 0.0
        %2407 = vmatprep.subr.mxu0 0.0
        %2408 = vmatpush1.msra.mxu0 0.0
        %2409 = vmatprep.subr.mxu0 0.0
        %2410 = vmatpush1.msra.mxu0 0.0
        %2411 = vmatprep.subr.mxu0 0.0
        %2412 = vmatpush1.msra.mxu0 0.0
        %2413 = vmatprep.subr.mxu0 0.0
        %2414 = vmatpush1.msra.mxu0 %v726
        %2415 = vmatprep.subr.mxu0 0.0
        %2416 = vmatpush1.msra.mxu0 %v725
        %2417 = vmatprep.subr.mxu0 0.0
        %2418 = vmatpush1.msra.mxu0 %v724
        %2419 = vmatprep.subr.mxu0 0.0
        %2420 = vmatpush1.msra.mxu0 %v723
        %2421 = vmatprep.subr.mxu0 0.0
        %2422 = vmatpush2.msra.mxu0 0.0
        %2423 = vmatprep.subr.mxu0 0.0
        %2424 = vmatpush2.msra.mxu0 0.0
        %2425 = vmatprep.subr.mxu0 0.0
        %2426 = vmatpush2.msra.mxu0 0.0
        %2427 = vmatprep.subr.mxu0 0.0
        %2428 = vmatpush2.msra.mxu0 0.0
        %2429 = vmatprep.subr.mxu0 0.0
        %2430 = vmatpush2.msra.mxu0 0.0
        %2431 = vmatprep.subr.mxu0 0.0
        %2432 = vmatpush2.msra.mxu0 0.0
        %2433 = vmatprep.subr.mxu0 0.0
        %2434 = vmatpush2.msra.mxu0 0.0
        %2435 = vmatprep.subr.mxu0 0.0
        %2436 = vmatpush2.msra.mxu0 0.0
        %2437 = vmatprep.subr.mxu0 0.0
        %2438 = vmatpush2.msra.mxu0 0.0
        %2439 = vmatprep.subr.mxu0 0.0
        %2440 = vmatpush2.msra.mxu0 0.0
        %2441 = vmatprep.subr.mxu0 0.0
        %2442 = vmatpush2.msra.mxu0 0.0
        %2443 = vmatprep.subr.mxu0 0.0
        %2444 = vmatpush2.msra.mxu0 0.0
        %2445 = vmatprep.subr.mxu0 0.0
        %2446 = vmatpush2.msra.mxu0 0.0
        %2447 = vmatprep.subr.mxu0 0.0
        %2448 = vmatpush2.msra.mxu0 0.0
        %2449 = vmatprep.subr.mxu0 0.0
        %2450 = vmatpush2.msra.mxu0 0.0
        %2451 = vmatprep.subr.mxu0 0.0
        %2452 = vmatpush2.msra.mxu0 0.0
        %2453 = vmatprep.mubr.f32.mxu0 0.0
        %2454 = vmatmul.mubr.f32.gmra.mxu0 %v2292
        %v2455 = vpop.f32.mrf.mxu0
        %v2456 = vadd.f32 0.0, %v2455
        %v2457 = vpop.f32.mrf.mxu0
        %2458 = vdwg.mxu0
        %v2460 = vrot.slane %v2456, 2
        %v2462 = vadd.f32 %v720, %v2460
        %v2463 = vxor.u32 %v2462, 2147483648
        %v2464 = vmul.f32 %v2463, 1.442695
        %v2465 = vpow.pop %v2464
        %v2466 = vadd.f32 %v2465, 1.0
        %v2467 = vrcp.pop %v2466
        %v2468 = vmul.f32 1.0, %v2467
        %v2469 = vtanh.pop %v2462
        %v2471 = vrot.slane %v2206, 7
        %v2473 = vmul.f32 %v2468, %v2471
        %2475 = vrot.lane.b32.xlu0 %v2469, 64
        %v2476 = vpop.permute.xlu0 %2475
        %v2478 = vmul.f32 %v2468, %v2476
        %2480 = vrot.lane.b32.xlu0 %v2478, 32
        %v2481 = vpop.permute.xlu0 %2480
        %v2483 = vadd.f32 %v2473, %v2481
        %v2484 = vtanh.pop %v2483
        %2486 = vrot.lane.b32.xlu0 %v2484, 64
        %v2487 = vpop.permute.xlu0 %2486
        %v2489 = vmul.f32 %v2468, %v2487
        %2491 = vrot.lane.b32.xlu0 %v2388, 32
        %v2492 = vpop.permute.xlu0 %2491
        %v2493 = vsel %vm727, %v2492, 0
        %2495 = vmatprep.subr.mxu0 0.0
        %2496 = vmatpush1.msra.mxu0 0.0
        %2497 = vmatprep.subr.mxu0 0.0
        %2498 = vmatpush1.msra.mxu0 0.0
        %2499 = vmatprep.subr.mxu0 0.0
        %2500 = vmatpush1.msra.mxu0 0.0
        %2501 = vmatprep.subr.mxu0 0.0
        %2502 = vmatpush1.msra.mxu0 0.0
        %2503 = vmatprep.subr.mxu0 0.0
        %2504 = vmatpush1.msra.mxu0 0.0
        %2505 = vmatprep.subr.mxu0 0.0
        %2506 = vmatpush1.msra.mxu0 0.0
        %2507 = vmatprep.subr.mxu0 0.0
        %2508 = vmatpush1.msra.mxu0 0.0
        %2509 = vmatprep.subr.mxu0 0.0
        %2510 = vmatpush1.msra.mxu0 0.0
        %2511 = vmatprep.subr.mxu0 0.0
        %2512 = vmatpush1.msra.mxu0 0.0
        %2513 = vmatprep.subr.mxu0 0.0
        %2514 = vmatpush1.msra.mxu0 0.0
        %2515 = vmatprep.subr.mxu0 0.0
        %2516 = vmatpush1.msra.mxu0 0.0
        %2517 = vmatprep.subr.mxu0 0.0
        %2518 = vmatpush1.msra.mxu0 0.0
        %2519 = vmatprep.subr.mxu0 0.0
        %2520 = vmatpush1.msra.mxu0 %v833
        %2521 = vmatprep.subr.mxu0 0.0
        %2522 = vmatpush1.msra.mxu0 %v832
        %2523 = vmatprep.subr.mxu0 0.0
        %2524 = vmatpush1.msra.mxu0 %v831
        %2525 = vmatprep.subr.mxu0 0.0
        %2526 = vmatpush1.msra.mxu0 %v830
        %2527 = vmatprep.subr.mxu0 0.0
        %2528 = vmatpush2.msra.mxu0 0.0
        %2529 = vmatprep.subr.mxu0 0.0
        %2530 = vmatpush2.msra.mxu0 0.0
        %2531 = vmatprep.subr.mxu0 0.0
        %2532 = vmatpush2.msra.mxu0 0.0
        %2533 = vmatprep.subr.mxu0 0.0
        %2534 = vmatpush2.msra.mxu0 0.0
        %2535 = vmatprep.subr.mxu0 0.0
        %2536 = vmatpush2.msra.mxu0 0.0
        %2537 = vmatprep.subr.mxu0 0.0
        %2538 = vmatpush2.msra.mxu0 0.0
        %2539 = vmatprep.subr.mxu0 0.0
        %2540 = vmatpush2.msra.mxu0 0.0
        %2541 = vmatprep.subr.mxu0 0.0
        %2542 = vmatpush2.msra.mxu0 0.0
        %2543 = vmatprep.subr.mxu0 0.0
        %2544 = vmatpush2.msra.mxu0 0.0
        %2545 = vmatprep.subr.mxu0 0.0
        %2546 = vmatpush2.msra.mxu0 0.0
        %2547 = vmatprep.subr.mxu0 0.0
        %2548 = vmatpush2.msra.mxu0 0.0
        %2549 = vmatprep.subr.mxu0 0.0
        %2550 = vmatpush2.msra.mxu0 0.0
        %2551 = vmatprep.subr.mxu0 0.0
        %2552 = vmatpush2.msra.mxu0 0.0
        %2553 = vmatprep.subr.mxu0 0.0
        %2554 = vmatpush2.msra.mxu0 0.0
        %2555 = vmatprep.subr.mxu0 0.0
        %2556 = vmatpush2.msra.mxu0 0.0
        %2557 = vmatprep.subr.mxu0 0.0
        %2558 = vmatpush2.msra.mxu0 0.0
        %2559 = vmatprep.mubr.f32.mxu0 0.0
        %2560 = vmatmul.mubr.f32.gmra.mxu0 %v2493
        %v2561 = vpop.f32.mrf.mxu0
        %v2562 = vadd.f32 0.0, %v2561
        %v2563 = vpop.f32.mrf.mxu0
        %2564 = vdwg.mxu0
        %v2566 = vrot.slane %v2489, 6
        %2567 = vrot.lane.b32.xlu0 %v2566, 32
        %v2568 = vpop.permute.xlu0 %2567
        %v2569 = vsel %vm727, %v2568, 0
        %2571 = vmatprep.subr.mxu0 0.0
        %2572 = vmatpush1.msra.mxu0 0.0
        %2573 = vmatprep.subr.mxu0 0.0
        %2574 = vmatpush1.msra.mxu0 0.0
        %2575 = vmatprep.subr.mxu0 0.0
        %2576 = vmatpush1.msra.mxu0 0.0
        %2577 = vmatprep.subr.mxu0 0.0
        %2578 = vmatpush1.msra.mxu0 0.0
        %2579 = vmatprep.subr.mxu0 0.0
        %2580 = vmatpush1.msra.mxu0 0.0
        %2581 = vmatprep.subr.mxu0 0.0
        %2582 = vmatpush1.msra.mxu0 0.0
        %2583 = vmatprep.subr.mxu0 0.0
        %2584 = vmatpush1.msra.mxu0 0.0
        %2585 = vmatprep.subr.mxu0 0.0
        %2586 = vmatpush1.msra.mxu0 0.0
        %2587 = vmatprep.subr.mxu0 0.0
        %2588 = vmatpush1.msra.mxu0 0.0
        %2589 = vmatprep.subr.mxu0 0.0
        %2590 = vmatpush1.msra.mxu0 0.0
        %2591 = vmatprep.subr.mxu0 0.0
        %2592 = vmatpush1.msra.mxu0 0.0
        %2593 = vmatprep.subr.mxu0 0.0
        %2594 = vmatpush1.msra.mxu0 0.0
        %2595 = vmatprep.subr.mxu0 0.0
        %2596 = vmatpush1.msra.mxu0 %v829
        %2597 = vmatprep.subr.mxu0 0.0
        %2598 = vmatpush1.msra.mxu0 %v828
        %2599 = vmatprep.subr.mxu0 0.0
        %2600 = vmatpush1.msra.mxu0 %v827
        %2601 = vmatprep.subr.mxu0 0.0
        %2602 = vmatpush1.msra.mxu0 %v826
        %2603 = vmatprep.subr.mxu0 0.0
        %2604 = vmatpush2.msra.mxu0 0.0
        %2605 = vmatprep.subr.mxu0 0.0
        %2606 = vmatpush2.msra.mxu0 0.0
        %2607 = vmatprep.subr.mxu0 0.0
        %2608 = vmatpush2.msra.mxu0 0.0
        %2609 = vmatprep.subr.mxu0 0.0
        %2610 = vmatpush2.msra.mxu0 0.0
        %2611 = vmatprep.subr.mxu0 0.0
        %2612 = vmatpush2.msra.mxu0 0.0
        %2613 = vmatprep.subr.mxu0 0.0
        %2614 = vmatpush2.msra.mxu0 0.0
        %2615 = vmatprep.subr.mxu0 0.0
        %2616 = vmatpush2.msra.mxu0 0.0
        %2617 = vmatprep.subr.mxu0 0.0
        %2618 = vmatpush2.msra.mxu0 0.0
        %2619 = vmatprep.subr.mxu0 0.0
        %2620 = vmatpush2.msra.mxu0 0.0
        %2621 = vmatprep.subr.mxu0 0.0
        %2622 = vmatpush2.msra.mxu0 0.0
        %2623 = vmatprep.subr.mxu0 0.0
        %2624 = vmatpush2.msra.mxu0 0.0
        %2625 = vmatprep.subr.mxu0 0.0
        %2626 = vmatpush2.msra.mxu0 0.0
        %2627 = vmatprep.subr.mxu0 0.0
        %2628 = vmatpush2.msra.mxu0 0.0
        %2629 = vmatprep.subr.mxu0 0.0
        %2630 = vmatpush2.msra.mxu0 0.0
        %2631 = vmatprep.subr.mxu0 0.0
        %2632 = vmatpush2.msra.mxu0 0.0
        %2633 = vmatprep.subr.mxu0 0.0
        %2634 = vmatpush2.msra.mxu0 0.0
        %2635 = vmatprep.mubr.f32.mxu0 0.0
        %2636 = vmatmul.mubr.f32.gmra.mxu0 %v2569
        %v2637 = vpop.f32.mrf.mxu0
        %v2638 = vadd.f32 %v2562, %v2637
        %v2639 = vpop.f32.mrf.mxu0
        %2640 = vdwg.mxu0
        %v2641 = vadd.f32 %v2638, %v636
        %v2642 = vxor.u32 %v2641, 2147483648
        %v2643 = vmul.f32 %v2642, 1.442695
        %v2644 = vpow.pop %v2643
        %v2645 = vadd.f32 %v2644, 1.0
        %v2646 = vrcp.pop %v2645
        %v2647 = vmul.f32 1.0, %v2646
        %v2648 = vtanh.pop %v2641
        %v2649 = vmul.f32 %v2647, %v2382
        %2651 = vrot.lane.b32.xlu0 %v2648, 64
        %v2652 = vpop.permute.xlu0 %2651
        %v2654 = vmul.f32 %v2647, %v2652
        %2656 = vrot.lane.b32.xlu0 %v2654, 32
        %v2657 = vpop.permute.xlu0 %2656
        %v2659 = vadd.f32 %v2649, %v2657
        %v2660 = vtanh.pop %v2659
        %2662 = vrot.lane.b32.xlu0 %v2660, 64
        %v2663 = vpop.permute.xlu0 %2662
        %v2665 = vmul.f32 %v2647, %v2663
        %2666 = vmatprep.subr.mxu0 0.0
        %2667 = vmatpush1.msra.mxu0 0.0
        %2668 = vmatprep.subr.mxu0 0.0
        %2669 = vmatpush1.msra.mxu0 0.0
        %2670 = vmatprep.subr.mxu0 0.0
        %2671 = vmatpush1.msra.mxu0 0.0
        %2672 = vmatprep.subr.mxu0 0.0
        %2673 = vmatpush1.msra.mxu0 0.0
        %2674 = vmatprep.subr.mxu0 0.0
        %2675 = vmatpush1.msra.mxu0 0.0
        %2676 = vmatprep.subr.mxu0 0.0
        %2677 = vmatpush1.msra.mxu0 0.0
        %2678 = vmatprep.subr.mxu0 0.0
        %2679 = vmatpush1.msra.mxu0 0.0
        %2680 = vmatprep.subr.mxu0 0.0
        %2681 = vmatpush1.msra.mxu0 0.0
        %2682 = vmatprep.subr.mxu0 0.0
        %2683 = vmatpush1.msra.mxu0 0.0
        %2684 = vmatprep.subr.mxu0 0.0
        %2685 = vmatpush1.msra.mxu0 0.0
        %2686 = vmatprep.subr.mxu0 0.0
        %2687 = vmatpush1.msra.mxu0 0.0
        %2688 = vmatprep.subr.mxu0 0.0
        %2689 = vmatpush1.msra.mxu0 0.0
        %2690 = vmatprep.subr.mxu0 0.0
        %2691 = vmatpush1.msra.mxu0 %v726
        %2692 = vmatprep.subr.mxu0 0.0
        %2693 = vmatpush1.msra.mxu0 %v725
        %2694 = vmatprep.subr.mxu0 0.0
        %2695 = vmatpush1.msra.mxu0 %v724
        %2696 = vmatprep.subr.mxu0 0.0
        %2697 = vmatpush1.msra.mxu0 %v723
        %2698 = vmatprep.subr.mxu0 0.0
        %2699 = vmatpush2.msra.mxu0 0.0
        %2700 = vmatprep.subr.mxu0 0.0
        %2701 = vmatpush2.msra.mxu0 0.0
        %2702 = vmatprep.subr.mxu0 0.0
        %2703 = vmatpush2.msra.mxu0 0.0
        %2704 = vmatprep.subr.mxu0 0.0
        %2705 = vmatpush2.msra.mxu0 0.0
        %2706 = vmatprep.subr.mxu0 0.0
        %2707 = vmatpush2.msra.mxu0 0.0
        %2708 = vmatprep.subr.mxu0 0.0
        %2709 = vmatpush2.msra.mxu0 0.0
        %2710 = vmatprep.subr.mxu0 0.0
        %2711 = vmatpush2.msra.mxu0 0.0
        %2712 = vmatprep.subr.mxu0 0.0
        %2713 = vmatpush2.msra.mxu0 0.0
        %2714 = vmatprep.subr.mxu0 0.0
        %2715 = vmatpush2.msra.mxu0 0.0
        %2716 = vmatprep.subr.mxu0 0.0
        %2717 = vmatpush2.msra.mxu0 0.0
        %2718 = vmatprep.subr.mxu0 0.0
        %2719 = vmatpush2.msra.mxu0 0.0
        %2720 = vmatprep.subr.mxu0 0.0
        %2721 = vmatpush2.msra.mxu0 0.0
        %2722 = vmatprep.subr.mxu0 0.0
        %2723 = vmatpush2.msra.mxu0 0.0
        %2724 = vmatprep.subr.mxu0 0.0
        %2725 = vmatpush2.msra.mxu0 0.0
        %2726 = vmatprep.subr.mxu0 0.0
        %2727 = vmatpush2.msra.mxu0 0.0
        %2728 = vmatprep.subr.mxu0 0.0
        %2729 = vmatpush2.msra.mxu0 0.0
        %2730 = vmatprep.mubr.f32.mxu0 0.0
        %2731 = vmatmul.mubr.f32.gmra.mxu0 %v2569
        %v2732 = vpop.f32.mrf.mxu0
        %v2733 = vadd.f32 0.0, %v2732
        %v2734 = vpop.f32.mrf.mxu0
        %2735 = vdwg.mxu0
        %v2737 = vrot.slane %v2733, 1
        %v2739 = vadd.f32 %v720, %v2737
        %v2740 = vxor.u32 %v2739, 2147483648
        %v2741 = vmul.f32 %v2740, 1.442695
        %v2742 = vpow.pop %v2741
        %v2743 = vadd.f32 %v2742, 1.0
        %v2744 = vrcp.pop %v2743
        %v2745 = vmul.f32 1.0, %v2744
        %v2746 = vtanh.pop %v2739
        %v2748 = vrot.slane %v2483, 7
        %v2750 = vmul.f32 %v2745, %v2748
        %2752 = vrot.lane.b32.xlu0 %v2746, 64
        %v2753 = vpop.permute.xlu0 %2752
        %v2755 = vmul.f32 %v2745, %v2753
        %2757 = vrot.lane.b32.xlu0 %v2755, 32
        %v2758 = vpop.permute.xlu0 %2757
        %v2760 = vadd.f32 %v2750, %v2758
        %v2761 = vtanh.pop %v2760
        %2763 = vrot.lane.b32.xlu0 %v2761, 64
        %v2764 = vpop.permute.xlu0 %2763
        %v2766 = vmul.f32 %v2745, %v2764
        %2768 = vrot.lane.b32.xlu0 %v2665, 32
        %v2769 = vpop.permute.xlu0 %2768
        %v2770 = vsel %vm727, %v2769, 0
        %2772 = vmatprep.subr.mxu0 0.0
        %2773 = vmatpush1.msra.mxu0 0.0
        %2774 = vmatprep.subr.mxu0 0.0
        %2775 = vmatpush1.msra.mxu0 0.0
        %2776 = vmatprep.subr.mxu0 0.0
        %2777 = vmatpush1.msra.mxu0 0.0
        %2778 = vmatprep.subr.mxu0 0.0
        %2779 = vmatpush1.msra.mxu0 0.0
        %2780 = vmatprep.subr.mxu0 0.0
        %2781 = vmatpush1.msra.mxu0 0.0
        %2782 = vmatprep.subr.mxu0 0.0
        %2783 = vmatpush1.msra.mxu0 0.0
        %2784 = vmatprep.subr.mxu0 0.0
        %2785 = vmatpush1.msra.mxu0 0.0
        %2786 = vmatprep.subr.mxu0 0.0
        %2787 = vmatpush1.msra.mxu0 0.0
        %2788 = vmatprep.subr.mxu0 0.0
        %2789 = vmatpush1.msra.mxu0 0.0
        %2790 = vmatprep.subr.mxu0 0.0
        %2791 = vmatpush1.msra.mxu0 0.0
        %2792 = vmatprep.subr.mxu0 0.0
        %2793 = vmatpush1.msra.mxu0 0.0
        %2794 = vmatprep.subr.mxu0 0.0
        %2795 = vmatpush1.msra.mxu0 0.0
        %2796 = vmatprep.subr.mxu0 0.0
        %2797 = vmatpush1.msra.mxu0 %v833
        %2798 = vmatprep.subr.mxu0 0.0
        %2799 = vmatpush1.msra.mxu0 %v832
        %2800 = vmatprep.subr.mxu0 0.0
        %2801 = vmatpush1.msra.mxu0 %v831
        %2802 = vmatprep.subr.mxu0 0.0
        %2803 = vmatpush1.msra.mxu0 %v830
        %2804 = vmatprep.subr.mxu0 0.0
        %2805 = vmatpush2.msra.mxu0 0.0
        %2806 = vmatprep.subr.mxu0 0.0
        %2807 = vmatpush2.msra.mxu0 0.0
        %2808 = vmatprep.subr.mxu0 0.0
        %2809 = vmatpush2.msra.mxu0 0.0
        %2810 = vmatprep.subr.mxu0 0.0
        %2811 = vmatpush2.msra.mxu0 0.0
        %2812 = vmatprep.subr.mxu0 0.0
        %2813 = vmatpush2.msra.mxu0 0.0
        %2814 = vmatprep.subr.mxu0 0.0
        %2815 = vmatpush2.msra.mxu0 0.0
        %2816 = vmatprep.subr.mxu0 0.0
        %2817 = vmatpush2.msra.mxu0 0.0
        %2818 = vmatprep.subr.mxu0 0.0
        %2819 = vmatpush2.msra.mxu0 0.0
        %2820 = vmatprep.subr.mxu0 0.0
        %2821 = vmatpush2.msra.mxu0 0.0
        %2822 = vmatprep.subr.mxu0 0.0
        %2823 = vmatpush2.msra.mxu0 0.0
        %2824 = vmatprep.subr.mxu0 0.0
        %2825 = vmatpush2.msra.mxu0 0.0
        %2826 = vmatprep.subr.mxu0 0.0
        %2827 = vmatpush2.msra.mxu0 0.0
        %2828 = vmatprep.subr.mxu0 0.0
        %2829 = vmatpush2.msra.mxu0 0.0
        %2830 = vmatprep.subr.mxu0 0.0
        %2831 = vmatpush2.msra.mxu0 0.0
        %2832 = vmatprep.subr.mxu0 0.0
        %2833 = vmatpush2.msra.mxu0 0.0
        %2834 = vmatprep.subr.mxu0 0.0
        %2835 = vmatpush2.msra.mxu0 0.0
        %2836 = vmatprep.mubr.f32.mxu0 0.0
        %2837 = vmatmul.mubr.f32.gmra.mxu0 %v2770
        %v2838 = vpop.f32.mrf.mxu0
        %v2839 = vadd.f32 0.0, %v2838
        %v2840 = vpop.f32.mrf.mxu0
        %2841 = vdwg.mxu0
        %v2843 = vrot.slane %v2766, 7
        %2844 = vrot.lane.b32.xlu0 %v2843, 32
        %v2845 = vpop.permute.xlu0 %2844
        %v2846 = vsel %vm727, %v2845, 0
        %2848 = vmatprep.subr.mxu0 0.0
        %2849 = vmatpush1.msra.mxu0 0.0
        %2850 = vmatprep.subr.mxu0 0.0
        %2851 = vmatpush1.msra.mxu0 0.0
        %2852 = vmatprep.subr.mxu0 0.0
        %2853 = vmatpush1.msra.mxu0 0.0
        %2854 = vmatprep.subr.mxu0 0.0
        %2855 = vmatpush1.msra.mxu0 0.0
        %2856 = vmatprep.subr.mxu0 0.0
        %2857 = vmatpush1.msra.mxu0 0.0
        %2858 = vmatprep.subr.mxu0 0.0
        %2859 = vmatpush1.msra.mxu0 0.0
        %2860 = vmatprep.subr.mxu0 0.0
        %2861 = vmatpush1.msra.mxu0 0.0
        %2862 = vmatprep.subr.mxu0 0.0
        %2863 = vmatpush1.msra.mxu0 0.0
        %2864 = vmatprep.subr.mxu0 0.0
        %2865 = vmatpush1.msra.mxu0 0.0
        %2866 = vmatprep.subr.mxu0 0.0
        %2867 = vmatpush1.msra.mxu0 0.0
        %2868 = vmatprep.subr.mxu0 0.0
        %2869 = vmatpush1.msra.mxu0 0.0
        %2870 = vmatprep.subr.mxu0 0.0
        %2871 = vmatpush1.msra.mxu0 0.0
        %2872 = vmatprep.subr.mxu0 0.0
        %2873 = vmatpush1.msra.mxu0 %v829
        %2874 = vmatprep.subr.mxu0 0.0
        %2875 = vmatpush1.msra.mxu0 %v828
        %2876 = vmatprep.subr.mxu0 0.0
        %2877 = vmatpush1.msra.mxu0 %v827
        %2878 = vmatprep.subr.mxu0 0.0
        %2879 = vmatpush1.msra.mxu0 %v826
        %2880 = vmatprep.subr.mxu0 0.0
        %2881 = vmatpush2.msra.mxu0 0.0
        %2882 = vmatprep.subr.mxu0 0.0
        %2883 = vmatpush2.msra.mxu0 0.0
        %2884 = vmatprep.subr.mxu0 0.0
        %2885 = vmatpush2.msra.mxu0 0.0
        %2886 = vmatprep.subr.mxu0 0.0
        %2887 = vmatpush2.msra.mxu0 0.0
        %2888 = vmatprep.subr.mxu0 0.0
        %2889 = vmatpush2.msra.mxu0 0.0
        %2890 = vmatprep.subr.mxu0 0.0
        %2891 = vmatpush2.msra.mxu0 0.0
        %2892 = vmatprep.subr.mxu0 0.0
        %2893 = vmatpush2.msra.mxu0 0.0
        %2894 = vmatprep.subr.mxu0 0.0
        %2895 = vmatpush2.msra.mxu0 0.0
        %2896 = vmatprep.subr.mxu0 0.0
        %2897 = vmatpush2.msra.mxu0 0.0
        %2898 = vmatprep.subr.mxu0 0.0
        %2899 = vmatpush2.msra.mxu0 0.0
        %2900 = vmatprep.subr.mxu0 0.0
        %2901 = vmatpush2.msra.mxu0 0.0
        %2902 = vmatprep.subr.mxu0 0.0
        %2903 = vmatpush2.msra.mxu0 0.0
        %2904 = vmatprep.subr.mxu0 0.0
        %2905 = vmatpush2.msra.mxu0 0.0
        %2906 = vmatprep.subr.mxu0 0.0
        %2907 = vmatpush2.msra.mxu0 0.0
        %2908 = vmatprep.subr.mxu0 0.0
        %2909 = vmatpush2.msra.mxu0 0.0
        %2910 = vmatprep.subr.mxu0 0.0
        %2911 = vmatpush2.msra.mxu0 0.0
        %2912 = vmatprep.mubr.f32.mxu0 0.0
        %2913 = vmatmul.mubr.f32.gmra.mxu0 %v2846
        %v2914 = vpop.f32.mrf.mxu0
        %v2915 = vadd.f32 %v2839, %v2914
        %v2916 = vpop.f32.mrf.mxu0
        %2917 = vdwg.mxu0
        %v2918 = vadd.f32 %v2915, %v636
        %v2919 = vxor.u32 %v2918, 2147483648
        %v2920 = vmul.f32 %v2919, 1.442695
        %v2921 = vpow.pop %v2920
        %v2922 = vadd.f32 %v2921, 1.0
        %v2923 = vrcp.pop %v2922
        %v2924 = vmul.f32 1.0, %v2923
        %v2925 = vtanh.pop %v2918
        %v2926 = vmul.f32 %v2924, %v2659
        %2928 = vrot.lane.b32.xlu0 %v2925, 64
        %v2929 = vpop.permute.xlu0 %2928
        %v2931 = vmul.f32 %v2924, %v2929
        %2933 = vrot.lane.b32.xlu0 %v2931, 32
        %v2934 = vpop.permute.xlu0 %2933
        %v2936 = vadd.f32 %v2926, %v2934
        %v2937 = vtanh.pop %v2936
        %2939 = vrot.lane.b32.xlu0 %v2937, 64
        %v2940 = vpop.permute.xlu0 %2939
        %v2942 = vmul.f32 %v2924, %v2940
        %v2943 = vld [vmem:[#allocation13] sm:$0xff]
        %v2944 = vld [vmem:[#allocation13 + $0x8] sm:$0xff]
        %v2945 = vld [vmem:[#allocation14] sm:$0xff]
        %v2946 = vld [vmem:[#allocation14 + $0x8] sm:$0xff]
        %v2947 = vld [vmem:[#allocation14 + $0x10] sm:$0xff]
        %v2948 = vld [vmem:[#allocation14 + $0x18] sm:$0xff]
        %2949 = vmatprep.subr.mxu0 0.0
        %2950 = vmatpush1.msra.mxu0 0.0
        %2951 = vmatprep.subr.mxu0 0.0
        %2952 = vmatpush1.msra.mxu0 0.0
        %2953 = vmatprep.subr.mxu0 0.0
        %2954 = vmatpush1.msra.mxu0 0.0
        %2955 = vmatprep.subr.mxu0 0.0
        %2956 = vmatpush1.msra.mxu0 0.0
        %2957 = vmatprep.subr.mxu0 0.0
        %2958 = vmatpush1.msra.mxu0 0.0
        %2959 = vmatprep.subr.mxu0 0.0
        %2960 = vmatpush1.msra.mxu0 0.0
        %2961 = vmatprep.subr.mxu0 0.0
        %2962 = vmatpush1.msra.mxu0 0.0
        %2963 = vmatprep.subr.mxu0 0.0
        %2964 = vmatpush1.msra.mxu0 0.0
        %2965 = vmatprep.subr.mxu0 0.0
        %2966 = vmatpush1.msra.mxu0 0.0
        %2967 = vmatprep.subr.mxu0 0.0
        %2968 = vmatpush1.msra.mxu0 0.0
        %2969 = vmatprep.subr.mxu0 0.0
        %2970 = vmatpush1.msra.mxu0 0.0
        %2971 = vmatprep.subr.mxu0 0.0
        %2972 = vmatpush1.msra.mxu0 0.0
        %2973 = vmatprep.subr.mxu0 0.0
        %2974 = vmatpush1.msra.mxu0 %v2948
        %2975 = vmatprep.subr.mxu0 0.0
        %2976 = vmatpush1.msra.mxu0 %v2947
        %2977 = vmatprep.subr.mxu0 0.0
        %2978 = vmatpush1.msra.mxu0 %v2946
        %2979 = vmatprep.subr.mxu0 0.0
        %2980 = vmatpush1.msra.mxu0 %v2945
        %2981 = vmatprep.subr.mxu0 0.0
        %2982 = vmatpush2.msra.mxu0 0.0
        %2983 = vmatprep.subr.mxu0 0.0
        %2984 = vmatpush2.msra.mxu0 0.0
        %2985 = vmatprep.subr.mxu0 0.0
        %2986 = vmatpush2.msra.mxu0 0.0
        %2987 = vmatprep.subr.mxu0 0.0
        %2988 = vmatpush2.msra.mxu0 0.0
        %2989 = vmatprep.subr.mxu0 0.0
        %2990 = vmatpush2.msra.mxu0 0.0
        %2991 = vmatprep.subr.mxu0 0.0
        %2992 = vmatpush2.msra.mxu0 0.0
        %2993 = vmatprep.subr.mxu0 0.0
        %2994 = vmatpush2.msra.mxu0 0.0
        %2995 = vmatprep.subr.mxu0 0.0
        %2996 = vmatpush2.msra.mxu0 0.0
        %2997 = vmatprep.subr.mxu0 0.0
        %2998 = vmatpush2.msra.mxu0 0.0
        %2999 = vmatprep.subr.mxu0 0.0
        %3000 = vmatpush2.msra.mxu0 0.0
        %3001 = vmatprep.subr.mxu0 0.0
        %3002 = vmatpush2.msra.mxu0 0.0
        %3003 = vmatprep.subr.mxu0 0.0
        %3004 = vmatpush2.msra.mxu0 0.0
        %3005 = vmatprep.subr.mxu0 0.0
        %3006 = vmatpush2.msra.mxu0 0.0
        %3007 = vmatprep.subr.mxu0 0.0
        %3008 = vmatpush2.msra.mxu0 0.0
        %3009 = vmatprep.subr.mxu0 0.0
        %3010 = vmatpush2.msra.mxu0 0.0
        %3011 = vmatprep.subr.mxu0 0.0
        %3012 = vmatpush2.msra.mxu0 0.0
        %3013 = vmatprep.mubr.f32.mxu0 0.0
        %3014 = vmatmul.mubr.f32.gmra.mxu0 %v2846
        %v3015 = vpop.f32.mrf.mxu0
        %v3016 = vadd.f32 0.0, %v3015
        %v3017 = vpop.f32.mrf.mxu0
        %3018 = vdwg.mxu0
        %v3019 = vsel %vm649, 0.0, 0
        %3021 = vmatprep.subr.mxu0 0.0
        %3022 = vmatpush1.msra.mxu0 0.0
        %3023 = vmatprep.subr.mxu0 0.0
        %3024 = vmatpush1.msra.mxu0 0.0
        %3025 = vmatprep.subr.mxu0 0.0
        %3026 = vmatpush1.msra.mxu0 0.0
        %3027 = vmatprep.subr.mxu0 0.0
        %3028 = vmatpush1.msra.mxu0 0.0
        %3029 = vmatprep.subr.mxu0 0.0
        %3030 = vmatpush1.msra.mxu0 0.0
        %3031 = vmatprep.subr.mxu0 0.0
        %3032 = vmatpush1.msra.mxu0 0.0
        %3033 = vmatprep.subr.mxu0 0.0
        %3034 = vmatpush1.msra.mxu0 0.0
        %3035 = vmatprep.subr.mxu0 0.0
        %3036 = vmatpush1.msra.mxu0 0.0
        %3037 = vmatprep.subr.mxu0 0.0
        %3038 = vmatpush1.msra.mxu0 0.0
        %3039 = vmatprep.subr.mxu0 0.0
        %3040 = vmatpush1.msra.mxu0 0.0
        %3041 = vmatprep.subr.mxu0 0.0
        %3042 = vmatpush1.msra.mxu0 0.0
        %3043 = vmatprep.subr.mxu0 0.0
        %3044 = vmatpush1.msra.mxu0 0.0
        %3045 = vmatprep.subr.mxu0 0.0
        %3046 = vmatpush1.msra.mxu0 0.0
        %3047 = vmatprep.subr.mxu0 0.0
        %3048 = vmatpush1.msra.mxu0 0.0
        %3049 = vmatprep.subr.mxu0 0.0
        %3050 = vmatpush1.msra.mxu0 %v2944
        %3051 = vmatprep.subr.mxu0 0.0
        %3052 = vmatpush1.msra.mxu0 %v2943
        %3053 = vmatprep.subr.mxu0 0.0
        %3054 = vmatpush2.msra.mxu0 0.0
        %3055 = vmatprep.subr.mxu0 0.0
        %3056 = vmatpush2.msra.mxu0 0.0
        %3057 = vmatprep.subr.mxu0 0.0
        %3058 = vmatpush2.msra.mxu0 0.0
        %3059 = vmatprep.subr.mxu0 0.0
        %3060 = vmatpush2.msra.mxu0 0.0
        %3061 = vmatprep.subr.mxu0 0.0
        %3062 = vmatpush2.msra.mxu0 0.0
        %3063 = vmatprep.subr.mxu0 0.0
        %3064 = vmatpush2.msra.mxu0 0.0
        %3065 = vmatprep.subr.mxu0 0.0
        %3066 = vmatpush2.msra.mxu0 0.0
        %3067 = vmatprep.subr.mxu0 0.0
        %3068 = vmatpush2.msra.mxu0 0.0
        %3069 = vmatprep.subr.mxu0 0.0
        %3070 = vmatpush2.msra.mxu0 0.0
        %3071 = vmatprep.subr.mxu0 0.0
        %3072 = vmatpush2.msra.mxu0 0.0
        %3073 = vmatprep.subr.mxu0 0.0
        %3074 = vmatpush2.msra.mxu0 0.0
        %3075 = vmatprep.subr.mxu0 0.0
        %3076 = vmatpush2.msra.mxu0 0.0
        %3077 = vmatprep.subr.mxu0 0.0
        %3078 = vmatpush2.msra.mxu0 0.0
        %3079 = vmatprep.subr.mxu0 0.0
        %3080 = vmatpush2.msra.mxu0 0.0
        %3081 = vmatprep.subr.mxu0 0.0
        %3082 = vmatpush2.msra.mxu0 0.0
        %3083 = vmatprep.subr.mxu0 0.0
        %3084 = vmatpush2.msra.mxu0 0.0
        %3085 = vmatprep.mubr.f32.mxu0 0.0
        %3086 = vmatmul.mubr.f32.gmra.mxu0 %v3019
        %v3087 = vpop.f32.mrf.mxu0
        %v3088 = vadd.f32 %v3016, %v3087
        %v3089 = vpop.f32.mrf.mxu0
        %3090 = vdwg.mxu0
        %v3091 = vadd.f32 %v3088, %v637
        %v3092 = vxor.u32 %v3091, 2147483648
        %v3093 = vmul.f32 %v3092, 1.442695
        %v3094 = vpow.pop %v3093
        %v3095 = vadd.f32 %v3094, 1.0
        %v3096 = vrcp.pop %v3095
        %v3097 = vmul.f32 1.0, %v3096
        %v3098 = vtanh.pop %v3091
        %v3100 = vrot.slane %v2760, 7
        %v3102 = vmul.f32 %v3097, %v3100
        %3104 = vrot.lane.b32.xlu0 %v3098, 64
        %v3105 = vpop.permute.xlu0 %3104
        %v3107 = vmul.f32 %v3097, %v3105
        %3109 = vrot.lane.b32.xlu0 %v3107, 32
        %v3110 = vpop.permute.xlu0 %3109
        %v3112 = vadd.f32 %v3102, %v3110
        %v3113 = vtanh.pop %v3112
        %3115 = vrot.lane.b32.xlu0 %v3113, 64
        %v3116 = vpop.permute.xlu0 %3115
        %v3118 = vmul.f32 %v3097, %v3116
        %v3119 = vld [vmem:[%s10] sm:$0xff]
        %v3120 = vld [vmem:[%s10 + $0x8] sm:$0xff]
        %v3121 = vld [vmem:[%s10 + $0x10] sm:$0xff]
        %v3122 = vld [vmem:[%s10 + $0x18] sm:$0xff]
        %v3123 = vld [vmem:[#allocation17] sm:$0xff]
        %v3124 = vld [vmem:[#allocation17 + $0x8] sm:$0xff]
        %v3125 = vld [vmem:[#allocation17 + $0x10] sm:$0xff]
        %v3126 = vld [vmem:[#allocation17 + $0x18] sm:$0xff]
        %3128 = vrot.lane.b32.xlu0 %v2942, 32
        %v3129 = vpop.permute.xlu0 %3128
        %v3130 = vsel %vm727, %v3129, 0
        %3132 = vmatprep.subr.mxu0 0.0
        %3133 = vmatpush1.msra.mxu0 0.0
        %3134 = vmatprep.subr.mxu0 0.0
        %3135 = vmatpush1.msra.mxu0 0.0
        %3136 = vmatprep.subr.mxu0 0.0
        %3137 = vmatpush1.msra.mxu0 0.0
        %3138 = vmatprep.subr.mxu0 0.0
        %3139 = vmatpush1.msra.mxu0 0.0
        %3140 = vmatprep.subr.mxu0 0.0
        %3141 = vmatpush1.msra.mxu0 0.0
        %3142 = vmatprep.subr.mxu0 0.0
        %3143 = vmatpush1.msra.mxu0 0.0
        %3144 = vmatprep.subr.mxu0 0.0
        %3145 = vmatpush1.msra.mxu0 0.0
        %3146 = vmatprep.subr.mxu0 0.0
        %3147 = vmatpush1.msra.mxu0 0.0
        %3148 = vmatprep.subr.mxu0 0.0
        %3149 = vmatpush1.msra.mxu0 0.0
        %3150 = vmatprep.subr.mxu0 0.0
        %3151 = vmatpush1.msra.mxu0 0.0
        %3152 = vmatprep.subr.mxu0 0.0
        %3153 = vmatpush1.msra.mxu0 0.0
        %3154 = vmatprep.subr.mxu0 0.0
        %3155 = vmatpush1.msra.mxu0 0.0
        %3156 = vmatprep.subr.mxu0 0.0
        %3157 = vmatpush1.msra.mxu0 %v3126
        %3158 = vmatprep.subr.mxu0 0.0
        %3159 = vmatpush1.msra.mxu0 %v3125
        %3160 = vmatprep.subr.mxu0 0.0
        %3161 = vmatpush1.msra.mxu0 %v3124
        %3162 = vmatprep.subr.mxu0 0.0
        %3163 = vmatpush1.msra.mxu0 %v3123
        %3164 = vmatprep.subr.mxu0 0.0
        %3165 = vmatpush2.msra.mxu0 0.0
        %3166 = vmatprep.subr.mxu0 0.0
        %3167 = vmatpush2.msra.mxu0 0.0
        %3168 = vmatprep.subr.mxu0 0.0
        %3169 = vmatpush2.msra.mxu0 0.0
        %3170 = vmatprep.subr.mxu0 0.0
        %3171 = vmatpush2.msra.mxu0 0.0
        %3172 = vmatprep.subr.mxu0 0.0
        %3173 = vmatpush2.msra.mxu0 0.0
        %3174 = vmatprep.subr.mxu0 0.0
        %3175 = vmatpush2.msra.mxu0 0.0
        %3176 = vmatprep.subr.mxu0 0.0
        %3177 = vmatpush2.msra.mxu0 0.0
        %3178 = vmatprep.subr.mxu0 0.0
        %3179 = vmatpush2.msra.mxu0 0.0
        %3180 = vmatprep.subr.mxu0 0.0
        %3181 = vmatpush2.msra.mxu0 0.0
        %3182 = vmatprep.subr.mxu0 0.0
        %3183 = vmatpush2.msra.mxu0 0.0
        %3184 = vmatprep.subr.mxu0 0.0
        %3185 = vmatpush2.msra.mxu0 0.0
        %3186 = vmatprep.subr.mxu0 0.0
        %3187 = vmatpush2.msra.mxu0 0.0
        %3188 = vmatprep.subr.mxu0 0.0
        %3189 = vmatpush2.msra.mxu0 0.0
        %3190 = vmatprep.subr.mxu0 0.0
        %3191 = vmatpush2.msra.mxu0 0.0
        %3192 = vmatprep.subr.mxu0 0.0
        %3193 = vmatpush2.msra.mxu0 0.0
        %3194 = vmatprep.subr.mxu0 0.0
        %3195 = vmatpush2.msra.mxu0 0.0
        %3196 = vmatprep.mubr.f32.mxu0 0.0
        %3197 = vmatmul.mubr.f32.gmra.mxu0 %v3130
        %v3198 = vpop.f32.mrf.mxu0
        %v3199 = vadd.f32 0.0, %v3198
        %v3200 = vpop.f32.mrf.mxu0
        %3201 = vdwg.mxu0
        %3203 = vrot.lane.b32.xlu0 %v3118, 32
        %v3204 = vpop.permute.xlu0 %3203
        %v3205 = vsel %vm727, %v3204, 0
        %3207 = vmatprep.subr.mxu0 0.0
        %3208 = vmatpush1.msra.mxu0 0.0
        %3209 = vmatprep.subr.mxu0 0.0
        %3210 = vmatpush1.msra.mxu0 0.0
        %3211 = vmatprep.subr.mxu0 0.0
        %3212 = vmatpush1.msra.mxu0 0.0
        %3213 = vmatprep.subr.mxu0 0.0
        %3214 = vmatpush1.msra.mxu0 0.0
        %3215 = vmatprep.subr.mxu0 0.0
        %3216 = vmatpush1.msra.mxu0 0.0
        %3217 = vmatprep.subr.mxu0 0.0
        %3218 = vmatpush1.msra.mxu0 0.0
        %3219 = vmatprep.subr.mxu0 0.0
        %3220 = vmatpush1.msra.mxu0 0.0
        %3221 = vmatprep.subr.mxu0 0.0
        %3222 = vmatpush1.msra.mxu0 0.0
        %3223 = vmatprep.subr.mxu0 0.0
        %3224 = vmatpush1.msra.mxu0 0.0
        %3225 = vmatprep.subr.mxu0 0.0
        %3226 = vmatpush1.msra.mxu0 0.0
        %3227 = vmatprep.subr.mxu0 0.0
        %3228 = vmatpush1.msra.mxu0 0.0
        %3229 = vmatprep.subr.mxu0 0.0
        %3230 = vmatpush1.msra.mxu0 0.0
        %3231 = vmatprep.subr.mxu0 0.0
        %3232 = vmatpush1.msra.mxu0 %v3122
        %3233 = vmatprep.subr.mxu0 0.0
        %3234 = vmatpush1.msra.mxu0 %v3121
        %3235 = vmatprep.subr.mxu0 0.0
        %3236 = vmatpush1.msra.mxu0 %v3120
        %3237 = vmatprep.subr.mxu0 0.0
        %3238 = vmatpush1.msra.mxu0 %v3119
        %3239 = vmatprep.subr.mxu0 0.0
        %3240 = vmatpush2.msra.mxu0 0.0
        %3241 = vmatprep.subr.mxu0 0.0
        %3242 = vmatpush2.msra.mxu0 0.0
        %3243 = vmatprep.subr.mxu0 0.0
        %3244 = vmatpush2.msra.mxu0 0.0
        %3245 = vmatprep.subr.mxu0 0.0
        %3246 = vmatpush2.msra.mxu0 0.0
        %3247 = vmatprep.subr.mxu0 0.0
        %3248 = vmatpush2.msra.mxu0 0.0
        %3249 = vmatprep.subr.mxu0 0.0
        %3250 = vmatpush2.msra.mxu0 0.0
        %3251 = vmatprep.subr.mxu0 0.0
        %3252 = vmatpush2.msra.mxu0 0.0
        %3253 = vmatprep.subr.mxu0 0.0
        %3254 = vmatpush2.msra.mxu0 0.0
        %3255 = vmatprep.subr.mxu0 0.0
        %3256 = vmatpush2.msra.mxu0 0.0
        %3257 = vmatprep.subr.mxu0 0.0
        %3258 = vmatpush2.msra.mxu0 0.0
        %3259 = vmatprep.subr.mxu0 0.0
        %3260 = vmatpush2.msra.mxu0 0.0
        %3261 = vmatprep.subr.mxu0 0.0
        %3262 = vmatpush2.msra.mxu0 0.0
        %3263 = vmatprep.subr.mxu0 0.0
        %3264 = vmatpush2.msra.mxu0 0.0
        %3265 = vmatprep.subr.mxu0 0.0
        %3266 = vmatpush2.msra.mxu0 0.0
        %3267 = vmatprep.subr.mxu0 0.0
        %3268 = vmatpush2.msra.mxu0 0.0
        %3269 = vmatprep.subr.mxu0 0.0
        %3270 = vmatpush2.msra.mxu0 0.0
        %3271 = vmatprep.mubr.f32.mxu0 0.0
        %3272 = vmatmul.mubr.f32.gmra.mxu0 %v3205
        %v3273 = vpop.f32.mrf.mxu0
        %v3274 = vadd.f32 %v3199, %v3273
        %v3275 = vpop.f32.mrf.mxu0
        %3276 = vdwg.mxu0
        %v3277 = vadd.f32 %v3274, %v638
        %v3278 = vxor.u32 %v3277, 2147483648
        %v3279 = vmul.f32 %v3278, 1.442695
        %v3280 = vpow.pop %v3279
        %v3281 = vadd.f32 %v3280, 1.0
        %v3282 = vrcp.pop %v3281
        %v3283 = vmul.f32 1.0, %v3282
        %v3284 = vtanh.pop %v3277
        %v3285 = vmul.f32 %v3283, %v2936
        %3287 = vrot.lane.b32.xlu0 %v3284, 64
        %v3288 = vpop.permute.xlu0 %3287
        %v3290 = vmul.f32 %v3283, %v3288
        %3292 = vrot.lane.b32.xlu0 %v3290, 32
        %v3293 = vpop.permute.xlu0 %3292
        %v3295 = vadd.f32 %v3285, %v3293
        %v3296 = vtanh.pop %v3295
        %3298 = vrot.lane.b32.xlu0 %v3296, 64
        %v3299 = vpop.permute.xlu0 %3298
        %v3301 = vmul.f32 %v3283, %v3299
        %v3302 = vld [vmem:[%s13] sm:$0xff]
        %v3303 = vld [vmem:[%s13 + $0x8] sm:$0xff]
        %v3304 = vld [vmem:[%s13 + $0x10] sm:$0xff]
        %v3305 = vld [vmem:[%s13 + $0x18] sm:$0xff]
        %3307 = vrot.lane.b32.xlu0 %v3301, 32
        %v3308 = vpop.permute.xlu0 %3307
        %v3309 = vsel %vm727, %v3308, 0
        %3311 = vmatprep.subr.mxu0 0.0
        %3312 = vmatpush1.msra.mxu0 0.0
        %3313 = vmatprep.subr.mxu0 0.0
        %3314 = vmatpush1.msra.mxu0 0.0
        %3315 = vmatprep.subr.mxu0 0.0
        %3316 = vmatpush1.msra.mxu0 0.0
        %3317 = vmatprep.subr.mxu0 0.0
        %3318 = vmatpush1.msra.mxu0 0.0
        %3319 = vmatprep.subr.mxu0 0.0
        %3320 = vmatpush1.msra.mxu0 0.0
        %3321 = vmatprep.subr.mxu0 0.0
        %3322 = vmatpush1.msra.mxu0 0.0
        %3323 = vmatprep.subr.mxu0 0.0
        %3324 = vmatpush1.msra.mxu0 0.0
        %3325 = vmatprep.subr.mxu0 0.0
        %3326 = vmatpush1.msra.mxu0 0.0
        %3327 = vmatprep.subr.mxu0 0.0
        %3328 = vmatpush1.msra.mxu0 0.0
        %3329 = vmatprep.subr.mxu0 0.0
        %3330 = vmatpush1.msra.mxu0 0.0
        %3331 = vmatprep.subr.mxu0 0.0
        %3332 = vmatpush1.msra.mxu0 0.0
        %3333 = vmatprep.subr.mxu0 0.0
        %3334 = vmatpush1.msra.mxu0 0.0
        %3335 = vmatprep.subr.mxu0 0.0
        %3336 = vmatpush1.msra.mxu0 %v3305
        %3337 = vmatprep.subr.mxu0 0.0
        %3338 = vmatpush1.msra.mxu0 %v3304
        %3339 = vmatprep.subr.mxu0 0.0
        %3340 = vmatpush1.msra.mxu0 %v3303
        %3341 = vmatprep.subr.mxu0 0.0
        %3342 = vmatpush1.msra.mxu0 %v3302
        %3343 = vmatprep.subr.mxu0 0.0
        %3344 = vmatpush2.msra.mxu0 0.0
        %3345 = vmatprep.subr.mxu0 0.0
        %3346 = vmatpush2.msra.mxu0 0.0
        %3347 = vmatprep.subr.mxu0 0.0
        %3348 = vmatpush2.msra.mxu0 0.0
        %3349 = vmatprep.subr.mxu0 0.0
        %3350 = vmatpush2.msra.mxu0 0.0
        %3351 = vmatprep.subr.mxu0 0.0
        %3352 = vmatpush2.msra.mxu0 0.0
        %3353 = vmatprep.subr.mxu0 0.0
        %3354 = vmatpush2.msra.mxu0 0.0
        %3355 = vmatprep.subr.mxu0 0.0
        %3356 = vmatpush2.msra.mxu0 0.0
        %3357 = vmatprep.subr.mxu0 0.0
        %3358 = vmatpush2.msra.mxu0 0.0
        %3359 = vmatprep.subr.mxu0 0.0
        %3360 = vmatpush2.msra.mxu0 0.0
        %3361 = vmatprep.subr.mxu0 0.0
        %3362 = vmatpush2.msra.mxu0 0.0
        %3363 = vmatprep.subr.mxu0 0.0
        %3364 = vmatpush2.msra.mxu0 0.0
        %3365 = vmatprep.subr.mxu0 0.0
        %3366 = vmatpush2.msra.mxu0 0.0
        %3367 = vmatprep.subr.mxu0 0.0
        %3368 = vmatpush2.msra.mxu0 0.0
        %3369 = vmatprep.subr.mxu0 0.0
        %3370 = vmatpush2.msra.mxu0 0.0
        %3371 = vmatprep.subr.mxu0 0.0
        %3372 = vmatpush2.msra.mxu0 0.0
        %3373 = vmatprep.subr.mxu0 0.0
        %3374 = vmatpush2.msra.mxu0 0.0
        %3375 = vmatprep.mubr.f32.mxu0 0.0
        %3376 = vmatmul.mubr.f32.gmra.mxu0 %v3309
        %v3377 = vpop.f32.mrf.mxu0
        %v3378 = vadd.f32 %v639, %v3377
        %v3379 = vpop.f32.mrf.mxu0
        %3380 = vdwg.mxu0
        %vm3381 = vcmp.ge.f32.partialorder %v3378, 0.0
        %v3382 = vmul.f32 %v3378, 0.01
        %v3383 = vsel %vm3381, %v3378, %v3382
        %3384 = vmatprep.subr.mxu0 0.0
        %3385 = vmatpush1.msra.mxu0 0.0
        %3386 = vmatprep.subr.mxu0 0.0
        %3387 = vmatpush1.msra.mxu0 0.0
        %3388 = vmatprep.subr.mxu0 0.0
        %3389 = vmatpush1.msra.mxu0 0.0
        %3390 = vmatprep.subr.mxu0 0.0
        %3391 = vmatpush1.msra.mxu0 0.0
        %3392 = vmatprep.subr.mxu0 0.0
        %3393 = vmatpush1.msra.mxu0 0.0
        %3394 = vmatprep.subr.mxu0 0.0
        %3395 = vmatpush1.msra.mxu0 0.0
        %3396 = vmatprep.subr.mxu0 0.0
        %3397 = vmatpush1.msra.mxu0 0.0
        %3398 = vmatprep.subr.mxu0 0.0
        %3399 = vmatpush1.msra.mxu0 0.0
        %3400 = vmatprep.subr.mxu0 0.0
        %3401 = vmatpush1.msra.mxu0 0.0
        %3402 = vmatprep.subr.mxu0 0.0
        %3403 = vmatpush1.msra.mxu0 0.0
        %3404 = vmatprep.subr.mxu0 0.0
        %3405 = vmatpush1.msra.mxu0 0.0
        %3406 = vmatprep.subr.mxu0 0.0
        %3407 = vmatpush1.msra.mxu0 0.0
        %3408 = vmatprep.subr.mxu0 0.0
        %3409 = vmatpush1.msra.mxu0 %v2948
        %3410 = vmatprep.subr.mxu0 0.0
        %3411 = vmatpush1.msra.mxu0 %v2947
        %3412 = vmatprep.subr.mxu0 0.0
        %3413 = vmatpush1.msra.mxu0 %v2946
        %3414 = vmatprep.subr.mxu0 0.0
        %3415 = vmatpush1.msra.mxu0 %v2945
        %3416 = vmatprep.subr.mxu0 0.0
        %3417 = vmatpush2.msra.mxu0 0.0
        %3418 = vmatprep.subr.mxu0 0.0
        %3419 = vmatpush2.msra.mxu0 0.0
        %3420 = vmatprep.subr.mxu0 0.0
        %3421 = vmatpush2.msra.mxu0 0.0
        %3422 = vmatprep.subr.mxu0 0.0
        %3423 = vmatpush2.msra.mxu0 0.0
        %3424 = vmatprep.subr.mxu0 0.0
        %3425 = vmatpush2.msra.mxu0 0.0
        %3426 = vmatprep.subr.mxu0 0.0
        %3427 = vmatpush2.msra.mxu0 0.0
        %3428 = vmatprep.subr.mxu0 0.0
        %3429 = vmatpush2.msra.mxu0 0.0
        %3430 = vmatprep.subr.mxu0 0.0
        %3431 = vmatpush2.msra.mxu0 0.0
        %3432 = vmatprep.subr.mxu0 0.0
        %3433 = vmatpush2.msra.mxu0 0.0
        %3434 = vmatprep.subr.mxu0 0.0
        %3435 = vmatpush2.msra.mxu0 0.0
        %3436 = vmatprep.subr.mxu0 0.0
        %3437 = vmatpush2.msra.mxu0 0.0
        %3438 = vmatprep.subr.mxu0 0.0
        %3439 = vmatpush2.msra.mxu0 0.0
        %3440 = vmatprep.subr.mxu0 0.0
        %3441 = vmatpush2.msra.mxu0 0.0
        %3442 = vmatprep.subr.mxu0 0.0
        %3443 = vmatpush2.msra.mxu0 0.0
        %3444 = vmatprep.subr.mxu0 0.0
        %3445 = vmatpush2.msra.mxu0 0.0
        %3446 = vmatprep.subr.mxu0 0.0
        %3447 = vmatpush2.msra.mxu0 0.0
        %3448 = vmatprep.mubr.f32.mxu0 0.0
        %3449 = vmatmul.mubr.f32.gmra.mxu0 %v3205
        %v3450 = vpop.f32.mrf.mxu0
        %v3451 = vadd.f32 0.0, %v3450
        %v3452 = vpop.f32.mrf.mxu0
        %3453 = vdwg.mxu0
        %v3455 = vsel %vm649, %v3383, 0
        %3457 = vmatprep.subr.mxu0 0.0
        %3458 = vmatpush1.msra.mxu0 0.0
        %3459 = vmatprep.subr.mxu0 0.0
        %3460 = vmatpush1.msra.mxu0 0.0
        %3461 = vmatprep.subr.mxu0 0.0
        %3462 = vmatpush1.msra.mxu0 0.0
        %3463 = vmatprep.subr.mxu0 0.0
        %3464 = vmatpush1.msra.mxu0 0.0
        %3465 = vmatprep.subr.mxu0 0.0
        %3466 = vmatpush1.msra.mxu0 0.0
        %3467 = vmatprep.subr.mxu0 0.0
        %3468 = vmatpush1.msra.mxu0 0.0
        %3469 = vmatprep.subr.mxu0 0.0
        %3470 = vmatpush1.msra.mxu0 0.0
        %3471 = vmatprep.subr.mxu0 0.0
        %3472 = vmatpush1.msra.mxu0 0.0
        %3473 = vmatprep.subr.mxu0 0.0
        %3474 = vmatpush1.msra.mxu0 0.0
        %3475 = vmatprep.subr.mxu0 0.0
        %3476 = vmatpush1.msra.mxu0 0.0
        %3477 = vmatprep.subr.mxu0 0.0
        %3478 = vmatpush1.msra.mxu0 0.0
        %3479 = vmatprep.subr.mxu0 0.0
        %3480 = vmatpush1.msra.mxu0 0.0
        %3481 = vmatprep.subr.mxu0 0.0
        %3482 = vmatpush1.msra.mxu0 0.0
        %3483 = vmatprep.subr.mxu0 0.0
        %3484 = vmatpush1.msra.mxu0 0.0
        %3485 = vmatprep.subr.mxu0 0.0
        %3486 = vmatpush1.msra.mxu0 %v2944
        %3487 = vmatprep.subr.mxu0 0.0
        %3488 = vmatpush1.msra.mxu0 %v2943
        %3489 = vmatprep.subr.mxu0 0.0
        %3490 = vmatpush2.msra.mxu0 0.0
        %3491 = vmatprep.subr.mxu0 0.0
        %3492 = vmatpush2.msra.mxu0 0.0
        %3493 = vmatprep.subr.mxu0 0.0
        %3494 = vmatpush2.msra.mxu0 0.0
        %3495 = vmatprep.subr.mxu0 0.0
        %3496 = vmatpush2.msra.mxu0 0.0
        %3497 = vmatprep.subr.mxu0 0.0
        %3498 = vmatpush2.msra.mxu0 0.0
        %3499 = vmatprep.subr.mxu0 0.0
        %3500 = vmatpush2.msra.mxu0 0.0
        %3501 = vmatprep.subr.mxu0 0.0
        %3502 = vmatpush2.msra.mxu0 0.0
        %3503 = vmatprep.subr.mxu0 0.0
        %3504 = vmatpush2.msra.mxu0 0.0
        %3505 = vmatprep.subr.mxu0 0.0
        %3506 = vmatpush2.msra.mxu0 0.0
        %3507 = vmatprep.subr.mxu0 0.0
        %3508 = vmatpush2.msra.mxu0 0.0
        %3509 = vmatprep.subr.mxu0 0.0
        %3510 = vmatpush2.msra.mxu0 0.0
        %3511 = vmatprep.subr.mxu0 0.0
        %3512 = vmatpush2.msra.mxu0 0.0
        %3513 = vmatprep.subr.mxu0 0.0
        %3514 = vmatpush2.msra.mxu0 0.0
        %3515 = vmatprep.subr.mxu0 0.0
        %3516 = vmatpush2.msra.mxu0 0.0
        %3517 = vmatprep.subr.mxu0 0.0
        %3518 = vmatpush2.msra.mxu0 0.0
        %3519 = vmatprep.subr.mxu0 0.0
        %3520 = vmatpush2.msra.mxu0 0.0
        %3521 = vmatprep.mubr.f32.mxu0 0.0
        %3522 = vmatmul.mubr.f32.gmra.mxu0 %v3455
        %v3523 = vpop.f32.mrf.mxu0
        %v3524 = vadd.f32 %v3451, %v3523
        %v3525 = vpop.f32.mrf.mxu0
        %3526 = vdwg.mxu0
        %v3527 = vadd.f32 %v3524, %v637
        %v3528 = vxor.u32 %v3527, 2147483648
        %v3529 = vmul.f32 %v3528, 1.442695
        %v3530 = vpow.pop %v3529
        %v3531 = vadd.f32 %v3530, 1.0
        %v3532 = vrcp.pop %v3531
        %v3533 = vmul.f32 1.0, %v3532
        %v3534 = vtanh.pop %v3527
        %v3535 = vmul.f32 %v3533, %v3112
        %3537 = vrot.lane.b32.xlu0 %v3534, 64
        %v3538 = vpop.permute.xlu0 %3537
        %v3540 = vmul.f32 %v3533, %v3538
        %3542 = vrot.lane.b32.xlu0 %v3540, 32
        %v3543 = vpop.permute.xlu0 %3542
        %v3545 = vadd.f32 %v3535, %v3543
        %v3546 = vtanh.pop %v3545
        %3548 = vrot.lane.b32.xlu0 %v3546, 64
        %v3549 = vpop.permute.xlu0 %3548
        %v3551 = vmul.f32 %v3533, %v3549
        %3552 = vmatprep.subr.mxu0 0.0
        %3553 = vmatpush1.msra.mxu0 0.0
        %3554 = vmatprep.subr.mxu0 0.0
        %3555 = vmatpush1.msra.mxu0 0.0
        %3556 = vmatprep.subr.mxu0 0.0
        %3557 = vmatpush1.msra.mxu0 0.0
        %3558 = vmatprep.subr.mxu0 0.0
        %3559 = vmatpush1.msra.mxu0 0.0
        %3560 = vmatprep.subr.mxu0 0.0
        %3561 = vmatpush1.msra.mxu0 0.0
        %3562 = vmatprep.subr.mxu0 0.0
        %3563 = vmatpush1.msra.mxu0 0.0
        %3564 = vmatprep.subr.mxu0 0.0
        %3565 = vmatpush1.msra.mxu0 0.0
        %3566 = vmatprep.subr.mxu0 0.0
        %3567 = vmatpush1.msra.mxu0 0.0
        %3568 = vmatprep.subr.mxu0 0.0
        %3569 = vmatpush1.msra.mxu0 0.0
        %3570 = vmatprep.subr.mxu0 0.0
        %3571 = vmatpush1.msra.mxu0 0.0
        %3572 = vmatprep.subr.mxu0 0.0
        %3573 = vmatpush1.msra.mxu0 0.0
        %3574 = vmatprep.subr.mxu0 0.0
        %3575 = vmatpush1.msra.mxu0 0.0
        %3576 = vmatprep.subr.mxu0 0.0
        %3577 = vmatpush1.msra.mxu0 %v3126
        %3578 = vmatprep.subr.mxu0 0.0
        %3579 = vmatpush1.msra.mxu0 %v3125
        %3580 = vmatprep.subr.mxu0 0.0
        %3581 = vmatpush1.msra.mxu0 %v3124
        %3582 = vmatprep.subr.mxu0 0.0
        %3583 = vmatpush1.msra.mxu0 %v3123
        %3584 = vmatprep.subr.mxu0 0.0
        %3585 = vmatpush2.msra.mxu0 0.0
        %3586 = vmatprep.subr.mxu0 0.0
        %3587 = vmatpush2.msra.mxu0 0.0
        %3588 = vmatprep.subr.mxu0 0.0
        %3589 = vmatpush2.msra.mxu0 0.0
        %3590 = vmatprep.subr.mxu0 0.0
        %3591 = vmatpush2.msra.mxu0 0.0
        %3592 = vmatprep.subr.mxu0 0.0
        %3593 = vmatpush2.msra.mxu0 0.0
        %3594 = vmatprep.subr.mxu0 0.0
        %3595 = vmatpush2.msra.mxu0 0.0
        %3596 = vmatprep.subr.mxu0 0.0
        %3597 = vmatpush2.msra.mxu0 0.0
        %3598 = vmatprep.subr.mxu0 0.0
        %3599 = vmatpush2.msra.mxu0 0.0
        %3600 = vmatprep.subr.mxu0 0.0
        %3601 = vmatpush2.msra.mxu0 0.0
        %3602 = vmatprep.subr.mxu0 0.0
        %3603 = vmatpush2.msra.mxu0 0.0
        %3604 = vmatprep.subr.mxu0 0.0
        %3605 = vmatpush2.msra.mxu0 0.0
        %3606 = vmatprep.subr.mxu0 0.0
        %3607 = vmatpush2.msra.mxu0 0.0
        %3608 = vmatprep.subr.mxu0 0.0
        %3609 = vmatpush2.msra.mxu0 0.0
        %3610 = vmatprep.subr.mxu0 0.0
        %3611 = vmatpush2.msra.mxu0 0.0
        %3612 = vmatprep.subr.mxu0 0.0
        %3613 = vmatpush2.msra.mxu0 0.0
        %3614 = vmatprep.subr.mxu0 0.0
        %3615 = vmatpush2.msra.mxu0 0.0
        %3616 = vmatprep.mubr.f32.mxu0 0.0
        %3617 = vmatmul.mubr.f32.gmra.mxu0 %v3309
        %v3618 = vpop.f32.mrf.mxu0
        %v3619 = vadd.f32 0.0, %v3618
        %v3620 = vpop.f32.mrf.mxu0
        %3621 = vdwg.mxu0
        %3623 = vrot.lane.b32.xlu0 %v3551, 32
        %v3624 = vpop.permute.xlu0 %3623
        %v3625 = vsel %vm727, %v3624, 0
        %3627 = vmatprep.subr.mxu0 0.0
        %3628 = vmatpush1.msra.mxu0 0.0
        %3629 = vmatprep.subr.mxu0 0.0
        %3630 = vmatpush1.msra.mxu0 0.0
        %3631 = vmatprep.subr.mxu0 0.0
        %3632 = vmatpush1.msra.mxu0 0.0
        %3633 = vmatprep.subr.mxu0 0.0
        %3634 = vmatpush1.msra.mxu0 0.0
        %3635 = vmatprep.subr.mxu0 0.0
        %3636 = vmatpush1.msra.mxu0 0.0
        %3637 = vmatprep.subr.mxu0 0.0
        %3638 = vmatpush1.msra.mxu0 0.0
        %3639 = vmatprep.subr.mxu0 0.0
        %3640 = vmatpush1.msra.mxu0 0.0
        %3641 = vmatprep.subr.mxu0 0.0
        %3642 = vmatpush1.msra.mxu0 0.0
        %3643 = vmatprep.subr.mxu0 0.0
        %3644 = vmatpush1.msra.mxu0 0.0
        %3645 = vmatprep.subr.mxu0 0.0
        %3646 = vmatpush1.msra.mxu0 0.0
        %3647 = vmatprep.subr.mxu0 0.0
        %3648 = vmatpush1.msra.mxu0 0.0
        %3649 = vmatprep.subr.mxu0 0.0
        %3650 = vmatpush1.msra.mxu0 0.0
        %3651 = vmatprep.subr.mxu0 0.0
        %3652 = vmatpush1.msra.mxu0 %v3122
        %3653 = vmatprep.subr.mxu0 0.0
        %3654 = vmatpush1.msra.mxu0 %v3121
        %3655 = vmatprep.subr.mxu0 0.0
        %3656 = vmatpush1.msra.mxu0 %v3120
        %3657 = vmatprep.subr.mxu0 0.0
        %3658 = vmatpush1.msra.mxu0 %v3119
        %3659 = vmatprep.subr.mxu0 0.0
        %3660 = vmatpush2.msra.mxu0 0.0
        %3661 = vmatprep.subr.mxu0 0.0
        %3662 = vmatpush2.msra.mxu0 0.0
        %3663 = vmatprep.subr.mxu0 0.0
        %3664 = vmatpush2.msra.mxu0 0.0
        %3665 = vmatprep.subr.mxu0 0.0
        %3666 = vmatpush2.msra.mxu0 0.0
        %3667 = vmatprep.subr.mxu0 0.0
        %3668 = vmatpush2.msra.mxu0 0.0
        %3669 = vmatprep.subr.mxu0 0.0
        %3670 = vmatpush2.msra.mxu0 0.0
        %3671 = vmatprep.subr.mxu0 0.0
        %3672 = vmatpush2.msra.mxu0 0.0
        %3673 = vmatprep.subr.mxu0 0.0
        %3674 = vmatpush2.msra.mxu0 0.0
        %3675 = vmatprep.subr.mxu0 0.0
        %3676 = vmatpush2.msra.mxu0 0.0
        %3677 = vmatprep.subr.mxu0 0.0
        %3678 = vmatpush2.msra.mxu0 0.0
        %3679 = vmatprep.subr.mxu0 0.0
        %3680 = vmatpush2.msra.mxu0 0.0
        %3681 = vmatprep.subr.mxu0 0.0
        %3682 = vmatpush2.msra.mxu0 0.0
        %3683 = vmatprep.subr.mxu0 0.0
        %3684 = vmatpush2.msra.mxu0 0.0
        %3685 = vmatprep.subr.mxu0 0.0
        %3686 = vmatpush2.msra.mxu0 0.0
        %3687 = vmatprep.subr.mxu0 0.0
        %3688 = vmatpush2.msra.mxu0 0.0
        %3689 = vmatprep.subr.mxu0 0.0
        %3690 = vmatpush2.msra.mxu0 0.0
        %3691 = vmatprep.mubr.f32.mxu0 0.0
        %3692 = vmatmul.mubr.f32.gmra.mxu0 %v3625
        %v3693 = vpop.f32.mrf.mxu0
        %v3694 = vadd.f32 %v3619, %v3693
        %v3695 = vpop.f32.mrf.mxu0
        %3696 = vdwg.mxu0
        %v3697 = vadd.f32 %v3694, %v638
        %v3698 = vxor.u32 %v3697, 2147483648
        %v3699 = vmul.f32 %v3698, 1.442695
        %v3700 = vpow.pop %v3699
        %v3701 = vadd.f32 %v3700, 1.0
        %v3702 = vrcp.pop %v3701
        %v3703 = vmul.f32 1.0, %v3702
        %v3704 = vtanh.pop %v3697
        %v3705 = vmul.f32 %v3703, %v3295
        %3707 = vrot.lane.b32.xlu0 %v3704, 64
        %v3708 = vpop.permute.xlu0 %3707
        %v3710 = vmul.f32 %v3703, %v3708
        %3712 = vrot.lane.b32.xlu0 %v3710, 32
        %v3713 = vpop.permute.xlu0 %3712
        %v3715 = vadd.f32 %v3705, %v3713
        %v3716 = vtanh.pop %v3715
        %3718 = vrot.lane.b32.xlu0 %v3716, 64
        %v3719 = vpop.permute.xlu0 %3718
        %v3721 = vmul.f32 %v3703, %v3719
        %3723 = vrot.lane.b32.xlu0 %v3721, 32
        %v3724 = vpop.permute.xlu0 %3723
        %v3725 = vsel %vm727, %v3724, 0
        %3727 = vmatprep.subr.mxu0 0.0
        %3728 = vmatpush1.msra.mxu0 0.0
        %3729 = vmatprep.subr.mxu0 0.0
        %3730 = vmatpush1.msra.mxu0 0.0
        %3731 = vmatprep.subr.mxu0 0.0
        %3732 = vmatpush1.msra.mxu0 0.0
        %3733 = vmatprep.subr.mxu0 0.0
        %3734 = vmatpush1.msra.mxu0 0.0
        %3735 = vmatprep.subr.mxu0 0.0
        %3736 = vmatpush1.msra.mxu0 0.0
        %3737 = vmatprep.subr.mxu0 0.0
        %3738 = vmatpush1.msra.mxu0 0.0
        %3739 = vmatprep.subr.mxu0 0.0
        %3740 = vmatpush1.msra.mxu0 0.0
        %3741 = vmatprep.subr.mxu0 0.0
        %3742 = vmatpush1.msra.mxu0 0.0
        %3743 = vmatprep.subr.mxu0 0.0
        %3744 = vmatpush1.msra.mxu0 0.0
        %3745 = vmatprep.subr.mxu0 0.0
        %3746 = vmatpush1.msra.mxu0 0.0
        %3747 = vmatprep.subr.mxu0 0.0
        %3748 = vmatpush1.msra.mxu0 0.0
        %3749 = vmatprep.subr.mxu0 0.0
        %3750 = vmatpush1.msra.mxu0 0.0
        %3751 = vmatprep.subr.mxu0 0.0
        %3752 = vmatpush1.msra.mxu0 %v3305
        %3753 = vmatprep.subr.mxu0 0.0
        %3754 = vmatpush1.msra.mxu0 %v3304
        %3755 = vmatprep.subr.mxu0 0.0
        %3756 = vmatpush1.msra.mxu0 %v3303
        %3757 = vmatprep.subr.mxu0 0.0
        %3758 = vmatpush1.msra.mxu0 %v3302
        %3759 = vmatprep.subr.mxu0 0.0
        %3760 = vmatpush2.msra.mxu0 0.0
        %3761 = vmatprep.subr.mxu0 0.0
        %3762 = vmatpush2.msra.mxu0 0.0
        %3763 = vmatprep.subr.mxu0 0.0
        %3764 = vmatpush2.msra.mxu0 0.0
        %3765 = vmatprep.subr.mxu0 0.0
        %3766 = vmatpush2.msra.mxu0 0.0
        %3767 = vmatprep.subr.mxu0 0.0
        %3768 = vmatpush2.msra.mxu0 0.0
        %3769 = vmatprep.subr.mxu0 0.0
        %3770 = vmatpush2.msra.mxu0 0.0
        %3771 = vmatprep.subr.mxu0 0.0
        %3772 = vmatpush2.msra.mxu0 0.0
        %3773 = vmatprep.subr.mxu0 0.0
        %3774 = vmatpush2.msra.mxu0 0.0
        %3775 = vmatprep.subr.mxu0 0.0
        %3776 = vmatpush2.msra.mxu0 0.0
        %3777 = vmatprep.subr.mxu0 0.0
        %3778 = vmatpush2.msra.mxu0 0.0
        %3779 = vmatprep.subr.mxu0 0.0
        %3780 = vmatpush2.msra.mxu0 0.0
        %3781 = vmatprep.subr.mxu0 0.0
        %3782 = vmatpush2.msra.mxu0 0.0
        %3783 = vmatprep.subr.mxu0 0.0
        %3784 = vmatpush2.msra.mxu0 0.0
        %3785 = vmatprep.subr.mxu0 0.0
        %3786 = vmatpush2.msra.mxu0 0.0
        %3787 = vmatprep.subr.mxu0 0.0
        %3788 = vmatpush2.msra.mxu0 0.0
        %3789 = vmatprep.subr.mxu0 0.0
        %3790 = vmatpush2.msra.mxu0 0.0
        %3791 = vmatprep.mubr.f32.mxu0 0.0
        %3792 = vmatmul.mubr.f32.gmra.mxu0 %v3725
        %v3793 = vpop.f32.mrf.mxu0
        %v3794 = vadd.f32 %v639, %v3793
        %v3795 = vpop.f32.mrf.mxu0
        %3796 = vdwg.mxu0
        %vm3797 = vcmp.ge.f32.partialorder %v3794, 0.0
        %v3798 = vmul.f32 %v3794, 0.01
        %v3799 = vsel %vm3797, %v3794, %v3798
        %3800 = vmatprep.subr.mxu0 0.0
        %3801 = vmatpush1.msra.mxu0 0.0
        %3802 = vmatprep.subr.mxu0 0.0
        %3803 = vmatpush1.msra.mxu0 0.0
        %3804 = vmatprep.subr.mxu0 0.0
        %3805 = vmatpush1.msra.mxu0 0.0
        %3806 = vmatprep.subr.mxu0 0.0
        %3807 = vmatpush1.msra.mxu0 0.0
        %3808 = vmatprep.subr.mxu0 0.0
        %3809 = vmatpush1.msra.mxu0 0.0
        %3810 = vmatprep.subr.mxu0 0.0
        %3811 = vmatpush1.msra.mxu0 0.0
        %3812 = vmatprep.subr.mxu0 0.0
        %3813 = vmatpush1.msra.mxu0 0.0
        %3814 = vmatprep.subr.mxu0 0.0
        %3815 = vmatpush1.msra.mxu0 0.0
        %3816 = vmatprep.subr.mxu0 0.0
        %3817 = vmatpush1.msra.mxu0 0.0
        %3818 = vmatprep.subr.mxu0 0.0
        %3819 = vmatpush1.msra.mxu0 0.0
        %3820 = vmatprep.subr.mxu0 0.0
        %3821 = vmatpush1.msra.mxu0 0.0
        %3822 = vmatprep.subr.mxu0 0.0
        %3823 = vmatpush1.msra.mxu0 0.0
        %3824 = vmatprep.subr.mxu0 0.0
        %3825 = vmatpush1.msra.mxu0 %v2948
        %3826 = vmatprep.subr.mxu0 0.0
        %3827 = vmatpush1.msra.mxu0 %v2947
        %3828 = vmatprep.subr.mxu0 0.0
        %3829 = vmatpush1.msra.mxu0 %v2946
        %3830 = vmatprep.subr.mxu0 0.0
        %3831 = vmatpush1.msra.mxu0 %v2945
        %3832 = vmatprep.subr.mxu0 0.0
        %3833 = vmatpush2.msra.mxu0 0.0
        %3834 = vmatprep.subr.mxu0 0.0
        %3835 = vmatpush2.msra.mxu0 0.0
        %3836 = vmatprep.subr.mxu0 0.0
        %3837 = vmatpush2.msra.mxu0 0.0
        %3838 = vmatprep.subr.mxu0 0.0
        %3839 = vmatpush2.msra.mxu0 0.0
        %3840 = vmatprep.subr.mxu0 0.0
        %3841 = vmatpush2.msra.mxu0 0.0
        %3842 = vmatprep.subr.mxu0 0.0
        %3843 = vmatpush2.msra.mxu0 0.0
        %3844 = vmatprep.subr.mxu0 0.0
        %3845 = vmatpush2.msra.mxu0 0.0
        %3846 = vmatprep.subr.mxu0 0.0
        %3847 = vmatpush2.msra.mxu0 0.0
        %3848 = vmatprep.subr.mxu0 0.0
        %3849 = vmatpush2.msra.mxu0 0.0
        %3850 = vmatprep.subr.mxu0 0.0
        %3851 = vmatpush2.msra.mxu0 0.0
        %3852 = vmatprep.subr.mxu0 0.0
        %3853 = vmatpush2.msra.mxu0 0.0
        %3854 = vmatprep.subr.mxu0 0.0
        %3855 = vmatpush2.msra.mxu0 0.0
        %3856 = vmatprep.subr.mxu0 0.0
        %3857 = vmatpush2.msra.mxu0 0.0
        %3858 = vmatprep.subr.mxu0 0.0
        %3859 = vmatpush2.msra.mxu0 0.0
        %3860 = vmatprep.subr.mxu0 0.0
        %3861 = vmatpush2.msra.mxu0 0.0
        %3862 = vmatprep.subr.mxu0 0.0
        %3863 = vmatpush2.msra.mxu0 0.0
        %3864 = vmatprep.mubr.f32.mxu0 0.0
        %3865 = vmatmul.mubr.f32.gmra.mxu0 %v3625
        %v3866 = vpop.f32.mrf.mxu0
        %v3867 = vadd.f32 0.0, %v3866
        %v3868 = vpop.f32.mrf.mxu0
        %3869 = vdwg.mxu0
        %v3871 = vsel %vm649, %v3799, 0
        %3873 = vmatprep.subr.mxu0 0.0
        %3874 = vmatpush1.msra.mxu0 0.0
        %3875 = vmatprep.subr.mxu0 0.0
        %3876 = vmatpush1.msra.mxu0 0.0
        %3877 = vmatprep.subr.mxu0 0.0
        %3878 = vmatpush1.msra.mxu0 0.0
        %3879 = vmatprep.subr.mxu0 0.0
        %3880 = vmatpush1.msra.mxu0 0.0
        %3881 = vmatprep.subr.mxu0 0.0
        %3882 = vmatpush1.msra.mxu0 0.0
        %3883 = vmatprep.subr.mxu0 0.0
        %3884 = vmatpush1.msra.mxu0 0.0
        %3885 = vmatprep.subr.mxu0 0.0
        %3886 = vmatpush1.msra.mxu0 0.0
        %3887 = vmatprep.subr.mxu0 0.0
        %3888 = vmatpush1.msra.mxu0 0.0
        %3889 = vmatprep.subr.mxu0 0.0
        %3890 = vmatpush1.msra.mxu0 0.0
        %3891 = vmatprep.subr.mxu0 0.0
        %3892 = vmatpush1.msra.mxu0 0.0
        %3893 = vmatprep.subr.mxu0 0.0
        %3894 = vmatpush1.msra.mxu0 0.0
        %3895 = vmatprep.subr.mxu0 0.0
        %3896 = vmatpush1.msra.mxu0 0.0
        %3897 = vmatprep.subr.mxu0 0.0
        %3898 = vmatpush1.msra.mxu0 0.0
        %3899 = vmatprep.subr.mxu0 0.0
        %3900 = vmatpush1.msra.mxu0 0.0
        %3901 = vmatprep.subr.mxu0 0.0
        %3902 = vmatpush1.msra.mxu0 %v2944
        %3903 = vmatprep.subr.mxu0 0.0
        %3904 = vmatpush1.msra.mxu0 %v2943
        %3905 = vmatprep.subr.mxu0 0.0
        %3906 = vmatpush2.msra.mxu0 0.0
        %3907 = vmatprep.subr.mxu0 0.0
        %3908 = vmatpush2.msra.mxu0 0.0
        %3909 = vmatprep.subr.mxu0 0.0
        %3910 = vmatpush2.msra.mxu0 0.0
        %3911 = vmatprep.subr.mxu0 0.0
        %3912 = vmatpush2.msra.mxu0 0.0
        %3913 = vmatprep.subr.mxu0 0.0
        %3914 = vmatpush2.msra.mxu0 0.0
        %3915 = vmatprep.subr.mxu0 0.0
        %3916 = vmatpush2.msra.mxu0 0.0
        %3917 = vmatprep.subr.mxu0 0.0
        %3918 = vmatpush2.msra.mxu0 0.0
        %3919 = vmatprep.subr.mxu0 0.0
        %3920 = vmatpush2.msra.mxu0 0.0
        %3921 = vmatprep.subr.mxu0 0.0
        %3922 = vmatpush2.msra.mxu0 0.0
        %3923 = vmatprep.subr.mxu0 0.0
        %3924 = vmatpush2.msra.mxu0 0.0
        %3925 = vmatprep.subr.mxu0 0.0
        %3926 = vmatpush2.msra.mxu0 0.0
        %3927 = vmatprep.subr.mxu0 0.0
        %3928 = vmatpush2.msra.mxu0 0.0
        %3929 = vmatprep.subr.mxu0 0.0
        %3930 = vmatpush2.msra.mxu0 0.0
        %3931 = vmatprep.subr.mxu0 0.0
        %3932 = vmatpush2.msra.mxu0 0.0
        %3933 = vmatprep.subr.mxu0 0.0
        %3934 = vmatpush2.msra.mxu0 0.0
        %3935 = vmatprep.subr.mxu0 0.0
        %3936 = vmatpush2.msra.mxu0 0.0
        %3937 = vmatprep.mubr.f32.mxu0 0.0
        %3938 = vmatmul.mubr.f32.gmra.mxu0 %v3871
        %v3939 = vpop.f32.mrf.mxu0
        %v3940 = vadd.f32 %v3867, %v3939
        %v3941 = vpop.f32.mrf.mxu0
        %3942 = vdwg.mxu0
        %v3943 = vadd.f32 %v3940, %v637
        %v3944 = vxor.u32 %v3943, 2147483648
        %v3945 = vmul.f32 %v3944, 1.442695
        %v3946 = vpow.pop %v3945
        %v3947 = vadd.f32 %v3946, 1.0
        %v3948 = vrcp.pop %v3947
        %v3949 = vmul.f32 1.0, %v3948
        %v3950 = vtanh.pop %v3943
        %v3951 = vmul.f32 %v3949, %v3545
        %3953 = vrot.lane.b32.xlu0 %v3950, 64
        %v3954 = vpop.permute.xlu0 %3953
        %v3956 = vmul.f32 %v3949, %v3954
        %3958 = vrot.lane.b32.xlu0 %v3956, 32
        %v3959 = vpop.permute.xlu0 %3958
        %v3961 = vadd.f32 %v3951, %v3959
        %v3962 = vtanh.pop %v3961
        %3964 = vrot.lane.b32.xlu0 %v3962, 64
        %v3965 = vpop.permute.xlu0 %3964
        %v3967 = vmul.f32 %v3949, %v3965
        %3968 = vmatprep.subr.mxu0 0.0
        %3969 = vmatpush1.msra.mxu0 0.0
        %3970 = vmatprep.subr.mxu0 0.0
        %3971 = vmatpush1.msra.mxu0 0.0
        %3972 = vmatprep.subr.mxu0 0.0
        %3973 = vmatpush1.msra.mxu0 0.0
        %3974 = vmatprep.subr.mxu0 0.0
        %3975 = vmatpush1.msra.mxu0 0.0
        %3976 = vmatprep.subr.mxu0 0.0
        %3977 = vmatpush1.msra.mxu0 0.0
        %3978 = vmatprep.subr.mxu0 0.0
        %3979 = vmatpush1.msra.mxu0 0.0
        %3980 = vmatprep.subr.mxu0 0.0
        %3981 = vmatpush1.msra.mxu0 0.0
        %3982 = vmatprep.subr.mxu0 0.0
        %3983 = vmatpush1.msra.mxu0 0.0
        %3984 = vmatprep.subr.mxu0 0.0
        %3985 = vmatpush1.msra.mxu0 0.0
        %3986 = vmatprep.subr.mxu0 0.0
        %3987 = vmatpush1.msra.mxu0 0.0
        %3988 = vmatprep.subr.mxu0 0.0
        %3989 = vmatpush1.msra.mxu0 0.0
        %3990 = vmatprep.subr.mxu0 0.0
        %3991 = vmatpush1.msra.mxu0 0.0
        %3992 = vmatprep.subr.mxu0 0.0
        %3993 = vmatpush1.msra.mxu0 %v3126
        %3994 = vmatprep.subr.mxu0 0.0
        %3995 = vmatpush1.msra.mxu0 %v3125
        %3996 = vmatprep.subr.mxu0 0.0
        %3997 = vmatpush1.msra.mxu0 %v3124
        %3998 = vmatprep.subr.mxu0 0.0
        %3999 = vmatpush1.msra.mxu0 %v3123
        %4000 = vmatprep.subr.mxu0 0.0
        %4001 = vmatpush2.msra.mxu0 0.0
        %4002 = vmatprep.subr.mxu0 0.0
        %4003 = vmatpush2.msra.mxu0 0.0
        %4004 = vmatprep.subr.mxu0 0.0
        %4005 = vmatpush2.msra.mxu0 0.0
        %4006 = vmatprep.subr.mxu0 0.0
        %4007 = vmatpush2.msra.mxu0 0.0
        %4008 = vmatprep.subr.mxu0 0.0
        %4009 = vmatpush2.msra.mxu0 0.0
        %4010 = vmatprep.subr.mxu0 0.0
        %4011 = vmatpush2.msra.mxu0 0.0
        %4012 = vmatprep.subr.mxu0 0.0
        %4013 = vmatpush2.msra.mxu0 0.0
        %4014 = vmatprep.subr.mxu0 0.0
        %4015 = vmatpush2.msra.mxu0 0.0
        %4016 = vmatprep.subr.mxu0 0.0
        %4017 = vmatpush2.msra.mxu0 0.0
        %4018 = vmatprep.subr.mxu0 0.0
        %4019 = vmatpush2.msra.mxu0 0.0
        %4020 = vmatprep.subr.mxu0 0.0
        %4021 = vmatpush2.msra.mxu0 0.0
        %4022 = vmatprep.subr.mxu0 0.0
        %4023 = vmatpush2.msra.mxu0 0.0
        %4024 = vmatprep.subr.mxu0 0.0
        %4025 = vmatpush2.msra.mxu0 0.0
        %4026 = vmatprep.subr.mxu0 0.0
        %4027 = vmatpush2.msra.mxu0 0.0
        %4028 = vmatprep.subr.mxu0 0.0
        %4029 = vmatpush2.msra.mxu0 0.0
        %4030 = vmatprep.subr.mxu0 0.0
        %4031 = vmatpush2.msra.mxu0 0.0
        %4032 = vmatprep.mubr.f32.mxu0 0.0
        %4033 = vmatmul.mubr.f32.gmra.mxu0 %v3725
        %v4034 = vpop.f32.mrf.mxu0
        %v4035 = vadd.f32 0.0, %v4034
        %v4036 = vpop.f32.mrf.mxu0
        %4037 = vdwg.mxu0
        %4039 = vrot.lane.b32.xlu0 %v3967, 32
        %v4040 = vpop.permute.xlu0 %4039
        %v4041 = vsel %vm727, %v4040, 0
        %4043 = vmatprep.subr.mxu0 0.0
        %4044 = vmatpush1.msra.mxu0 0.0
        %4045 = vmatprep.subr.mxu0 0.0
        %4046 = vmatpush1.msra.mxu0 0.0
        %4047 = vmatprep.subr.mxu0 0.0
        %4048 = vmatpush1.msra.mxu0 0.0
        %4049 = vmatprep.subr.mxu0 0.0
        %4050 = vmatpush1.msra.mxu0 0.0
        %4051 = vmatprep.subr.mxu0 0.0
        %4052 = vmatpush1.msra.mxu0 0.0
        %4053 = vmatprep.subr.mxu0 0.0
        %4054 = vmatpush1.msra.mxu0 0.0
        %4055 = vmatprep.subr.mxu0 0.0
        %4056 = vmatpush1.msra.mxu0 0.0
        %4057 = vmatprep.subr.mxu0 0.0
        %4058 = vmatpush1.msra.mxu0 0.0
        %4059 = vmatprep.subr.mxu0 0.0
        %4060 = vmatpush1.msra.mxu0 0.0
        %4061 = vmatprep.subr.mxu0 0.0
        %4062 = vmatpush1.msra.mxu0 0.0
        %4063 = vmatprep.subr.mxu0 0.0
        %4064 = vmatpush1.msra.mxu0 0.0
        %4065 = vmatprep.subr.mxu0 0.0
        %4066 = vmatpush1.msra.mxu0 0.0
        %4067 = vmatprep.subr.mxu0 0.0
        %4068 = vmatpush1.msra.mxu0 %v3122
        %4069 = vmatprep.subr.mxu0 0.0
        %4070 = vmatpush1.msra.mxu0 %v3121
        %4071 = vmatprep.subr.mxu0 0.0
        %4072 = vmatpush1.msra.mxu0 %v3120
        %4073 = vmatprep.subr.mxu0 0.0
        %4074 = vmatpush1.msra.mxu0 %v3119
        %4075 = vmatprep.subr.mxu0 0.0
        %4076 = vmatpush2.msra.mxu0 0.0
        %4077 = vmatprep.subr.mxu0 0.0
        %4078 = vmatpush2.msra.mxu0 0.0
        %4079 = vmatprep.subr.mxu0 0.0
        %4080 = vmatpush2.msra.mxu0 0.0
        %4081 = vmatprep.subr.mxu0 0.0
        %4082 = vmatpush2.msra.mxu0 0.0
        %4083 = vmatprep.subr.mxu0 0.0
        %4084 = vmatpush2.msra.mxu0 0.0
        %4085 = vmatprep.subr.mxu0 0.0
        %4086 = vmatpush2.msra.mxu0 0.0
        %4087 = vmatprep.subr.mxu0 0.0
        %4088 = vmatpush2.msra.mxu0 0.0
        %4089 = vmatprep.subr.mxu0 0.0
        %4090 = vmatpush2.msra.mxu0 0.0
        %4091 = vmatprep.subr.mxu0 0.0
        %4092 = vmatpush2.msra.mxu0 0.0
        %4093 = vmatprep.subr.mxu0 0.0
        %4094 = vmatpush2.msra.mxu0 0.0
        %4095 = vmatprep.subr.mxu0 0.0
        %4096 = vmatpush2.msra.mxu0 0.0
        %4097 = vmatprep.subr.mxu0 0.0
        %4098 = vmatpush2.msra.mxu0 0.0
        %4099 = vmatprep.subr.mxu0 0.0
        %4100 = vmatpush2.msra.mxu0 0.0
        %4101 = vmatprep.subr.mxu0 0.0
        %4102 = vmatpush2.msra.mxu0 0.0
        %4103 = vmatprep.subr.mxu0 0.0
        %4104 = vmatpush2.msra.mxu0 0.0
        %4105 = vmatprep.subr.mxu0 0.0
        %4106 = vmatpush2.msra.mxu0 0.0
        %4107 = vmatprep.mubr.f32.mxu0 0.0
        %4108 = vmatmul.mubr.f32.gmra.mxu0 %v4041
        %v4109 = vpop.f32.mrf.mxu0
        %v4110 = vadd.f32 %v4035, %v4109
        %v4111 = vpop.f32.mrf.mxu0
        %4112 = vdwg.mxu0
        %v4113 = vadd.f32 %v4110, %v638
        %v4114 = vxor.u32 %v4113, 2147483648
        %v4115 = vmul.f32 %v4114, 1.442695
        %v4116 = vpow.pop %v4115
        %v4117 = vadd.f32 %v4116, 1.0
        %v4118 = vrcp.pop %v4117
        %v4119 = vmul.f32 1.0, %v4118
        %v4120 = vtanh.pop %v4113
        %v4121 = vmul.f32 %v4119, %v3715
        %4123 = vrot.lane.b32.xlu0 %v4120, 64
        %v4124 = vpop.permute.xlu0 %4123
        %v4126 = vmul.f32 %v4119, %v4124
        %4128 = vrot.lane.b32.xlu0 %v4126, 32
        %v4129 = vpop.permute.xlu0 %4128
        %v4131 = vadd.f32 %v4121, %v4129
        %v4132 = vtanh.pop %v4131
        %4134 = vrot.lane.b32.xlu0 %v4132, 64
        %v4135 = vpop.permute.xlu0 %4134
        %v4137 = vmul.f32 %v4119, %v4135
        %4139 = vrot.lane.b32.xlu0 %v4137, 32
        %v4140 = vpop.permute.xlu0 %4139
        %v4141 = vsel %vm727, %v4140, 0
        %4143 = vmatprep.subr.mxu0 0.0
        %4144 = vmatpush1.msra.mxu0 0.0
        %4145 = vmatprep.subr.mxu0 0.0
        %4146 = vmatpush1.msra.mxu0 0.0
        %4147 = vmatprep.subr.mxu0 0.0
        %4148 = vmatpush1.msra.mxu0 0.0
        %4149 = vmatprep.subr.mxu0 0.0
        %4150 = vmatpush1.msra.mxu0 0.0
        %4151 = vmatprep.subr.mxu0 0.0
        %4152 = vmatpush1.msra.mxu0 0.0
        %4153 = vmatprep.subr.mxu0 0.0
        %4154 = vmatpush1.msra.mxu0 0.0
        %4155 = vmatprep.subr.mxu0 0.0
        %4156 = vmatpush1.msra.mxu0 0.0
        %4157 = vmatprep.subr.mxu0 0.0
        %4158 = vmatpush1.msra.mxu0 0.0
        %4159 = vmatprep.subr.mxu0 0.0
        %4160 = vmatpush1.msra.mxu0 0.0
        %4161 = vmatprep.subr.mxu0 0.0
        %4162 = vmatpush1.msra.mxu0 0.0
        %4163 = vmatprep.subr.mxu0 0.0
        %4164 = vmatpush1.msra.mxu0 0.0
        %4165 = vmatprep.subr.mxu0 0.0
        %4166 = vmatpush1.msra.mxu0 0.0
        %4167 = vmatprep.subr.mxu0 0.0
        %4168 = vmatpush1.msra.mxu0 %v3305
        %4169 = vmatprep.subr.mxu0 0.0
        %4170 = vmatpush1.msra.mxu0 %v3304
        %4171 = vmatprep.subr.mxu0 0.0
        %4172 = vmatpush1.msra.mxu0 %v3303
        %4173 = vmatprep.subr.mxu0 0.0
        %4174 = vmatpush1.msra.mxu0 %v3302
        %4175 = vmatprep.subr.mxu0 0.0
        %4176 = vmatpush2.msra.mxu0 0.0
        %4177 = vmatprep.subr.mxu0 0.0
        %4178 = vmatpush2.msra.mxu0 0.0
        %4179 = vmatprep.subr.mxu0 0.0
        %4180 = vmatpush2.msra.mxu0 0.0
        %4181 = vmatprep.subr.mxu0 0.0
        %4182 = vmatpush2.msra.mxu0 0.0
        %4183 = vmatprep.subr.mxu0 0.0
        %4184 = vmatpush2.msra.mxu0 0.0
        %4185 = vmatprep.subr.mxu0 0.0
        %4186 = vmatpush2.msra.mxu0 0.0
        %4187 = vmatprep.subr.mxu0 0.0
        %4188 = vmatpush2.msra.mxu0 0.0
        %4189 = vmatprep.subr.mxu0 0.0
        %4190 = vmatpush2.msra.mxu0 0.0
        %4191 = vmatprep.subr.mxu0 0.0
        %4192 = vmatpush2.msra.mxu0 0.0
        %4193 = vmatprep.subr.mxu0 0.0
        %4194 = vmatpush2.msra.mxu0 0.0
        %4195 = vmatprep.subr.mxu0 0.0
        %4196 = vmatpush2.msra.mxu0 0.0
        %4197 = vmatprep.subr.mxu0 0.0
        %4198 = vmatpush2.msra.mxu0 0.0
        %4199 = vmatprep.subr.mxu0 0.0
        %4200 = vmatpush2.msra.mxu0 0.0
        %4201 = vmatprep.subr.mxu0 0.0
        %4202 = vmatpush2.msra.mxu0 0.0
        %4203 = vmatprep.subr.mxu0 0.0
        %4204 = vmatpush2.msra.mxu0 0.0
        %4205 = vmatprep.subr.mxu0 0.0
        %4206 = vmatpush2.msra.mxu0 0.0
        %4207 = vmatprep.mubr.f32.mxu0 0.0
        %4208 = vmatmul.mubr.f32.gmra.mxu0 %v4141
        %v4209 = vpop.f32.mrf.mxu0
        %v4210 = vadd.f32 %v639, %v4209
        %v4211 = vpop.f32.mrf.mxu0
        %4212 = vdwg.mxu0
        %vm4213 = vcmp.ge.f32.partialorder %v4210, 0.0
        %v4214 = vmul.f32 %v4210, 0.01
        %v4215 = vsel %vm4213, %v4210, %v4214
        %4216 = vmatprep.subr.mxu0 0.0
        %4217 = vmatpush1.msra.mxu0 0.0
        %4218 = vmatprep.subr.mxu0 0.0
        %4219 = vmatpush1.msra.mxu0 0.0
        %4220 = vmatprep.subr.mxu0 0.0
        %4221 = vmatpush1.msra.mxu0 0.0
        %4222 = vmatprep.subr.mxu0 0.0
        %4223 = vmatpush1.msra.mxu0 0.0
        %4224 = vmatprep.subr.mxu0 0.0
        %4225 = vmatpush1.msra.mxu0 0.0
        %4226 = vmatprep.subr.mxu0 0.0
        %4227 = vmatpush1.msra.mxu0 0.0
        %4228 = vmatprep.subr.mxu0 0.0
        %4229 = vmatpush1.msra.mxu0 0.0
        %4230 = vmatprep.subr.mxu0 0.0
        %4231 = vmatpush1.msra.mxu0 0.0
        %4232 = vmatprep.subr.mxu0 0.0
        %4233 = vmatpush1.msra.mxu0 0.0
        %4234 = vmatprep.subr.mxu0 0.0
        %4235 = vmatpush1.msra.mxu0 0.0
        %4236 = vmatprep.subr.mxu0 0.0
        %4237 = vmatpush1.msra.mxu0 0.0
        %4238 = vmatprep.subr.mxu0 0.0
        %4239 = vmatpush1.msra.mxu0 0.0
        %4240 = vmatprep.subr.mxu0 0.0
        %4241 = vmatpush1.msra.mxu0 %v2948
        %4242 = vmatprep.subr.mxu0 0.0
        %4243 = vmatpush1.msra.mxu0 %v2947
        %4244 = vmatprep.subr.mxu0 0.0
        %4245 = vmatpush1.msra.mxu0 %v2946
        %4246 = vmatprep.subr.mxu0 0.0
        %4247 = vmatpush1.msra.mxu0 %v2945
        %4248 = vmatprep.subr.mxu0 0.0
        %4249 = vmatpush2.msra.mxu0 0.0
        %4250 = vmatprep.subr.mxu0 0.0
        %4251 = vmatpush2.msra.mxu0 0.0
        %4252 = vmatprep.subr.mxu0 0.0
        %4253 = vmatpush2.msra.mxu0 0.0
        %4254 = vmatprep.subr.mxu0 0.0
        %4255 = vmatpush2.msra.mxu0 0.0
        %4256 = vmatprep.subr.mxu0 0.0
        %4257 = vmatpush2.msra.mxu0 0.0
        %4258 = vmatprep.subr.mxu0 0.0
        %4259 = vmatpush2.msra.mxu0 0.0
        %4260 = vmatprep.subr.mxu0 0.0
        %4261 = vmatpush2.msra.mxu0 0.0
        %4262 = vmatprep.subr.mxu0 0.0
        %4263 = vmatpush2.msra.mxu0 0.0
        %4264 = vmatprep.subr.mxu0 0.0
        %4265 = vmatpush2.msra.mxu0 0.0
        %4266 = vmatprep.subr.mxu0 0.0
        %4267 = vmatpush2.msra.mxu0 0.0
        %4268 = vmatprep.subr.mxu0 0.0
        %4269 = vmatpush2.msra.mxu0 0.0
        %4270 = vmatprep.subr.mxu0 0.0
        %4271 = vmatpush2.msra.mxu0 0.0
        %4272 = vmatprep.subr.mxu0 0.0
        %4273 = vmatpush2.msra.mxu0 0.0
        %4274 = vmatprep.subr.mxu0 0.0
        %4275 = vmatpush2.msra.mxu0 0.0
        %4276 = vmatprep.subr.mxu0 0.0
        %4277 = vmatpush2.msra.mxu0 0.0
        %4278 = vmatprep.subr.mxu0 0.0
        %4279 = vmatpush2.msra.mxu0 0.0
        %4280 = vmatprep.mubr.f32.mxu0 0.0
        %4281 = vmatmul.mubr.f32.gmra.mxu0 %v4041
        %v4282 = vpop.f32.mrf.mxu0
        %v4283 = vadd.f32 0.0, %v4282
        %v4284 = vpop.f32.mrf.mxu0
        %4285 = vdwg.mxu0
        %v4287 = vsel %vm649, %v4215, 0
        %4289 = vmatprep.subr.mxu0 0.0
        %4290 = vmatpush1.msra.mxu0 0.0
        %4291 = vmatprep.subr.mxu0 0.0
        %4292 = vmatpush1.msra.mxu0 0.0
        %4293 = vmatprep.subr.mxu0 0.0
        %4294 = vmatpush1.msra.mxu0 0.0
        %4295 = vmatprep.subr.mxu0 0.0
        %4296 = vmatpush1.msra.mxu0 0.0
        %4297 = vmatprep.subr.mxu0 0.0
        %4298 = vmatpush1.msra.mxu0 0.0
        %4299 = vmatprep.subr.mxu0 0.0
        %4300 = vmatpush1.msra.mxu0 0.0
        %4301 = vmatprep.subr.mxu0 0.0
        %4302 = vmatpush1.msra.mxu0 0.0
        %4303 = vmatprep.subr.mxu0 0.0
        %4304 = vmatpush1.msra.mxu0 0.0
        %4305 = vmatprep.subr.mxu0 0.0
        %4306 = vmatpush1.msra.mxu0 0.0
        %4307 = vmatprep.subr.mxu0 0.0
        %4308 = vmatpush1.msra.mxu0 0.0
        %4309 = vmatprep.subr.mxu0 0.0
        %4310 = vmatpush1.msra.mxu0 0.0
        %4311 = vmatprep.subr.mxu0 0.0
        %4312 = vmatpush1.msra.mxu0 0.0
        %4313 = vmatprep.subr.mxu0 0.0
        %4314 = vmatpush1.msra.mxu0 0.0
        %4315 = vmatprep.subr.mxu0 0.0
        %4316 = vmatpush1.msra.mxu0 0.0
        %4317 = vmatprep.subr.mxu0 0.0
        %4318 = vmatpush1.msra.mxu0 %v2944
        %4319 = vmatprep.subr.mxu0 0.0
        %4320 = vmatpush1.msra.mxu0 %v2943
        %4321 = vmatprep.subr.mxu0 0.0
        %4322 = vmatpush2.msra.mxu0 0.0
        %4323 = vmatprep.subr.mxu0 0.0
        %4324 = vmatpush2.msra.mxu0 0.0
        %4325 = vmatprep.subr.mxu0 0.0
        %4326 = vmatpush2.msra.mxu0 0.0
        %4327 = vmatprep.subr.mxu0 0.0
        %4328 = vmatpush2.msra.mxu0 0.0
        %4329 = vmatprep.subr.mxu0 0.0
        %4330 = vmatpush2.msra.mxu0 0.0
        %4331 = vmatprep.subr.mxu0 0.0
        %4332 = vmatpush2.msra.mxu0 0.0
        %4333 = vmatprep.subr.mxu0 0.0
        %4334 = vmatpush2.msra.mxu0 0.0
        %4335 = vmatprep.subr.mxu0 0.0
        %4336 = vmatpush2.msra.mxu0 0.0
        %4337 = vmatprep.subr.mxu0 0.0
        %4338 = vmatpush2.msra.mxu0 0.0
        %4339 = vmatprep.subr.mxu0 0.0
        %4340 = vmatpush2.msra.mxu0 0.0
        %4341 = vmatprep.subr.mxu0 0.0
        %4342 = vmatpush2.msra.mxu0 0.0
        %4343 = vmatprep.subr.mxu0 0.0
        %4344 = vmatpush2.msra.mxu0 0.0
        %4345 = vmatprep.subr.mxu0 0.0
        %4346 = vmatpush2.msra.mxu0 0.0
        %4347 = vmatprep.subr.mxu0 0.0
        %4348 = vmatpush2.msra.mxu0 0.0
        %4349 = vmatprep.subr.mxu0 0.0
        %4350 = vmatpush2.msra.mxu0 0.0
        %4351 = vmatprep.subr.mxu0 0.0
        %4352 = vmatpush2.msra.mxu0 0.0
        %4353 = vmatprep.mubr.f32.mxu0 0.0
        %4354 = vmatmul.mubr.f32.gmra.mxu0 %v4287
        %v4355 = vpop.f32.mrf.mxu0
        %v4356 = vadd.f32 %v4283, %v4355
        %v4357 = vpop.f32.mrf.mxu0
        %4358 = vdwg.mxu0
        %v4359 = vadd.f32 %v4356, %v637
        %v4360 = vxor.u32 %v4359, 2147483648
        %v4361 = vmul.f32 %v4360, 1.442695
        %v4362 = vpow.pop %v4361
        %v4363 = vadd.f32 %v4362, 1.0
        %v4364 = vrcp.pop %v4363
        %v4365 = vmul.f32 1.0, %v4364
        %v4366 = vtanh.pop %v4359
        %v4367 = vmul.f32 %v4365, %v3961
        %4369 = vrot.lane.b32.xlu0 %v4366, 64
        %v4370 = vpop.permute.xlu0 %4369
        %v4372 = vmul.f32 %v4365, %v4370
        %4374 = vrot.lane.b32.xlu0 %v4372, 32
        %v4375 = vpop.permute.xlu0 %4374
        %v4377 = vadd.f32 %v4367, %v4375
        %v4378 = vtanh.pop %v4377
        %4380 = vrot.lane.b32.xlu0 %v4378, 64
        %v4381 = vpop.permute.xlu0 %4380
        %v4383 = vmul.f32 %v4365, %v4381
        %4384 = vmatprep.subr.mxu0 0.0
        %4385 = vmatpush1.msra.mxu0 0.0
        %4386 = vmatprep.subr.mxu0 0.0
        %4387 = vmatpush1.msra.mxu0 0.0
        %4388 = vmatprep.subr.mxu0 0.0
        %4389 = vmatpush1.msra.mxu0 0.0
        %4390 = vmatprep.subr.mxu0 0.0
        %4391 = vmatpush1.msra.mxu0 0.0
        %4392 = vmatprep.subr.mxu0 0.0
        %4393 = vmatpush1.msra.mxu0 0.0
        %4394 = vmatprep.subr.mxu0 0.0
        %4395 = vmatpush1.msra.mxu0 0.0
        %4396 = vmatprep.subr.mxu0 0.0
        %4397 = vmatpush1.msra.mxu0 0.0
        %4398 = vmatprep.subr.mxu0 0.0
        %4399 = vmatpush1.msra.mxu0 0.0
        %4400 = vmatprep.subr.mxu0 0.0
        %4401 = vmatpush1.msra.mxu0 0.0
        %4402 = vmatprep.subr.mxu0 0.0
        %4403 = vmatpush1.msra.mxu0 0.0
        %4404 = vmatprep.subr.mxu0 0.0
        %4405 = vmatpush1.msra.mxu0 0.0
        %4406 = vmatprep.subr.mxu0 0.0
        %4407 = vmatpush1.msra.mxu0 0.0
        %4408 = vmatprep.subr.mxu0 0.0
        %4409 = vmatpush1.msra.mxu0 %v3126
        %4410 = vmatprep.subr.mxu0 0.0
        %4411 = vmatpush1.msra.mxu0 %v3125
        %4412 = vmatprep.subr.mxu0 0.0
        %4413 = vmatpush1.msra.mxu0 %v3124
        %4414 = vmatprep.subr.mxu0 0.0
        %4415 = vmatpush1.msra.mxu0 %v3123
        %4416 = vmatprep.subr.mxu0 0.0
        %4417 = vmatpush2.msra.mxu0 0.0
        %4418 = vmatprep.subr.mxu0 0.0
        %4419 = vmatpush2.msra.mxu0 0.0
        %4420 = vmatprep.subr.mxu0 0.0
        %4421 = vmatpush2.msra.mxu0 0.0
        %4422 = vmatprep.subr.mxu0 0.0
        %4423 = vmatpush2.msra.mxu0 0.0
        %4424 = vmatprep.subr.mxu0 0.0
        %4425 = vmatpush2.msra.mxu0 0.0
        %4426 = vmatprep.subr.mxu0 0.0
        %4427 = vmatpush2.msra.mxu0 0.0
        %4428 = vmatprep.subr.mxu0 0.0
        %4429 = vmatpush2.msra.mxu0 0.0
        %4430 = vmatprep.subr.mxu0 0.0
        %4431 = vmatpush2.msra.mxu0 0.0
        %4432 = vmatprep.subr.mxu0 0.0
        %4433 = vmatpush2.msra.mxu0 0.0
        %4434 = vmatprep.subr.mxu0 0.0
        %4435 = vmatpush2.msra.mxu0 0.0
        %4436 = vmatprep.subr.mxu0 0.0
        %4437 = vmatpush2.msra.mxu0 0.0
        %4438 = vmatprep.subr.mxu0 0.0
        %4439 = vmatpush2.msra.mxu0 0.0
        %4440 = vmatprep.subr.mxu0 0.0
        %4441 = vmatpush2.msra.mxu0 0.0
        %4442 = vmatprep.subr.mxu0 0.0
        %4443 = vmatpush2.msra.mxu0 0.0
        %4444 = vmatprep.subr.mxu0 0.0
        %4445 = vmatpush2.msra.mxu0 0.0
        %4446 = vmatprep.subr.mxu0 0.0
        %4447 = vmatpush2.msra.mxu0 0.0
        %4448 = vmatprep.mubr.f32.mxu0 0.0
        %4449 = vmatmul.mubr.f32.gmra.mxu0 %v4141
        %v4450 = vpop.f32.mrf.mxu0
        %v4451 = vadd.f32 0.0, %v4450
        %v4452 = vpop.f32.mrf.mxu0
        %4453 = vdwg.mxu0
        %4455 = vrot.lane.b32.xlu0 %v4383, 32
        %v4456 = vpop.permute.xlu0 %4455
        %v4457 = vsel %vm727, %v4456, 0
        %4459 = vmatprep.subr.mxu0 0.0
        %4460 = vmatpush1.msra.mxu0 0.0
        %4461 = vmatprep.subr.mxu0 0.0
        %4462 = vmatpush1.msra.mxu0 0.0
        %4463 = vmatprep.subr.mxu0 0.0
        %4464 = vmatpush1.msra.mxu0 0.0
        %4465 = vmatprep.subr.mxu0 0.0
        %4466 = vmatpush1.msra.mxu0 0.0
        %4467 = vmatprep.subr.mxu0 0.0
        %4468 = vmatpush1.msra.mxu0 0.0
        %4469 = vmatprep.subr.mxu0 0.0
        %4470 = vmatpush1.msra.mxu0 0.0
        %4471 = vmatprep.subr.mxu0 0.0
        %4472 = vmatpush1.msra.mxu0 0.0
        %4473 = vmatprep.subr.mxu0 0.0
        %4474 = vmatpush1.msra.mxu0 0.0
        %4475 = vmatprep.subr.mxu0 0.0
        %4476 = vmatpush1.msra.mxu0 0.0
        %4477 = vmatprep.subr.mxu0 0.0
        %4478 = vmatpush1.msra.mxu0 0.0
        %4479 = vmatprep.subr.mxu0 0.0
        %4480 = vmatpush1.msra.mxu0 0.0
        %4481 = vmatprep.subr.mxu0 0.0
        %4482 = vmatpush1.msra.mxu0 0.0
        %4483 = vmatprep.subr.mxu0 0.0
        %4484 = vmatpush1.msra.mxu0 %v3122
        %4485 = vmatprep.subr.mxu0 0.0
        %4486 = vmatpush1.msra.mxu0 %v3121
        %4487 = vmatprep.subr.mxu0 0.0
        %4488 = vmatpush1.msra.mxu0 %v3120
        %4489 = vmatprep.subr.mxu0 0.0
        %4490 = vmatpush1.msra.mxu0 %v3119
        %4491 = vmatprep.subr.mxu0 0.0
        %4492 = vmatpush2.msra.mxu0 0.0
        %4493 = vmatprep.subr.mxu0 0.0
        %4494 = vmatpush2.msra.mxu0 0.0
        %4495 = vmatprep.subr.mxu0 0.0
        %4496 = vmatpush2.msra.mxu0 0.0
        %4497 = vmatprep.subr.mxu0 0.0
        %4498 = vmatpush2.msra.mxu0 0.0
        %4499 = vmatprep.subr.mxu0 0.0
        %4500 = vmatpush2.msra.mxu0 0.0
        %4501 = vmatprep.subr.mxu0 0.0
        %4502 = vmatpush2.msra.mxu0 0.0
        %4503 = vmatprep.subr.mxu0 0.0
        %4504 = vmatpush2.msra.mxu0 0.0
        %4505 = vmatprep.subr.mxu0 0.0
        %4506 = vmatpush2.msra.mxu0 0.0
        %4507 = vmatprep.subr.mxu0 0.0
        %4508 = vmatpush2.msra.mxu0 0.0
        %4509 = vmatprep.subr.mxu0 0.0
        %4510 = vmatpush2.msra.mxu0 0.0
        %4511 = vmatprep.subr.mxu0 0.0
        %4512 = vmatpush2.msra.mxu0 0.0
        %4513 = vmatprep.subr.mxu0 0.0
        %4514 = vmatpush2.msra.mxu0 0.0
        %4515 = vmatprep.subr.mxu0 0.0
        %4516 = vmatpush2.msra.mxu0 0.0
        %4517 = vmatprep.subr.mxu0 0.0
        %4518 = vmatpush2.msra.mxu0 0.0
        %4519 = vmatprep.subr.mxu0 0.0
        %4520 = vmatpush2.msra.mxu0 0.0
        %4521 = vmatprep.subr.mxu0 0.0
        %4522 = vmatpush2.msra.mxu0 0.0
        %4523 = vmatprep.mubr.f32.mxu0 0.0
        %4524 = vmatmul.mubr.f32.gmra.mxu0 %v4457
        %v4525 = vpop.f32.mrf.mxu0
        %v4526 = vadd.f32 %v4451, %v4525
        %v4527 = vpop.f32.mrf.mxu0
        %4528 = vdwg.mxu0
        %v4529 = vadd.f32 %v4526, %v638
        %v4530 = vxor.u32 %v4529, 2147483648
        %v4531 = vmul.f32 %v4530, 1.442695
        %v4532 = vpow.pop %v4531
        %v4533 = vadd.f32 %v4532, 1.0
        %v4534 = vrcp.pop %v4533
        %v4535 = vmul.f32 1.0, %v4534
        %v4536 = vtanh.pop %v4529
        %v4537 = vmul.f32 %v4535, %v4131
        %4539 = vrot.lane.b32.xlu0 %v4536, 64
        %v4540 = vpop.permute.xlu0 %4539
        %v4542 = vmul.f32 %v4535, %v4540
        %4544 = vrot.lane.b32.xlu0 %v4542, 32
        %v4545 = vpop.permute.xlu0 %4544
        %v4547 = vadd.f32 %v4537, %v4545
        %v4548 = vtanh.pop %v4547
        %4550 = vrot.lane.b32.xlu0 %v4548, 64
        %v4551 = vpop.permute.xlu0 %4550
        %v4553 = vmul.f32 %v4535, %v4551
        %4555 = vrot.lane.b32.xlu0 %v4553, 32
        %v4556 = vpop.permute.xlu0 %4555
        %v4557 = vsel %vm727, %v4556, 0
        %4559 = vmatprep.subr.mxu0 0.0
        %4560 = vmatpush1.msra.mxu0 0.0
        %4561 = vmatprep.subr.mxu0 0.0
        %4562 = vmatpush1.msra.mxu0 0.0
        %4563 = vmatprep.subr.mxu0 0.0
        %4564 = vmatpush1.msra.mxu0 0.0
        %4565 = vmatprep.subr.mxu0 0.0
        %4566 = vmatpush1.msra.mxu0 0.0
        %4567 = vmatprep.subr.mxu0 0.0
        %4568 = vmatpush1.msra.mxu0 0.0
        %4569 = vmatprep.subr.mxu0 0.0
        %4570 = vmatpush1.msra.mxu0 0.0
        %4571 = vmatprep.subr.mxu0 0.0
        %4572 = vmatpush1.msra.mxu0 0.0
        %4573 = vmatprep.subr.mxu0 0.0
        %4574 = vmatpush1.msra.mxu0 0.0
        %4575 = vmatprep.subr.mxu0 0.0
        %4576 = vmatpush1.msra.mxu0 0.0
        %4577 = vmatprep.subr.mxu0 0.0
        %4578 = vmatpush1.msra.mxu0 0.0
        %4579 = vmatprep.subr.mxu0 0.0
        %4580 = vmatpush1.msra.mxu0 0.0
        %4581 = vmatprep.subr.mxu0 0.0
        %4582 = vmatpush1.msra.mxu0 0.0
        %4583 = vmatprep.subr.mxu0 0.0
        %4584 = vmatpush1.msra.mxu0 %v3305
        %4585 = vmatprep.subr.mxu0 0.0
        %4586 = vmatpush1.msra.mxu0 %v3304
        %4587 = vmatprep.subr.mxu0 0.0
        %4588 = vmatpush1.msra.mxu0 %v3303
        %4589 = vmatprep.subr.mxu0 0.0
        %4590 = vmatpush1.msra.mxu0 %v3302
        %4591 = vmatprep.subr.mxu0 0.0
        %4592 = vmatpush2.msra.mxu0 0.0
        %4593 = vmatprep.subr.mxu0 0.0
        %4594 = vmatpush2.msra.mxu0 0.0
        %4595 = vmatprep.subr.mxu0 0.0
        %4596 = vmatpush2.msra.mxu0 0.0
        %4597 = vmatprep.subr.mxu0 0.0
        %4598 = vmatpush2.msra.mxu0 0.0
        %4599 = vmatprep.subr.mxu0 0.0
        %4600 = vmatpush2.msra.mxu0 0.0
        %4601 = vmatprep.subr.mxu0 0.0
        %4602 = vmatpush2.msra.mxu0 0.0
        %4603 = vmatprep.subr.mxu0 0.0
        %4604 = vmatpush2.msra.mxu0 0.0
        %4605 = vmatprep.subr.mxu0 0.0
        %4606 = vmatpush2.msra.mxu0 0.0
        %4607 = vmatprep.subr.mxu0 0.0
        %4608 = vmatpush2.msra.mxu0 0.0
        %4609 = vmatprep.subr.mxu0 0.0
        %4610 = vmatpush2.msra.mxu0 0.0
        %4611 = vmatprep.subr.mxu0 0.0
        %4612 = vmatpush2.msra.mxu0 0.0
        %4613 = vmatprep.subr.mxu0 0.0
        %4614 = vmatpush2.msra.mxu0 0.0
        %4615 = vmatprep.subr.mxu0 0.0
        %4616 = vmatpush2.msra.mxu0 0.0
        %4617 = vmatprep.subr.mxu0 0.0
        %4618 = vmatpush2.msra.mxu0 0.0
        %4619 = vmatprep.subr.mxu0 0.0
        %4620 = vmatpush2.msra.mxu0 0.0
        %4621 = vmatprep.subr.mxu0 0.0
        %4622 = vmatpush2.msra.mxu0 0.0
        %4623 = vmatprep.mubr.f32.mxu0 0.0
        %4624 = vmatmul.mubr.f32.gmra.mxu0 %v4557
        %v4625 = vpop.f32.mrf.mxu0
        %v4626 = vadd.f32 %v639, %v4625
        %v4627 = vpop.f32.mrf.mxu0
        %4628 = vdwg.mxu0
        %vm4629 = vcmp.ge.f32.partialorder %v4626, 0.0
        %v4630 = vmul.f32 %v4626, 0.01
        %v4631 = vsel %vm4629, %v4626, %v4630
        %4632 = vmatprep.subr.mxu0 0.0
        %4633 = vmatpush1.msra.mxu0 0.0
        %4634 = vmatprep.subr.mxu0 0.0
        %4635 = vmatpush1.msra.mxu0 0.0
        %4636 = vmatprep.subr.mxu0 0.0
        %4637 = vmatpush1.msra.mxu0 0.0
        %4638 = vmatprep.subr.mxu0 0.0
        %4639 = vmatpush1.msra.mxu0 0.0
        %4640 = vmatprep.subr.mxu0 0.0
        %4641 = vmatpush1.msra.mxu0 0.0
        %4642 = vmatprep.subr.mxu0 0.0
        %4643 = vmatpush1.msra.mxu0 0.0
        %4644 = vmatprep.subr.mxu0 0.0
        %4645 = vmatpush1.msra.mxu0 0.0
        %4646 = vmatprep.subr.mxu0 0.0
        %4647 = vmatpush1.msra.mxu0 0.0
        %4648 = vmatprep.subr.mxu0 0.0
        %4649 = vmatpush1.msra.mxu0 0.0
        %4650 = vmatprep.subr.mxu0 0.0
        %4651 = vmatpush1.msra.mxu0 0.0
        %4652 = vmatprep.subr.mxu0 0.0
        %4653 = vmatpush1.msra.mxu0 0.0
        %4654 = vmatprep.subr.mxu0 0.0
        %4655 = vmatpush1.msra.mxu0 0.0
        %4656 = vmatprep.subr.mxu0 0.0
        %4657 = vmatpush1.msra.mxu0 %v2948
        %4658 = vmatprep.subr.mxu0 0.0
        %4659 = vmatpush1.msra.mxu0 %v2947
        %4660 = vmatprep.subr.mxu0 0.0
        %4661 = vmatpush1.msra.mxu0 %v2946
        %4662 = vmatprep.subr.mxu0 0.0
        %4663 = vmatpush1.msra.mxu0 %v2945
        %4664 = vmatprep.subr.mxu0 0.0
        %4665 = vmatpush2.msra.mxu0 0.0
        %4666 = vmatprep.subr.mxu0 0.0
        %4667 = vmatpush2.msra.mxu0 0.0
        %4668 = vmatprep.subr.mxu0 0.0
        %4669 = vmatpush2.msra.mxu0 0.0
        %4670 = vmatprep.subr.mxu0 0.0
        %4671 = vmatpush2.msra.mxu0 0.0
        %4672 = vmatprep.subr.mxu0 0.0
        %4673 = vmatpush2.msra.mxu0 0.0
        %4674 = vmatprep.subr.mxu0 0.0
        %4675 = vmatpush2.msra.mxu0 0.0
        %4676 = vmatprep.subr.mxu0 0.0
        %4677 = vmatpush2.msra.mxu0 0.0
        %4678 = vmatprep.subr.mxu0 0.0
        %4679 = vmatpush2.msra.mxu0 0.0
        %4680 = vmatprep.subr.mxu0 0.0
        %4681 = vmatpush2.msra.mxu0 0.0
        %4682 = vmatprep.subr.mxu0 0.0
        %4683 = vmatpush2.msra.mxu0 0.0
        %4684 = vmatprep.subr.mxu0 0.0
        %4685 = vmatpush2.msra.mxu0 0.0
        %4686 = vmatprep.subr.mxu0 0.0
        %4687 = vmatpush2.msra.mxu0 0.0
        %4688 = vmatprep.subr.mxu0 0.0
        %4689 = vmatpush2.msra.mxu0 0.0
        %4690 = vmatprep.subr.mxu0 0.0
        %4691 = vmatpush2.msra.mxu0 0.0
        %4692 = vmatprep.subr.mxu0 0.0
        %4693 = vmatpush2.msra.mxu0 0.0
        %4694 = vmatprep.subr.mxu0 0.0
        %4695 = vmatpush2.msra.mxu0 0.0
        %4696 = vmatprep.mubr.f32.mxu0 0.0
        %4697 = vmatmul.mubr.f32.gmra.mxu0 %v4457
        %v4698 = vpop.f32.mrf.mxu0
        %v4699 = vadd.f32 0.0, %v4698
        %v4700 = vpop.f32.mrf.mxu0
        %4701 = vdwg.mxu0
        %v4703 = vsel %vm649, %v4631, 0
        %4705 = vmatprep.subr.mxu0 0.0
        %4706 = vmatpush1.msra.mxu0 0.0
        %4707 = vmatprep.subr.mxu0 0.0
        %4708 = vmatpush1.msra.mxu0 0.0
        %4709 = vmatprep.subr.mxu0 0.0
        %4710 = vmatpush1.msra.mxu0 0.0
        %4711 = vmatprep.subr.mxu0 0.0
        %4712 = vmatpush1.msra.mxu0 0.0
        %4713 = vmatprep.subr.mxu0 0.0
        %4714 = vmatpush1.msra.mxu0 0.0
        %4715 = vmatprep.subr.mxu0 0.0
        %4716 = vmatpush1.msra.mxu0 0.0
        %4717 = vmatprep.subr.mxu0 0.0
        %4718 = vmatpush1.msra.mxu0 0.0
        %4719 = vmatprep.subr.mxu0 0.0
        %4720 = vmatpush1.msra.mxu0 0.0
        %4721 = vmatprep.subr.mxu0 0.0
        %4722 = vmatpush1.msra.mxu0 0.0
        %4723 = vmatprep.subr.mxu0 0.0
        %4724 = vmatpush1.msra.mxu0 0.0
        %4725 = vmatprep.subr.mxu0 0.0
        %4726 = vmatpush1.msra.mxu0 0.0
        %4727 = vmatprep.subr.mxu0 0.0
        %4728 = vmatpush1.msra.mxu0 0.0
        %4729 = vmatprep.subr.mxu0 0.0
        %4730 = vmatpush1.msra.mxu0 0.0
        %4731 = vmatprep.subr.mxu0 0.0
        %4732 = vmatpush1.msra.mxu0 0.0
        %4733 = vmatprep.subr.mxu0 0.0
        %4734 = vmatpush1.msra.mxu0 %v2944
        %4735 = vmatprep.subr.mxu0 0.0
        %4736 = vmatpush1.msra.mxu0 %v2943
        %4737 = vmatprep.subr.mxu0 0.0
        %4738 = vmatpush2.msra.mxu0 0.0
        %4739 = vmatprep.subr.mxu0 0.0
        %4740 = vmatpush2.msra.mxu0 0.0
        %4741 = vmatprep.subr.mxu0 0.0
        %4742 = vmatpush2.msra.mxu0 0.0
        %4743 = vmatprep.subr.mxu0 0.0
        %4744 = vmatpush2.msra.mxu0 0.0
        %4745 = vmatprep.subr.mxu0 0.0
        %4746 = vmatpush2.msra.mxu0 0.0
        %4747 = vmatprep.subr.mxu0 0.0
        %4748 = vmatpush2.msra.mxu0 0.0
        %4749 = vmatprep.subr.mxu0 0.0
        %4750 = vmatpush2.msra.mxu0 0.0
        %4751 = vmatprep.subr.mxu0 0.0
        %4752 = vmatpush2.msra.mxu0 0.0
        %4753 = vmatprep.subr.mxu0 0.0
        %4754 = vmatpush2.msra.mxu0 0.0
        %4755 = vmatprep.subr.mxu0 0.0
        %4756 = vmatpush2.msra.mxu0 0.0
        %4757 = vmatprep.subr.mxu0 0.0
        %4758 = vmatpush2.msra.mxu0 0.0
        %4759 = vmatprep.subr.mxu0 0.0
        %4760 = vmatpush2.msra.mxu0 0.0
        %4761 = vmatprep.subr.mxu0 0.0
        %4762 = vmatpush2.msra.mxu0 0.0
        %4763 = vmatprep.subr.mxu0 0.0
        %4764 = vmatpush2.msra.mxu0 0.0
        %4765 = vmatprep.subr.mxu0 0.0
        %4766 = vmatpush2.msra.mxu0 0.0
        %4767 = vmatprep.subr.mxu0 0.0
        %4768 = vmatpush2.msra.mxu0 0.0
        %4769 = vmatprep.mubr.f32.mxu0 0.0
        %4770 = vmatmul.mubr.f32.gmra.mxu0 %v4703
        %v4771 = vpop.f32.mrf.mxu0
        %v4772 = vadd.f32 %v4699, %v4771
        %v4773 = vpop.f32.mrf.mxu0
        %4774 = vdwg.mxu0
        %v4775 = vadd.f32 %v4772, %v637
        %v4776 = vxor.u32 %v4775, 2147483648
        %v4777 = vmul.f32 %v4776, 1.442695
        %v4778 = vpow.pop %v4777
        %v4779 = vadd.f32 %v4778, 1.0
        %v4780 = vrcp.pop %v4779
        %v4781 = vmul.f32 1.0, %v4780
        %v4782 = vtanh.pop %v4775
        %v4783 = vmul.f32 %v4781, %v4377
        %4785 = vrot.lane.b32.xlu0 %v4782, 64
        %v4786 = vpop.permute.xlu0 %4785
        %v4788 = vmul.f32 %v4781, %v4786
        %4790 = vrot.lane.b32.xlu0 %v4788, 32
        %v4791 = vpop.permute.xlu0 %4790
        %v4793 = vadd.f32 %v4783, %v4791
        %v4794 = vtanh.pop %v4793
        %4796 = vrot.lane.b32.xlu0 %v4794, 64
        %v4797 = vpop.permute.xlu0 %4796
        %v4799 = vmul.f32 %v4781, %v4797
        %4800 = vmatprep.subr.mxu0 0.0
        %4801 = vmatpush1.msra.mxu0 0.0
        %4802 = vmatprep.subr.mxu0 0.0
        %4803 = vmatpush1.msra.mxu0 0.0
        %4804 = vmatprep.subr.mxu0 0.0
        %4805 = vmatpush1.msra.mxu0 0.0
        %4806 = vmatprep.subr.mxu0 0.0
        %4807 = vmatpush1.msra.mxu0 0.0
        %4808 = vmatprep.subr.mxu0 0.0
        %4809 = vmatpush1.msra.mxu0 0.0
        %4810 = vmatprep.subr.mxu0 0.0
        %4811 = vmatpush1.msra.mxu0 0.0
        %4812 = vmatprep.subr.mxu0 0.0
        %4813 = vmatpush1.msra.mxu0 0.0
        %4814 = vmatprep.subr.mxu0 0.0
        %4815 = vmatpush1.msra.mxu0 0.0
        %4816 = vmatprep.subr.mxu0 0.0
        %4817 = vmatpush1.msra.mxu0 0.0
        %4818 = vmatprep.subr.mxu0 0.0
        %4819 = vmatpush1.msra.mxu0 0.0
        %4820 = vmatprep.subr.mxu0 0.0
        %4821 = vmatpush1.msra.mxu0 0.0
        %4822 = vmatprep.subr.mxu0 0.0
        %4823 = vmatpush1.msra.mxu0 0.0
        %4824 = vmatprep.subr.mxu0 0.0
        %4825 = vmatpush1.msra.mxu0 %v3126
        %4826 = vmatprep.subr.mxu0 0.0
        %4827 = vmatpush1.msra.mxu0 %v3125
        %4828 = vmatprep.subr.mxu0 0.0
        %4829 = vmatpush1.msra.mxu0 %v3124
        %4830 = vmatprep.subr.mxu0 0.0
        %4831 = vmatpush1.msra.mxu0 %v3123
        %4832 = vmatprep.subr.mxu0 0.0
        %4833 = vmatpush2.msra.mxu0 0.0
        %4834 = vmatprep.subr.mxu0 0.0
        %4835 = vmatpush2.msra.mxu0 0.0
        %4836 = vmatprep.subr.mxu0 0.0
        %4837 = vmatpush2.msra.mxu0 0.0
        %4838 = vmatprep.subr.mxu0 0.0
        %4839 = vmatpush2.msra.mxu0 0.0
        %4840 = vmatprep.subr.mxu0 0.0
        %4841 = vmatpush2.msra.mxu0 0.0
        %4842 = vmatprep.subr.mxu0 0.0
        %4843 = vmatpush2.msra.mxu0 0.0
        %4844 = vmatprep.subr.mxu0 0.0
        %4845 = vmatpush2.msra.mxu0 0.0
        %4846 = vmatprep.subr.mxu0 0.0
        %4847 = vmatpush2.msra.mxu0 0.0
        %4848 = vmatprep.subr.mxu0 0.0
        %4849 = vmatpush2.msra.mxu0 0.0
        %4850 = vmatprep.subr.mxu0 0.0
        %4851 = vmatpush2.msra.mxu0 0.0
        %4852 = vmatprep.subr.mxu0 0.0
        %4853 = vmatpush2.msra.mxu0 0.0
        %4854 = vmatprep.subr.mxu0 0.0
        %4855 = vmatpush2.msra.mxu0 0.0
        %4856 = vmatprep.subr.mxu0 0.0
        %4857 = vmatpush2.msra.mxu0 0.0
        %4858 = vmatprep.subr.mxu0 0.0
        %4859 = vmatpush2.msra.mxu0 0.0
        %4860 = vmatprep.subr.mxu0 0.0
        %4861 = vmatpush2.msra.mxu0 0.0
        %4862 = vmatprep.subr.mxu0 0.0
        %4863 = vmatpush2.msra.mxu0 0.0
        %4864 = vmatprep.mubr.f32.mxu0 0.0
        %4865 = vmatmul.mubr.f32.gmra.mxu0 %v4557
        %v4866 = vpop.f32.mrf.mxu0
        %v4867 = vadd.f32 0.0, %v4866
        %v4868 = vpop.f32.mrf.mxu0
        %4869 = vdwg.mxu0
        %4871 = vrot.lane.b32.xlu0 %v4799, 32
        %v4872 = vpop.permute.xlu0 %4871
        %v4873 = vsel %vm727, %v4872, 0
        %4875 = vmatprep.subr.mxu0 0.0
        %4876 = vmatpush1.msra.mxu0 0.0
        %4877 = vmatprep.subr.mxu0 0.0
        %4878 = vmatpush1.msra.mxu0 0.0
        %4879 = vmatprep.subr.mxu0 0.0
        %4880 = vmatpush1.msra.mxu0 0.0
        %4881 = vmatprep.subr.mxu0 0.0
        %4882 = vmatpush1.msra.mxu0 0.0
        %4883 = vmatprep.subr.mxu0 0.0
        %4884 = vmatpush1.msra.mxu0 0.0
        %4885 = vmatprep.subr.mxu0 0.0
        %4886 = vmatpush1.msra.mxu0 0.0
        %4887 = vmatprep.subr.mxu0 0.0
        %4888 = vmatpush1.msra.mxu0 0.0
        %4889 = vmatprep.subr.mxu0 0.0
        %4890 = vmatpush1.msra.mxu0 0.0
        %4891 = vmatprep.subr.mxu0 0.0
        %4892 = vmatpush1.msra.mxu0 0.0
        %4893 = vmatprep.subr.mxu0 0.0
        %4894 = vmatpush1.msra.mxu0 0.0
        %4895 = vmatprep.subr.mxu0 0.0
        %4896 = vmatpush1.msra.mxu0 0.0
        %4897 = vmatprep.subr.mxu0 0.0
        %4898 = vmatpush1.msra.mxu0 0.0
        %4899 = vmatprep.subr.mxu0 0.0
        %4900 = vmatpush1.msra.mxu0 %v3122
        %4901 = vmatprep.subr.mxu0 0.0
        %4902 = vmatpush1.msra.mxu0 %v3121
        %4903 = vmatprep.subr.mxu0 0.0
        %4904 = vmatpush1.msra.mxu0 %v3120
        %4905 = vmatprep.subr.mxu0 0.0
        %4906 = vmatpush1.msra.mxu0 %v3119
        %4907 = vmatprep.subr.mxu0 0.0
        %4908 = vmatpush2.msra.mxu0 0.0
        %4909 = vmatprep.subr.mxu0 0.0
        %4910 = vmatpush2.msra.mxu0 0.0
        %4911 = vmatprep.subr.mxu0 0.0
        %4912 = vmatpush2.msra.mxu0 0.0
        %4913 = vmatprep.subr.mxu0 0.0
        %4914 = vmatpush2.msra.mxu0 0.0
        %4915 = vmatprep.subr.mxu0 0.0
        %4916 = vmatpush2.msra.mxu0 0.0
        %4917 = vmatprep.subr.mxu0 0.0
        %4918 = vmatpush2.msra.mxu0 0.0
        %4919 = vmatprep.subr.mxu0 0.0
        %4920 = vmatpush2.msra.mxu0 0.0
        %4921 = vmatprep.subr.mxu0 0.0
        %4922 = vmatpush2.msra.mxu0 0.0
        %4923 = vmatprep.subr.mxu0 0.0
        %4924 = vmatpush2.msra.mxu0 0.0
        %4925 = vmatprep.subr.mxu0 0.0
        %4926 = vmatpush2.msra.mxu0 0.0
        %4927 = vmatprep.subr.mxu0 0.0
        %4928 = vmatpush2.msra.mxu0 0.0
        %4929 = vmatprep.subr.mxu0 0.0
        %4930 = vmatpush2.msra.mxu0 0.0
        %4931 = vmatprep.subr.mxu0 0.0
        %4932 = vmatpush2.msra.mxu0 0.0
        %4933 = vmatprep.subr.mxu0 0.0
        %4934 = vmatpush2.msra.mxu0 0.0
        %4935 = vmatprep.subr.mxu0 0.0
        %4936 = vmatpush2.msra.mxu0 0.0
        %4937 = vmatprep.subr.mxu0 0.0
        %4938 = vmatpush2.msra.mxu0 0.0
        %4939 = vmatprep.mubr.f32.mxu0 0.0
        %4940 = vmatmul.mubr.f32.gmra.mxu0 %v4873
        %v4941 = vpop.f32.mrf.mxu0
        %v4942 = vadd.f32 %v4867, %v4941
        %v4943 = vpop.f32.mrf.mxu0
        %4944 = vdwg.mxu0
        %v4945 = vadd.f32 %v4942, %v638
        %v4946 = vxor.u32 %v4945, 2147483648
        %v4947 = vmul.f32 %v4946, 1.442695
        %v4948 = vpow.pop %v4947
        %v4949 = vadd.f32 %v4948, 1.0
        %v4950 = vrcp.pop %v4949
        %v4951 = vmul.f32 1.0, %v4950
        %v4952 = vtanh.pop %v4945
        %v4953 = vmul.f32 %v4951, %v4547
        %4955 = vrot.lane.b32.xlu0 %v4952, 64
        %v4956 = vpop.permute.xlu0 %4955
        %v4958 = vmul.f32 %v4951, %v4956
        %4960 = vrot.lane.b32.xlu0 %v4958, 32
        %v4961 = vpop.permute.xlu0 %4960
        %v4963 = vadd.f32 %v4953, %v4961
        %v4964 = vtanh.pop %v4963
        %4966 = vrot.lane.b32.xlu0 %v4964, 64
        %v4967 = vpop.permute.xlu0 %4966
        %v4969 = vmul.f32 %v4951, %v4967
        %4971 = vrot.lane.b32.xlu0 %v4969, 32
        %v4972 = vpop.permute.xlu0 %4971
        %v4973 = vsel %vm727, %v4972, 0
        %4975 = vmatprep.subr.mxu0 0.0
        %4976 = vmatpush1.msra.mxu0 0.0
        %4977 = vmatprep.subr.mxu0 0.0
        %4978 = vmatpush1.msra.mxu0 0.0
        %4979 = vmatprep.subr.mxu0 0.0
        %4980 = vmatpush1.msra.mxu0 0.0
        %4981 = vmatprep.subr.mxu0 0.0
        %4982 = vmatpush1.msra.mxu0 0.0
        %4983 = vmatprep.subr.mxu0 0.0
        %4984 = vmatpush1.msra.mxu0 0.0
        %4985 = vmatprep.subr.mxu0 0.0
        %4986 = vmatpush1.msra.mxu0 0.0
        %4987 = vmatprep.subr.mxu0 0.0
        %4988 = vmatpush1.msra.mxu0 0.0
        %4989 = vmatprep.subr.mxu0 0.0
        %4990 = vmatpush1.msra.mxu0 0.0
        %4991 = vmatprep.subr.mxu0 0.0
        %4992 = vmatpush1.msra.mxu0 0.0
        %4993 = vmatprep.subr.mxu0 0.0
        %4994 = vmatpush1.msra.mxu0 0.0
        %4995 = vmatprep.subr.mxu0 0.0
        %4996 = vmatpush1.msra.mxu0 0.0
        %4997 = vmatprep.subr.mxu0 0.0
        %4998 = vmatpush1.msra.mxu0 0.0
        %4999 = vmatprep.subr.mxu0 0.0
        %5000 = vmatpush1.msra.mxu0 %v3305
        %5001 = vmatprep.subr.mxu0 0.0
        %5002 = vmatpush1.msra.mxu0 %v3304
        %5003 = vmatprep.subr.mxu0 0.0
        %5004 = vmatpush1.msra.mxu0 %v3303
        %5005 = vmatprep.subr.mxu0 0.0
        %5006 = vmatpush1.msra.mxu0 %v3302
        %5007 = vmatprep.subr.mxu0 0.0
        %5008 = vmatpush2.msra.mxu0 0.0
        %5009 = vmatprep.subr.mxu0 0.0
        %5010 = vmatpush2.msra.mxu0 0.0
        %5011 = vmatprep.subr.mxu0 0.0
        %5012 = vmatpush2.msra.mxu0 0.0
        %5013 = vmatprep.subr.mxu0 0.0
        %5014 = vmatpush2.msra.mxu0 0.0
        %5015 = vmatprep.subr.mxu0 0.0
        %5016 = vmatpush2.msra.mxu0 0.0
        %5017 = vmatprep.subr.mxu0 0.0
        %5018 = vmatpush2.msra.mxu0 0.0
        %5019 = vmatprep.subr.mxu0 0.0
        %5020 = vmatpush2.msra.mxu0 0.0
        %5021 = vmatprep.subr.mxu0 0.0
        %5022 = vmatpush2.msra.mxu0 0.0
        %5023 = vmatprep.subr.mxu0 0.0
        %5024 = vmatpush2.msra.mxu0 0.0
        %5025 = vmatprep.subr.mxu0 0.0
        %5026 = vmatpush2.msra.mxu0 0.0
        %5027 = vmatprep.subr.mxu0 0.0
        %5028 = vmatpush2.msra.mxu0 0.0
        %5029 = vmatprep.subr.mxu0 0.0
        %5030 = vmatpush2.msra.mxu0 0.0
        %5031 = vmatprep.subr.mxu0 0.0
        %5032 = vmatpush2.msra.mxu0 0.0
        %5033 = vmatprep.subr.mxu0 0.0
        %5034 = vmatpush2.msra.mxu0 0.0
        %5035 = vmatprep.subr.mxu0 0.0
        %5036 = vmatpush2.msra.mxu0 0.0
        %5037 = vmatprep.subr.mxu0 0.0
        %5038 = vmatpush2.msra.mxu0 0.0
        %5039 = vmatprep.mubr.f32.mxu0 0.0
        %5040 = vmatmul.mubr.f32.gmra.mxu0 %v4973
        %v5041 = vpop.f32.mrf.mxu0
        %v5042 = vadd.f32 %v639, %v5041
        %v5043 = vpop.f32.mrf.mxu0
        %5044 = vdwg.mxu0
        %vm5045 = vcmp.ge.f32.partialorder %v5042, 0.0
        %v5046 = vmul.f32 %v5042, 0.01
        %v5047 = vsel %vm5045, %v5042, %v5046
        %5048 = vmatprep.subr.mxu0 0.0
        %5049 = vmatpush1.msra.mxu0 0.0
        %5050 = vmatprep.subr.mxu0 0.0
        %5051 = vmatpush1.msra.mxu0 0.0
        %5052 = vmatprep.subr.mxu0 0.0
        %5053 = vmatpush1.msra.mxu0 0.0
        %5054 = vmatprep.subr.mxu0 0.0
        %5055 = vmatpush1.msra.mxu0 0.0
        %5056 = vmatprep.subr.mxu0 0.0
        %5057 = vmatpush1.msra.mxu0 0.0
        %5058 = vmatprep.subr.mxu0 0.0
        %5059 = vmatpush1.msra.mxu0 0.0
        %5060 = vmatprep.subr.mxu0 0.0
        %5061 = vmatpush1.msra.mxu0 0.0
        %5062 = vmatprep.subr.mxu0 0.0
        %5063 = vmatpush1.msra.mxu0 0.0
        %5064 = vmatprep.subr.mxu0 0.0
        %5065 = vmatpush1.msra.mxu0 0.0
        %5066 = vmatprep.subr.mxu0 0.0
        %5067 = vmatpush1.msra.mxu0 0.0
        %5068 = vmatprep.subr.mxu0 0.0
        %5069 = vmatpush1.msra.mxu0 0.0
        %5070 = vmatprep.subr.mxu0 0.0
        %5071 = vmatpush1.msra.mxu0 0.0
        %5072 = vmatprep.subr.mxu0 0.0
        %5073 = vmatpush1.msra.mxu0 %v2948
        %5074 = vmatprep.subr.mxu0 0.0
        %5075 = vmatpush1.msra.mxu0 %v2947
        %5076 = vmatprep.subr.mxu0 0.0
        %5077 = vmatpush1.msra.mxu0 %v2946
        %5078 = vmatprep.subr.mxu0 0.0
        %5079 = vmatpush1.msra.mxu0 %v2945
        %5080 = vmatprep.subr.mxu0 0.0
        %5081 = vmatpush2.msra.mxu0 0.0
        %5082 = vmatprep.subr.mxu0 0.0
        %5083 = vmatpush2.msra.mxu0 0.0
        %5084 = vmatprep.subr.mxu0 0.0
        %5085 = vmatpush2.msra.mxu0 0.0
        %5086 = vmatprep.subr.mxu0 0.0
        %5087 = vmatpush2.msra.mxu0 0.0
        %5088 = vmatprep.subr.mxu0 0.0
        %5089 = vmatpush2.msra.mxu0 0.0
        %5090 = vmatprep.subr.mxu0 0.0
        %5091 = vmatpush2.msra.mxu0 0.0
        %5092 = vmatprep.subr.mxu0 0.0
        %5093 = vmatpush2.msra.mxu0 0.0
        %5094 = vmatprep.subr.mxu0 0.0
        %5095 = vmatpush2.msra.mxu0 0.0
        %5096 = vmatprep.subr.mxu0 0.0
        %5097 = vmatpush2.msra.mxu0 0.0
        %5098 = vmatprep.subr.mxu0 0.0
        %5099 = vmatpush2.msra.mxu0 0.0
        %5100 = vmatprep.subr.mxu0 0.0
        %5101 = vmatpush2.msra.mxu0 0.0
        %5102 = vmatprep.subr.mxu0 0.0
        %5103 = vmatpush2.msra.mxu0 0.0
        %5104 = vmatprep.subr.mxu0 0.0
        %5105 = vmatpush2.msra.mxu0 0.0
        %5106 = vmatprep.subr.mxu0 0.0
        %5107 = vmatpush2.msra.mxu0 0.0
        %5108 = vmatprep.subr.mxu0 0.0
        %5109 = vmatpush2.msra.mxu0 0.0
        %5110 = vmatprep.subr.mxu0 0.0
        %5111 = vmatpush2.msra.mxu0 0.0
        %5112 = vmatprep.mubr.f32.mxu0 0.0
        %5113 = vmatmul.mubr.f32.gmra.mxu0 %v4873
        %v5114 = vpop.f32.mrf.mxu0
        %v5115 = vadd.f32 0.0, %v5114
        %v5116 = vpop.f32.mrf.mxu0
        %5117 = vdwg.mxu0
        %v5119 = vsel %vm649, %v5047, 0
        %5121 = vmatprep.subr.mxu0 0.0
        %5122 = vmatpush1.msra.mxu0 0.0
        %5123 = vmatprep.subr.mxu0 0.0
        %5124 = vmatpush1.msra.mxu0 0.0
        %5125 = vmatprep.subr.mxu0 0.0
        %5126 = vmatpush1.msra.mxu0 0.0
        %5127 = vmatprep.subr.mxu0 0.0
        %5128 = vmatpush1.msra.mxu0 0.0
        %5129 = vmatprep.subr.mxu0 0.0
        %5130 = vmatpush1.msra.mxu0 0.0
        %5131 = vmatprep.subr.mxu0 0.0
        %5132 = vmatpush1.msra.mxu0 0.0
        %5133 = vmatprep.subr.mxu0 0.0
        %5134 = vmatpush1.msra.mxu0 0.0
        %5135 = vmatprep.subr.mxu0 0.0
        %5136 = vmatpush1.msra.mxu0 0.0
        %5137 = vmatprep.subr.mxu0 0.0
        %5138 = vmatpush1.msra.mxu0 0.0
        %5139 = vmatprep.subr.mxu0 0.0
        %5140 = vmatpush1.msra.mxu0 0.0
        %5141 = vmatprep.subr.mxu0 0.0
        %5142 = vmatpush1.msra.mxu0 0.0
        %5143 = vmatprep.subr.mxu0 0.0
        %5144 = vmatpush1.msra.mxu0 0.0
        %5145 = vmatprep.subr.mxu0 0.0
        %5146 = vmatpush1.msra.mxu0 0.0
        %5147 = vmatprep.subr.mxu0 0.0
        %5148 = vmatpush1.msra.mxu0 0.0
        %5149 = vmatprep.subr.mxu0 0.0
        %5150 = vmatpush1.msra.mxu0 %v2944
        %5151 = vmatprep.subr.mxu0 0.0
        %5152 = vmatpush1.msra.mxu0 %v2943
        %5153 = vmatprep.subr.mxu0 0.0
        %5154 = vmatpush2.msra.mxu0 0.0
        %5155 = vmatprep.subr.mxu0 0.0
        %5156 = vmatpush2.msra.mxu0 0.0
        %5157 = vmatprep.subr.mxu0 0.0
        %5158 = vmatpush2.msra.mxu0 0.0
        %5159 = vmatprep.subr.mxu0 0.0
        %5160 = vmatpush2.msra.mxu0 0.0
        %5161 = vmatprep.subr.mxu0 0.0
        %5162 = vmatpush2.msra.mxu0 0.0
        %5163 = vmatprep.subr.mxu0 0.0
        %5164 = vmatpush2.msra.mxu0 0.0
        %5165 = vmatprep.subr.mxu0 0.0
        %5166 = vmatpush2.msra.mxu0 0.0
        %5167 = vmatprep.subr.mxu0 0.0
        %5168 = vmatpush2.msra.mxu0 0.0
        %5169 = vmatprep.subr.mxu0 0.0
        %5170 = vmatpush2.msra.mxu0 0.0
        %5171 = vmatprep.subr.mxu0 0.0
        %5172 = vmatpush2.msra.mxu0 0.0
        %5173 = vmatprep.subr.mxu0 0.0
        %5174 = vmatpush2.msra.mxu0 0.0
        %5175 = vmatprep.subr.mxu0 0.0
        %5176 = vmatpush2.msra.mxu0 0.0
        %5177 = vmatprep.subr.mxu0 0.0
        %5178 = vmatpush2.msra.mxu0 0.0
        %5179 = vmatprep.subr.mxu0 0.0
        %5180 = vmatpush2.msra.mxu0 0.0
        %5181 = vmatprep.subr.mxu0 0.0
        %5182 = vmatpush2.msra.mxu0 0.0
        %5183 = vmatprep.subr.mxu0 0.0
        %5184 = vmatpush2.msra.mxu0 0.0
        %5185 = vmatprep.mubr.f32.mxu0 0.0
        %5186 = vmatmul.mubr.f32.gmra.mxu0 %v5119
        %v5187 = vpop.f32.mrf.mxu0
        %v5188 = vadd.f32 %v5115, %v5187
        %v5189 = vpop.f32.mrf.mxu0
        %5190 = vdwg.mxu0
        %v5191 = vadd.f32 %v5188, %v637
        %v5192 = vxor.u32 %v5191, 2147483648
        %v5193 = vmul.f32 %v5192, 1.442695
        %v5194 = vpow.pop %v5193
        %v5195 = vadd.f32 %v5194, 1.0
        %v5196 = vrcp.pop %v5195
        %v5197 = vmul.f32 1.0, %v5196
        %v5198 = vtanh.pop %v5191
        %v5199 = vmul.f32 %v5197, %v4793
        %5201 = vrot.lane.b32.xlu0 %v5198, 64
        %v5202 = vpop.permute.xlu0 %5201
        %v5204 = vmul.f32 %v5197, %v5202
        %5206 = vrot.lane.b32.xlu0 %v5204, 32
        %v5207 = vpop.permute.xlu0 %5206
        %v5209 = vadd.f32 %v5199, %v5207
        %v5210 = vtanh.pop %v5209
        %5212 = vrot.lane.b32.xlu0 %v5210, 64
        %v5213 = vpop.permute.xlu0 %5212
        %v5215 = vmul.f32 %v5197, %v5213
        %5216 = vmatprep.subr.mxu0 0.0
        %5217 = vmatpush1.msra.mxu0 0.0
        %5218 = vmatprep.subr.mxu0 0.0
        %5219 = vmatpush1.msra.mxu0 0.0
        %5220 = vmatprep.subr.mxu0 0.0
        %5221 = vmatpush1.msra.mxu0 0.0
        %5222 = vmatprep.subr.mxu0 0.0
        %5223 = vmatpush1.msra.mxu0 0.0
        %5224 = vmatprep.subr.mxu0 0.0
        %5225 = vmatpush1.msra.mxu0 0.0
        %5226 = vmatprep.subr.mxu0 0.0
        %5227 = vmatpush1.msra.mxu0 0.0
        %5228 = vmatprep.subr.mxu0 0.0
        %5229 = vmatpush1.msra.mxu0 0.0
        %5230 = vmatprep.subr.mxu0 0.0
        %5231 = vmatpush1.msra.mxu0 0.0
        %5232 = vmatprep.subr.mxu0 0.0
        %5233 = vmatpush1.msra.mxu0 0.0
        %5234 = vmatprep.subr.mxu0 0.0
        %5235 = vmatpush1.msra.mxu0 0.0
        %5236 = vmatprep.subr.mxu0 0.0
        %5237 = vmatpush1.msra.mxu0 0.0
        %5238 = vmatprep.subr.mxu0 0.0
        %5239 = vmatpush1.msra.mxu0 0.0
        %5240 = vmatprep.subr.mxu0 0.0
        %5241 = vmatpush1.msra.mxu0 %v3126
        %5242 = vmatprep.subr.mxu0 0.0
        %5243 = vmatpush1.msra.mxu0 %v3125
        %5244 = vmatprep.subr.mxu0 0.0
        %5245 = vmatpush1.msra.mxu0 %v3124
        %5246 = vmatprep.subr.mxu0 0.0
        %5247 = vmatpush1.msra.mxu0 %v3123
        %5248 = vmatprep.subr.mxu0 0.0
        %5249 = vmatpush2.msra.mxu0 0.0
        %5250 = vmatprep.subr.mxu0 0.0
        %5251 = vmatpush2.msra.mxu0 0.0
        %5252 = vmatprep.subr.mxu0 0.0
        %5253 = vmatpush2.msra.mxu0 0.0
        %5254 = vmatprep.subr.mxu0 0.0
        %5255 = vmatpush2.msra.mxu0 0.0
        %5256 = vmatprep.subr.mxu0 0.0
        %5257 = vmatpush2.msra.mxu0 0.0
        %5258 = vmatprep.subr.mxu0 0.0
        %5259 = vmatpush2.msra.mxu0 0.0
        %5260 = vmatprep.subr.mxu0 0.0
        %5261 = vmatpush2.msra.mxu0 0.0
        %5262 = vmatprep.subr.mxu0 0.0
        %5263 = vmatpush2.msra.mxu0 0.0
        %5264 = vmatprep.subr.mxu0 0.0
        %5265 = vmatpush2.msra.mxu0 0.0
        %5266 = vmatprep.subr.mxu0 0.0
        %5267 = vmatpush2.msra.mxu0 0.0
        %5268 = vmatprep.subr.mxu0 0.0
        %5269 = vmatpush2.msra.mxu0 0.0
        %5270 = vmatprep.subr.mxu0 0.0
        %5271 = vmatpush2.msra.mxu0 0.0
        %5272 = vmatprep.subr.mxu0 0.0
        %5273 = vmatpush2.msra.mxu0 0.0
        %5274 = vmatprep.subr.mxu0 0.0
        %5275 = vmatpush2.msra.mxu0 0.0
        %5276 = vmatprep.subr.mxu0 0.0
        %5277 = vmatpush2.msra.mxu0 0.0
        %5278 = vmatprep.subr.mxu0 0.0
        %5279 = vmatpush2.msra.mxu0 0.0
        %5280 = vmatprep.mubr.f32.mxu0 0.0
        %5281 = vmatmul.mubr.f32.gmra.mxu0 %v4973
        %v5282 = vpop.f32.mrf.mxu0
        %v5283 = vadd.f32 0.0, %v5282
        %v5284 = vpop.f32.mrf.mxu0
        %5285 = vdwg.mxu0
        %5287 = vrot.lane.b32.xlu0 %v5215, 32
        %v5288 = vpop.permute.xlu0 %5287
        %v5289 = vsel %vm727, %v5288, 0
        %5291 = vmatprep.subr.mxu0 0.0
        %5292 = vmatpush1.msra.mxu0 0.0
        %5293 = vmatprep.subr.mxu0 0.0
        %5294 = vmatpush1.msra.mxu0 0.0
        %5295 = vmatprep.subr.mxu0 0.0
        %5296 = vmatpush1.msra.mxu0 0.0
        %5297 = vmatprep.subr.mxu0 0.0
        %5298 = vmatpush1.msra.mxu0 0.0
        %5299 = vmatprep.subr.mxu0 0.0
        %5300 = vmatpush1.msra.mxu0 0.0
        %5301 = vmatprep.subr.mxu0 0.0
        %5302 = vmatpush1.msra.mxu0 0.0
        %5303 = vmatprep.subr.mxu0 0.0
        %5304 = vmatpush1.msra.mxu0 0.0
        %5305 = vmatprep.subr.mxu0 0.0
        %5306 = vmatpush1.msra.mxu0 0.0
        %5307 = vmatprep.subr.mxu0 0.0
        %5308 = vmatpush1.msra.mxu0 0.0
        %5309 = vmatprep.subr.mxu0 0.0
        %5310 = vmatpush1.msra.mxu0 0.0
        %5311 = vmatprep.subr.mxu0 0.0
        %5312 = vmatpush1.msra.mxu0 0.0
        %5313 = vmatprep.subr.mxu0 0.0
        %5314 = vmatpush1.msra.mxu0 0.0
        %5315 = vmatprep.subr.mxu0 0.0
        %5316 = vmatpush1.msra.mxu0 %v3122
        %5317 = vmatprep.subr.mxu0 0.0
        %5318 = vmatpush1.msra.mxu0 %v3121
        %5319 = vmatprep.subr.mxu0 0.0
        %5320 = vmatpush1.msra.mxu0 %v3120
        %5321 = vmatprep.subr.mxu0 0.0
        %5322 = vmatpush1.msra.mxu0 %v3119
        %5323 = vmatprep.subr.mxu0 0.0
        %5324 = vmatpush2.msra.mxu0 0.0
        %5325 = vmatprep.subr.mxu0 0.0
        %5326 = vmatpush2.msra.mxu0 0.0
        %5327 = vmatprep.subr.mxu0 0.0
        %5328 = vmatpush2.msra.mxu0 0.0
        %5329 = vmatprep.subr.mxu0 0.0
        %5330 = vmatpush2.msra.mxu0 0.0
        %5331 = vmatprep.subr.mxu0 0.0
        %5332 = vmatpush2.msra.mxu0 0.0
        %5333 = vmatprep.subr.mxu0 0.0
        %5334 = vmatpush2.msra.mxu0 0.0
        %5335 = vmatprep.subr.mxu0 0.0
        %5336 = vmatpush2.msra.mxu0 0.0
        %5337 = vmatprep.subr.mxu0 0.0
        %5338 = vmatpush2.msra.mxu0 0.0
        %5339 = vmatprep.subr.mxu0 0.0
        %5340 = vmatpush2.msra.mxu0 0.0
        %5341 = vmatprep.subr.mxu0 0.0
        %5342 = vmatpush2.msra.mxu0 0.0
        %5343 = vmatprep.subr.mxu0 0.0
        %5344 = vmatpush2.msra.mxu0 0.0
        %5345 = vmatprep.subr.mxu0 0.0
        %5346 = vmatpush2.msra.mxu0 0.0
        %5347 = vmatprep.subr.mxu0 0.0
        %5348 = vmatpush2.msra.mxu0 0.0
        %5349 = vmatprep.subr.mxu0 0.0
        %5350 = vmatpush2.msra.mxu0 0.0
        %5351 = vmatprep.subr.mxu0 0.0
        %5352 = vmatpush2.msra.mxu0 0.0
        %5353 = vmatprep.subr.mxu0 0.0
        %5354 = vmatpush2.msra.mxu0 0.0
        %5355 = vmatprep.mubr.f32.mxu0 0.0
        %5356 = vmatmul.mubr.f32.gmra.mxu0 %v5289
        %v5357 = vpop.f32.mrf.mxu0
        %v5358 = vadd.f32 %v5283, %v5357
        %v5359 = vpop.f32.mrf.mxu0
        %5360 = vdwg.mxu0
        %v5361 = vadd.f32 %v5358, %v638
        %v5362 = vxor.u32 %v5361, 2147483648
        %v5363 = vmul.f32 %v5362, 1.442695
        %v5364 = vpow.pop %v5363
        %v5365 = vadd.f32 %v5364, 1.0
        %v5366 = vrcp.pop %v5365
        %v5367 = vmul.f32 1.0, %v5366
        %v5368 = vtanh.pop %v5361
        %v5369 = vmul.f32 %v5367, %v4963
        %5371 = vrot.lane.b32.xlu0 %v5368, 64
        %v5372 = vpop.permute.xlu0 %5371
        %v5374 = vmul.f32 %v5367, %v5372
        %5376 = vrot.lane.b32.xlu0 %v5374, 32
        %v5377 = vpop.permute.xlu0 %5376
        %v5379 = vadd.f32 %v5369, %v5377
        %v5380 = vtanh.pop %v5379
        %5382 = vrot.lane.b32.xlu0 %v5380, 64
        %v5383 = vpop.permute.xlu0 %5382
        %v5385 = vmul.f32 %v5367, %v5383
        %5387 = vrot.lane.b32.xlu0 %v5385, 32
        %v5388 = vpop.permute.xlu0 %5387
        %v5389 = vsel %vm727, %v5388, 0
        %5391 = vmatprep.subr.mxu0 0.0
        %5392 = vmatpush1.msra.mxu0 0.0
        %5393 = vmatprep.subr.mxu0 0.0
        %5394 = vmatpush1.msra.mxu0 0.0
        %5395 = vmatprep.subr.mxu0 0.0
        %5396 = vmatpush1.msra.mxu0 0.0
        %5397 = vmatprep.subr.mxu0 0.0
        %5398 = vmatpush1.msra.mxu0 0.0
        %5399 = vmatprep.subr.mxu0 0.0
        %5400 = vmatpush1.msra.mxu0 0.0
        %5401 = vmatprep.subr.mxu0 0.0
        %5402 = vmatpush1.msra.mxu0 0.0
        %5403 = vmatprep.subr.mxu0 0.0
        %5404 = vmatpush1.msra.mxu0 0.0
        %5405 = vmatprep.subr.mxu0 0.0
        %5406 = vmatpush1.msra.mxu0 0.0
        %5407 = vmatprep.subr.mxu0 0.0
        %5408 = vmatpush1.msra.mxu0 0.0
        %5409 = vmatprep.subr.mxu0 0.0
        %5410 = vmatpush1.msra.mxu0 0.0
        %5411 = vmatprep.subr.mxu0 0.0
        %5412 = vmatpush1.msra.mxu0 0.0
        %5413 = vmatprep.subr.mxu0 0.0
        %5414 = vmatpush1.msra.mxu0 0.0
        %5415 = vmatprep.subr.mxu0 0.0
        %5416 = vmatpush1.msra.mxu0 %v3305
        %5417 = vmatprep.subr.mxu0 0.0
        %5418 = vmatpush1.msra.mxu0 %v3304
        %5419 = vmatprep.subr.mxu0 0.0
        %5420 = vmatpush1.msra.mxu0 %v3303
        %5421 = vmatprep.subr.mxu0 0.0
        %5422 = vmatpush1.msra.mxu0 %v3302
        %5423 = vmatprep.subr.mxu0 0.0
        %5424 = vmatpush2.msra.mxu0 0.0
        %5425 = vmatprep.subr.mxu0 0.0
        %5426 = vmatpush2.msra.mxu0 0.0
        %5427 = vmatprep.subr.mxu0 0.0
        %5428 = vmatpush2.msra.mxu0 0.0
        %5429 = vmatprep.subr.mxu0 0.0
        %5430 = vmatpush2.msra.mxu0 0.0
        %5431 = vmatprep.subr.mxu0 0.0
        %5432 = vmatpush2.msra.mxu0 0.0
        %5433 = vmatprep.subr.mxu0 0.0
        %5434 = vmatpush2.msra.mxu0 0.0
        %5435 = vmatprep.subr.mxu0 0.0
        %5436 = vmatpush2.msra.mxu0 0.0
        %5437 = vmatprep.subr.mxu0 0.0
        %5438 = vmatpush2.msra.mxu0 0.0
        %5439 = vmatprep.subr.mxu0 0.0
        %5440 = vmatpush2.msra.mxu0 0.0
        %5441 = vmatprep.subr.mxu0 0.0
        %5442 = vmatpush2.msra.mxu0 0.0
        %5443 = vmatprep.subr.mxu0 0.0
        %5444 = vmatpush2.msra.mxu0 0.0
        %5445 = vmatprep.subr.mxu0 0.0
        %5446 = vmatpush2.msra.mxu0 0.0
        %5447 = vmatprep.subr.mxu0 0.0
        %5448 = vmatpush2.msra.mxu0 0.0
        %5449 = vmatprep.subr.mxu0 0.0
        %5450 = vmatpush2.msra.mxu0 0.0
        %5451 = vmatprep.subr.mxu0 0.0
        %5452 = vmatpush2.msra.mxu0 0.0
        %5453 = vmatprep.subr.mxu0 0.0
        %5454 = vmatpush2.msra.mxu0 0.0
        %5455 = vmatprep.mubr.f32.mxu0 0.0
        %5456 = vmatmul.mubr.f32.gmra.mxu0 %v5389
        %v5457 = vpop.f32.mrf.mxu0
        %v5458 = vadd.f32 %v639, %v5457
        %v5459 = vpop.f32.mrf.mxu0
        %5460 = vdwg.mxu0
        %vm5461 = vcmp.ge.f32.partialorder %v5458, 0.0
        %v5462 = vmul.f32 %v5458, 0.01
        %v5463 = vsel %vm5461, %v5458, %v5462
        %5464 = vmatprep.subr.mxu0 0.0
        %5465 = vmatpush1.msra.mxu0 0.0
        %5466 = vmatprep.subr.mxu0 0.0
        %5467 = vmatpush1.msra.mxu0 0.0
        %5468 = vmatprep.subr.mxu0 0.0
        %5469 = vmatpush1.msra.mxu0 0.0
        %5470 = vmatprep.subr.mxu0 0.0
        %5471 = vmatpush1.msra.mxu0 0.0
        %5472 = vmatprep.subr.mxu0 0.0
        %5473 = vmatpush1.msra.mxu0 0.0
        %5474 = vmatprep.subr.mxu0 0.0
        %5475 = vmatpush1.msra.mxu0 0.0
        %5476 = vmatprep.subr.mxu0 0.0
        %5477 = vmatpush1.msra.mxu0 0.0
        %5478 = vmatprep.subr.mxu0 0.0
        %5479 = vmatpush1.msra.mxu0 0.0
        %5480 = vmatprep.subr.mxu0 0.0
        %5481 = vmatpush1.msra.mxu0 0.0
        %5482 = vmatprep.subr.mxu0 0.0
        %5483 = vmatpush1.msra.mxu0 0.0
        %5484 = vmatprep.subr.mxu0 0.0
        %5485 = vmatpush1.msra.mxu0 0.0
        %5486 = vmatprep.subr.mxu0 0.0
        %5487 = vmatpush1.msra.mxu0 0.0
        %5488 = vmatprep.subr.mxu0 0.0
        %5489 = vmatpush1.msra.mxu0 %v2948
        %5490 = vmatprep.subr.mxu0 0.0
        %5491 = vmatpush1.msra.mxu0 %v2947
        %5492 = vmatprep.subr.mxu0 0.0
        %5493 = vmatpush1.msra.mxu0 %v2946
        %5494 = vmatprep.subr.mxu0 0.0
        %5495 = vmatpush1.msra.mxu0 %v2945
        %5496 = vmatprep.subr.mxu0 0.0
        %5497 = vmatpush2.msra.mxu0 0.0
        %5498 = vmatprep.subr.mxu0 0.0
        %5499 = vmatpush2.msra.mxu0 0.0
        %5500 = vmatprep.subr.mxu0 0.0
        %5501 = vmatpush2.msra.mxu0 0.0
        %5502 = vmatprep.subr.mxu0 0.0
        %5503 = vmatpush2.msra.mxu0 0.0
        %5504 = vmatprep.subr.mxu0 0.0
        %5505 = vmatpush2.msra.mxu0 0.0
        %5506 = vmatprep.subr.mxu0 0.0
        %5507 = vmatpush2.msra.mxu0 0.0
        %5508 = vmatprep.subr.mxu0 0.0
        %5509 = vmatpush2.msra.mxu0 0.0
        %5510 = vmatprep.subr.mxu0 0.0
        %5511 = vmatpush2.msra.mxu0 0.0
        %5512 = vmatprep.subr.mxu0 0.0
        %5513 = vmatpush2.msra.mxu0 0.0
        %5514 = vmatprep.subr.mxu0 0.0
        %5515 = vmatpush2.msra.mxu0 0.0
        %5516 = vmatprep.subr.mxu0 0.0
        %5517 = vmatpush2.msra.mxu0 0.0
        %5518 = vmatprep.subr.mxu0 0.0
        %5519 = vmatpush2.msra.mxu0 0.0
        %5520 = vmatprep.subr.mxu0 0.0
        %5521 = vmatpush2.msra.mxu0 0.0
        %5522 = vmatprep.subr.mxu0 0.0
        %5523 = vmatpush2.msra.mxu0 0.0
        %5524 = vmatprep.subr.mxu0 0.0
        %5525 = vmatpush2.msra.mxu0 0.0
        %5526 = vmatprep.subr.mxu0 0.0
        %5527 = vmatpush2.msra.mxu0 0.0
        %5528 = vmatprep.mubr.f32.mxu0 0.0
        %5529 = vmatmul.mubr.f32.gmra.mxu0 %v5289
        %v5530 = vpop.f32.mrf.mxu0
        %v5531 = vadd.f32 0.0, %v5530
        %v5532 = vpop.f32.mrf.mxu0
        %5533 = vdwg.mxu0
        %v5535 = vsel %vm649, %v5463, 0
        %5537 = vmatprep.subr.mxu0 0.0
        %5538 = vmatpush1.msra.mxu0 0.0
        %5539 = vmatprep.subr.mxu0 0.0
        %5540 = vmatpush1.msra.mxu0 0.0
        %5541 = vmatprep.subr.mxu0 0.0
        %5542 = vmatpush1.msra.mxu0 0.0
        %5543 = vmatprep.subr.mxu0 0.0
        %5544 = vmatpush1.msra.mxu0 0.0
        %5545 = vmatprep.subr.mxu0 0.0
        %5546 = vmatpush1.msra.mxu0 0.0
        %5547 = vmatprep.subr.mxu0 0.0
        %5548 = vmatpush1.msra.mxu0 0.0
        %5549 = vmatprep.subr.mxu0 0.0
        %5550 = vmatpush1.msra.mxu0 0.0
        %5551 = vmatprep.subr.mxu0 0.0
        %5552 = vmatpush1.msra.mxu0 0.0
        %5553 = vmatprep.subr.mxu0 0.0
        %5554 = vmatpush1.msra.mxu0 0.0
        %5555 = vmatprep.subr.mxu0 0.0
        %5556 = vmatpush1.msra.mxu0 0.0
        %5557 = vmatprep.subr.mxu0 0.0
        %5558 = vmatpush1.msra.mxu0 0.0
        %5559 = vmatprep.subr.mxu0 0.0
        %5560 = vmatpush1.msra.mxu0 0.0
        %5561 = vmatprep.subr.mxu0 0.0
        %5562 = vmatpush1.msra.mxu0 0.0
        %5563 = vmatprep.subr.mxu0 0.0
        %5564 = vmatpush1.msra.mxu0 0.0
        %5565 = vmatprep.subr.mxu0 0.0
        %5566 = vmatpush1.msra.mxu0 %v2944
        %5567 = vmatprep.subr.mxu0 0.0
        %5568 = vmatpush1.msra.mxu0 %v2943
        %5569 = vmatprep.subr.mxu0 0.0
        %5570 = vmatpush2.msra.mxu0 0.0
        %5571 = vmatprep.subr.mxu0 0.0
        %5572 = vmatpush2.msra.mxu0 0.0
        %5573 = vmatprep.subr.mxu0 0.0
        %5574 = vmatpush2.msra.mxu0 0.0
        %5575 = vmatprep.subr.mxu0 0.0
        %5576 = vmatpush2.msra.mxu0 0.0
        %5577 = vmatprep.subr.mxu0 0.0
        %5578 = vmatpush2.msra.mxu0 0.0
        %5579 = vmatprep.subr.mxu0 0.0
        %5580 = vmatpush2.msra.mxu0 0.0
        %5581 = vmatprep.subr.mxu0 0.0
        %5582 = vmatpush2.msra.mxu0 0.0
        %5583 = vmatprep.subr.mxu0 0.0
        %5584 = vmatpush2.msra.mxu0 0.0
        %5585 = vmatprep.subr.mxu0 0.0
        %5586 = vmatpush2.msra.mxu0 0.0
        %5587 = vmatprep.subr.mxu0 0.0
        %5588 = vmatpush2.msra.mxu0 0.0
        %5589 = vmatprep.subr.mxu0 0.0
        %5590 = vmatpush2.msra.mxu0 0.0
        %5591 = vmatprep.subr.mxu0 0.0
        %5592 = vmatpush2.msra.mxu0 0.0
        %5593 = vmatprep.subr.mxu0 0.0
        %5594 = vmatpush2.msra.mxu0 0.0
        %5595 = vmatprep.subr.mxu0 0.0
        %5596 = vmatpush2.msra.mxu0 0.0
        %5597 = vmatprep.subr.mxu0 0.0
        %5598 = vmatpush2.msra.mxu0 0.0
        %5599 = vmatprep.subr.mxu0 0.0
        %5600 = vmatpush2.msra.mxu0 0.0
        %5601 = vmatprep.mubr.f32.mxu0 0.0
        %5602 = vmatmul.mubr.f32.gmra.mxu0 %v5535
        %v5603 = vpop.f32.mrf.mxu0
        %v5604 = vadd.f32 %v5531, %v5603
        %v5605 = vpop.f32.mrf.mxu0
        %5606 = vdwg.mxu0
        %v5607 = vadd.f32 %v5604, %v637
        %v5608 = vxor.u32 %v5607, 2147483648
        %v5609 = vmul.f32 %v5608, 1.442695
        %v5610 = vpow.pop %v5609
        %v5611 = vadd.f32 %v5610, 1.0
        %v5612 = vrcp.pop %v5611
        %v5613 = vmul.f32 1.0, %v5612
        %v5614 = vtanh.pop %v5607
        %v5615 = vmul.f32 %v5613, %v5209
        %5617 = vrot.lane.b32.xlu0 %v5614, 64
        %v5618 = vpop.permute.xlu0 %5617
        %v5620 = vmul.f32 %v5613, %v5618
        %5622 = vrot.lane.b32.xlu0 %v5620, 32
        %v5623 = vpop.permute.xlu0 %5622
        %v5625 = vadd.f32 %v5615, %v5623
        %v5626 = vtanh.pop %v5625
        %5628 = vrot.lane.b32.xlu0 %v5626, 64
        %v5629 = vpop.permute.xlu0 %5628
        %v5631 = vmul.f32 %v5613, %v5629
        %5632 = vmatprep.subr.mxu0 0.0
        %5633 = vmatpush1.msra.mxu0 0.0
        %5634 = vmatprep.subr.mxu0 0.0
        %5635 = vmatpush1.msra.mxu0 0.0
        %5636 = vmatprep.subr.mxu0 0.0
        %5637 = vmatpush1.msra.mxu0 0.0
        %5638 = vmatprep.subr.mxu0 0.0
        %5639 = vmatpush1.msra.mxu0 0.0
        %5640 = vmatprep.subr.mxu0 0.0
        %5641 = vmatpush1.msra.mxu0 0.0
        %5642 = vmatprep.subr.mxu0 0.0
        %5643 = vmatpush1.msra.mxu0 0.0
        %5644 = vmatprep.subr.mxu0 0.0
        %5645 = vmatpush1.msra.mxu0 0.0
        %5646 = vmatprep.subr.mxu0 0.0
        %5647 = vmatpush1.msra.mxu0 0.0
        %5648 = vmatprep.subr.mxu0 0.0
        %5649 = vmatpush1.msra.mxu0 0.0
        %5650 = vmatprep.subr.mxu0 0.0
        %5651 = vmatpush1.msra.mxu0 0.0
        %5652 = vmatprep.subr.mxu0 0.0
        %5653 = vmatpush1.msra.mxu0 0.0
        %5654 = vmatprep.subr.mxu0 0.0
        %5655 = vmatpush1.msra.mxu0 0.0
        %5656 = vmatprep.subr.mxu0 0.0
        %5657 = vmatpush1.msra.mxu0 %v3126
        %5658 = vmatprep.subr.mxu0 0.0
        %5659 = vmatpush1.msra.mxu0 %v3125
        %5660 = vmatprep.subr.mxu0 0.0
        %5661 = vmatpush1.msra.mxu0 %v3124
        %5662 = vmatprep.subr.mxu0 0.0
        %5663 = vmatpush1.msra.mxu0 %v3123
        %5664 = vmatprep.subr.mxu0 0.0
        %5665 = vmatpush2.msra.mxu0 0.0
        %5666 = vmatprep.subr.mxu0 0.0
        %5667 = vmatpush2.msra.mxu0 0.0
        %5668 = vmatprep.subr.mxu0 0.0
        %5669 = vmatpush2.msra.mxu0 0.0
        %5670 = vmatprep.subr.mxu0 0.0
        %5671 = vmatpush2.msra.mxu0 0.0
        %5672 = vmatprep.subr.mxu0 0.0
        %5673 = vmatpush2.msra.mxu0 0.0
        %5674 = vmatprep.subr.mxu0 0.0
        %5675 = vmatpush2.msra.mxu0 0.0
        %5676 = vmatprep.subr.mxu0 0.0
        %5677 = vmatpush2.msra.mxu0 0.0
        %5678 = vmatprep.subr.mxu0 0.0
        %5679 = vmatpush2.msra.mxu0 0.0
        %5680 = vmatprep.subr.mxu0 0.0
        %5681 = vmatpush2.msra.mxu0 0.0
        %5682 = vmatprep.subr.mxu0 0.0
        %5683 = vmatpush2.msra.mxu0 0.0
        %5684 = vmatprep.subr.mxu0 0.0
        %5685 = vmatpush2.msra.mxu0 0.0
        %5686 = vmatprep.subr.mxu0 0.0
        %5687 = vmatpush2.msra.mxu0 0.0
        %5688 = vmatprep.subr.mxu0 0.0
        %5689 = vmatpush2.msra.mxu0 0.0
        %5690 = vmatprep.subr.mxu0 0.0
        %5691 = vmatpush2.msra.mxu0 0.0
        %5692 = vmatprep.subr.mxu0 0.0
        %5693 = vmatpush2.msra.mxu0 0.0
        %5694 = vmatprep.subr.mxu0 0.0
        %5695 = vmatpush2.msra.mxu0 0.0
        %5696 = vmatprep.mubr.f32.mxu0 0.0
        %5697 = vmatmul.mubr.f32.gmra.mxu0 %v5389
        %v5698 = vpop.f32.mrf.mxu0
        %v5699 = vadd.f32 0.0, %v5698
        %v5700 = vpop.f32.mrf.mxu0
        %5701 = vdwg.mxu0
        %5703 = vrot.lane.b32.xlu0 %v5631, 32
        %v5704 = vpop.permute.xlu0 %5703
        %v5705 = vsel %vm727, %v5704, 0
        %5707 = vmatprep.subr.mxu0 0.0
        %5708 = vmatpush1.msra.mxu0 0.0
        %5709 = vmatprep.subr.mxu0 0.0
        %5710 = vmatpush1.msra.mxu0 0.0
        %5711 = vmatprep.subr.mxu0 0.0
        %5712 = vmatpush1.msra.mxu0 0.0
        %5713 = vmatprep.subr.mxu0 0.0
        %5714 = vmatpush1.msra.mxu0 0.0
        %5715 = vmatprep.subr.mxu0 0.0
        %5716 = vmatpush1.msra.mxu0 0.0
        %5717 = vmatprep.subr.mxu0 0.0
        %5718 = vmatpush1.msra.mxu0 0.0
        %5719 = vmatprep.subr.mxu0 0.0
        %5720 = vmatpush1.msra.mxu0 0.0
        %5721 = vmatprep.subr.mxu0 0.0
        %5722 = vmatpush1.msra.mxu0 0.0
        %5723 = vmatprep.subr.mxu0 0.0
        %5724 = vmatpush1.msra.mxu0 0.0
        %5725 = vmatprep.subr.mxu0 0.0
        %5726 = vmatpush1.msra.mxu0 0.0
        %5727 = vmatprep.subr.mxu0 0.0
        %5728 = vmatpush1.msra.mxu0 0.0
        %5729 = vmatprep.subr.mxu0 0.0
        %5730 = vmatpush1.msra.mxu0 0.0
        %5731 = vmatprep.subr.mxu0 0.0
        %5732 = vmatpush1.msra.mxu0 %v3122
        %5733 = vmatprep.subr.mxu0 0.0
        %5734 = vmatpush1.msra.mxu0 %v3121
        %5735 = vmatprep.subr.mxu0 0.0
        %5736 = vmatpush1.msra.mxu0 %v3120
        %5737 = vmatprep.subr.mxu0 0.0
        %5738 = vmatpush1.msra.mxu0 %v3119
        %5739 = vmatprep.subr.mxu0 0.0
        %5740 = vmatpush2.msra.mxu0 0.0
        %5741 = vmatprep.subr.mxu0 0.0
        %5742 = vmatpush2.msra.mxu0 0.0
        %5743 = vmatprep.subr.mxu0 0.0
        %5744 = vmatpush2.msra.mxu0 0.0
        %5745 = vmatprep.subr.mxu0 0.0
        %5746 = vmatpush2.msra.mxu0 0.0
        %5747 = vmatprep.subr.mxu0 0.0
        %5748 = vmatpush2.msra.mxu0 0.0
        %5749 = vmatprep.subr.mxu0 0.0
        %5750 = vmatpush2.msra.mxu0 0.0
        %5751 = vmatprep.subr.mxu0 0.0
        %5752 = vmatpush2.msra.mxu0 0.0
        %5753 = vmatprep.subr.mxu0 0.0
        %5754 = vmatpush2.msra.mxu0 0.0
        %5755 = vmatprep.subr.mxu0 0.0
        %5756 = vmatpush2.msra.mxu0 0.0
        %5757 = vmatprep.subr.mxu0 0.0
        %5758 = vmatpush2.msra.mxu0 0.0
        %5759 = vmatprep.subr.mxu0 0.0
        %5760 = vmatpush2.msra.mxu0 0.0
        %5761 = vmatprep.subr.mxu0 0.0
        %5762 = vmatpush2.msra.mxu0 0.0
        %5763 = vmatprep.subr.mxu0 0.0
        %5764 = vmatpush2.msra.mxu0 0.0
        %5765 = vmatprep.subr.mxu0 0.0
        %5766 = vmatpush2.msra.mxu0 0.0
        %5767 = vmatprep.subr.mxu0 0.0
        %5768 = vmatpush2.msra.mxu0 0.0
        %5769 = vmatprep.subr.mxu0 0.0
        %5770 = vmatpush2.msra.mxu0 0.0
        %5771 = vmatprep.mubr.f32.mxu0 0.0
        %5772 = vmatmul.mubr.f32.gmra.mxu0 %v5705
        %v5773 = vpop.f32.mrf.mxu0
        %v5774 = vadd.f32 %v5699, %v5773
        %v5775 = vpop.f32.mrf.mxu0
        %5776 = vdwg.mxu0
        %v5777 = vadd.f32 %v5774, %v638
        %v5778 = vxor.u32 %v5777, 2147483648
        %v5779 = vmul.f32 %v5778, 1.442695
        %v5780 = vpow.pop %v5779
        %v5781 = vadd.f32 %v5780, 1.0
        %v5782 = vrcp.pop %v5781
        %v5783 = vmul.f32 1.0, %v5782
        %v5784 = vtanh.pop %v5777
        %v5785 = vmul.f32 %v5783, %v5379
        %5787 = vrot.lane.b32.xlu0 %v5784, 64
        %v5788 = vpop.permute.xlu0 %5787
        %v5790 = vmul.f32 %v5783, %v5788
        %5792 = vrot.lane.b32.xlu0 %v5790, 32
        %v5793 = vpop.permute.xlu0 %5792
        %v5795 = vadd.f32 %v5785, %v5793
        %v5796 = vtanh.pop %v5795
        %5798 = vrot.lane.b32.xlu0 %v5796, 64
        %v5799 = vpop.permute.xlu0 %5798
        %v5801 = vmul.f32 %v5783, %v5799
        %5803 = vrot.lane.b32.xlu0 %v5801, 32
        %v5804 = vpop.permute.xlu0 %5803
        %v5805 = vsel %vm727, %v5804, 0
        %5807 = vmatprep.subr.mxu0 0.0
        %5808 = vmatpush1.msra.mxu0 0.0
        %5809 = vmatprep.subr.mxu0 0.0
        %5810 = vmatpush1.msra.mxu0 0.0
        %5811 = vmatprep.subr.mxu0 0.0
        %5812 = vmatpush1.msra.mxu0 0.0
        %5813 = vmatprep.subr.mxu0 0.0
        %5814 = vmatpush1.msra.mxu0 0.0
        %5815 = vmatprep.subr.mxu0 0.0
        %5816 = vmatpush1.msra.mxu0 0.0
        %5817 = vmatprep.subr.mxu0 0.0
        %5818 = vmatpush1.msra.mxu0 0.0
        %5819 = vmatprep.subr.mxu0 0.0
        %5820 = vmatpush1.msra.mxu0 0.0
        %5821 = vmatprep.subr.mxu0 0.0
        %5822 = vmatpush1.msra.mxu0 0.0
        %5823 = vmatprep.subr.mxu0 0.0
        %5824 = vmatpush1.msra.mxu0 0.0
        %5825 = vmatprep.subr.mxu0 0.0
        %5826 = vmatpush1.msra.mxu0 0.0
        %5827 = vmatprep.subr.mxu0 0.0
        %5828 = vmatpush1.msra.mxu0 0.0
        %5829 = vmatprep.subr.mxu0 0.0
        %5830 = vmatpush1.msra.mxu0 0.0
        %5831 = vmatprep.subr.mxu0 0.0
        %5832 = vmatpush1.msra.mxu0 %v3305
        %5833 = vmatprep.subr.mxu0 0.0
        %5834 = vmatpush1.msra.mxu0 %v3304
        %5835 = vmatprep.subr.mxu0 0.0
        %5836 = vmatpush1.msra.mxu0 %v3303
        %5837 = vmatprep.subr.mxu0 0.0
        %5838 = vmatpush1.msra.mxu0 %v3302
        %5839 = vmatprep.subr.mxu0 0.0
        %5840 = vmatpush2.msra.mxu0 0.0
        %5841 = vmatprep.subr.mxu0 0.0
        %5842 = vmatpush2.msra.mxu0 0.0
        %5843 = vmatprep.subr.mxu0 0.0
        %5844 = vmatpush2.msra.mxu0 0.0
        %5845 = vmatprep.subr.mxu0 0.0
        %5846 = vmatpush2.msra.mxu0 0.0
        %5847 = vmatprep.subr.mxu0 0.0
        %5848 = vmatpush2.msra.mxu0 0.0
        %5849 = vmatprep.subr.mxu0 0.0
        %5850 = vmatpush2.msra.mxu0 0.0
        %5851 = vmatprep.subr.mxu0 0.0
        %5852 = vmatpush2.msra.mxu0 0.0
        %5853 = vmatprep.subr.mxu0 0.0
        %5854 = vmatpush2.msra.mxu0 0.0
        %5855 = vmatprep.subr.mxu0 0.0
        %5856 = vmatpush2.msra.mxu0 0.0
        %5857 = vmatprep.subr.mxu0 0.0
        %5858 = vmatpush2.msra.mxu0 0.0
        %5859 = vmatprep.subr.mxu0 0.0
        %5860 = vmatpush2.msra.mxu0 0.0
        %5861 = vmatprep.subr.mxu0 0.0
        %5862 = vmatpush2.msra.mxu0 0.0
        %5863 = vmatprep.subr.mxu0 0.0
        %5864 = vmatpush2.msra.mxu0 0.0
        %5865 = vmatprep.subr.mxu0 0.0
        %5866 = vmatpush2.msra.mxu0 0.0
        %5867 = vmatprep.subr.mxu0 0.0
        %5868 = vmatpush2.msra.mxu0 0.0
        %5869 = vmatprep.subr.mxu0 0.0
        %5870 = vmatpush2.msra.mxu0 0.0
        %5871 = vmatprep.mubr.f32.mxu0 0.0
        %5872 = vmatmul.mubr.f32.gmra.mxu0 %v5805
        %v5873 = vpop.f32.mrf.mxu0
        %v5874 = vadd.f32 %v639, %v5873
        %v5875 = vpop.f32.mrf.mxu0
        %5876 = vdwg.mxu0
        %vm5877 = vcmp.ge.f32.partialorder %v5874, 0.0
        %v5878 = vmul.f32 %v5874, 0.01
        %v5879 = vsel %vm5877, %v5874, %v5878
        %5880 = vmatprep.subr.mxu0 0.0
        %5881 = vmatpush1.msra.mxu0 0.0
        %5882 = vmatprep.subr.mxu0 0.0
        %5883 = vmatpush1.msra.mxu0 0.0
        %5884 = vmatprep.subr.mxu0 0.0
        %5885 = vmatpush1.msra.mxu0 0.0
        %5886 = vmatprep.subr.mxu0 0.0
        %5887 = vmatpush1.msra.mxu0 0.0
        %5888 = vmatprep.subr.mxu0 0.0
        %5889 = vmatpush1.msra.mxu0 0.0
        %5890 = vmatprep.subr.mxu0 0.0
        %5891 = vmatpush1.msra.mxu0 0.0
        %5892 = vmatprep.subr.mxu0 0.0
        %5893 = vmatpush1.msra.mxu0 0.0
        %5894 = vmatprep.subr.mxu0 0.0
        %5895 = vmatpush1.msra.mxu0 0.0
        %5896 = vmatprep.subr.mxu0 0.0
        %5897 = vmatpush1.msra.mxu0 0.0
        %5898 = vmatprep.subr.mxu0 0.0
        %5899 = vmatpush1.msra.mxu0 0.0
        %5900 = vmatprep.subr.mxu0 0.0
        %5901 = vmatpush1.msra.mxu0 0.0
        %5902 = vmatprep.subr.mxu0 0.0
        %5903 = vmatpush1.msra.mxu0 0.0
        %5904 = vmatprep.subr.mxu0 0.0
        %5905 = vmatpush1.msra.mxu0 %v2948
        %5906 = vmatprep.subr.mxu0 0.0
        %5907 = vmatpush1.msra.mxu0 %v2947
        %5908 = vmatprep.subr.mxu0 0.0
        %5909 = vmatpush1.msra.mxu0 %v2946
        %5910 = vmatprep.subr.mxu0 0.0
        %5911 = vmatpush1.msra.mxu0 %v2945
        %5912 = vmatprep.subr.mxu0 0.0
        %5913 = vmatpush2.msra.mxu0 0.0
        %5914 = vmatprep.subr.mxu0 0.0
        %5915 = vmatpush2.msra.mxu0 0.0
        %5916 = vmatprep.subr.mxu0 0.0
        %5917 = vmatpush2.msra.mxu0 0.0
        %5918 = vmatprep.subr.mxu0 0.0
        %5919 = vmatpush2.msra.mxu0 0.0
        %5920 = vmatprep.subr.mxu0 0.0
        %5921 = vmatpush2.msra.mxu0 0.0
        %5922 = vmatprep.subr.mxu0 0.0
        %5923 = vmatpush2.msra.mxu0 0.0
        %5924 = vmatprep.subr.mxu0 0.0
        %5925 = vmatpush2.msra.mxu0 0.0
        %5926 = vmatprep.subr.mxu0 0.0
        %5927 = vmatpush2.msra.mxu0 0.0
        %5928 = vmatprep.subr.mxu0 0.0
        %5929 = vmatpush2.msra.mxu0 0.0
        %5930 = vmatprep.subr.mxu0 0.0
        %5931 = vmatpush2.msra.mxu0 0.0
        %5932 = vmatprep.subr.mxu0 0.0
        %5933 = vmatpush2.msra.mxu0 0.0
        %5934 = vmatprep.subr.mxu0 0.0
        %5935 = vmatpush2.msra.mxu0 0.0
        %5936 = vmatprep.subr.mxu0 0.0
        %5937 = vmatpush2.msra.mxu0 0.0
        %5938 = vmatprep.subr.mxu0 0.0
        %5939 = vmatpush2.msra.mxu0 0.0
        %5940 = vmatprep.subr.mxu0 0.0
        %5941 = vmatpush2.msra.mxu0 0.0
        %5942 = vmatprep.subr.mxu0 0.0
        %5943 = vmatpush2.msra.mxu0 0.0
        %5944 = vmatprep.mubr.f32.mxu0 0.0
        %5945 = vmatmul.mubr.f32.gmra.mxu0 %v5705
        %v5946 = vpop.f32.mrf.mxu0
        %v5947 = vadd.f32 0.0, %v5946
        %v5948 = vpop.f32.mrf.mxu0
        %5949 = vdwg.mxu0
        %v5951 = vsel %vm649, %v5879, 0
        %5953 = vmatprep.subr.mxu0 0.0
        %5954 = vmatpush1.msra.mxu0 0.0
        %5955 = vmatprep.subr.mxu0 0.0
        %5956 = vmatpush1.msra.mxu0 0.0
        %5957 = vmatprep.subr.mxu0 0.0
        %5958 = vmatpush1.msra.mxu0 0.0
        %5959 = vmatprep.subr.mxu0 0.0
        %5960 = vmatpush1.msra.mxu0 0.0
        %5961 = vmatprep.subr.mxu0 0.0
        %5962 = vmatpush1.msra.mxu0 0.0
        %5963 = vmatprep.subr.mxu0 0.0
        %5964 = vmatpush1.msra.mxu0 0.0
        %5965 = vmatprep.subr.mxu0 0.0
        %5966 = vmatpush1.msra.mxu0 0.0
        %5967 = vmatprep.subr.mxu0 0.0
        %5968 = vmatpush1.msra.mxu0 0.0
        %5969 = vmatprep.subr.mxu0 0.0
        %5970 = vmatpush1.msra.mxu0 0.0
        %5971 = vmatprep.subr.mxu0 0.0
        %5972 = vmatpush1.msra.mxu0 0.0
        %5973 = vmatprep.subr.mxu0 0.0
        %5974 = vmatpush1.msra.mxu0 0.0
        %5975 = vmatprep.subr.mxu0 0.0
        %5976 = vmatpush1.msra.mxu0 0.0
        %5977 = vmatprep.subr.mxu0 0.0
        %5978 = vmatpush1.msra.mxu0 0.0
        %5979 = vmatprep.subr.mxu0 0.0
        %5980 = vmatpush1.msra.mxu0 0.0
        %5981 = vmatprep.subr.mxu0 0.0
        %5982 = vmatpush1.msra.mxu0 %v2944
        %5983 = vmatprep.subr.mxu0 0.0
        %5984 = vmatpush1.msra.mxu0 %v2943
        %5985 = vmatprep.subr.mxu0 0.0
        %5986 = vmatpush2.msra.mxu0 0.0
        %5987 = vmatprep.subr.mxu0 0.0
        %5988 = vmatpush2.msra.mxu0 0.0
        %5989 = vmatprep.subr.mxu0 0.0
        %5990 = vmatpush2.msra.mxu0 0.0
        %5991 = vmatprep.subr.mxu0 0.0
        %5992 = vmatpush2.msra.mxu0 0.0
        %5993 = vmatprep.subr.mxu0 0.0
        %5994 = vmatpush2.msra.mxu0 0.0
        %5995 = vmatprep.subr.mxu0 0.0
        %5996 = vmatpush2.msra.mxu0 0.0
        %5997 = vmatprep.subr.mxu0 0.0
        %5998 = vmatpush2.msra.mxu0 0.0
        %5999 = vmatprep.subr.mxu0 0.0
        %6000 = vmatpush2.msra.mxu0 0.0
        %6001 = vmatprep.subr.mxu0 0.0
        %6002 = vmatpush2.msra.mxu0 0.0
        %6003 = vmatprep.subr.mxu0 0.0
        %6004 = vmatpush2.msra.mxu0 0.0
        %6005 = vmatprep.subr.mxu0 0.0
        %6006 = vmatpush2.msra.mxu0 0.0
        %6007 = vmatprep.subr.mxu0 0.0
        %6008 = vmatpush2.msra.mxu0 0.0
        %6009 = vmatprep.subr.mxu0 0.0
        %6010 = vmatpush2.msra.mxu0 0.0
        %6011 = vmatprep.subr.mxu0 0.0
        %6012 = vmatpush2.msra.mxu0 0.0
        %6013 = vmatprep.subr.mxu0 0.0
        %6014 = vmatpush2.msra.mxu0 0.0
        %6015 = vmatprep.subr.mxu0 0.0
        %6016 = vmatpush2.msra.mxu0 0.0
        %6017 = vmatprep.mubr.f32.mxu0 0.0
        %6018 = vmatmul.mubr.f32.gmra.mxu0 %v5951
        %v6019 = vpop.f32.mrf.mxu0
        %v6020 = vadd.f32 %v5947, %v6019
        %v6021 = vpop.f32.mrf.mxu0
        %6022 = vdwg.mxu0
        %v6023 = vadd.f32 %v6020, %v637
        %v6024 = vxor.u32 %v6023, 2147483648
        %v6025 = vmul.f32 %v6024, 1.442695
        %v6026 = vpow.pop %v6025
        %v6027 = vadd.f32 %v6026, 1.0
        %v6028 = vrcp.pop %v6027
        %v6029 = vmul.f32 1.0, %v6028
        %v6030 = vtanh.pop %v6023
        %v6031 = vmul.f32 %v6029, %v5625
        %6033 = vrot.lane.b32.xlu0 %v6030, 64
        %v6034 = vpop.permute.xlu0 %6033
        %v6036 = vmul.f32 %v6029, %v6034
        %6038 = vrot.lane.b32.xlu0 %v6036, 32
        %v6039 = vpop.permute.xlu0 %6038
        %v6041 = vadd.f32 %v6031, %v6039
        %v6042 = vtanh.pop %v6041
        %6044 = vrot.lane.b32.xlu0 %v6042, 64
        %v6045 = vpop.permute.xlu0 %6044
        %v6047 = vmul.f32 %v6029, %v6045
        %6048 = vmatprep.subr.mxu0 0.0
        %6049 = vmatpush1.msra.mxu0 0.0
        %6050 = vmatprep.subr.mxu0 0.0
        %6051 = vmatpush1.msra.mxu0 0.0
        %6052 = vmatprep.subr.mxu0 0.0
        %6053 = vmatpush1.msra.mxu0 0.0
        %6054 = vmatprep.subr.mxu0 0.0
        %6055 = vmatpush1.msra.mxu0 0.0
        %6056 = vmatprep.subr.mxu0 0.0
        %6057 = vmatpush1.msra.mxu0 0.0
        %6058 = vmatprep.subr.mxu0 0.0
        %6059 = vmatpush1.msra.mxu0 0.0
        %6060 = vmatprep.subr.mxu0 0.0
        %6061 = vmatpush1.msra.mxu0 0.0
        %6062 = vmatprep.subr.mxu0 0.0
        %6063 = vmatpush1.msra.mxu0 0.0
        %6064 = vmatprep.subr.mxu0 0.0
        %6065 = vmatpush1.msra.mxu0 0.0
        %6066 = vmatprep.subr.mxu0 0.0
        %6067 = vmatpush1.msra.mxu0 0.0
        %6068 = vmatprep.subr.mxu0 0.0
        %6069 = vmatpush1.msra.mxu0 0.0
        %6070 = vmatprep.subr.mxu0 0.0
        %6071 = vmatpush1.msra.mxu0 0.0
        %6072 = vmatprep.subr.mxu0 0.0
        %6073 = vmatpush1.msra.mxu0 %v3126
        %6074 = vmatprep.subr.mxu0 0.0
        %6075 = vmatpush1.msra.mxu0 %v3125
        %6076 = vmatprep.subr.mxu0 0.0
        %6077 = vmatpush1.msra.mxu0 %v3124
        %6078 = vmatprep.subr.mxu0 0.0
        %6079 = vmatpush1.msra.mxu0 %v3123
        %6080 = vmatprep.subr.mxu0 0.0
        %6081 = vmatpush2.msra.mxu0 0.0
        %6082 = vmatprep.subr.mxu0 0.0
        %6083 = vmatpush2.msra.mxu0 0.0
        %6084 = vmatprep.subr.mxu0 0.0
        %6085 = vmatpush2.msra.mxu0 0.0
        %6086 = vmatprep.subr.mxu0 0.0
        %6087 = vmatpush2.msra.mxu0 0.0
        %6088 = vmatprep.subr.mxu0 0.0
        %6089 = vmatpush2.msra.mxu0 0.0
        %6090 = vmatprep.subr.mxu0 0.0
        %6091 = vmatpush2.msra.mxu0 0.0
        %6092 = vmatprep.subr.mxu0 0.0
        %6093 = vmatpush2.msra.mxu0 0.0
        %6094 = vmatprep.subr.mxu0 0.0
        %6095 = vmatpush2.msra.mxu0 0.0
        %6096 = vmatprep.subr.mxu0 0.0
        %6097 = vmatpush2.msra.mxu0 0.0
        %6098 = vmatprep.subr.mxu0 0.0
        %6099 = vmatpush2.msra.mxu0 0.0
        %6100 = vmatprep.subr.mxu0 0.0
        %6101 = vmatpush2.msra.mxu0 0.0
        %6102 = vmatprep.subr.mxu0 0.0
        %6103 = vmatpush2.msra.mxu0 0.0
        %6104 = vmatprep.subr.mxu0 0.0
        %6105 = vmatpush2.msra.mxu0 0.0
        %6106 = vmatprep.subr.mxu0 0.0
        %6107 = vmatpush2.msra.mxu0 0.0
        %6108 = vmatprep.subr.mxu0 0.0
        %6109 = vmatpush2.msra.mxu0 0.0
        %6110 = vmatprep.subr.mxu0 0.0
        %6111 = vmatpush2.msra.mxu0 0.0
        %6112 = vmatprep.mubr.f32.mxu0 0.0
        %6113 = vmatmul.mubr.f32.gmra.mxu0 %v5805
        %v6114 = vpop.f32.mrf.mxu0
        %v6115 = vadd.f32 0.0, %v6114
        %v6116 = vpop.f32.mrf.mxu0
        %6117 = vdwg.mxu0
        %6119 = vrot.lane.b32.xlu0 %v6047, 32
        %v6120 = vpop.permute.xlu0 %6119
        %v6121 = vsel %vm727, %v6120, 0
        %6123 = vmatprep.subr.mxu0 0.0
        %6124 = vmatpush1.msra.mxu0 0.0
        %6125 = vmatprep.subr.mxu0 0.0
        %6126 = vmatpush1.msra.mxu0 0.0
        %6127 = vmatprep.subr.mxu0 0.0
        %6128 = vmatpush1.msra.mxu0 0.0
        %6129 = vmatprep.subr.mxu0 0.0
        %6130 = vmatpush1.msra.mxu0 0.0
        %6131 = vmatprep.subr.mxu0 0.0
        %6132 = vmatpush1.msra.mxu0 0.0
        %6133 = vmatprep.subr.mxu0 0.0
        %6134 = vmatpush1.msra.mxu0 0.0
        %6135 = vmatprep.subr.mxu0 0.0
        %6136 = vmatpush1.msra.mxu0 0.0
        %6137 = vmatprep.subr.mxu0 0.0
        %6138 = vmatpush1.msra.mxu0 0.0
        %6139 = vmatprep.subr.mxu0 0.0
        %6140 = vmatpush1.msra.mxu0 0.0
        %6141 = vmatprep.subr.mxu0 0.0
        %6142 = vmatpush1.msra.mxu0 0.0
        %6143 = vmatprep.subr.mxu0 0.0
        %6144 = vmatpush1.msra.mxu0 0.0
        %6145 = vmatprep.subr.mxu0 0.0
        %6146 = vmatpush1.msra.mxu0 0.0
        %6147 = vmatprep.subr.mxu0 0.0
        %6148 = vmatpush1.msra.mxu0 %v3122
        %6149 = vmatprep.subr.mxu0 0.0
        %6150 = vmatpush1.msra.mxu0 %v3121
        %6151 = vmatprep.subr.mxu0 0.0
        %6152 = vmatpush1.msra.mxu0 %v3120
        %6153 = vmatprep.subr.mxu0 0.0
        %6154 = vmatpush1.msra.mxu0 %v3119
        %6155 = vmatprep.subr.mxu0 0.0
        %6156 = vmatpush2.msra.mxu0 0.0
        %6157 = vmatprep.subr.mxu0 0.0
        %6158 = vmatpush2.msra.mxu0 0.0
        %6159 = vmatprep.subr.mxu0 0.0
        %6160 = vmatpush2.msra.mxu0 0.0
        %6161 = vmatprep.subr.mxu0 0.0
        %6162 = vmatpush2.msra.mxu0 0.0
        %6163 = vmatprep.subr.mxu0 0.0
        %6164 = vmatpush2.msra.mxu0 0.0
        %6165 = vmatprep.subr.mxu0 0.0
        %6166 = vmatpush2.msra.mxu0 0.0
        %6167 = vmatprep.subr.mxu0 0.0
        %6168 = vmatpush2.msra.mxu0 0.0
        %6169 = vmatprep.subr.mxu0 0.0
        %6170 = vmatpush2.msra.mxu0 0.0
        %6171 = vmatprep.subr.mxu0 0.0
        %6172 = vmatpush2.msra.mxu0 0.0
        %6173 = vmatprep.subr.mxu0 0.0
        %6174 = vmatpush2.msra.mxu0 0.0
        %6175 = vmatprep.subr.mxu0 0.0
        %6176 = vmatpush2.msra.mxu0 0.0
        %6177 = vmatprep.subr.mxu0 0.0
        %6178 = vmatpush2.msra.mxu0 0.0
        %6179 = vmatprep.subr.mxu0 0.0
        %6180 = vmatpush2.msra.mxu0 0.0
        %6181 = vmatprep.subr.mxu0 0.0
        %6182 = vmatpush2.msra.mxu0 0.0
        %6183 = vmatprep.subr.mxu0 0.0
        %6184 = vmatpush2.msra.mxu0 0.0
        %6185 = vmatprep.subr.mxu0 0.0
        %6186 = vmatpush2.msra.mxu0 0.0
        %6187 = vmatprep.mubr.f32.mxu0 0.0
        %6188 = vmatmul.mubr.f32.gmra.mxu0 %v6121
        %v6189 = vpop.f32.mrf.mxu0
        %v6190 = vadd.f32 %v6115, %v6189
        %v6191 = vpop.f32.mrf.mxu0
        %6192 = vdwg.mxu0
        %v6193 = vadd.f32 %v6190, %v638
        %v6194 = vxor.u32 %v6193, 2147483648
        %v6195 = vmul.f32 %v6194, 1.442695
        %v6196 = vpow.pop %v6195
        %v6197 = vadd.f32 %v6196, 1.0
        %v6198 = vrcp.pop %v6197
        %v6199 = vmul.f32 1.0, %v6198
        %v6200 = vtanh.pop %v6193
        %v6201 = vmul.f32 %v6199, %v5795
        %6203 = vrot.lane.b32.xlu0 %v6200, 64
        %v6204 = vpop.permute.xlu0 %6203
        %v6206 = vmul.f32 %v6199, %v6204
        %6208 = vrot.lane.b32.xlu0 %v6206, 32
        %v6209 = vpop.permute.xlu0 %6208
        %v6211 = vadd.f32 %v6201, %v6209
        %v6212 = vtanh.pop %v6211
        %6214 = vrot.lane.b32.xlu0 %v6212, 64
        %v6215 = vpop.permute.xlu0 %6214
        %v6217 = vmul.f32 %v6199, %v6215
        %6219 = vrot.lane.b32.xlu0 %v6217, 32
        %v6220 = vpop.permute.xlu0 %6219
        %v6221 = vsel %vm727, %v6220, 0
        %6223 = vmatprep.subr.mxu0 0.0
        %6224 = vmatpush1.msra.mxu0 0.0
        %6225 = vmatprep.subr.mxu0 0.0
        %6226 = vmatpush1.msra.mxu0 0.0
        %6227 = vmatprep.subr.mxu0 0.0
        %6228 = vmatpush1.msra.mxu0 0.0
        %6229 = vmatprep.subr.mxu0 0.0
        %6230 = vmatpush1.msra.mxu0 0.0
        %6231 = vmatprep.subr.mxu0 0.0
        %6232 = vmatpush1.msra.mxu0 0.0
        %6233 = vmatprep.subr.mxu0 0.0
        %6234 = vmatpush1.msra.mxu0 0.0
        %6235 = vmatprep.subr.mxu0 0.0
        %6236 = vmatpush1.msra.mxu0 0.0
        %6237 = vmatprep.subr.mxu0 0.0
        %6238 = vmatpush1.msra.mxu0 0.0
        %6239 = vmatprep.subr.mxu0 0.0
        %6240 = vmatpush1.msra.mxu0 0.0
        %6241 = vmatprep.subr.mxu0 0.0
        %6242 = vmatpush1.msra.mxu0 0.0
        %6243 = vmatprep.subr.mxu0 0.0
        %6244 = vmatpush1.msra.mxu0 0.0
        %6245 = vmatprep.subr.mxu0 0.0
        %6246 = vmatpush1.msra.mxu0 0.0
        %6247 = vmatprep.subr.mxu0 0.0
        %6248 = vmatpush1.msra.mxu0 %v3305
        %6249 = vmatprep.subr.mxu0 0.0
        %6250 = vmatpush1.msra.mxu0 %v3304
        %6251 = vmatprep.subr.mxu0 0.0
        %6252 = vmatpush1.msra.mxu0 %v3303
        %6253 = vmatprep.subr.mxu0 0.0
        %6254 = vmatpush1.msra.mxu0 %v3302
        %6255 = vmatprep.subr.mxu0 0.0
        %6256 = vmatpush2.msra.mxu0 0.0
        %6257 = vmatprep.subr.mxu0 0.0
        %6258 = vmatpush2.msra.mxu0 0.0
        %6259 = vmatprep.subr.mxu0 0.0
        %6260 = vmatpush2.msra.mxu0 0.0
        %6261 = vmatprep.subr.mxu0 0.0
        %6262 = vmatpush2.msra.mxu0 0.0
        %6263 = vmatprep.subr.mxu0 0.0
        %6264 = vmatpush2.msra.mxu0 0.0
        %6265 = vmatprep.subr.mxu0 0.0
        %6266 = vmatpush2.msra.mxu0 0.0
        %6267 = vmatprep.subr.mxu0 0.0
        %6268 = vmatpush2.msra.mxu0 0.0
        %6269 = vmatprep.subr.mxu0 0.0
        %6270 = vmatpush2.msra.mxu0 0.0
        %6271 = vmatprep.subr.mxu0 0.0
        %6272 = vmatpush2.msra.mxu0 0.0
        %6273 = vmatprep.subr.mxu0 0.0
        %6274 = vmatpush2.msra.mxu0 0.0
        %6275 = vmatprep.subr.mxu0 0.0
        %6276 = vmatpush2.msra.mxu0 0.0
        %6277 = vmatprep.subr.mxu0 0.0
        %6278 = vmatpush2.msra.mxu0 0.0
        %6279 = vmatprep.subr.mxu0 0.0
        %6280 = vmatpush2.msra.mxu0 0.0
        %6281 = vmatprep.subr.mxu0 0.0
        %6282 = vmatpush2.msra.mxu0 0.0
        %6283 = vmatprep.subr.mxu0 0.0
        %6284 = vmatpush2.msra.mxu0 0.0
        %6285 = vmatprep.subr.mxu0 0.0
        %6286 = vmatpush2.msra.mxu0 0.0
        %6287 = vmatprep.mubr.f32.mxu0 0.0
        %6288 = vmatmul.mubr.f32.gmra.mxu0 %v6221
        %v6289 = vpop.f32.mrf.mxu0
        %v6290 = vadd.f32 %v639, %v6289
        %v6291 = vpop.f32.mrf.mxu0
        %6292 = vdwg.mxu0
        %vm6293 = vcmp.ge.f32.partialorder %v6290, 0.0
        %v6294 = vmul.f32 %v6290, 0.01
        %v6295 = vsel %vm6293, %v6290, %v6294
        %v6296 = vrot.slane %v3799, 7
        %v6298 = vrot.slane %v4215, 6
        %v6300 = vrot.slane %v4631, 5
        %v6302 = vrot.slane %v5047, 4
        %v6304 = vrot.slane %v5463, 3
        %v6306 = vrot.slane %v5879, 2
        %v6309 = vrot.slane %v6295, 1
        %vm6311 = vcmask 1040384
        %v6312 = vsel %vm6311, %v3383, %v6296
        %vm6313 = vcmask 1041408
        %v6314 = vsel %vm6313, %v6312, %v6298
        %vm6315 = vcmask 1042432
        %v6316 = vsel %vm6315, %v6314, %v6300
        %vm6317 = vcmask 1043456
        %v6318 = vsel %vm6317, %v6316, %v6302
        %vm6319 = vcmask 1044480
        %v6320 = vsel %vm6319, %v6318, %v6304
        %vm6321 = vcmask 1045504
        %v6322 = vsel %vm6321, %v6320, %v6306
        %vm6323 = vcmask 1046528
        %v6324 = vsel %vm6323, %v6322, %v6309
        %6325 = vst.msk [vmem:[%s634] sm:$0xff] %vm649, %v6324
        %s6326 = sand.u32 %s365, 1
        %s6327 = scalar_lea.sflag [#allocation4], %s6326
        %s6328 = sand.u32 %s365, 1
        %s6329 = smul.addr %s6328, 8
        %s6330 = scalar_lea.vmem [#allocation19], %s6329
        // Predicated region
        $region121: #{tpu_custom_call.1} parent=79 // pred_check
          %p6331 = pneg %p375
        $region122: #{tpu_custom_call.1} parent=79 // pred_check_branch
          %6333 = sbr.rel (%p6331) target = $region124
        $region123: #{tpu_custom_call.1} parent=79 // pred_region
          %s6335 = ssub.s32 128, 128
          %6336 = vsyncadd %s6327, %s6335
          %s6337 = smul.addr %s37, 128
          %s6338 = scalar_lea.hbm %s15, %s6337
          %s6340 = sshll.u32 %s6330, 4
          %s6341 = int_to_ptr.vmem [resolvable:$true] %s6340
          %6343 = dma.vmem_to_hbm [thread:$0]  %s6341, 128, %s6338, %s6327
        $region124: #{tpu_custom_call.1} parent=79 // pred_fallthru
          _
      $region80: #{tpu_custom_call.1} parent=5 // pred_fallthru
        _
      %p6344 = scmp.le.s32.totalorder 2, %s32
      // Predicated region
      $region125: #{tpu_custom_call.1} parent=5 // pred_check
        %p6345 = pneg %p6344
      $region126: #{tpu_custom_call.1} parent=5 // pred_check_branch
        %6347 = sbr.rel (%p6345) target = $region128
      $region127: #{tpu_custom_call.1} parent=5 // pred_region
        %s6348 = ssub.s32 %s32, 2
        // Predicated region
        $region129: #{tpu_custom_call.1} parent=127 // pred_check
          %p6349 = pneg %p381
        $region130: #{tpu_custom_call.1} parent=127 // pred_check_branch
          %6351 = sbr.rel (%p6349) target = $region132
        $region131: #{tpu_custom_call.1} parent=127 // pred_region
          %s6352 = sand.u32 %s366, 1
          %s6353 = scalar_lea.sflag [#allocation4], %s6352
          %s6354 = sand.u32 %s366, 1
          %s6355 = smul.addr %s6354, 8
          %s6356 = scalar_lea.vmem [#allocation19], %s6355
          %6357 = dma.done %s6353, 128
        $region132: #{tpu_custom_call.1} parent=127 // pred_fallthru
          _
      $region128: #{tpu_custom_call.1} parent=5 // pred_fallthru
        _
    $region6: #{tpu_custom_call.1} parent=1 // loop_footer
      %s36 = sadd.s32 1, %s32
    $region7: #{tpu_custom_call.1} parent=1 // loop_footer_branch
      %31 = sbr.rel target = $region3
    $region8: #{tpu_custom_call.1} parent=1 // loop_exit
      _
    %6358 = vsyncpa [#allocation3], 1
    %s6359 = scalar_lea.sflag [#allocation3], 1
    %6360 = vsyncpa %s6359, 1
    %6361 = vsyncpa [#allocation6], 1
    %6362 = vsyncpa [#allocation9], 1
    %6363 = vsyncpa [#allocation12], 1
    %6364 = vsyncpa [#allocation15], 1
    %6365 = vsyncpa [#allocation18], 1
    %6366 = vsyncpa [#allocation4], 1
    %s6367 = scalar_lea.sflag [#allocation4], 1
    %6368 = vsyncpa %s6367, 1

</llo_original>
